<compile_context>
chip_gen: v7x
topology: tpu7x:2x2x1
jax: 0.10.0
libtpu: 0.0.40
codegen_flags: <defaults>
</compile_context>

<pallas_src>
import functools

import jax
import jax.numpy as jnp
from jax import lax
from jax.experimental import pallas as pl
from jax.experimental.pallas import tpu as pltpu

EPS = 1e-5


# ---------------------------------------------------------------------------
# Kernel 1: fused [optional input BN+ReLU] -> 3x3 conv (MXU) -> per-channel
#           partial stats. One image (NHWC) per grid step.
# ---------------------------------------------------------------------------
def _conv3x3_kernel(x_ref, w_ref, b_ref, scale_ref, shift_ref,
                    y_ref, psum_ref, psq_ref, xpad_ref,
                    *, h, w, cin, cout, fuse_input_bn_relu):
    # x_ref:     (1, h, w, cin)   unpadded NHWC input tile
    # w_ref:     (9, cin, cout)   conv weights, VMEM, indexed by (dy*3+dx)
    # b_ref:     (1, cout)        bias
    # scale_ref: (1, 1, cin)      BN scale of previous stage (if fused)
    # shift_ref: (1, 1, cin)      BN shift of previous stage (if fused)
    # y_ref:     (1, h, w, cout)  conv output (pre-BN)
    # psum_ref:  (1, 1, cout)     per-image per-channel sum of y
    # psq_ref:   (1, 1, cout)     per-image per-channel sum of y^2
    # xpad_ref:  (h+2, w+2, cin)  VMEM scratch: spatially padded input
    x = x_ref[0]  # (h, w, cin)
    if fuse_input_bn_relu:
        # Stage-1 BN + ReLU applied on the fly; rides in free VPU slots.
        x = jnp.maximum(x * scale_ref[...] + shift_ref[...], 0.0)

    # In-kernel zero padding (halo must be zero *after* BN/ReLU).
    xpad_ref[...] = jnp.zeros((h + 2, w + 2, cin), jnp.float32)
    xpad_ref[1:h + 1, 1:w + 1, :] = x

    # 3x3 conv as 9 accumulating MXU matmuls: (h*w, cin) x (cin, cout).
    acc = jnp.zeros((h * w, cout), jnp.float32)
    for dy in range(3):
        for dx in range(3):
            patch = xpad_ref[dy:dy + h, dx:dx + w, :].reshape(h * w, cin)
            acc = acc + jnp.dot(patch, w_ref[dy * 3 + dx],
                                preferred_element_type=jnp.float32)
    acc = acc + b_ref[...]  # (1, cout) broadcast over sublanes

    y_ref[0] = acc.reshape(h, w, cout)
    # Per-channel partial stats (single sublane reduction over the whole slab).
    psum_ref[0] = jnp.sum(acc, axis=0, keepdims=True)
    psq_ref[0] = jnp.sum(acc * acc, axis=0, keepdims=True)


def conv3x3_fused(x_nhwc, weight_oihw, bias, in_scale=None, in_shift=None):
    """3x3 conv (padding=1) on an NHWC tensor; optionally applies BN+ReLU of
    the previous stage to the input inside the kernel. Returns the conv output
    (pre-BN) plus per-image per-channel (sum, sum of squares)."""
    n, h, w, cin = x_nhwc.shape
    cout = weight_oihw.shape[0]

    # OIHW -> (ky, kx, cin, cout) -> (9, cin, cout): row k = (dy*3+dx).
    wmat = jnp.transpose(weight_oihw, (2, 3, 1, 0)).reshape(9, cin, cout)
    wmat = wmat.astype(jnp.float32)
    b2d = bias.reshape(1, cout).astype(jnp.float32)

    fuse = in_scale is not None
    if not fuse:
        in_scale = jnp.ones((cin,), jnp.float32)
        in_shift = jnp.zeros((cin,), jnp.float32)
    scale3d = in_scale.reshape(1, 1, cin).astype(jnp.float32)
    shift3d = in_shift.reshape(1, 1, cin).astype(jnp.float32)

    kern = functools.partial(_conv3x3_kernel, h=h, w=w, cin=cin, cout=cout,
                             fuse_input_bn_relu=fuse)
    y, psum, psq = pl.pallas_call(
        kern,
        grid=(n,),
        in_specs=[
            pl.BlockSpec((1, h, w, cin), lambda i: (i, 0, 0, 0)),
            pl.BlockSpec((9, cin, cout), lambda i: (0, 0, 0)),  # resident VMEM
            pl.BlockSpec((1, cout), lambda i: (0, 0)),
            pl.BlockSpec((1, 1, cin), lambda i: (0, 0, 0)),
            pl.BlockSpec((1, 1, cin), lambda i: (0, 0, 0)),
        ],
        out_specs=[
            pl.BlockSpec((1, h, w, cout), lambda i: (i, 0, 0, 0)),
            pl.BlockSpec((1, 1, cout), lambda i: (i, 0, 0)),
            pl.BlockSpec((1, 1, cout), lambda i: (i, 0, 0)),
        ],
        out_shape=[
            jax.ShapeDtypeStruct((n, h, w, cout), jnp.float32),
            jax.ShapeDtypeStruct((n, 1, cout), jnp.float32),
            jax.ShapeDtypeStruct((n, 1, cout), jnp.float32),
        ],
        scratch_shapes=[pltpu.VMEM((h + 2, w + 2, cin), jnp.float32)],
        compiler_params=pltpu.CompilerParams(
            dimension_semantics=("parallel",)),  # per-image independent
    )(x_nhwc.astype(jnp.float32), wmat, b2d, scale3d, shift3d)
    return y, psum, psq


# ---------------------------------------------------------------------------
# Kernel 2: final BN affine + ReLU, elementwise on the channel-last flat view.
# ---------------------------------------------------------------------------
def _bn_relu_kernel(x_ref, scale_ref, shift_ref, o_ref):
    o_ref[...] = jnp.maximum(
        x_ref[...] * scale_ref[...] + shift_ref[...], 0.0)


def bn_relu(x_flat, scale, shift):
    # x_flat: (N, H*W, C) -- channel axis is the lane axis.
    n, hw, c = x_flat.shape
    return pl.pallas_call(
        _bn_relu_kernel,
        grid=(n,),
        in_specs=[
            pl.BlockSpec((1, hw, c), lambda i: (i, 0, 0)),
            pl.BlockSpec((1, 1, c), lambda i: (0, 0, 0)),
            pl.BlockSpec((1, 1, c), lambda i: (0, 0, 0)),
        ],
        out_specs=pl.BlockSpec((1, hw, c), lambda i: (i, 0, 0)),
        out_shape=jax.ShapeDtypeStruct((n, hw, c), jnp.float32),
        compiler_params=pltpu.CompilerParams(
            dimension_semantics=("parallel",)),
    )(x_flat.astype(jnp.float32),
      scale.reshape(1, 1, c).astype(jnp.float32),
      shift.reshape(1, 1, c).astype(jnp.float32))


# ---------------------------------------------------------------------------
# BN helpers (tiny XLA glue on per-channel vectors only).
# ---------------------------------------------------------------------------
def _finish_stats(psum, psq, count):
    s = jnp.sum(psum, axis=(0, 1))            # (C,)
    q = jnp.sum(psq, axis=(0, 1))             # (C,)
    mean = s / count
    var = jnp.maximum(q / count - mean * mean, 0.0)   # biased variance
    return mean, var


def _bn_scale_shift(mean, var, gamma, beta):
    scale = gamma / jnp.sqrt(var + EPS)
    shift = beta - mean * scale
    return scale, shift


# ---------------------------------------------------------------------------
# UNet_block forward: (Conv -> BN -> ReLU) x 2
# ---------------------------------------------------------------------------
def init_params(key, dim1, dim2):
    k1, k2, k3, k4 = jax.random.split(key, 4)
    return {
        "w1": jax.random.normal(k1, (dim2, dim1, 3, 3), jnp.float32) * 0.2,
        "b1": jax.random.normal(k2, (dim2,), jnp.float32) * 0.1,
        "g1": jnp.ones((dim2,), jnp.float32),    # BatchNorm2d default weight
        "be1": jnp.zeros((dim2,), jnp.float32),  # BatchNorm2d default bias
        "w2": jax.random.normal(k3, (dim2, dim2, 3, 3), jnp.float32) * 0.2,
        "b2": jax.random.normal(k4, (dim2,), jnp.float32) * 0.1,
        "g2": jnp.ones((dim2,), jnp.float32),
        "be2": jnp.zeros((dim2,), jnp.float32),
    }


def unet_block(x_nchw, p):
    n, _, h, w = x_nchw.shape
    count = n * h * w
    x = jnp.transpose(x_nchw, (0, 2, 3, 1))          # NCHW -> NHWC (once)

    # Stage 1: conv1 (+ fused stats). BN1/ReLU1 is NOT materialized in HBM --
    # it is applied on the fly inside the stage-2 conv kernel.
    y1, s1, q1 = conv3x3_fused(x, p["w1"], p["b1"])
    mean1, var1 = _finish_stats(s1, q1, count)
    scale1, shift1 = _bn_scale_shift(mean1, var1, p["g1"], p["be1"])

    # Stage 2: [BN1+ReLU1 fused on input] -> conv2 (+ fused stats).
    y2, s2, q2 = conv3x3_fused(y1, p["w2"], p["b2"],
                               in_scale=scale1, in_shift=shift1)
    mean2, var2 = _finish_stats(s2, q2, count)
    scale2, shift2 = _bn_scale_shift(mean2, var2, p["g2"], p["be2"])

    cout = y2.shape[-1]
    out = bn_relu(y2.reshape(n, h * w, cout), scale2, shift2)
    out = out.reshape(n, h, w, cout)
    return jnp.transpose(out, (0, 3, 1, 2))          # NHWC -> NCHW (once)


# Pure-JAX reference for correctness checking.
def _ref_forward(x, p):
    def conv(x, w, b):
        y = lax.conv_general_dilated(
            x, w, window_strides=(1, 1), padding="SAME",
            dimension_numbers=("NCHW", "OIHW", "NCHW"),
            precision=lax.Precision.HIGHEST)
        return y + b[None, :, None, None]

    def bn_relu_ref(x, g, b):
        mean = jnp.mean(x, axis=(0, 2, 3), keepdims=True)
        var = jnp.var(x, axis=(0, 2, 3), keepdims=True)
        xn = (x - mean) / jnp.sqrt(var + EPS)
        return jnp.maximum(xn * g[None, :, None, None] + b[None, :, None, None], 0.0)

    h = bn_relu_ref(conv(x, p["w1"], p["b1"]), p["g1"], p["be1"])
    h = bn_relu_ref(conv(h, p["w2"], p["b2"]), p["g2"], p["be2"])
    return h


if __name__ == "__main__":
    key = jax.random.PRNGKey(0)
    kx, kp = jax.random.split(key)
    dim1, dim2 = 4, 8
    x = jax.random.normal(kx, (2, dim1, 16, 16), jnp.float32)
    params = init_params(kp, dim1, dim2)

    fwd = jax.jit(unet_block)
    out = jax.block_until_ready(fwd(x, params))
    ref = jax.block_until_ready(_ref_forward(x, params))

    assert out.shape == (2, dim2, 16, 16), out.shape
    max_err = float(jnp.max(jnp.abs(out - ref)))
    # Slightly relaxed tolerance: MXU matmul + single-pass BN stats rounding.
    assert jnp.allclose(out, ref, rtol=1e-2, atol=1e-2), max_err
    print("KERNEL_OK")
</pallas_src>

<mosaic_0001>
module attributes {stable_mosaic.version = 11 : i64} {
  func.func @_conv3x3_kernel(%arg0: i32, %arg1: memref<1x16x16x4xf32, #tpu.memory_space<vmem>>, %arg2: memref<9x4x8xf32, #tpu.memory_space<vmem>>, %arg3: memref<1x8xf32, #tpu.memory_space<vmem>>, %arg4: memref<1x1x4xf32, #tpu.memory_space<vmem>>, %arg5: memref<1x1x4xf32, #tpu.memory_space<vmem>>, %arg6: memref<1x16x16x8xf32, #tpu.memory_space<vmem>>, %arg7: memref<1x1x8xf32, #tpu.memory_space<vmem>>, %arg8: memref<1x1x8xf32, #tpu.memory_space<vmem>>, %arg9: memref<18x18x4xf32, #tpu.memory_space<vmem>>) attributes {dimension_semantics = [#tpu.dimension_semantics<parallel>], iteration_bounds = array<i64: 2>, scalar_prefetch = 0 : i64, scratch_operands = 1 : i64, tpu.core_type = #tpu.core_type<tc>, window_params = [{transform_indices = @transform_0, window_bounds = array<i64: 1, 16, 16, 4>}, {pipeline_mode = #tpu.pipeline_mode<synchronous>, transform_indices = @transform_1, window_bounds = array<i64: 9, 4, 8>}, {pipeline_mode = #tpu.pipeline_mode<synchronous>, transform_indices = @transform_2, window_bounds = array<i64: 1, 8>}, {pipeline_mode = #tpu.pipeline_mode<synchronous>, transform_indices = @transform_3, window_bounds = array<i64: 1, 1, 4>}, {pipeline_mode = #tpu.pipeline_mode<synchronous>, transform_indices = @transform_4, window_bounds = array<i64: 1, 1, 4>}, {transform_indices = @transform_5, window_bounds = array<i64: 1, 16, 16, 8>}, {transform_indices = @transform_6, window_bounds = array<i64: 1, 1, 8>}, {transform_indices = @transform_7, window_bounds = array<i64: 1, 1, 8>}]} {
    %c0 = arith.constant 0 : index
    %c0_0 = arith.constant 0 : index
    %c0_1 = arith.constant 0 : index
    %c0_2 = arith.constant 0 : index
    %0 = vector.load %arg1[%c0, %c0_0, %c0_1, %c0_2] : memref<1x16x16x4xf32, #tpu.memory_space<vmem>>, vector<1x16x16x4xf32>
    %1 = vector.shape_cast %0 : vector<1x16x16x4xf32> to vector<16x16x4xf32>
    %cst = arith.constant 0.000000e+00 : f32
    %2 = vector.broadcast %cst : f32 to vector<18x18x4xf32>
    %c0_3 = arith.constant 0 : index
    %c0_4 = arith.constant 0 : index
    %c0_5 = arith.constant 0 : index
    %3 = vector.load %arg9[%c0_3, %c0_4, %c0_5] : memref<18x18x4xf32, #tpu.memory_space<vmem>>, vector<18x18x4xf32>
    tpu.vector_store %arg9[%c0_3, %c0_4, %c0_5], %2 {strides = array<i32>} : memref<18x18x4xf32, #tpu.memory_space<vmem>>, vector<18x18x4xf32>,
    %c1 = arith.constant 1 : index
    %c1_6 = arith.constant 1 : index
    %c0_7 = arith.constant 0 : index
    %4 = vector.load %arg9[%c1, %c1_6, %c0_7] : memref<18x18x4xf32, #tpu.memory_space<vmem>>, vector<16x16x4xf32>
    tpu.vector_store %arg9[%c1, %c1_6, %c0_7], %1 {strides = array<i32>} : memref<18x18x4xf32, #tpu.memory_space<vmem>>, vector<16x16x4xf32>,
    %cst_8 = arith.constant 0.000000e+00 : f32
    %5 = vector.broadcast %cst_8 : f32 to vector<256x8xf32>
    %c0_9 = arith.constant 0 : index
    %c0_10 = arith.constant 0 : index
    %c0_11 = arith.constant 0 : index
    %6 = vector.load %arg9[%c0_9, %c0_10, %c0_11] : memref<18x18x4xf32, #tpu.memory_space<vmem>>, vector<16x16x4xf32>
    %7 = vector.shape_cast %6 : vector<16x16x4xf32> to vector<256x4xf32>
    %c0_12 = arith.constant 0 : index
    %c0_13 = arith.constant 0 : index
    %c0_14 = arith.constant 0 : index
    %8 = vector.load %arg2[%c0_12, %c0_13, %c0_14] : memref<9x4x8xf32, #tpu.memory_space<vmem>>, vector<1x4x8xf32>
    %9 = vector.shape_cast %8 : vector<1x4x8xf32> to vector<4x8xf32>
    %cst_15 = arith.constant dense<0.000000e+00> : vector<256x8xf32>
    %10 = tpu.matmul %7, %9, %cst_15 {dimension_numbers = #tpu.dot_dimension_numbers<[1], [0], [0], [1], [0, 0, 1, 1], [], []>} : vector<256x4xf32>, vector<4x8xf32>, vector<256x8xf32> -> vector<256x8xf32>
    %11 = arith.addf %5, %10 : vector<256x8xf32>
    %c0_16 = arith.constant 0 : index
    %c1_17 = arith.constant 1 : index
    %c0_18 = arith.constant 0 : index
    %12 = vector.load %arg9[%c0_16, %c1_17, %c0_18] : memref<18x18x4xf32, #tpu.memory_space<vmem>>, vector<16x16x4xf32>
    %13 = vector.shape_cast %12 : vector<16x16x4xf32> to vector<256x4xf32>
    %c1_19 = arith.constant 1 : index
    %c0_20 = arith.constant 0 : index
    %c0_21 = arith.constant 0 : index
    %14 = vector.load %arg2[%c1_19, %c0_20, %c0_21] : memref<9x4x8xf32, #tpu.memory_space<vmem>>, vector<1x4x8xf32>
    %15 = vector.shape_cast %14 : vector<1x4x8xf32> to vector<4x8xf32>
    %cst_22 = arith.constant dense<0.000000e+00> : vector<256x8xf32>
    %16 = tpu.matmul %13, %15, %cst_22 {dimension_numbers = #tpu.dot_dimension_numbers<[1], [0], [0], [1], [0, 0, 1, 1], [], []>} : vector<256x4xf32>, vector<4x8xf32>, vector<256x8xf32> -> vector<256x8xf32>
    %17 = arith.addf %11, %16 : vector<256x8xf32>
    %c0_23 = arith.constant 0 : index
    %c2 = arith.constant 2 : index
    %c0_24 = arith.constant 0 : index
    %18 = vector.load %arg9[%c0_23, %c2, %c0_24] : memref<18x18x4xf32, #tpu.memory_space<vmem>>, vector<16x16x4xf32>
    %19 = vector.shape_cast %18 : vector<16x16x4xf32> to vector<256x4xf32>
    %c2_25 = arith.constant 2 : index
    %c0_26 = arith.constant 0 : index
    %c0_27 = arith.constant 0 : index
    %20 = vector.load %arg2[%c2_25, %c0_26, %c0_27] : memref<9x4x8xf32, #tpu.memory_space<vmem>>, vector<1x4x8xf32>
    %21 = vector.shape_cast %20 : vector<1x4x8xf32> to vector<4x8xf32>
    %cst_28 = arith.constant dense<0.000000e+00> : vector<256x8xf32>
    %22 = tpu.matmul %19, %21, %cst_28 {dimension_numbers = #tpu.dot_dimension_numbers<[1], [0], [0], [1], [0, 0, 1, 1], [], []>} : vector<256x4xf32>, vector<4x8xf32>, vector<256x8xf32> -> vector<256x8xf32>
    %23 = arith.addf %17, %22 : vector<256x8xf32>
    %c1_29 = arith.constant 1 : index
    %c0_30 = arith.constant 0 : index
    %c0_31 = arith.constant 0 : index
    %24 = vector.load %arg9[%c1_29, %c0_30, %c0_31] : memref<18x18x4xf32, #tpu.memory_space<vmem>>, vector<16x16x4xf32>
    %25 = vector.shape_cast %24 : vector<16x16x4xf32> to vector<256x4xf32>
    %c3 = arith.constant 3 : index
    %c0_32 = arith.constant 0 : index
    %c0_33 = arith.constant 0 : index
    %26 = vector.load %arg2[%c3, %c0_32, %c0_33] : memref<9x4x8xf32, #tpu.memory_space<vmem>>, vector<1x4x8xf32>
    %27 = vector.shape_cast %26 : vector<1x4x8xf32> to vector<4x8xf32>
    %cst_34 = arith.constant dense<0.000000e+00> : vector<256x8xf32>
    %28 = tpu.matmul %25, %27, %cst_34 {dimension_numbers = #tpu.dot_dimension_numbers<[1], [0], [0], [1], [0, 0, 1, 1], [], []>} : vector<256x4xf32>, vector<4x8xf32>, vector<256x8xf32> -> vector<256x8xf32>
    %29 = arith.addf %23, %28 : vector<256x8xf32>
    %c1_35 = arith.constant 1 : index
    %c1_36 = arith.constant 1 : index
    %c0_37 = arith.constant 0 : index
    %30 = vector.load %arg9[%c1_35, %c1_36, %c0_37] : memref<18x18x4xf32, #tpu.memory_space<vmem>>, vector<16x16x4xf32>
    %31 = vector.shape_cast %30 : vector<16x16x4xf32> to vector<256x4xf32>
    %c4 = arith.constant 4 : index
    %c0_38 = arith.constant 0 : index
    %c0_39 = arith.constant 0 : index
    %32 = vector.load %arg2[%c4, %c0_38, %c0_39] : memref<9x4x8xf32, #tpu.memory_space<vmem>>, vector<1x4x8xf32>
    %33 = vector.shape_cast %32 : vector<1x4x8xf32> to vector<4x8xf32>
    %cst_40 = arith.constant dense<0.000000e+00> : vector<256x8xf32>
    %34 = tpu.matmul %31, %33, %cst_40 {dimension_numbers = #tpu.dot_dimension_numbers<[1], [0], [0], [1], [0, 0, 1, 1], [], []>} : vector<256x4xf32>, vector<4x8xf32>, vector<256x8xf32> -> vector<256x8xf32>
    %35 = arith.addf %29, %34 : vector<256x8xf32>
    %c1_41 = arith.constant 1 : index
    %c2_42 = arith.constant 2 : index
    %c0_43 = arith.constant 0 : index
    %36 = vector.load %arg9[%c1_41, %c2_42, %c0_43] : memref<18x18x4xf32, #tpu.memory_space<vmem>>, vector<16x16x4xf32>
    %37 = vector.shape_cast %36 : vector<16x16x4xf32> to vector<256x4xf32>
    %c5 = arith.constant 5 : index
    %c0_44 = arith.constant 0 : index
    %c0_45 = arith.constant 0 : index
    %38 = vector.load %arg2[%c5, %c0_44, %c0_45] : memref<9x4x8xf32, #tpu.memory_space<vmem>>, vector<1x4x8xf32>
    %39 = vector.shape_cast %38 : vector<1x4x8xf32> to vector<4x8xf32>
    %cst_46 = arith.constant dense<0.000000e+00> : vector<256x8xf32>
    %40 = tpu.matmul %37, %39, %cst_46 {dimension_numbers = #tpu.dot_dimension_numbers<[1], [0], [0], [1], [0, 0, 1, 1], [], []>} : vector<256x4xf32>, vector<4x8xf32>, vector<256x8xf32> -> vector<256x8xf32>
    %41 = arith.addf %35, %40 : vector<256x8xf32>
    %c2_47 = arith.constant 2 : index
    %c0_48 = arith.constant 0 : index
    %c0_49 = arith.constant 0 : index
    %42 = vector.load %arg9[%c2_47, %c0_48, %c0_49] : memref<18x18x4xf32, #tpu.memory_space<vmem>>, vector<16x16x4xf32>
    %43 = vector.shape_cast %42 : vector<16x16x4xf32> to vector<256x4xf32>
    %c6 = arith.constant 6 : index
    %c0_50 = arith.constant 0 : index
    %c0_51 = arith.constant 0 : index
    %44 = vector.load %arg2[%c6, %c0_50, %c0_51] : memref<9x4x8xf32, #tpu.memory_space<vmem>>, vector<1x4x8xf32>
    %45 = vector.shape_cast %44 : vector<1x4x8xf32> to vector<4x8xf32>
    %cst_52 = arith.constant dense<0.000000e+00> : vector<256x8xf32>
    %46 = tpu.matmul %43, %45, %cst_52 {dimension_numbers = #tpu.dot_dimension_numbers<[1], [0], [0], [1], [0, 0, 1, 1], [], []>} : vector<256x4xf32>, vector<4x8xf32>, vector<256x8xf32> -> vector<256x8xf32>
    %47 = arith.addf %41, %46 : vector<256x8xf32>
    %c2_53 = arith.constant 2 : index
    %c1_54 = arith.constant 1 : index
    %c0_55 = arith.constant 0 : index
    %48 = vector.load %arg9[%c2_53, %c1_54, %c0_55] : memref<18x18x4xf32, #tpu.memory_space<vmem>>, vector<16x16x4xf32>
    %49 = vector.shape_cast %48 : vector<16x16x4xf32> to vector<256x4xf32>
    %c7 = arith.constant 7 : index
    %c0_56 = arith.constant 0 : index
    %c0_57 = arith.constant 0 : index
    %50 = vector.load %arg2[%c7, %c0_56, %c0_57] : memref<9x4x8xf32, #tpu.memory_space<vmem>>, vector<1x4x8xf32>
    %51 = vector.shape_cast %50 : vector<1x4x8xf32> to vector<4x8xf32>
    %cst_58 = arith.constant dense<0.000000e+00> : vector<256x8xf32>
    %52 = tpu.matmul %49, %51, %cst_58 {dimension_numbers = #tpu.dot_dimension_numbers<[1], [0], [0], [1], [0, 0, 1, 1], [], []>} : vector<256x4xf32>, vector<4x8xf32>, vector<256x8xf32> -> vector<256x8xf32>
    %53 = arith.addf %47, %52 : vector<256x8xf32>
    %c2_59 = arith.constant 2 : index
    %c2_60 = arith.constant 2 : index
    %c0_61 = arith.constant 0 : index
    %54 = vector.load %arg9[%c2_59, %c2_60, %c0_61] : memref<18x18x4xf32, #tpu.memory_space<vmem>>, vector<16x16x4xf32>
    %55 = vector.shape_cast %54 : vector<16x16x4xf32> to vector<256x4xf32>
    %c8 = arith.constant 8 : index
    %c0_62 = arith.constant 0 : index
    %c0_63 = arith.constant 0 : index
    %56 = vector.load %arg2[%c8, %c0_62, %c0_63] : memref<9x4x8xf32, #tpu.memory_space<vmem>>, vector<1x4x8xf32>
    %57 = vector.shape_cast %56 : vector<1x4x8xf32> to vector<4x8xf32>
    %cst_64 = arith.constant dense<0.000000e+00> : vector<256x8xf32>
    %58 = tpu.matmul %55, %57, %cst_64 {dimension_numbers = #tpu.dot_dimension_numbers<[1], [0], [0], [1], [0, 0, 1, 1], [], []>} : vector<256x4xf32>, vector<4x8xf32>, vector<256x8xf32> -> vector<256x8xf32>
    %59 = arith.addf %53, %58 : vector<256x8xf32>
    %c0_65 = arith.constant 0 : index
    %c0_66 = arith.constant 0 : index
    %60 = vector.load %arg3[%c0_65, %c0_66] : memref<1x8xf32, #tpu.memory_space<vmem>>, vector<1x8xf32>
    %61 = vector.broadcast %60 : vector<1x8xf32> to vector<256x8xf32>
    %62 = arith.addf %59, %61 : vector<256x8xf32>
    %63 = vector.shape_cast %62 : vector<256x8xf32> to vector<16x16x8xf32>
    %c0_67 = arith.constant 0 : index
    %c0_68 = arith.constant 0 : index
    %c0_69 = arith.constant 0 : index
    %c0_70 = arith.constant 0 : index
    %64 = vector.load %arg6[%c0_67, %c0_68, %c0_69, %c0_70] : memref<1x16x16x8xf32, #tpu.memory_space<vmem>>, vector<1x16x16x8xf32>
    %65 = vector.shape_cast %64 : vector<1x16x16x8xf32> to vector<16x16x8xf32>
    %66 = vector.shape_cast %63 : vector<16x16x8xf32> to vector<1x16x16x8xf32>
    tpu.vector_store %arg6[%c0_67, %c0_68, %c0_69, %c0_70], %66 {strides = array<i32>} : memref<1x16x16x8xf32, #tpu.memory_space<vmem>>, vector<1x16x16x8xf32>,
    %cst_71 = arith.constant dense<0.000000e+00> : vector<8xf32>
    %67 = vector.multi_reduction <add>, %62, %cst_71 [0] : vector<256x8xf32> to vector<8xf32>
    %68 = vector.shape_cast %67 : vector<8xf32> to vector<1x8xf32>
    %c0_72 = arith.constant 0 : index
    %c0_73 = arith.constant 0 : index
    %c0_74 = arith.constant 0 : index
    %69 = vector.load %arg7[%c0_72, %c0_73, %c0_74] : memref<1x1x8xf32, #tpu.memory_space<vmem>>, vector<1x1x8xf32>
    %70 = vector.shape_cast %69 : vector<1x1x8xf32> to vector<1x8xf32>
    %71 = vector.shape_cast %68 : vector<1x8xf32> to vector<1x1x8xf32>
    tpu.vector_store %arg7[%c0_72, %c0_73, %c0_74], %71 {strides = array<i32>} : memref<1x1x8xf32, #tpu.memory_space<vmem>>, vector<1x1x8xf32>,
    %72 = arith.mulf %62, %62 : vector<256x8xf32>
    %cst_75 = arith.constant dense<0.000000e+00> : vector<8xf32>
    %73 = vector.multi_reduction <add>, %72, %cst_75 [0] : vector<256x8xf32> to vector<8xf32>
    %74 = vector.shape_cast %73 : vector<8xf32> to vector<1x8xf32>
    %c0_76 = arith.constant 0 : index
    %c0_77 = arith.constant 0 : index
    %c0_78 = arith.constant 0 : index
    %75 = vector.load %arg8[%c0_76, %c0_77, %c0_78] : memref<1x1x8xf32, #tpu.memory_space<vmem>>, vector<1x1x8xf32>
    %76 = vector.shape_cast %75 : vector<1x1x8xf32> to vector<1x8xf32>
    %77 = vector.shape_cast %74 : vector<1x8xf32> to vector<1x1x8xf32>
    tpu.vector_store %arg8[%c0_76, %c0_77, %c0_78], %77 {strides = array<i32>} : memref<1x1x8xf32, #tpu.memory_space<vmem>>, vector<1x1x8xf32>,
    return
  }
  func.func @transform_0(%arg0: i32) -> (i32, i32, i32, i32) {
    %c0_i32 = arith.constant 0 : i32
    %c0_i32_0 = arith.constant 0 : i32
    %c0_i32_1 = arith.constant 0 : i32
    %c0_i32_2 = arith.constant 0 : i32
    return %arg0, %c0_i32, %c0_i32_0, %c0_i32_1 : i32, i32, i32, i32
  }
  func.func @transform_1(%arg0: i32) -> (i32, i32, i32) {
    %c0_i32 = arith.constant 0 : i32
    %c0_i32_0 = arith.constant 0 : i32
    %c0_i32_1 = arith.constant 0 : i32
    %c0_i32_2 = arith.constant 0 : i32
    return %c0_i32, %c0_i32_0, %c0_i32_1 : i32, i32, i32
  }
  func.func @transform_2(%arg0: i32) -> (i32, i32) {
    %c0_i32 = arith.constant 0 : i32
    %c0_i32_0 = arith.constant 0 : i32
    %c0_i32_1 = arith.constant 0 : i32
    return %c0_i32, %c0_i32_0 : i32, i32
  }
  func.func @transform_3(%arg0: i32) -> (i32, i32, i32) {
    %c0_i32 = arith.constant 0 : i32
    %c0_i32_0 = arith.constant 0 : i32
    %c0_i32_1 = arith.constant 0 : i32
    %c0_i32_2 = arith.constant 0 : i32
    return %c0_i32, %c0_i32_0, %c0_i32_1 : i32, i32, i32
  }
  func.func @transform_4(%arg0: i32) -> (i32, i32, i32) {
    %c0_i32 = arith.constant 0 : i32
    %c0_i32_0 = arith.constant 0 : i32
    %c0_i32_1 = arith.constant 0 : i32
    %c0_i32_2 = arith.constant 0 : i32
    return %c0_i32, %c0_i32_0, %c0_i32_1 : i32, i32, i32
  }
  func.func @transform_5(%arg0: i32) -> (i32, i32, i32, i32) {
    %c0_i32 = arith.constant 0 : i32
    %c0_i32_0 = arith.constant 0 : i32
    %c0_i32_1 = arith.constant 0 : i32
    %c0_i32_2 = arith.constant 0 : i32
    return %arg0, %c0_i32, %c0_i32_0, %c0_i32_1 : i32, i32, i32, i32
  }
  func.func @transform_6(%arg0: i32) -> (i32, i32, i32) {
    %c0_i32 = arith.constant 0 : i32
    %c0_i32_0 = arith.constant 0 : i32
    %c0_i32_1 = arith.constant 0 : i32
    return %arg0, %c0_i32, %c0_i32_0 : i32, i32, i32
  }
  func.func @transform_7(%arg0: i32) -> (i32, i32, i32) {
    %c0_i32 = arith.constant 0 : i32
    %c0_i32_0 = arith.constant 0 : i32
    %c0_i32_1 = arith.constant 0 : i32
    return %arg0, %c0_i32, %c0_i32_0 : i32, i32, i32
  }
}

module attributes {stable_mosaic.version = 11 : i64} {
  func.func @_conv3x3_kernel(%arg0: i32, %arg1: memref<1x16x16x8xf32, #tpu.memory_space<vmem>>, %arg2: memref<9x8x8xf32, #tpu.memory_space<vmem>>, %arg3: memref<1x8xf32, #tpu.memory_space<vmem>>, %arg4: memref<1x1x8xf32, #tpu.memory_space<vmem>>, %arg5: memref<1x1x8xf32, #tpu.memory_space<vmem>>, %arg6: memref<1x16x16x8xf32, #tpu.memory_space<vmem>>, %arg7: memref<1x1x8xf32, #tpu.memory_space<vmem>>, %arg8: memref<1x1x8xf32, #tpu.memory_space<vmem>>, %arg9: memref<18x18x8xf32, #tpu.memory_space<vmem>>) attributes {dimension_semantics = [#tpu.dimension_semantics<parallel>], iteration_bounds = array<i64: 2>, scalar_prefetch = 0 : i64, scratch_operands = 1 : i64, tpu.core_type = #tpu.core_type<tc>, window_params = [{transform_indices = @transform_0, window_bounds = array<i64: 1, 16, 16, 8>}, {pipeline_mode = #tpu.pipeline_mode<synchronous>, transform_indices = @transform_1, window_bounds = array<i64: 9, 8, 8>}, {pipeline_mode = #tpu.pipeline_mode<synchronous>, transform_indices = @transform_2, window_bounds = array<i64: 1, 8>}, {pipeline_mode = #tpu.pipeline_mode<synchronous>, transform_indices = @transform_3, window_bounds = array<i64: 1, 1, 8>}, {pipeline_mode = #tpu.pipeline_mode<synchronous>, transform_indices = @transform_4, window_bounds = array<i64: 1, 1, 8>}, {transform_indices = @transform_5, window_bounds = array<i64: 1, 16, 16, 8>}, {transform_indices = @transform_6, window_bounds = array<i64: 1, 1, 8>}, {transform_indices = @transform_7, window_bounds = array<i64: 1, 1, 8>}]} {
    %c0 = arith.constant 0 : index
    %c0_0 = arith.constant 0 : index
    %c0_1 = arith.constant 0 : index
    %c0_2 = arith.constant 0 : index
    %0 = vector.load %arg1[%c0, %c0_0, %c0_1, %c0_2] : memref<1x16x16x8xf32, #tpu.memory_space<vmem>>, vector<1x16x16x8xf32>
    %1 = vector.shape_cast %0 : vector<1x16x16x8xf32> to vector<16x16x8xf32>
    %c0_3 = arith.constant 0 : index
    %c0_4 = arith.constant 0 : index
    %c0_5 = arith.constant 0 : index
    %2 = vector.load %arg4[%c0_3, %c0_4, %c0_5] : memref<1x1x8xf32, #tpu.memory_space<vmem>>, vector<1x1x8xf32>
    %3 = vector.broadcast %2 : vector<1x1x8xf32> to vector<16x16x8xf32>
    %4 = arith.mulf %1, %3 : vector<16x16x8xf32>
    %c0_6 = arith.constant 0 : index
    %c0_7 = arith.constant 0 : index
    %c0_8 = arith.constant 0 : index
    %5 = vector.load %arg5[%c0_6, %c0_7, %c0_8] : memref<1x1x8xf32, #tpu.memory_space<vmem>>, vector<1x1x8xf32>
    %6 = vector.broadcast %5 : vector<1x1x8xf32> to vector<16x16x8xf32>
    %7 = arith.addf %4, %6 : vector<16x16x8xf32>
    %cst = arith.constant 0.000000e+00 : f32
    %8 = vector.broadcast %cst : f32 to vector<16x16x8xf32>
    %9 = arith.maximumf %7, %8 : vector<16x16x8xf32>
    %cst_9 = arith.constant 0.000000e+00 : f32
    %10 = vector.broadcast %cst_9 : f32 to vector<18x18x8xf32>
    %c0_10 = arith.constant 0 : index
    %c0_11 = arith.constant 0 : index
    %c0_12 = arith.constant 0 : index
    %11 = vector.load %arg9[%c0_10, %c0_11, %c0_12] : memref<18x18x8xf32, #tpu.memory_space<vmem>>, vector<18x18x8xf32>
    tpu.vector_store %arg9[%c0_10, %c0_11, %c0_12], %10 {strides = array<i32>} : memref<18x18x8xf32, #tpu.memory_space<vmem>>, vector<18x18x8xf32>,
    %c1 = arith.constant 1 : index
    %c1_13 = arith.constant 1 : index
    %c0_14 = arith.constant 0 : index
    %12 = vector.load %arg9[%c1, %c1_13, %c0_14] : memref<18x18x8xf32, #tpu.memory_space<vmem>>, vector<16x16x8xf32>
    tpu.vector_store %arg9[%c1, %c1_13, %c0_14], %9 {strides = array<i32>} : memref<18x18x8xf32, #tpu.memory_space<vmem>>, vector<16x16x8xf32>,
    %cst_15 = arith.constant 0.000000e+00 : f32
    %13 = vector.broadcast %cst_15 : f32 to vector<256x8xf32>
    %c0_16 = arith.constant 0 : index
    %c0_17 = arith.constant 0 : index
    %c0_18 = arith.constant 0 : index
    %14 = vector.load %arg9[%c0_16, %c0_17, %c0_18] : memref<18x18x8xf32, #tpu.memory_space<vmem>>, vector<16x16x8xf32>
    %15 = vector.shape_cast %14 : vector<16x16x8xf32> to vector<256x8xf32>
    %c0_19 = arith.constant 0 : index
    %c0_20 = arith.constant 0 : index
    %c0_21 = arith.constant 0 : index
    %16 = vector.load %arg2[%c0_19, %c0_20, %c0_21] : memref<9x8x8xf32, #tpu.memory_space<vmem>>, vector<1x8x8xf32>
    %17 = vector.shape_cast %16 : vector<1x8x8xf32> to vector<8x8xf32>
    %cst_22 = arith.constant dense<0.000000e+00> : vector<256x8xf32>
    %18 = tpu.matmul %15, %17, %cst_22 {dimension_numbers = #tpu.dot_dimension_numbers<[1], [0], [0], [1], [0, 0, 1, 1], [], []>} : vector<256x8xf32>, vector<8x8xf32>, vector<256x8xf32> -> vector<256x8xf32>
    %19 = arith.addf %13, %18 : vector<256x8xf32>
    %c0_23 = arith.constant 0 : index
    %c1_24 = arith.constant 1 : index
    %c0_25 = arith.constant 0 : index
    %20 = vector.load %arg9[%c0_23, %c1_24, %c0_25] : memref<18x18x8xf32, #tpu.memory_space<vmem>>, vector<16x16x8xf32>
    %21 = vector.shape_cast %20 : vector<16x16x8xf32> to vector<256x8xf32>
    %c1_26 = arith.constant 1 : index
    %c0_27 = arith.constant 0 : index
    %c0_28 = arith.constant 0 : index
    %22 = vector.load %arg2[%c1_26, %c0_27, %c0_28] : memref<9x8x8xf32, #tpu.memory_space<vmem>>, vector<1x8x8xf32>
    %23 = vector.shape_cast %22 : vector<1x8x8xf32> to vector<8x8xf32>
    %cst_29 = arith.constant dense<0.000000e+00> : vector<256x8xf32>
    %24 = tpu.matmul %21, %23, %cst_29 {dimension_numbers = #tpu.dot_dimension_numbers<[1], [0], [0], [1], [0, 0, 1, 1], [], []>} : vector<256x8xf32>, vector<8x8xf32>, vector<256x8xf32> -> vector<256x8xf32>
    %25 = arith.addf %19, %24 : vector<256x8xf32>
    %c0_30 = arith.constant 0 : index
    %c2 = arith.constant 2 : index
    %c0_31 = arith.constant 0 : index
    %26 = vector.load %arg9[%c0_30, %c2, %c0_31] : memref<18x18x8xf32, #tpu.memory_space<vmem>>, vector<16x16x8xf32>
    %27 = vector.shape_cast %26 : vector<16x16x8xf32> to vector<256x8xf32>
    %c2_32 = arith.constant 2 : index
    %c0_33 = arith.constant 0 : index
    %c0_34 = arith.constant 0 : index
    %28 = vector.load %arg2[%c2_32, %c0_33, %c0_34] : memref<9x8x8xf32, #tpu.memory_space<vmem>>, vector<1x8x8xf32>
    %29 = vector.shape_cast %28 : vector<1x8x8xf32> to vector<8x8xf32>
    %cst_35 = arith.constant dense<0.000000e+00> : vector<256x8xf32>
    %30 = tpu.matmul %27, %29, %cst_35 {dimension_numbers = #tpu.dot_dimension_numbers<[1], [0], [0], [1], [0, 0, 1, 1], [], []>} : vector<256x8xf32>, vector<8x8xf32>, vector<256x8xf32> -> vector<256x8xf32>
    %31 = arith.addf %25, %30 : vector<256x8xf32>
    %c1_36 = arith.constant 1 : index
    %c0_37 = arith.constant 0 : index
    %c0_38 = arith.constant 0 : index
    %32 = vector.load %arg9[%c1_36, %c0_37, %c0_38] : memref<18x18x8xf32, #tpu.memory_space<vmem>>, vector<16x16x8xf32>
    %33 = vector.shape_cast %32 : vector<16x16x8xf32> to vector<256x8xf32>
    %c3 = arith.constant 3 : index
    %c0_39 = arith.constant 0 : index
    %c0_40 = arith.constant 0 : index
    %34 = vector.load %arg2[%c3, %c0_39, %c0_40] : memref<9x8x8xf32, #tpu.memory_space<vmem>>, vector<1x8x8xf32>
    %35 = vector.shape_cast %34 : vector<1x8x8xf32> to vector<8x8xf32>
    %cst_41 = arith.constant dense<0.000000e+00> : vector<256x8xf32>
    %36 = tpu.matmul %33, %35, %cst_41 {dimension_numbers = #tpu.dot_dimension_numbers<[1], [0], [0], [1], [0, 0, 1, 1], [], []>} : vector<256x8xf32>, vector<8x8xf32>, vector<256x8xf32> -> vector<256x8xf32>
    %37 = arith.addf %31, %36 : vector<256x8xf32>
    %c1_42 = arith.constant 1 : index
    %c1_43 = arith.constant 1 : index
    %c0_44 = arith.constant 0 : index
    %38 = vector.load %arg9[%c1_42, %c1_43, %c0_44] : memref<18x18x8xf32, #tpu.memory_space<vmem>>, vector<16x16x8xf32>
    %39 = vector.shape_cast %38 : vector<16x16x8xf32> to vector<256x8xf32>
    %c4 = arith.constant 4 : index
    %c0_45 = arith.constant 0 : index
    %c0_46 = arith.constant 0 : index
    %40 = vector.load %arg2[%c4, %c0_45, %c0_46] : memref<9x8x8xf32, #tpu.memory_space<vmem>>, vector<1x8x8xf32>
    %41 = vector.shape_cast %40 : vector<1x8x8xf32> to vector<8x8xf32>
    %cst_47 = arith.constant dense<0.000000e+00> : vector<256x8xf32>
    %42 = tpu.matmul %39, %41, %cst_47 {dimension_numbers = #tpu.dot_dimension_numbers<[1], [0], [0], [1], [0, 0, 1, 1], [], []>} : vector<256x8xf32>, vector<8x8xf32>, vector<256x8xf32> -> vector<256x8xf32>
    %43 = arith.addf %37, %42 : vector<256x8xf32>
    %c1_48 = arith.constant 1 : index
    %c2_49 = arith.constant 2 : index
    %c0_50 = arith.constant 0 : index
    %44 = vector.load %arg9[%c1_48, %c2_49, %c0_50] : memref<18x18x8xf32, #tpu.memory_space<vmem>>, vector<16x16x8xf32>
    %45 = vector.shape_cast %44 : vector<16x16x8xf32> to vector<256x8xf32>
    %c5 = arith.constant 5 : index
    %c0_51 = arith.constant 0 : index
    %c0_52 = arith.constant 0 : index
    %46 = vector.load %arg2[%c5, %c0_51, %c0_52] : memref<9x8x8xf32, #tpu.memory_space<vmem>>, vector<1x8x8xf32>
    %47 = vector.shape_cast %46 : vector<1x8x8xf32> to vector<8x8xf32>
    %cst_53 = arith.constant dense<0.000000e+00> : vector<256x8xf32>
    %48 = tpu.matmul %45, %47, %cst_53 {dimension_numbers = #tpu.dot_dimension_numbers<[1], [0], [0], [1], [0, 0, 1, 1], [], []>} : vector<256x8xf32>, vector<8x8xf32>, vector<256x8xf32> -> vector<256x8xf32>
    %49 = arith.addf %43, %48 : vector<256x8xf32>
    %c2_54 = arith.constant 2 : index
    %c0_55 = arith.constant 0 : index
    %c0_56 = arith.constant 0 : index
    %50 = vector.load %arg9[%c2_54, %c0_55, %c0_56] : memref<18x18x8xf32, #tpu.memory_space<vmem>>, vector<16x16x8xf32>
    %51 = vector.shape_cast %50 : vector<16x16x8xf32> to vector<256x8xf32>
    %c6 = arith.constant 6 : index
    %c0_57 = arith.constant 0 : index
    %c0_58 = arith.constant 0 : index
    %52 = vector.load %arg2[%c6, %c0_57, %c0_58] : memref<9x8x8xf32, #tpu.memory_space<vmem>>, vector<1x8x8xf32>
    %53 = vector.shape_cast %52 : vector<1x8x8xf32> to vector<8x8xf32>
    %cst_59 = arith.constant dense<0.000000e+00> : vector<256x8xf32>
    %54 = tpu.matmul %51, %53, %cst_59 {dimension_numbers = #tpu.dot_dimension_numbers<[1], [0], [0], [1], [0, 0, 1, 1], [], []>} : vector<256x8xf32>, vector<8x8xf32>, vector<256x8xf32> -> vector<256x8xf32>
    %55 = arith.addf %49, %54 : vector<256x8xf32>
    %c2_60 = arith.constant 2 : index
    %c1_61 = arith.constant 1 : index
    %c0_62 = arith.constant 0 : index
    %56 = vector.load %arg9[%c2_60, %c1_61, %c0_62] : memref<18x18x8xf32, #tpu.memory_space<vmem>>, vector<16x16x8xf32>
    %57 = vector.shape_cast %56 : vector<16x16x8xf32> to vector<256x8xf32>
    %c7 = arith.constant 7 : index
    %c0_63 = arith.constant 0 : index
    %c0_64 = arith.constant 0 : index
    %58 = vector.load %arg2[%c7, %c0_63, %c0_64] : memref<9x8x8xf32, #tpu.memory_space<vmem>>, vector<1x8x8xf32>
    %59 = vector.shape_cast %58 : vector<1x8x8xf32> to vector<8x8xf32>
    %cst_65 = arith.constant dense<0.000000e+00> : vector<256x8xf32>
    %60 = tpu.matmul %57, %59, %cst_65 {dimension_numbers = #tpu.dot_dimension_numbers<[1], [0], [0], [1], [0, 0, 1, 1], [], []>} : vector<256x8xf32>, vector<8x8xf32>, vector<256x8xf32> -> vector<256x8xf32>
    %61 = arith.addf %55, %60 : vector<256x8xf32>
    %c2_66 = arith.constant 2 : index
    %c2_67 = arith.constant 2 : index
    %c0_68 = arith.constant 0 : index
    %62 = vector.load %arg9[%c2_66, %c2_67, %c0_68] : memref<18x18x8xf32, #tpu.memory_space<vmem>>, vector<16x16x8xf32>
    %63 = vector.shape_cast %62 : vector<16x16x8xf32> to vector<256x8xf32>
    %c8 = arith.constant 8 : index
    %c0_69 = arith.constant 0 : index
    %c0_70 = arith.constant 0 : index
    %64 = vector.load %arg2[%c8, %c0_69, %c0_70] : memref<9x8x8xf32, #tpu.memory_space<vmem>>, vector<1x8x8xf32>
    %65 = vector.shape_cast %64 : vector<1x8x8xf32> to vector<8x8xf32>
    %cst_71 = arith.constant dense<0.000000e+00> : vector<256x8xf32>
    %66 = tpu.matmul %63, %65, %cst_71 {dimension_numbers = #tpu.dot_dimension_numbers<[1], [0], [0], [1], [0, 0, 1, 1], [], []>} : vector<256x8xf32>, vector<8x8xf32>, vector<256x8xf32> -> vector<256x8xf32>
    %67 = arith.addf %61, %66 : vector<256x8xf32>
    %c0_72 = arith.constant 0 : index
    %c0_73 = arith.constant 0 : index
    %68 = vector.load %arg3[%c0_72, %c0_73] : memref<1x8xf32, #tpu.memory_space<vmem>>, vector<1x8xf32>
    %69 = vector.broadcast %68 : vector<1x8xf32> to vector<256x8xf32>
    %70 = arith.addf %67, %69 : vector<256x8xf32>
    %71 = vector.shape_cast %70 : vector<256x8xf32> to vector<16x16x8xf32>
    %c0_74 = arith.constant 0 : index
    %c0_75 = arith.constant 0 : index
    %c0_76 = arith.constant 0 : index
    %c0_77 = arith.constant 0 : index
    %72 = vector.load %arg6[%c0_74, %c0_75, %c0_76, %c0_77] : memref<1x16x16x8xf32, #tpu.memory_space<vmem>>, vector<1x16x16x8xf32>
    %73 = vector.shape_cast %72 : vector<1x16x16x8xf32> to vector<16x16x8xf32>
    %74 = vector.shape_cast %71 : vector<16x16x8xf32> to vector<1x16x16x8xf32>
    tpu.vector_store %arg6[%c0_74, %c0_75, %c0_76, %c0_77], %74 {strides = array<i32>} : memref<1x16x16x8xf32, #tpu.memory_space<vmem>>, vector<1x16x16x8xf32>,
    %cst_78 = arith.constant dense<0.000000e+00> : vector<8xf32>
    %75 = vector.multi_reduction <add>, %70, %cst_78 [0] : vector<256x8xf32> to vector<8xf32>
    %76 = vector.shape_cast %75 : vector<8xf32> to vector<1x8xf32>
    %c0_79 = arith.constant 0 : index
    %c0_80 = arith.constant 0 : index
    %c0_81 = arith.constant 0 : index
    %77 = vector.load %arg7[%c0_79, %c0_80, %c0_81] : memref<1x1x8xf32, #tpu.memory_space<vmem>>, vector<1x1x8xf32>
    %78 = vector.shape_cast %77 : vector<1x1x8xf32> to vector<1x8xf32>
    %79 = vector.shape_cast %76 : vector<1x8xf32> to vector<1x1x8xf32>
    tpu.vector_store %arg7[%c0_79, %c0_80, %c0_81], %79 {strides = array<i32>} : memref<1x1x8xf32, #tpu.memory_space<vmem>>, vector<1x1x8xf32>,
    %80 = arith.mulf %70, %70 : vector<256x8xf32>
    %cst_82 = arith.constant dense<0.000000e+00> : vector<8xf32>
    %81 = vector.multi_reduction <add>, %80, %cst_82 [0] : vector<256x8xf32> to vector<8xf32>
    %82 = vector.shape_cast %81 : vector<8xf32> to vector<1x8xf32>
    %c0_83 = arith.constant 0 : index
    %c0_84 = arith.constant 0 : index
    %c0_85 = arith.constant 0 : index
    %83 = vector.load %arg8[%c0_83, %c0_84, %c0_85] : memref<1x1x8xf32, #tpu.memory_space<vmem>>, vector<1x1x8xf32>
    %84 = vector.shape_cast %83 : vector<1x1x8xf32> to vector<1x8xf32>
    %85 = vector.shape_cast %82 : vector<1x8xf32> to vector<1x1x8xf32>
    tpu.vector_store %arg8[%c0_83, %c0_84, %c0_85], %85 {strides = array<i32>} : memref<1x1x8xf32, #tpu.memory_space<vmem>>, vector<1x1x8xf32>,
    return
  }
  func.func @transform_0(%arg0: i32) -> (i32, i32, i32, i32) {
    %c0_i32 = arith.constant 0 : i32
    %c0_i32_0 = arith.constant 0 : i32
    %c0_i32_1 = arith.constant 0 : i32
    %c0_i32_2 = arith.constant 0 : i32
    return %arg0, %c0_i32, %c0_i32_0, %c0_i32_1 : i32, i32, i32, i32
  }
  func.func @transform_1(%arg0: i32) -> (i32, i32, i32) {
    %c0_i32 = arith.constant 0 : i32
    %c0_i32_0 = arith.constant 0 : i32
    %c0_i32_1 = arith.constant 0 : i32
    %c0_i32_2 = arith.constant 0 : i32
    return %c0_i32, %c0_i32_0, %c0_i32_1 : i32, i32, i32
  }
  func.func @transform_2(%arg0: i32) -> (i32, i32) {
    %c0_i32 = arith.constant 0 : i32
    %c0_i32_0 = arith.constant 0 : i32
    %c0_i32_1 = arith.constant 0 : i32
    return %c0_i32, %c0_i32_0 : i32, i32
  }
  func.func @transform_3(%arg0: i32) -> (i32, i32, i32) {
    %c0_i32 = arith.constant 0 : i32
    %c0_i32_0 = arith.constant 0 : i32
    %c0_i32_1 = arith.constant 0 : i32
    %c0_i32_2 = arith.constant 0 : i32
    return %c0_i32, %c0_i32_0, %c0_i32_1 : i32, i32, i32
  }
  func.func @transform_4(%arg0: i32) -> (i32, i32, i32) {
    %c0_i32 = arith.constant 0 : i32
    %c0_i32_0 = arith.constant 0 : i32
    %c0_i32_1 = arith.constant 0 : i32
    %c0_i32_2 = arith.constant 0 : i32
    return %c0_i32, %c0_i32_0, %c0_i32_1 : i32, i32, i32
  }
  func.func @transform_5(%arg0: i32) -> (i32, i32, i32, i32) {
    %c0_i32 = arith.constant 0 : i32
    %c0_i32_0 = arith.constant 0 : i32
    %c0_i32_1 = arith.constant 0 : i32
    %c0_i32_2 = arith.constant 0 : i32
    return %arg0, %c0_i32, %c0_i32_0, %c0_i32_1 : i32, i32, i32, i32
  }
  func.func @transform_6(%arg0: i32) -> (i32, i32, i32) {
    %c0_i32 = arith.constant 0 : i32
    %c0_i32_0 = arith.constant 0 : i32
    %c0_i32_1 = arith.constant 0 : i32
    return %arg0, %c0_i32, %c0_i32_0 : i32, i32, i32
  }
  func.func @transform_7(%arg0: i32) -> (i32, i32, i32) {
    %c0_i32 = arith.constant 0 : i32
    %c0_i32_0 = arith.constant 0 : i32
    %c0_i32_1 = arith.constant 0 : i32
    return %arg0, %c0_i32, %c0_i32_0 : i32, i32, i32
  }
}

module attributes {stable_mosaic.version = 11 : i64} {
  func.func @_bn_relu_kernel(%arg0: i32, %arg1: memref<1x256x8xf32, #tpu.memory_space<vmem>>, %arg2: memref<1x1x8xf32, #tpu.memory_space<vmem>>, %arg3: memref<1x1x8xf32, #tpu.memory_space<vmem>>, %arg4: memref<1x256x8xf32, #tpu.memory_space<vmem>>) attributes {dimension_semantics = [#tpu.dimension_semantics<parallel>], iteration_bounds = array<i64: 2>, scalar_prefetch = 0 : i64, scratch_operands = 0 : i64, tpu.core_type = #tpu.core_type<tc>, window_params = [{transform_indices = @transform_0, window_bounds = array<i64: 1, 256, 8>}, {pipeline_mode = #tpu.pipeline_mode<synchronous>, transform_indices = @transform_1, window_bounds = array<i64: 1, 1, 8>}, {pipeline_mode = #tpu.pipeline_mode<synchronous>, transform_indices = @transform_2, window_bounds = array<i64: 1, 1, 8>}, {transform_indices = @transform_3, window_bounds = array<i64: 1, 256, 8>}]} {
    %c0 = arith.constant 0 : index
    %c0_0 = arith.constant 0 : index
    %c0_1 = arith.constant 0 : index
    %0 = vector.load %arg1[%c0, %c0_0, %c0_1] : memref<1x256x8xf32, #tpu.memory_space<vmem>>, vector<1x256x8xf32>
    %c0_2 = arith.constant 0 : index
    %c0_3 = arith.constant 0 : index
    %c0_4 = arith.constant 0 : index
    %1 = vector.load %arg2[%c0_2, %c0_3, %c0_4] : memref<1x1x8xf32, #tpu.memory_space<vmem>>, vector<1x1x8xf32>
    %2 = vector.broadcast %1 : vector<1x1x8xf32> to vector<1x256x8xf32>
    %3 = arith.mulf %0, %2 : vector<1x256x8xf32>
    %c0_5 = arith.constant 0 : index
    %c0_6 = arith.constant 0 : index
    %c0_7 = arith.constant 0 : index
    %4 = vector.load %arg3[%c0_5, %c0_6, %c0_7] : memref<1x1x8xf32, #tpu.memory_space<vmem>>, vector<1x1x8xf32>
    %5 = vector.broadcast %4 : vector<1x1x8xf32> to vector<1x256x8xf32>
    %6 = arith.addf %3, %5 : vector<1x256x8xf32>
    %cst = arith.constant 0.000000e+00 : f32
    %7 = vector.broadcast %cst : f32 to vector<1x256x8xf32>
    %8 = arith.maximumf %6, %7 : vector<1x256x8xf32>
    %c0_8 = arith.constant 0 : index
    %c0_9 = arith.constant 0 : index
    %c0_10 = arith.constant 0 : index
    %9 = vector.load %arg4[%c0_8, %c0_9, %c0_10] : memref<1x256x8xf32, #tpu.memory_space<vmem>>, vector<1x256x8xf32>
    tpu.vector_store %arg4[%c0_8, %c0_9, %c0_10], %8 {strides = array<i32>} : memref<1x256x8xf32, #tpu.memory_space<vmem>>, vector<1x256x8xf32>,
    return
  }
  func.func @transform_0(%arg0: i32) -> (i32, i32, i32) {
    %c0_i32 = arith.constant 0 : i32
    %c0_i32_0 = arith.constant 0 : i32
    %c0_i32_1 = arith.constant 0 : i32
    return %arg0, %c0_i32, %c0_i32_0 : i32, i32, i32
  }
  func.func @transform_1(%arg0: i32) -> (i32, i32, i32) {
    %c0_i32 = arith.constant 0 : i32
    %c0_i32_0 = arith.constant 0 : i32
    %c0_i32_1 = arith.constant 0 : i32
    %c0_i32_2 = arith.constant 0 : i32
    return %c0_i32, %c0_i32_0, %c0_i32_1 : i32, i32, i32
  }
  func.func @transform_2(%arg0: i32) -> (i32, i32, i32) {
    %c0_i32 = arith.constant 0 : i32
    %c0_i32_0 = arith.constant 0 : i32
    %c0_i32_1 = arith.constant 0 : i32
    %c0_i32_2 = arith.constant 0 : i32
    return %c0_i32, %c0_i32_0, %c0_i32_1 : i32, i32, i32
  }
  func.func @transform_3(%arg0: i32) -> (i32, i32, i32) {
    %c0_i32 = arith.constant 0 : i32
    %c0_i32_0 = arith.constant 0 : i32
    %c0_i32_1 = arith.constant 0 : i32
    return %arg0, %c0_i32, %c0_i32_0 : i32, i32, i32
  }
}

</mosaic_0001>

<llo_original>
// kernel: unet_block.5
$region0: #{unet_block.5}
  #allocation0 [shape = 'u32[]', space=smem, size = 0x4, offset = 0x4, fixed_abs, tag = 'smem constant byte address 0x4 - core index']
  #allocation1 [shape = 'u32[144,128]{1,0:T(1,128)}', space=vmem, size = 0x12000, scoped, tag = 'internal scratch']
  %s0 = inlined_call_operand.vmem [shape: f32[2,256,8], index: 0, kind: input, shape index: {}]
  %s1 = inlined_call_operand.vmem [shape: f32[1,1,8], index: 1, kind: input, shape index: {}]
  %s2 = inlined_call_operand.vmem [shape: f32[1,1,8], index: 2, kind: input, shape index: {}]
  %s3 = inlined_call_operand.vmem [shape: f32[2,256,8], index: 3, kind: output, shape index: {}]
  %s4 = sld [smem:[#allocation0]]
  $region45: #{unet_block.5} parent=0
    _
  %s6 = ssub.s32 1, %s4
  %s7 = scalar_select 0, %s6, %s4
  loop: start=0, step=1, limit=4
  $region2: #{unet_block.5} parent=0 // loop_pre_header
    _
  $region3: #{unet_block.5} parent=0 // loop_header
    %s9 = sphi 0, %s13
    %p10 = scmp.ge.s32.totalorder %s9, 4
    %s19 = sphi 0, %s21
    %s22 = sphi 0, %s19
    %s23 = sphi 0, %s22
    %s39 = sphi 0, %s23
    %s43 = sphi 0, %s43
    %s45 = sphi 0, %s43
    %s46 = sphi 0, %s45
    %s60 = sphi 0, %s46
    %s64 = sphi 0, %s64
    %s66 = sphi 0, %s64
    %s67 = sphi 0, %s66
    %s81 = sphi 0, %s67
    %s87 = sphi 0, %s89
    %s90 = sphi 0, %s87
    %s91 = sphi 0, %s90
    %s107 = sphi 0, %s91
  $region4: #{unet_block.5} parent=0 // loop_header_branch
    %12 = sbr.rel (%p10) target = $region8
  $region5: #{unet_block.5} parent=0 // loop_body
    %s14 = ssub.s32 %s9, 1
    %s15 = ssub.s32 %s9, 2
    %s16 = sadd.s32 %s9, 1
    %s17 = ssub.s32 %s9, %s16
    %p18 = scmp.eq.s32.totalorder %s17, 0
    %s20 = sadd.s32 %s19, 1
    %s21 = scalar_select %p18, %s19, %s20
    %p24 = pneg %p18
    %p25 = scmp.eq.s32.totalorder %s9, 1
    %p26 = por %p24, %p25
    %p27 = scmp.ne.s32.totalorder %s19, %s22
    %p28 = scmp.eq.s32.totalorder %s9, 0
    %p29 = por %p27, %p28
    %p30 = scmp.ne.s32.totalorder %s19, %s22
    %p31 = scmp.eq.s32.totalorder %s14, 1
    %p32 = por %p30, %p31
    %p33 = scmp.ne.s32.totalorder %s22, %s23
    %p34 = scmp.eq.s32.totalorder %s14, 0
    %p35 = por %p33, %p34
    %p36 = scmp.ne.s32.totalorder %s22, %s23
    %p37 = scmp.eq.s32.totalorder %s15, 1
    %p38 = por %p36, %p37
    %p40 = scmp.ne.s32.totalorder %s23, %s39
    %p41 = scmp.eq.s32.totalorder %s15, 0
    %p42 = por %p40, %p41
    %s44 = sadd.s32 %s43, 1
    %p47 = scmp.eq.s32.totalorder %s9, 1
    %p48 = scmp.ne.s32.totalorder %s43, %s45
    %p49 = scmp.eq.s32.totalorder %s9, 0
    %p50 = por %p48, %p49
    %p51 = scmp.ne.s32.totalorder %s43, %s45
    %p52 = scmp.eq.s32.totalorder %s14, 1
    %p53 = por %p51, %p52
    %p54 = scmp.ne.s32.totalorder %s45, %s46
    %p55 = scmp.eq.s32.totalorder %s14, 0
    %p56 = por %p54, %p55
    %p57 = scmp.ne.s32.totalorder %s45, %s46
    %p58 = scmp.eq.s32.totalorder %s15, 1
    %p59 = por %p57, %p58
    %p61 = scmp.ne.s32.totalorder %s46, %s60
    %p62 = scmp.eq.s32.totalorder %s15, 0
    %p63 = por %p61, %p62
    %s65 = sadd.s32 %s64, 1
    %p68 = scmp.eq.s32.totalorder %s9, 1
    %p69 = scmp.ne.s32.totalorder %s64, %s66
    %p70 = scmp.eq.s32.totalorder %s9, 0
    %p71 = por %p69, %p70
    %p72 = scmp.ne.s32.totalorder %s64, %s66
    %p73 = scmp.eq.s32.totalorder %s14, 1
    %p74 = por %p72, %p73
    %p75 = scmp.ne.s32.totalorder %s66, %s67
    %p76 = scmp.eq.s32.totalorder %s14, 0
    %p77 = por %p75, %p76
    %p78 = scmp.ne.s32.totalorder %s66, %s67
    %p79 = scmp.eq.s32.totalorder %s15, 1
    %p80 = por %p78, %p79
    %p82 = scmp.ne.s32.totalorder %s67, %s81
    %p83 = scmp.eq.s32.totalorder %s15, 0
    %p84 = por %p82, %p83
    %s85 = ssub.s32 %s9, %s16
    %p86 = scmp.eq.s32.totalorder %s85, 0
    %s88 = sadd.s32 %s87, 1
    %s89 = scalar_select %p86, %s87, %s88
    %p92 = pneg %p86
    %p93 = scmp.eq.s32.totalorder %s9, 1
    %p94 = por %p92, %p93
    %p95 = scmp.ne.s32.totalorder %s87, %s90
    %p96 = scmp.eq.s32.totalorder %s9, 0
    %p97 = por %p95, %p96
    %p98 = scmp.ne.s32.totalorder %s87, %s90
    %p99 = scmp.eq.s32.totalorder %s14, 1
    %p100 = por %p98, %p99
    %p101 = scmp.ne.s32.totalorder %s90, %s91
    %p102 = scmp.eq.s32.totalorder %s14, 0
    %p103 = por %p101, %p102
    %p104 = scmp.ne.s32.totalorder %s90, %s91
    %p105 = scmp.eq.s32.totalorder %s15, 1
    %p106 = por %p104, %p105
    %p108 = scmp.ne.s32.totalorder %s91, %s107
    %p109 = scmp.eq.s32.totalorder %s15, 0
    %p110 = por %p108, %p109
    %p111 = scmp.le.s32.totalorder 1, %s9
    %p112 = scmp.lt.s32.totalorder %s9, 3
    %p113 = pnand %p111, %p112
    %p114 = pneg %p113
    // Predicated region
    $region9: #{unet_block.5} parent=5 // pred_check
      _
    $region10: #{unet_block.5} parent=5 // pred_check_branch
      %116 = sbr.rel (%p113) target = $region12
    $region11: #{unet_block.5} parent=5 // pred_region
      %s117 = ssub.s32 %s9, 1
      // Predicated region
      $region13: #{unet_block.5} parent=11 // pred_check
        %p118 = pneg %p56
      $region14: #{unet_block.5} parent=11 // pred_check_branch
        %120 = sbr.rel (%p118) target = $region16
      $region15: #{unet_block.5} parent=11 // pred_region
        _
      $region16: #{unet_block.5} parent=11 // pred_fallthru
        _
      // Predicated region
      $region17: #{unet_block.5} parent=11 // pred_check
        %p121 = pneg %p77
      $region18: #{unet_block.5} parent=11 // pred_check_branch
        %123 = sbr.rel (%p121) target = $region20
      $region19: #{unet_block.5} parent=11 // pred_region
        _
      $region20: #{unet_block.5} parent=11 // pred_fallthru
        _
    $region12: #{unet_block.5} parent=5 // pred_fallthru
      _
    %p124 = scmp.lt.s32.totalorder %s9, 2
    // Predicated region
    $region21: #{unet_block.5} parent=5 // pred_check
      %p125 = pneg %p124
    $region22: #{unet_block.5} parent=5 // pred_check_branch
      %127 = sbr.rel (%p125) target = $region24
    $region23: #{unet_block.5} parent=5 // pred_region
      // Predicated region
      $region25: #{unet_block.5} parent=23 // pred_check
        %p128 = pneg %p29
      $region26: #{unet_block.5} parent=23 // pred_check_branch
        %130 = sbr.rel (%p128) target = $region28
      $region27: #{unet_block.5} parent=23 // pred_region
        %p131 = scmp.lt.s32.totalorder %s9, 1
        %s132 = scalar_select %p131, %s9, 1
        %s133 = smul.addr %s132, 32
        %s134 = smul.addr %s133, 8
        %s135 = scalar_lea.vmem %s0, %s134
      $region28: #{unet_block.5} parent=23 // pred_fallthru
        _
    $region24: #{unet_block.5} parent=5 // pred_fallthru
      _
    %p136 = scmp.le.s32.totalorder 1, %s9
    %p137 = scmp.lt.s32.totalorder %s9, 3
    %p138 = pnand %p136, %p137
    %p139 = pneg %p138
    // Predicated region
    $region29: #{unet_block.5} parent=5 // pred_check
      _
    $region30: #{unet_block.5} parent=5 // pred_check_branch
      %141 = sbr.rel (%p138) target = $region32
    $region31: #{unet_block.5} parent=5 // pred_region
      %s142 = ssub.s32 %s9, 1
      %p143 = scmp.lt.s32.totalorder %s14, 1
      %s144 = scalar_select %p143, %s14, 1
      %s145 = smul.addr %s144, 32
      %s146 = smul.addr %s145, 8
      %s147 = scalar_lea.vmem %s0, %s146
      %p148 = pneg %p35
      %p149 = pneg %p32
      %p150 = pneg %p56
      %p151 = pneg %p53
      %p152 = pneg %p77
      %p153 = pneg %p74
      %p154 = pneg %p103
      %p155 = pneg %p100
      %p156 = scmp.lt.s32.totalorder %s14, 1
      %s157 = scalar_select %p156, %s14, 1
      %s158 = smul.addr %s157, 32
      %s159 = smul.addr %s158, 8
      %s160 = scalar_lea.vmem %s3, %s159
      %p161 = scmp.lt.s32.totalorder %s14, 1
      %s162 = scalar_select %p161, %s14, 1
      %s163 = smul.addr %s162, 32
      %s164 = smul.addr %s163, 8
      %s165 = scalar_lea.vmem %s0, %s164
      %p166 = scmp.lt.s32.totalorder %s14, 1
      %s167 = scalar_select %p166, %s14, 1
      %s168 = smul.addr %s167, 32
      %s169 = smul.addr %s168, 8
      %s170 = scalar_lea.vmem %s3, %s169
      %v171 = vld [vmem:[%s165] sm:$0xff]
      %v172 = vld [vmem:[%s165 + $0x8] sm:$0xff]
      %v173 = vld [vmem:[%s165 + $0x10] sm:$0xff]
      %v174 = vld [vmem:[%s165 + $0x18] sm:$0xff]
      %v175 = vld [vmem:[%s165 + $0x20] sm:$0xff]
      %v176 = vld [vmem:[%s165 + $0x28] sm:$0xff]
      %v177 = vld [vmem:[%s165 + $0x30] sm:$0xff]
      %v178 = vld [vmem:[%s165 + $0x38] sm:$0xff]
      %v179 = vld [vmem:[%s165 + $0x40] sm:$0xff]
      %v180 = vld [vmem:[%s165 + $0x48] sm:$0xff]
      %v181 = vld [vmem:[%s165 + $0x50] sm:$0xff]
      %v182 = vld [vmem:[%s165 + $0x58] sm:$0xff]
      %v183 = vld [vmem:[%s165 + $0x60] sm:$0xff]
      %v184 = vld [vmem:[%s165 + $0x68] sm:$0xff]
      %v185 = vld [vmem:[%s165 + $0x70] sm:$0xff]
      %v186 = vld [vmem:[%s165 + $0x78] sm:$0xff]
      %v187 = vld [vmem:[%s165 + $0x80] sm:$0xff]
      %v188 = vld [vmem:[%s165 + $0x88] sm:$0xff]
      %v189 = vld [vmem:[%s165 + $0x90] sm:$0xff]
      %v190 = vld [vmem:[%s165 + $0x98] sm:$0xff]
      %v191 = vld [vmem:[%s165 + $0xa0] sm:$0xff]
      %v192 = vld [vmem:[%s165 + $0xa8] sm:$0xff]
      %v193 = vld [vmem:[%s165 + $0xb0] sm:$0xff]
      %v194 = vld [vmem:[%s165 + $0xb8] sm:$0xff]
      %v195 = vld [vmem:[%s165 + $0xc0] sm:$0xff]
      %v196 = vld [vmem:[%s165 + $0xc8] sm:$0xff]
      %v197 = vld [vmem:[%s165 + $0xd0] sm:$0xff]
      %v198 = vld [vmem:[%s165 + $0xd8] sm:$0xff]
      %v199 = vld [vmem:[%s165 + $0xe0] sm:$0xff]
      %v200 = vld [vmem:[%s165 + $0xe8] sm:$0xff]
      %v201 = vld [vmem:[%s165 + $0xf0] sm:$0xff]
      %v202 = vld [vmem:[%s165 + $0xf8] sm:$0xff]
      %v203 = vld [vmem:[%s1] sm:$0x1]
      %v205 = vlaneseq
      %v206 = vshrl.u32 %v205, 7
      %v207 = vsub.s32 0, %v206
      %v208 = vrot.slane %v203, %v207
      %v210 = vmul.f32 %v171, %v208
      %v211 = vmul.f32 %v172, %v208
      %v212 = vmul.f32 %v173, %v208
      %v213 = vmul.f32 %v174, %v208
      %v214 = vmul.f32 %v175, %v208
      %v215 = vmul.f32 %v176, %v208
      %v216 = vmul.f32 %v177, %v208
      %v217 = vmul.f32 %v178, %v208
      %v218 = vmul.f32 %v179, %v208
      %v219 = vmul.f32 %v180, %v208
      %v220 = vmul.f32 %v181, %v208
      %v221 = vmul.f32 %v182, %v208
      %v222 = vmul.f32 %v183, %v208
      %v223 = vmul.f32 %v184, %v208
      %v224 = vmul.f32 %v185, %v208
      %v225 = vmul.f32 %v186, %v208
      %v226 = vmul.f32 %v187, %v208
      %v227 = vmul.f32 %v188, %v208
      %v228 = vmul.f32 %v189, %v208
      %v229 = vmul.f32 %v190, %v208
      %v230 = vmul.f32 %v191, %v208
      %v231 = vmul.f32 %v192, %v208
      %v232 = vmul.f32 %v193, %v208
      %v233 = vmul.f32 %v194, %v208
      %v234 = vmul.f32 %v195, %v208
      %v235 = vmul.f32 %v196, %v208
      %v236 = vmul.f32 %v197, %v208
      %v237 = vmul.f32 %v198, %v208
      %v238 = vmul.f32 %v199, %v208
      %v239 = vmul.f32 %v200, %v208
      %v240 = vmul.f32 %v201, %v208
      %v241 = vmul.f32 %v202, %v208
      %v242 = vld [vmem:[%s2] sm:$0x1]
      %v244 = vlaneseq
      %v245 = vshrl.u32 %v244, 7
      %v246 = vsub.s32 0, %v245
      %v247 = vrot.slane %v242, %v246
      %v249 = vadd.f32 %v210, %v247
      %v250 = vadd.f32 %v211, %v247
      %v251 = vadd.f32 %v212, %v247
      %v252 = vadd.f32 %v213, %v247
      %v253 = vadd.f32 %v214, %v247
      %v254 = vadd.f32 %v215, %v247
      %v255 = vadd.f32 %v216, %v247
      %v256 = vadd.f32 %v217, %v247
      %v257 = vadd.f32 %v218, %v247
      %v258 = vadd.f32 %v219, %v247
      %v259 = vadd.f32 %v220, %v247
      %v260 = vadd.f32 %v221, %v247
      %v261 = vadd.f32 %v222, %v247
      %v262 = vadd.f32 %v223, %v247
      %v263 = vadd.f32 %v224, %v247
      %v264 = vadd.f32 %v225, %v247
      %v265 = vadd.f32 %v226, %v247
      %v266 = vadd.f32 %v227, %v247
      %v267 = vadd.f32 %v228, %v247
      %v268 = vadd.f32 %v229, %v247
      %v269 = vadd.f32 %v230, %v247
      %v270 = vadd.f32 %v231, %v247
      %v271 = vadd.f32 %v232, %v247
      %v272 = vadd.f32 %v233, %v247
      %v273 = vadd.f32 %v234, %v247
      %v274 = vadd.f32 %v235, %v247
      %v275 = vadd.f32 %v236, %v247
      %v276 = vadd.f32 %v237, %v247
      %v277 = vadd.f32 %v238, %v247
      %v278 = vadd.f32 %v239, %v247
      %v279 = vadd.f32 %v240, %v247
      %v280 = vadd.f32 %v241, %v247
      %v281 = vmax.f32 %v249, 0.0
      %v282 = vmax.f32 %v250, 0.0
      %v283 = vmax.f32 %v251, 0.0
      %v284 = vmax.f32 %v252, 0.0
      %v285 = vmax.f32 %v253, 0.0
      %v286 = vmax.f32 %v254, 0.0
      %v287 = vmax.f32 %v255, 0.0
      %v288 = vmax.f32 %v256, 0.0
      %v289 = vmax.f32 %v257, 0.0
      %v290 = vmax.f32 %v258, 0.0
      %v291 = vmax.f32 %v259, 0.0
      %v292 = vmax.f32 %v260, 0.0
      %v293 = vmax.f32 %v261, 0.0
      %v294 = vmax.f32 %v262, 0.0
      %v295 = vmax.f32 %v263, 0.0
      %v296 = vmax.f32 %v264, 0.0
      %v297 = vmax.f32 %v265, 0.0
      %v298 = vmax.f32 %v266, 0.0
      %v299 = vmax.f32 %v267, 0.0
      %v300 = vmax.f32 %v268, 0.0
      %v301 = vmax.f32 %v269, 0.0
      %v302 = vmax.f32 %v270, 0.0
      %v303 = vmax.f32 %v271, 0.0
      %v304 = vmax.f32 %v272, 0.0
      %v305 = vmax.f32 %v273, 0.0
      %v306 = vmax.f32 %v274, 0.0
      %v307 = vmax.f32 %v275, 0.0
      %v308 = vmax.f32 %v276, 0.0
      %v309 = vmax.f32 %v277, 0.0
      %v310 = vmax.f32 %v278, 0.0
      %v311 = vmax.f32 %v279, 0.0
      %v312 = vmax.f32 %v280, 0.0
      %vm313 = vcmask 64512
      %314 = vst.msk [vmem:[%s170] sm:$0xff] %vm313, %v281
      %315 = vst.msk [vmem:[%s170 + $0x8] sm:$0xff] %vm313, %v282
      %316 = vst.msk [vmem:[%s170 + $0x10] sm:$0xff] %vm313, %v283
      %317 = vst.msk [vmem:[%s170 + $0x18] sm:$0xff] %vm313, %v284
      %318 = vst.msk [vmem:[%s170 + $0x20] sm:$0xff] %vm313, %v285
      %319 = vst.msk [vmem:[%s170 + $0x28] sm:$0xff] %vm313, %v286
      %320 = vst.msk [vmem:[%s170 + $0x30] sm:$0xff] %vm313, %v287
      %321 = vst.msk [vmem:[%s170 + $0x38] sm:$0xff] %vm313, %v288
      %322 = vst.msk [vmem:[%s170 + $0x40] sm:$0xff] %vm313, %v289
      %323 = vst.msk [vmem:[%s170 + $0x48] sm:$0xff] %vm313, %v290
      %324 = vst.msk [vmem:[%s170 + $0x50] sm:$0xff] %vm313, %v291
      %325 = vst.msk [vmem:[%s170 + $0x58] sm:$0xff] %vm313, %v292
      %326 = vst.msk [vmem:[%s170 + $0x60] sm:$0xff] %vm313, %v293
      %327 = vst.msk [vmem:[%s170 + $0x68] sm:$0xff] %vm313, %v294
      %328 = vst.msk [vmem:[%s170 + $0x70] sm:$0xff] %vm313, %v295
      %329 = vst.msk [vmem:[%s170 + $0x78] sm:$0xff] %vm313, %v296
      %330 = vst.msk [vmem:[%s170 + $0x80] sm:$0xff] %vm313, %v297
      %331 = vst.msk [vmem:[%s170 + $0x88] sm:$0xff] %vm313, %v298
      %332 = vst.msk [vmem:[%s170 + $0x90] sm:$0xff] %vm313, %v299
      %333 = vst.msk [vmem:[%s170 + $0x98] sm:$0xff] %vm313, %v300
      %334 = vst.msk [vmem:[%s170 + $0xa0] sm:$0xff] %vm313, %v301
      %335 = vst.msk [vmem:[%s170 + $0xa8] sm:$0xff] %vm313, %v302
      %336 = vst.msk [vmem:[%s170 + $0xb0] sm:$0xff] %vm313, %v303
      %337 = vst.msk [vmem:[%s170 + $0xb8] sm:$0xff] %vm313, %v304
      %338 = vst.msk [vmem:[%s170 + $0xc0] sm:$0xff] %vm313, %v305
      %339 = vst.msk [vmem:[%s170 + $0xc8] sm:$0xff] %vm313, %v306
      %340 = vst.msk [vmem:[%s170 + $0xd0] sm:$0xff] %vm313, %v307
      %341 = vst.msk [vmem:[%s170 + $0xd8] sm:$0xff] %vm313, %v308
      %342 = vst.msk [vmem:[%s170 + $0xe0] sm:$0xff] %vm313, %v309
      %343 = vst.msk [vmem:[%s170 + $0xe8] sm:$0xff] %vm313, %v310
      %344 = vst.msk [vmem:[%s170 + $0xf0] sm:$0xff] %vm313, %v311
      %345 = vst.msk [vmem:[%s170 + $0xf8] sm:$0xff] %vm313, %v312
      %p346 = scmp.lt.s32.totalorder %s14, 1
      %s347 = scalar_select %p346, %s14, 1
      %s348 = smul.addr %s347, 32
      %s349 = smul.addr %s348, 8
      %s350 = scalar_lea.vmem %s3, %s349
      // Predicated region
      $region33: #{unet_block.5} parent=31 // pred_check
        %p351 = pneg %p100
      $region34: #{unet_block.5} parent=31 // pred_check_branch
        %353 = sbr.rel (%p351) target = $region36
      $region35: #{unet_block.5} parent=31 // pred_region
        _
      $region36: #{unet_block.5} parent=31 // pred_fallthru
        _
    $region32: #{unet_block.5} parent=5 // pred_fallthru
      _
    %p354 = scmp.le.s32.totalorder 2, %s9
    // Predicated region
    $region37: #{unet_block.5} parent=5 // pred_check
      %p355 = pneg %p354
    $region38: #{unet_block.5} parent=5 // pred_check_branch
      %357 = sbr.rel (%p355) target = $region40
    $region39: #{unet_block.5} parent=5 // pred_region
      %s358 = ssub.s32 %s9, 2
      // Predicated region
      $region41: #{unet_block.5} parent=39 // pred_check
        %p359 = pneg %p106
      $region42: #{unet_block.5} parent=39 // pred_check_branch
        %361 = sbr.rel (%p359) target = $region44
      $region43: #{unet_block.5} parent=39 // pred_region
        %p362 = scmp.lt.s32.totalorder %s15, 1
        %s363 = scalar_select %p362, %s15, 1
        %s364 = smul.addr %s363, 32
        %s365 = smul.addr %s364, 8
        %s366 = scalar_lea.vmem %s3, %s365
      $region44: #{unet_block.5} parent=39 // pred_fallthru
        _
    $region40: #{unet_block.5} parent=5 // pred_fallthru
      _
  $region6: #{unet_block.5} parent=0 // loop_footer
    %s13 = sadd.s32 1, %s9
  $region7: #{unet_block.5} parent=0 // loop_footer_branch
    %8 = sbr.rel target = $region3
  $region8: #{unet_block.5} parent=0 // loop_exit
    _

// kernel: unet_block.3
$region0: #{unet_block.3}
  #allocation0 [shape = 'u32[]', space=smem, size = 0x4, offset = 0x4, fixed_abs, tag = 'smem constant byte address 0x4 - core index']
  #allocation1 [shape = 'u32[144,128]{1,0:T(1,128)}', space=vmem, size = 0x12000, scoped, tag = 'internal scratch']
  #allocation2 [shape = 'f32[18,18,4]{2,1,0:T(8,128)}', space=vmem, size = 0x36000, scoped, tag = 'scratch operand']
  %s0 = inlined_call_operand.vmem [shape: f32[2,16,16,4], index: 0, kind: input, shape index: {}]
  %s1 = inlined_call_operand.vmem [shape: f32[9,4,8], index: 1, kind: input, shape index: {}]
  %s2 = inlined_call_operand.vmem [shape: f32[1,8], index: 2, kind: input, shape index: {}]
  %s3 = inlined_call_operand.vmem [shape: f32[1,1,4], index: 3, kind: input, shape index: {}]
  %s4 = inlined_call_operand.vmem [shape: f32[1,1,4], index: 4, kind: input, shape index: {}]
  %s5 = inlined_call_operand.vmem [shape: f32[2,16,16,8], index: 5, kind: output, shape index: {0}]
  %s6 = inlined_call_operand.vmem [shape: f32[2,1,8], index: 6, kind: output, shape index: {1}]
  %s7 = inlined_call_operand.vmem [shape: f32[2,1,8], index: 7, kind: output, shape index: {2}]
  %8 = xla_tuple %s5, %s6, %s7
  %s9 = sld [smem:[#allocation0]]
  $region69: #{unet_block.3} parent=0
    _
  %s11 = ssub.s32 1, %s9
  %s12 = scalar_select 0, %s11, %s9
  loop: start=0, step=1, limit=4
  $region2: #{unet_block.3} parent=0 // loop_pre_header
    _
  $region3: #{unet_block.3} parent=0 // loop_header
    %s14 = sphi 0, %s18
    %p15 = scmp.ge.s32.totalorder %s14, 4
    %s24 = sphi 0, %s26
    %s27 = sphi 0, %s24
    %s28 = sphi 0, %s27
    %s44 = sphi 0, %s28
    %s48 = sphi 0, %s48
    %s50 = sphi 0, %s48
    %s51 = sphi 0, %s50
    %s65 = sphi 0, %s51
    %s69 = sphi 0, %s69
    %s71 = sphi 0, %s69
    %s72 = sphi 0, %s71
    %s86 = sphi 0, %s72
    %s90 = sphi 0, %s90
    %s92 = sphi 0, %s90
    %s93 = sphi 0, %s92
    %s107 = sphi 0, %s93
    %s111 = sphi 0, %s111
    %s113 = sphi 0, %s111
    %s114 = sphi 0, %s113
    %s128 = sphi 0, %s114
    %s134 = sphi 0, %s136
    %s137 = sphi 0, %s134
    %s138 = sphi 0, %s137
    %s154 = sphi 0, %s138
    %s160 = sphi 0, %s162
    %s163 = sphi 0, %s160
    %s164 = sphi 0, %s163
    %s180 = sphi 0, %s164
    %s186 = sphi 0, %s188
    %s189 = sphi 0, %s186
    %s190 = sphi 0, %s189
    %s206 = sphi 0, %s190
  $region4: #{unet_block.3} parent=0 // loop_header_branch
    %17 = sbr.rel (%p15) target = $region8
  $region5: #{unet_block.3} parent=0 // loop_body
    %s19 = ssub.s32 %s14, 1
    %s20 = ssub.s32 %s14, 2
    %s21 = sadd.s32 %s14, 1
    %s22 = ssub.s32 %s14, %s21
    %p23 = scmp.eq.s32.totalorder %s22, 0
    %s25 = sadd.s32 %s24, 1
    %s26 = scalar_select %p23, %s24, %s25
    %p29 = pneg %p23
    %p30 = scmp.eq.s32.totalorder %s14, 1
    %p31 = por %p29, %p30
    %p32 = scmp.ne.s32.totalorder %s24, %s27
    %p33 = scmp.eq.s32.totalorder %s14, 0
    %p34 = por %p32, %p33
    %p35 = scmp.ne.s32.totalorder %s24, %s27
    %p36 = scmp.eq.s32.totalorder %s19, 1
    %p37 = por %p35, %p36
    %p38 = scmp.ne.s32.totalorder %s27, %s28
    %p39 = scmp.eq.s32.totalorder %s19, 0
    %p40 = por %p38, %p39
    %p41 = scmp.ne.s32.totalorder %s27, %s28
    %p42 = scmp.eq.s32.totalorder %s20, 1
    %p43 = por %p41, %p42
    %p45 = scmp.ne.s32.totalorder %s28, %s44
    %p46 = scmp.eq.s32.totalorder %s20, 0
    %p47 = por %p45, %p46
    %s49 = sadd.s32 %s48, 1
    %p52 = scmp.eq.s32.totalorder %s14, 1
    %p53 = scmp.ne.s32.totalorder %s48, %s50
    %p54 = scmp.eq.s32.totalorder %s14, 0
    %p55 = por %p53, %p54
    %p56 = scmp.ne.s32.totalorder %s48, %s50
    %p57 = scmp.eq.s32.totalorder %s19, 1
    %p58 = por %p56, %p57
    %p59 = scmp.ne.s32.totalorder %s50, %s51
    %p60 = scmp.eq.s32.totalorder %s19, 0
    %p61 = por %p59, %p60
    %p62 = scmp.ne.s32.totalorder %s50, %s51
    %p63 = scmp.eq.s32.totalorder %s20, 1
    %p64 = por %p62, %p63
    %p66 = scmp.ne.s32.totalorder %s51, %s65
    %p67 = scmp.eq.s32.totalorder %s20, 0
    %p68 = por %p66, %p67
    %s70 = sadd.s32 %s69, 1
    %p73 = scmp.eq.s32.totalorder %s14, 1
    %p74 = scmp.ne.s32.totalorder %s69, %s71
    %p75 = scmp.eq.s32.totalorder %s14, 0
    %p76 = por %p74, %p75
    %p77 = scmp.ne.s32.totalorder %s69, %s71
    %p78 = scmp.eq.s32.totalorder %s19, 1
    %p79 = por %p77, %p78
    %p80 = scmp.ne.s32.totalorder %s71, %s72
    %p81 = scmp.eq.s32.totalorder %s19, 0
    %p82 = por %p80, %p81
    %p83 = scmp.ne.s32.totalorder %s71, %s72
    %p84 = scmp.eq.s32.totalorder %s20, 1
    %p85 = por %p83, %p84
    %p87 = scmp.ne.s32.totalorder %s72, %s86
    %p88 = scmp.eq.s32.totalorder %s20, 0
    %p89 = por %p87, %p88
    %s91 = sadd.s32 %s90, 1
    %p94 = scmp.eq.s32.totalorder %s14, 1
    %p95 = scmp.ne.s32.totalorder %s90, %s92
    %p96 = scmp.eq.s32.totalorder %s14, 0
    %p97 = por %p95, %p96
    %p98 = scmp.ne.s32.totalorder %s90, %s92
    %p99 = scmp.eq.s32.totalorder %s19, 1
    %p100 = por %p98, %p99
    %p101 = scmp.ne.s32.totalorder %s92, %s93
    %p102 = scmp.eq.s32.totalorder %s19, 0
    %p103 = por %p101, %p102
    %p104 = scmp.ne.s32.totalorder %s92, %s93
    %p105 = scmp.eq.s32.totalorder %s20, 1
    %p106 = por %p104, %p105
    %p108 = scmp.ne.s32.totalorder %s93, %s107
    %p109 = scmp.eq.s32.totalorder %s20, 0
    %p110 = por %p108, %p109
    %s112 = sadd.s32 %s111, 1
    %p115 = scmp.eq.s32.totalorder %s14, 1
    %p116 = scmp.ne.s32.totalorder %s111, %s113
    %p117 = scmp.eq.s32.totalorder %s14, 0
    %p118 = por %p116, %p117
    %p119 = scmp.ne.s32.totalorder %s111, %s113
    %p120 = scmp.eq.s32.totalorder %s19, 1
    %p121 = por %p119, %p120
    %p122 = scmp.ne.s32.totalorder %s113, %s114
    %p123 = scmp.eq.s32.totalorder %s19, 0
    %p124 = por %p122, %p123
    %p125 = scmp.ne.s32.totalorder %s113, %s114
    %p126 = scmp.eq.s32.totalorder %s20, 1
    %p127 = por %p125, %p126
    %p129 = scmp.ne.s32.totalorder %s114, %s128
    %p130 = scmp.eq.s32.totalorder %s20, 0
    %p131 = por %p129, %p130
    %s132 = ssub.s32 %s14, %s21
    %p133 = scmp.eq.s32.totalorder %s132, 0
    %s135 = sadd.s32 %s134, 1
    %s136 = scalar_select %p133, %s134, %s135
    %p139 = pneg %p133
    %p140 = scmp.eq.s32.totalorder %s14, 1
    %p141 = por %p139, %p140
    %p142 = scmp.ne.s32.totalorder %s134, %s137
    %p143 = scmp.eq.s32.totalorder %s14, 0
    %p144 = por %p142, %p143
    %p145 = scmp.ne.s32.totalorder %s134, %s137
    %p146 = scmp.eq.s32.totalorder %s19, 1
    %p147 = por %p145, %p146
    %p148 = scmp.ne.s32.totalorder %s137, %s138
    %p149 = scmp.eq.s32.totalorder %s19, 0
    %p150 = por %p148, %p149
    %p151 = scmp.ne.s32.totalorder %s137, %s138
    %p152 = scmp.eq.s32.totalorder %s20, 1
    %p153 = por %p151, %p152
    %p155 = scmp.ne.s32.totalorder %s138, %s154
    %p156 = scmp.eq.s32.totalorder %s20, 0
    %p157 = por %p155, %p156
    %s158 = ssub.s32 %s14, %s21
    %p159 = scmp.eq.s32.totalorder %s158, 0
    %s161 = sadd.s32 %s160, 1
    %s162 = scalar_select %p159, %s160, %s161
    %p165 = pneg %p159
    %p166 = scmp.eq.s32.totalorder %s14, 1
    %p167 = por %p165, %p166
    %p168 = scmp.ne.s32.totalorder %s160, %s163
    %p169 = scmp.eq.s32.totalorder %s14, 0
    %p170 = por %p168, %p169
    %p171 = scmp.ne.s32.totalorder %s160, %s163
    %p172 = scmp.eq.s32.totalorder %s19, 1
    %p173 = por %p171, %p172
    %p174 = scmp.ne.s32.totalorder %s163, %s164
    %p175 = scmp.eq.s32.totalorder %s19, 0
    %p176 = por %p174, %p175
    %p177 = scmp.ne.s32.totalorder %s163, %s164
    %p178 = scmp.eq.s32.totalorder %s20, 1
    %p179 = por %p177, %p178
    %p181 = scmp.ne.s32.totalorder %s164, %s180
    %p182 = scmp.eq.s32.totalorder %s20, 0
    %p183 = por %p181, %p182
    %s184 = ssub.s32 %s14, %s21
    %p185 = scmp.eq.s32.totalorder %s184, 0
    %s187 = sadd.s32 %s186, 1
    %s188 = scalar_select %p185, %s186, %s187
    %p191 = pneg %p185
    %p192 = scmp.eq.s32.totalorder %s14, 1
    %p193 = por %p191, %p192
    %p194 = scmp.ne.s32.totalorder %s186, %s189
    %p195 = scmp.eq.s32.totalorder %s14, 0
    %p196 = por %p194, %p195
    %p197 = scmp.ne.s32.totalorder %s186, %s189
    %p198 = scmp.eq.s32.totalorder %s19, 1
    %p199 = por %p197, %p198
    %p200 = scmp.ne.s32.totalorder %s189, %s190
    %p201 = scmp.eq.s32.totalorder %s19, 0
    %p202 = por %p200, %p201
    %p203 = scmp.ne.s32.totalorder %s189, %s190
    %p204 = scmp.eq.s32.totalorder %s20, 1
    %p205 = por %p203, %p204
    %p207 = scmp.ne.s32.totalorder %s190, %s206
    %p208 = scmp.eq.s32.totalorder %s20, 0
    %p209 = por %p207, %p208
    %p210 = scmp.le.s32.totalorder 1, %s14
    %p211 = scmp.lt.s32.totalorder %s14, 3
    %p212 = pnand %p210, %p211
    %p213 = pneg %p212
    // Predicated region
    $region9: #{unet_block.3} parent=5 // pred_check
      _
    $region10: #{unet_block.3} parent=5 // pred_check_branch
      %215 = sbr.rel (%p212) target = $region12
    $region11: #{unet_block.3} parent=5 // pred_region
      %s216 = ssub.s32 %s14, 1
      // Predicated region
      $region13: #{unet_block.3} parent=11 // pred_check
        %p217 = pneg %p61
      $region14: #{unet_block.3} parent=11 // pred_check_branch
        %219 = sbr.rel (%p217) target = $region16
      $region15: #{unet_block.3} parent=11 // pred_region
        _
      $region16: #{unet_block.3} parent=11 // pred_fallthru
        _
      // Predicated region
      $region17: #{unet_block.3} parent=11 // pred_check
        %p220 = pneg %p82
      $region18: #{unet_block.3} parent=11 // pred_check_branch
        %222 = sbr.rel (%p220) target = $region20
      $region19: #{unet_block.3} parent=11 // pred_region
        _
      $region20: #{unet_block.3} parent=11 // pred_fallthru
        _
      // Predicated region
      $region21: #{unet_block.3} parent=11 // pred_check
        %p223 = pneg %p103
      $region22: #{unet_block.3} parent=11 // pred_check_branch
        %225 = sbr.rel (%p223) target = $region24
      $region23: #{unet_block.3} parent=11 // pred_region
        _
      $region24: #{unet_block.3} parent=11 // pred_fallthru
        _
      // Predicated region
      $region25: #{unet_block.3} parent=11 // pred_check
        %p226 = pneg %p124
      $region26: #{unet_block.3} parent=11 // pred_check_branch
        %228 = sbr.rel (%p226) target = $region28
      $region27: #{unet_block.3} parent=11 // pred_region
        _
      $region28: #{unet_block.3} parent=11 // pred_fallthru
        _
    $region12: #{unet_block.3} parent=5 // pred_fallthru
      _
    %p229 = scmp.lt.s32.totalorder %s14, 2
    // Predicated region
    $region29: #{unet_block.3} parent=5 // pred_check
      %p230 = pneg %p229
    $region30: #{unet_block.3} parent=5 // pred_check_branch
      %232 = sbr.rel (%p230) target = $region32
    $region31: #{unet_block.3} parent=5 // pred_region
      // Predicated region
      $region33: #{unet_block.3} parent=31 // pred_check
        %p233 = pneg %p34
      $region34: #{unet_block.3} parent=31 // pred_check_branch
        %235 = sbr.rel (%p233) target = $region36
      $region35: #{unet_block.3} parent=31 // pred_region
        %p236 = scmp.lt.s32.totalorder %s14, 1
        %s237 = scalar_select %p236, %s14, 1
        %s238 = smul.addr %s237, 32
        %s239 = smul.addr %s238, 8
        %s240 = scalar_lea.vmem %s0, %s239
      $region36: #{unet_block.3} parent=31 // pred_fallthru
        _
    $region32: #{unet_block.3} parent=5 // pred_fallthru
      _
    %p241 = scmp.le.s32.totalorder 1, %s14
    %p242 = scmp.lt.s32.totalorder %s14, 3
    %p243 = pnand %p241, %p242
    %p244 = pneg %p243
    // Predicated region
    $region37: #{unet_block.3} parent=5 // pred_check
      _
    $region38: #{unet_block.3} parent=5 // pred_check_branch
      %246 = sbr.rel (%p243) target = $region40
    $region39: #{unet_block.3} parent=5 // pred_region
      %s247 = ssub.s32 %s14, 1
      %p248 = scmp.lt.s32.totalorder %s19, 1
      %s249 = scalar_select %p248, %s19, 1
      %s250 = smul.addr %s249, 32
      %s251 = smul.addr %s250, 8
      %s252 = scalar_lea.vmem %s0, %s251
      %p253 = pneg %p40
      %p254 = pneg %p37
      %p255 = pneg %p61
      %p256 = pneg %p58
      %p257 = pneg %p82
      %p258 = pneg %p79
      %p259 = pneg %p103
      %p260 = pneg %p100
      %p261 = pneg %p124
      %p262 = pneg %p121
      %p263 = pneg %p150
      %p264 = pneg %p147
      %p265 = scmp.lt.s32.totalorder %s19, 1
      %s266 = scalar_select %p265, %s19, 1
      %s267 = smul.addr %s266, 32
      %s268 = smul.addr %s267, 8
      %s269 = scalar_lea.vmem %s5, %s268
      %p270 = pneg %p176
      %p271 = pneg %p173
      %p272 = scmp.lt.s32.totalorder %s19, 1
      %s273 = scalar_select %p272, %s19, 1
      %s274 = scalar_lea.vmem %s6, %s273
      %p275 = pneg %p202
      %p276 = pneg %p199
      %p277 = scmp.lt.s32.totalorder %s19, 1
      %s278 = scalar_select %p277, %s19, 1
      %s279 = scalar_lea.vmem %s7, %s278
      %p280 = scmp.lt.s32.totalorder %s19, 1
      %s281 = scalar_select %p280, %s19, 1
      %s282 = smul.addr %s281, 32
      %s283 = smul.addr %s282, 8
      %s284 = scalar_lea.vmem %s0, %s283
      %p285 = scmp.lt.s32.totalorder %s19, 1
      %s286 = scalar_select %p285, %s19, 1
      %s287 = smul.addr %s286, 32
      %s288 = smul.addr %s287, 8
      %s289 = scalar_lea.vmem %s5, %s288
      %p290 = scmp.lt.s32.totalorder %s19, 1
      %s291 = scalar_select %p290, %s19, 1
      %s292 = scalar_lea.vmem %s6, %s291
      %p293 = scmp.lt.s32.totalorder %s19, 1
      %s294 = scalar_select %p293, %s19, 1
      %s295 = scalar_lea.vmem %s7, %s294
      %v296 = vld [vmem:[%s284] sm:$0xff]
      %v297 = vld [vmem:[%s284 + $0x8] sm:$0xff]
      %v298 = vld [vmem:[%s284 + $0x10] sm:$0xff]
      %v299 = vld [vmem:[%s284 + $0x18] sm:$0xff]
      %v300 = vld [vmem:[%s284 + $0x20] sm:$0xff]
      %v301 = vld [vmem:[%s284 + $0x28] sm:$0xff]
      %v302 = vld [vmem:[%s284 + $0x30] sm:$0xff]
      %v303 = vld [vmem:[%s284 + $0x38] sm:$0xff]
      %v304 = vld [vmem:[%s284 + $0x40] sm:$0xff]
      %v305 = vld [vmem:[%s284 + $0x48] sm:$0xff]
      %v306 = vld [vmem:[%s284 + $0x50] sm:$0xff]
      %v307 = vld [vmem:[%s284 + $0x58] sm:$0xff]
      %v308 = vld [vmem:[%s284 + $0x60] sm:$0xff]
      %v309 = vld [vmem:[%s284 + $0x68] sm:$0xff]
      %v310 = vld [vmem:[%s284 + $0x70] sm:$0xff]
      %v311 = vld [vmem:[%s284 + $0x78] sm:$0xff]
      %v312 = vld [vmem:[%s284 + $0x80] sm:$0xff]
      %v313 = vld [vmem:[%s284 + $0x88] sm:$0xff]
      %v314 = vld [vmem:[%s284 + $0x90] sm:$0xff]
      %v315 = vld [vmem:[%s284 + $0x98] sm:$0xff]
      %v316 = vld [vmem:[%s284 + $0xa0] sm:$0xff]
      %v317 = vld [vmem:[%s284 + $0xa8] sm:$0xff]
      %v318 = vld [vmem:[%s284 + $0xb0] sm:$0xff]
      %v319 = vld [vmem:[%s284 + $0xb8] sm:$0xff]
      %v320 = vld [vmem:[%s284 + $0xc0] sm:$0xff]
      %v321 = vld [vmem:[%s284 + $0xc8] sm:$0xff]
      %v322 = vld [vmem:[%s284 + $0xd0] sm:$0xff]
      %v323 = vld [vmem:[%s284 + $0xd8] sm:$0xff]
      %v324 = vld [vmem:[%s284 + $0xe0] sm:$0xff]
      %v325 = vld [vmem:[%s284 + $0xe8] sm:$0xff]
      %v326 = vld [vmem:[%s284 + $0xf0] sm:$0xff]
      %v327 = vld [vmem:[%s284 + $0xf8] sm:$0xff]
      %vm328 = vcmask 31744
      %329 = vst.msk [vmem:[#allocation2] sm:$0xff] %vm328, 0.0
      %330 = vst.msk [vmem:[#allocation2 + $0x8] sm:$0xff] %vm328, 0.0
      %vm331 = vcmask 25600
      %332 = vst.msk [vmem:[#allocation2 + $0x10] sm:$0x3] %vm331, 0.0
      %333 = vst.msk [vmem:[#allocation2 + $0x18] sm:$0xff] %vm328, 0.0
      %334 = vst.msk [vmem:[#allocation2 + $0x20] sm:$0xff] %vm328, 0.0
      %335 = vst.msk [vmem:[#allocation2 + $0x28] sm:$0x3] %vm331, 0.0
      %336 = vst.msk [vmem:[#allocation2 + $0x30] sm:$0xff] %vm328, 0.0
      %337 = vst.msk [vmem:[#allocation2 + $0x38] sm:$0xff] %vm328, 0.0
      %338 = vst.msk [vmem:[#allocation2 + $0x40] sm:$0x3] %vm331, 0.0
      %339 = vst.msk [vmem:[#allocation2 + $0x48] sm:$0xff] %vm328, 0.0
      %340 = vst.msk [vmem:[#allocation2 + $0x50] sm:$0xff] %vm328, 0.0
      %341 = vst.msk [vmem:[#allocation2 + $0x58] sm:$0x3] %vm331, 0.0
      %342 = vst.msk [vmem:[#allocation2 + $0x60] sm:$0xff] %vm328, 0.0
      %343 = vst.msk [vmem:[#allocation2 + $0x68] sm:$0xff] %vm328, 0.0
      %344 = vst.msk [vmem:[#allocation2 + $0x70] sm:$0x3] %vm331, 0.0
      %345 = vst.msk [vmem:[#allocation2 + $0x78] sm:$0xff] %vm328, 0.0
      %346 = vst.msk [vmem:[#allocation2 + $0x80] sm:$0xff] %vm328, 0.0
      %347 = vst.msk [vmem:[#allocation2 + $0x88] sm:$0x3] %vm331, 0.0
      %348 = vst.msk [vmem:[#allocation2 + $0x90] sm:$0xff] %vm328, 0.0
      %349 = vst.msk [vmem:[#allocation2 + $0x98] sm:$0xff] %vm328, 0.0
      %350 = vst.msk [vmem:[#allocation2 + $0xa0] sm:$0x3] %vm331, 0.0
      %351 = vst.msk [vmem:[#allocation2 + $0xa8] sm:$0xff] %vm328, 0.0
      %352 = vst.msk [vmem:[#allocation2 + $0xb0] sm:$0xff] %vm328, 0.0
      %353 = vst.msk [vmem:[#allocation2 + $0xb8] sm:$0x3] %vm331, 0.0
      %354 = vst.msk [vmem:[#allocation2 + $0xc0] sm:$0xff] %vm328, 0.0
      %355 = vst.msk [vmem:[#allocation2 + $0xc8] sm:$0xff] %vm328, 0.0
      %356 = vst.msk [vmem:[#allocation2 + $0xd0] sm:$0x3] %vm331, 0.0
      %357 = vst.msk [vmem:[#allocation2 + $0xd8] sm:$0xff] %vm328, 0.0
      %358 = vst.msk [vmem:[#allocation2 + $0xe0] sm:$0xff] %vm328, 0.0
      %359 = vst.msk [vmem:[#allocation2 + $0xe8] sm:$0x3] %vm331, 0.0
      %360 = vst.msk [vmem:[#allocation2 + $0xf0] sm:$0xff] %vm328, 0.0
      %361 = vst.msk [vmem:[#allocation2 + $0xf8] sm:$0xff] %vm328, 0.0
      %362 = vst.msk [vmem:[#allocation2 + $0x100] sm:$0x3] %vm331, 0.0
      %363 = vst.msk [vmem:[#allocation2 + $0x108] sm:$0xff] %vm328, 0.0
      %364 = vst.msk [vmem:[#allocation2 + $0x110] sm:$0xff] %vm328, 0.0
      %365 = vst.msk [vmem:[#allocation2 + $0x118] sm:$0x3] %vm331, 0.0
      %366 = vst.msk [vmem:[#allocation2 + $0x120] sm:$0xff] %vm328, 0.0
      %367 = vst.msk [vmem:[#allocation2 + $0x128] sm:$0xff] %vm328, 0.0
      %368 = vst.msk [vmem:[#allocation2 + $0x130] sm:$0x3] %vm331, 0.0
      %369 = vst.msk [vmem:[#allocation2 + $0x138] sm:$0xff] %vm328, 0.0
      %370 = vst.msk [vmem:[#allocation2 + $0x140] sm:$0xff] %vm328, 0.0
      %371 = vst.msk [vmem:[#allocation2 + $0x148] sm:$0x3] %vm331, 0.0
      %372 = vst.msk [vmem:[#allocation2 + $0x150] sm:$0xff] %vm328, 0.0
      %373 = vst.msk [vmem:[#allocation2 + $0x158] sm:$0xff] %vm328, 0.0
      %374 = vst.msk [vmem:[#allocation2 + $0x160] sm:$0x3] %vm331, 0.0
      %375 = vst.msk [vmem:[#allocation2 + $0x168] sm:$0xff] %vm328, 0.0
      %376 = vst.msk [vmem:[#allocation2 + $0x170] sm:$0xff] %vm328, 0.0
      %377 = vst.msk [vmem:[#allocation2 + $0x178] sm:$0x3] %vm331, 0.0
      %378 = vst.msk [vmem:[#allocation2 + $0x180] sm:$0xff] %vm328, 0.0
      %379 = vst.msk [vmem:[#allocation2 + $0x188] sm:$0xff] %vm328, 0.0
      %380 = vst.msk [vmem:[#allocation2 + $0x190] sm:$0x3] %vm331, 0.0
      %381 = vst.msk [vmem:[#allocation2 + $0x198] sm:$0xff] %vm328, 0.0
      %382 = vst.msk [vmem:[#allocation2 + $0x1a0] sm:$0xff] %vm328, 0.0
      %383 = vst.msk [vmem:[#allocation2 + $0x1a8] sm:$0x3] %vm331, 0.0
      %s384 = scalar_lea.vmem [#allocation2], 24
      %385 = vst.msk [vmem:[%s384 + $0x1] sm:$0xff] %vm328, %v296
      %386 = vst.msk [vmem:[%s384 + $0x9] sm:$0xff] %vm328, %v297
      %387 = vst.msk [vmem:[%s384 + $0x19] sm:$0xff] %vm328, %v298
      %388 = vst.msk [vmem:[%s384 + $0x21] sm:$0xff] %vm328, %v299
      %389 = vst.msk [vmem:[%s384 + $0x31] sm:$0xff] %vm328, %v300
      %390 = vst.msk [vmem:[%s384 + $0x39] sm:$0xff] %vm328, %v301
      %391 = vst.msk [vmem:[%s384 + $0x49] sm:$0xff] %vm328, %v302
      %392 = vst.msk [vmem:[%s384 + $0x51] sm:$0xff] %vm328, %v303
      %393 = vst.msk [vmem:[%s384 + $0x61] sm:$0xff] %vm328, %v304
      %394 = vst.msk [vmem:[%s384 + $0x69] sm:$0xff] %vm328, %v305
      %395 = vst.msk [vmem:[%s384 + $0x79] sm:$0xff] %vm328, %v306
      %396 = vst.msk [vmem:[%s384 + $0x81] sm:$0xff] %vm328, %v307
      %397 = vst.msk [vmem:[%s384 + $0x91] sm:$0xff] %vm328, %v308
      %398 = vst.msk [vmem:[%s384 + $0x99] sm:$0xff] %vm328, %v309
      %399 = vst.msk [vmem:[%s384 + $0xa9] sm:$0xff] %vm328, %v310
      %400 = vst.msk [vmem:[%s384 + $0xb1] sm:$0xff] %vm328, %v311
      %401 = vst.msk [vmem:[%s384 + $0xc1] sm:$0xff] %vm328, %v312
      %402 = vst.msk [vmem:[%s384 + $0xc9] sm:$0xff] %vm328, %v313
      %403 = vst.msk [vmem:[%s384 + $0xd9] sm:$0xff] %vm328, %v314
      %404 = vst.msk [vmem:[%s384 + $0xe1] sm:$0xff] %vm328, %v315
      %405 = vst.msk [vmem:[%s384 + $0xf1] sm:$0xff] %vm328, %v316
      %406 = vst.msk [vmem:[%s384 + $0xf9] sm:$0xff] %vm328, %v317
      %407 = vst.msk [vmem:[%s384 + $0x109] sm:$0xff] %vm328, %v318
      %408 = vst.msk [vmem:[%s384 + $0x111] sm:$0xff] %vm328, %v319
      %409 = vst.msk [vmem:[%s384 + $0x121] sm:$0xff] %vm328, %v320
      %410 = vst.msk [vmem:[%s384 + $0x129] sm:$0xff] %vm328, %v321
      %411 = vst.msk [vmem:[%s384 + $0x139] sm:$0xff] %vm328, %v322
      %412 = vst.msk [vmem:[%s384 + $0x141] sm:$0xff] %vm328, %v323
      %413 = vst.msk [vmem:[%s384 + $0x151] sm:$0xff] %vm328, %v324
      %414 = vst.msk [vmem:[%s384 + $0x159] sm:$0xff] %vm328, %v325
      %415 = vst.msk [vmem:[%s384 + $0x169] sm:$0xff] %vm328, %v326
      %416 = vst.msk [vmem:[%s384 + $0x171] sm:$0xff] %vm328, %v327
      %v417 = vld [vmem:[#allocation2] sm:$0xff]
      %v418 = vld [vmem:[#allocation2 + $0x8] sm:$0xff]
      %v419 = vld [vmem:[#allocation2 + $0x18] sm:$0xff]
      %v420 = vld [vmem:[#allocation2 + $0x20] sm:$0xff]
      %v421 = vld [vmem:[#allocation2 + $0x30] sm:$0xff]
      %v422 = vld [vmem:[#allocation2 + $0x38] sm:$0xff]
      %v423 = vld [vmem:[#allocation2 + $0x48] sm:$0xff]
      %v424 = vld [vmem:[#allocation2 + $0x50] sm:$0xff]
      %v425 = vld [vmem:[#allocation2 + $0x60] sm:$0xff]
      %v426 = vld [vmem:[#allocation2 + $0x68] sm:$0xff]
      %v427 = vld [vmem:[#allocation2 + $0x78] sm:$0xff]
      %v428 = vld [vmem:[#allocation2 + $0x80] sm:$0xff]
      %v429 = vld [vmem:[#allocation2 + $0x90] sm:$0xff]
      %v430 = vld [vmem:[#allocation2 + $0x98] sm:$0xff]
      %v431 = vld [vmem:[#allocation2 + $0xa8] sm:$0xff]
      %v432 = vld [vmem:[#allocation2 + $0xb0] sm:$0xff]
      %v433 = vld [vmem:[#allocation2 + $0xc0] sm:$0xff]
      %v434 = vld [vmem:[#allocation2 + $0xc8] sm:$0xff]
      %v435 = vld [vmem:[#allocation2 + $0xd8] sm:$0xff]
      %v436 = vld [vmem:[#allocation2 + $0xe0] sm:$0xff]
      %v437 = vld [vmem:[#allocation2 + $0xf0] sm:$0xff]
      %v438 = vld [vmem:[#allocation2 + $0xf8] sm:$0xff]
      %v439 = vld [vmem:[#allocation2 + $0x108] sm:$0xff]
      %v440 = vld [vmem:[#allocation2 + $0x110] sm:$0xff]
      %v441 = vld [vmem:[#allocation2 + $0x120] sm:$0xff]
      %v442 = vld [vmem:[#allocation2 + $0x128] sm:$0xff]
      %v443 = vld [vmem:[#allocation2 + $0x138] sm:$0xff]
      %v444 = vld [vmem:[#allocation2 + $0x140] sm:$0xff]
      %v445 = vld [vmem:[#allocation2 + $0x150] sm:$0xff]
      %v446 = vld [vmem:[#allocation2 + $0x158] sm:$0xff]
      %v447 = vld [vmem:[#allocation2 + $0x168] sm:$0xff]
      %v448 = vld [vmem:[#allocation2 + $0x170] sm:$0xff]
      %v449 = vld [vmem:[%s1] sm:$0xf]
      %v450 = vld [vmem:[#allocation2 + $0x1] sm:$0xff]
      %v451 = vld [vmem:[#allocation2 + $0x9] sm:$0xff]
      %v452 = vld [vmem:[#allocation2 + $0x19] sm:$0xff]
      %v453 = vld [vmem:[#allocation2 + $0x21] sm:$0xff]
      %v454 = vld [vmem:[#allocation2 + $0x31] sm:$0xff]
      %v455 = vld [vmem:[#allocation2 + $0x39] sm:$0xff]
      %v456 = vld [vmem:[#allocation2 + $0x49] sm:$0xff]
      %v457 = vld [vmem:[#allocation2 + $0x51] sm:$0xff]
      %v458 = vld [vmem:[#allocation2 + $0x61] sm:$0xff]
      %v459 = vld [vmem:[#allocation2 + $0x69] sm:$0xff]
      %v460 = vld [vmem:[#allocation2 + $0x79] sm:$0xff]
      %v461 = vld [vmem:[#allocation2 + $0x81] sm:$0xff]
      %v462 = vld [vmem:[#allocation2 + $0x91] sm:$0xff]
      %v463 = vld [vmem:[#allocation2 + $0x99] sm:$0xff]
      %v464 = vld [vmem:[#allocation2 + $0xa9] sm:$0xff]
      %v465 = vld [vmem:[#allocation2 + $0xb1] sm:$0xff]
      %v466 = vld [vmem:[#allocation2 + $0xc1] sm:$0xff]
      %v467 = vld [vmem:[#allocation2 + $0xc9] sm:$0xff]
      %v468 = vld [vmem:[#allocation2 + $0xd9] sm:$0xff]
      %v469 = vld [vmem:[#allocation2 + $0xe1] sm:$0xff]
      %v470 = vld [vmem:[#allocation2 + $0xf1] sm:$0xff]
      %v471 = vld [vmem:[#allocation2 + $0xf9] sm:$0xff]
      %v472 = vld [vmem:[#allocation2 + $0x109] sm:$0xff]
      %v473 = vld [vmem:[#allocation2 + $0x111] sm:$0xff]
      %v474 = vld [vmem:[#allocation2 + $0x121] sm:$0xff]
      %v475 = vld [vmem:[#allocation2 + $0x129] sm:$0xff]
      %v476 = vld [vmem:[#allocation2 + $0x139] sm:$0xff]
      %v477 = vld [vmem:[#allocation2 + $0x141] sm:$0xff]
      %v478 = vld [vmem:[#allocation2 + $0x151] sm:$0xff]
      %v479 = vld [vmem:[#allocation2 + $0x159] sm:$0xff]
      %v480 = vld [vmem:[#allocation2 + $0x169] sm:$0xff]
      %v481 = vld [vmem:[#allocation2 + $0x171] sm:$0xff]
      %s482 = scalar_lea.vmem %s1, 4
      %v483 = vld [vmem:[%s482] sm:$0xf]
      %v485 = vsel %vm328, %v450, 0
      %v488 = vsel %vm328, %v451, 0
      %v491 = vsel %vm328, %v452, 0
      %v494 = vsel %vm328, %v453, 0
      %v497 = vsel %vm328, %v454, 0
      %v500 = vsel %vm328, %v455, 0
      %v503 = vsel %vm328, %v456, 0
      %v506 = vsel %vm328, %v457, 0
      %v509 = vsel %vm328, %v458, 0
      %v512 = vsel %vm328, %v459, 0
      %v515 = vsel %vm328, %v460, 0
      %v518 = vsel %vm328, %v461, 0
      %v521 = vsel %vm328, %v462, 0
      %v524 = vsel %vm328, %v463, 0
      %v527 = vsel %vm328, %v464, 0
      %v530 = vsel %vm328, %v465, 0
      %v533 = vsel %vm328, %v466, 0
      %v536 = vsel %vm328, %v467, 0
      %v539 = vsel %vm328, %v468, 0
      %v542 = vsel %vm328, %v469, 0
      %v545 = vsel %vm328, %v470, 0
      %v548 = vsel %vm328, %v471, 0
      %v551 = vsel %vm328, %v472, 0
      %v554 = vsel %vm328, %v473, 0
      %v557 = vsel %vm328, %v474, 0
      %v560 = vsel %vm328, %v475, 0
      %v563 = vsel %vm328, %v476, 0
      %v566 = vsel %vm328, %v477, 0
      %v569 = vsel %vm328, %v478, 0
      %v572 = vsel %vm328, %v479, 0
      %v575 = vsel %vm328, %v480, 0
      %v578 = vsel %vm328, %v481, 0
      %vm580 = vcmask 1043456
      %v582 = vsel %vm580, %v483, 0
      %584 = vmatprep.subr.mxu0 0.0
      %585 = vmatpush1.msra.mxu0 %v582
      %586 = vmatprep.subr.mxu0 0.0
      %587 = vmatpush1.msra.mxu0 0.0
      %588 = vmatprep.subr.mxu0 0.0
      %589 = vmatpush1.msra.mxu0 0.0
      %590 = vmatprep.subr.mxu0 0.0
      %591 = vmatpush1.msra.mxu0 0.0
      %592 = vmatprep.subr.mxu0 0.0
      %593 = vmatpush1.msra.mxu0 0.0
      %594 = vmatprep.subr.mxu0 0.0
      %595 = vmatpush1.msra.mxu0 0.0
      %596 = vmatprep.subr.mxu0 0.0
      %597 = vmatpush1.msra.mxu0 0.0
      %598 = vmatprep.subr.mxu0 0.0
      %599 = vmatpush1.msra.mxu0 0.0
      %600 = vmatprep.subr.mxu0 0.0
      %601 = vmatpush1.msra.mxu0 0.0
      %602 = vmatprep.subr.mxu0 0.0
      %603 = vmatpush1.msra.mxu0 0.0
      %604 = vmatprep.subr.mxu0 0.0
      %605 = vmatpush1.msra.mxu0 0.0
      %606 = vmatprep.subr.mxu0 0.0
      %607 = vmatpush1.msra.mxu0 0.0
      %608 = vmatprep.subr.mxu0 0.0
      %609 = vmatpush1.msra.mxu0 0.0
      %610 = vmatprep.subr.mxu0 0.0
      %611 = vmatpush1.msra.mxu0 0.0
      %612 = vmatprep.subr.mxu0 0.0
      %613 = vmatpush1.msra.mxu0 0.0
      %614 = vmatprep.subr.mxu0 0.0
      %615 = vmatpush1.msra.mxu0 0.0
      %616 = vmatprep.subr.mxu0 0.0
      %617 = vmatpush1.msra.mxu0 0.0
      %618 = vmatprep.subr.mxu0 0.0
      %619 = vmatpush1.msra.mxu0 0.0
      %620 = vmatprep.subr.mxu0 0.0
      %621 = vmatpush1.msra.mxu0 0.0
      %622 = vmatprep.subr.mxu0 0.0
      %623 = vmatpush1.msra.mxu0 0.0
      %624 = vmatprep.subr.mxu0 0.0
      %625 = vmatpush1.msra.mxu0 0.0
      %626 = vmatprep.subr.mxu0 0.0
      %627 = vmatpush1.msra.mxu0 0.0
      %628 = vmatprep.subr.mxu0 0.0
      %629 = vmatpush1.msra.mxu0 0.0
      %630 = vmatprep.subr.mxu0 0.0
      %631 = vmatpush1.msra.mxu0 0.0
      %632 = vmatprep.subr.mxu0 0.0
      %633 = vmatpush1.msra.mxu0 0.0
      %634 = vmatprep.subr.mxu0 0.0
      %635 = vmatpush1.msra.mxu0 0.0
      %636 = vmatprep.subr.mxu0 0.0
      %637 = vmatpush1.msra.mxu0 0.0
      %638 = vmatprep.subr.mxu0 0.0
      %639 = vmatpush1.msra.mxu0 0.0
      %640 = vmatprep.subr.mxu0 0.0
      %641 = vmatpush1.msra.mxu0 0.0
      %642 = vmatprep.subr.mxu0 0.0
      %643 = vmatpush1.msra.mxu0 0.0
      %644 = vmatprep.subr.mxu0 0.0
      %645 = vmatpush1.msra.mxu0 0.0
      %646 = vmatprep.subr.mxu0 0.0
      %647 = vmatpush1.msra.mxu0 0.0
      %648 = vmatprep.mubr.f32.mxu0 0.0
      %649 = vmatmul.mubr.f32.gmra.mrb[0].mxu0 %v485
      %v650 = vpop.f32.mrb[0].mxu0
      %v651 = vadd.f32 0.0, %v650
      %v652 = vpop.f32.mrb[0].mxu0
      %653 = vmatprep.mubr.f32.mxu0 0.0
      %654 = vmatmul.mubr.f32.gmra.mrb[0].mxu0 %v488
      %v655 = vpop.f32.mrb[0].mxu0
      %v656 = vadd.f32 0.0, %v655
      %v657 = vpop.f32.mrb[0].mxu0
      %658 = vmatprep.mubr.f32.mxu0 0.0
      %659 = vmatmul.mubr.f32.gmra.mrb[0].mxu0 %v491
      %v660 = vpop.f32.mrb[0].mxu0
      %v661 = vadd.f32 0.0, %v660
      %v662 = vpop.f32.mrb[0].mxu0
      %663 = vmatprep.mubr.f32.mxu0 0.0
      %664 = vmatmul.mubr.f32.gmra.mrb[0].mxu0 %v494
      %v665 = vpop.f32.mrb[0].mxu0
      %v666 = vadd.f32 0.0, %v665
      %v667 = vpop.f32.mrb[0].mxu0
      %668 = vmatprep.mubr.f32.mxu0 0.0
      %669 = vmatmul.mubr.f32.gmra.mrb[0].mxu0 %v497
      %v670 = vpop.f32.mrb[0].mxu0
      %v671 = vadd.f32 0.0, %v670
      %v672 = vpop.f32.mrb[0].mxu0
      %673 = vmatprep.mubr.f32.mxu0 0.0
      %674 = vmatmul.mubr.f32.gmra.mrb[0].mxu0 %v500
      %v675 = vpop.f32.mrb[0].mxu0
      %v676 = vadd.f32 0.0, %v675
      %v677 = vpop.f32.mrb[0].mxu0
      %678 = vmatprep.mubr.f32.mxu0 0.0
      %679 = vmatmul.mubr.f32.gmra.mrb[0].mxu0 %v503
      %v680 = vpop.f32.mrb[0].mxu0
      %v681 = vadd.f32 0.0, %v680
      %v682 = vpop.f32.mrb[0].mxu0
      %683 = vmatprep.mubr.f32.mxu0 0.0
      %684 = vmatmul.mubr.f32.gmra.mrb[0].mxu0 %v506
      %v685 = vpop.f32.mrb[0].mxu0
      %v686 = vadd.f32 0.0, %v685
      %v687 = vpop.f32.mrb[0].mxu0
      %688 = vmatprep.mubr.f32.mxu0 0.0
      %689 = vmatmul.mubr.f32.gmra.mrb[0].mxu0 %v509
      %v690 = vpop.f32.mrb[0].mxu0
      %v691 = vadd.f32 0.0, %v690
      %v692 = vpop.f32.mrb[0].mxu0
      %693 = vmatprep.mubr.f32.mxu0 0.0
      %694 = vmatmul.mubr.f32.gmra.mrb[0].mxu0 %v512
      %v695 = vpop.f32.mrb[0].mxu0
      %v696 = vadd.f32 0.0, %v695
      %v697 = vpop.f32.mrb[0].mxu0
      %698 = vmatprep.mubr.f32.mxu0 0.0
      %699 = vmatmul.mubr.f32.gmra.mrb[0].mxu0 %v515
      %v700 = vpop.f32.mrb[0].mxu0
      %v701 = vadd.f32 0.0, %v700
      %v702 = vpop.f32.mrb[0].mxu0
      %703 = vmatprep.mubr.f32.mxu0 0.0
      %704 = vmatmul.mubr.f32.gmra.mrb[0].mxu0 %v518
      %v705 = vpop.f32.mrb[0].mxu0
      %v706 = vadd.f32 0.0, %v705
      %v707 = vpop.f32.mrb[0].mxu0
      %708 = vmatprep.mubr.f32.mxu0 0.0
      %709 = vmatmul.mubr.f32.gmra.mrb[0].mxu0 %v521
      %v710 = vpop.f32.mrb[0].mxu0
      %v711 = vadd.f32 0.0, %v710
      %v712 = vpop.f32.mrb[0].mxu0
      %713 = vmatprep.mubr.f32.mxu0 0.0
      %714 = vmatmul.mubr.f32.gmra.mrb[0].mxu0 %v524
      %v715 = vpop.f32.mrb[0].mxu0
      %v716 = vadd.f32 0.0, %v715
      %v717 = vpop.f32.mrb[0].mxu0
      %718 = vmatprep.mubr.f32.mxu0 0.0
      %719 = vmatmul.mubr.f32.gmra.mrb[0].mxu0 %v527
      %v720 = vpop.f32.mrb[0].mxu0
      %v721 = vadd.f32 0.0, %v720
      %v722 = vpop.f32.mrb[0].mxu0
      %723 = vmatprep.mubr.f32.mxu0 0.0
      %724 = vmatmul.mubr.f32.gmra.mrb[0].mxu0 %v530
      %v725 = vpop.f32.mrb[0].mxu0
      %v726 = vadd.f32 0.0, %v725
      %v727 = vpop.f32.mrb[0].mxu0
      %728 = vmatprep.mubr.f32.mxu0 0.0
      %729 = vmatmul.mubr.f32.gmra.mrb[0].mxu0 %v533
      %v730 = vpop.f32.mrb[0].mxu0
      %v731 = vadd.f32 0.0, %v730
      %v732 = vpop.f32.mrb[0].mxu0
      %733 = vmatprep.mubr.f32.mxu0 0.0
      %734 = vmatmul.mubr.f32.gmra.mrb[0].mxu0 %v536
      %v735 = vpop.f32.mrb[0].mxu0
      %v736 = vadd.f32 0.0, %v735
      %v737 = vpop.f32.mrb[0].mxu0
      %738 = vmatprep.mubr.f32.mxu0 0.0
      %739 = vmatmul.mubr.f32.gmra.mrb[0].mxu0 %v539
      %v740 = vpop.f32.mrb[0].mxu0
      %v741 = vadd.f32 0.0, %v740
      %v742 = vpop.f32.mrb[0].mxu0
      %743 = vmatprep.mubr.f32.mxu0 0.0
      %744 = vmatmul.mubr.f32.gmra.mrb[0].mxu0 %v542
      %v745 = vpop.f32.mrb[0].mxu0
      %v746 = vadd.f32 0.0, %v745
      %v747 = vpop.f32.mrb[0].mxu0
      %748 = vmatprep.mubr.f32.mxu0 0.0
      %749 = vmatmul.mubr.f32.gmra.mrb[0].mxu0 %v545
      %v750 = vpop.f32.mrb[0].mxu0
      %v751 = vadd.f32 0.0, %v750
      %v752 = vpop.f32.mrb[0].mxu0
      %753 = vmatprep.mubr.f32.mxu0 0.0
      %754 = vmatmul.mubr.f32.gmra.mrb[0].mxu0 %v548
      %v755 = vpop.f32.mrb[0].mxu0
      %v756 = vadd.f32 0.0, %v755
      %v757 = vpop.f32.mrb[0].mxu0
      %758 = vmatprep.mubr.f32.mxu0 0.0
      %759 = vmatmul.mubr.f32.gmra.mrb[0].mxu0 %v551
      %v760 = vpop.f32.mrb[0].mxu0
      %v761 = vadd.f32 0.0, %v760
      %v762 = vpop.f32.mrb[0].mxu0
      %763 = vmatprep.mubr.f32.mxu0 0.0
      %764 = vmatmul.mubr.f32.gmra.mrb[0].mxu0 %v554
      %v765 = vpop.f32.mrb[0].mxu0
      %v766 = vadd.f32 0.0, %v765
      %v767 = vpop.f32.mrb[0].mxu0
      %768 = vmatprep.mubr.f32.mxu0 0.0
      %769 = vmatmul.mubr.f32.gmra.mrb[0].mxu0 %v557
      %v770 = vpop.f32.mrb[0].mxu0
      %v771 = vadd.f32 0.0, %v770
      %v772 = vpop.f32.mrb[0].mxu0
      %773 = vmatprep.mubr.f32.mxu0 0.0
      %774 = vmatmul.mubr.f32.gmra.mrb[0].mxu0 %v560
      %v775 = vpop.f32.mrb[0].mxu0
      %v776 = vadd.f32 0.0, %v775
      %v777 = vpop.f32.mrb[0].mxu0
      %778 = vmatprep.mubr.f32.mxu0 0.0
      %779 = vmatmul.mubr.f32.gmra.mrb[0].mxu0 %v563
      %v780 = vpop.f32.mrb[0].mxu0
      %v781 = vadd.f32 0.0, %v780
      %v782 = vpop.f32.mrb[0].mxu0
      %783 = vmatprep.mubr.f32.mxu0 0.0
      %784 = vmatmul.mubr.f32.gmra.mrb[0].mxu0 %v566
      %v785 = vpop.f32.mrb[0].mxu0
      %v786 = vadd.f32 0.0, %v785
      %v787 = vpop.f32.mrb[0].mxu0
      %788 = vmatprep.mubr.f32.mxu0 0.0
      %789 = vmatmul.mubr.f32.gmra.mrb[0].mxu0 %v569
      %v790 = vpop.f32.mrb[0].mxu0
      %v791 = vadd.f32 0.0, %v790
      %v792 = vpop.f32.mrb[0].mxu0
      %793 = vmatprep.mubr.f32.mxu0 0.0
      %794 = vmatmul.mubr.f32.gmra.mrb[0].mxu0 %v572
      %v795 = vpop.f32.mrb[0].mxu0
      %v796 = vadd.f32 0.0, %v795
      %v797 = vpop.f32.mrb[0].mxu0
      %798 = vmatprep.mubr.f32.mxu0 0.0
      %799 = vmatmul.mubr.f32.gmra.mrb[0].mxu0 %v575
      %v800 = vpop.f32.mrb[0].mxu0
      %v801 = vadd.f32 0.0, %v800
      %v802 = vpop.f32.mrb[0].mxu0
      %803 = vmatprep.mubr.f32.mxu0 0.0
      %804 = vmatmul.mubr.f32.gmra.mrb[0].mxu0 %v578
      %v805 = vpop.f32.mrb[0].mxu0
      %v806 = vadd.f32 0.0, %v805
      %v807 = vpop.f32.mrb[0].mxu0
      %808 = vdwg.mxu0
      %v810 = vsel %vm328, %v417, 0
      %v813 = vsel %vm328, %v418, 0
      %v816 = vsel %vm328, %v419, 0
      %v819 = vsel %vm328, %v420, 0
      %v822 = vsel %vm328, %v421, 0
      %v825 = vsel %vm328, %v422, 0
      %v828 = vsel %vm328, %v423, 0
      %v831 = vsel %vm328, %v424, 0
      %v834 = vsel %vm328, %v425, 0
      %v837 = vsel %vm328, %v426, 0
      %v840 = vsel %vm328, %v427, 0
      %v843 = vsel %vm328, %v428, 0
      %v846 = vsel %vm328, %v429, 0
      %v849 = vsel %vm328, %v430, 0
      %v852 = vsel %vm328, %v431, 0
      %v855 = vsel %vm328, %v432, 0
      %v858 = vsel %vm328, %v433, 0
      %v861 = vsel %vm328, %v434, 0
      %v864 = vsel %vm328, %v435, 0
      %v867 = vsel %vm328, %v436, 0
      %v870 = vsel %vm328, %v437, 0
      %v873 = vsel %vm328, %v438, 0
      %v876 = vsel %vm328, %v439, 0
      %v879 = vsel %vm328, %v440, 0
      %v882 = vsel %vm328, %v441, 0
      %v885 = vsel %vm328, %v442, 0
      %v888 = vsel %vm328, %v443, 0
      %v891 = vsel %vm328, %v444, 0
      %v894 = vsel %vm328, %v445, 0
      %v897 = vsel %vm328, %v446, 0
      %v900 = vsel %vm328, %v447, 0
      %v903 = vsel %vm328, %v448, 0
      %v906 = vsel %vm580, %v449, 0
      %908 = vmatprep.subr.mxu0 0.0
      %909 = vmatpush1.msra.mxu0 %v906
      %910 = vmatprep.subr.mxu0 0.0
      %911 = vmatpush1.msra.mxu0 0.0
      %912 = vmatprep.subr.mxu0 0.0
      %913 = vmatpush1.msra.mxu0 0.0
      %914 = vmatprep.subr.mxu0 0.0
      %915 = vmatpush1.msra.mxu0 0.0
      %916 = vmatprep.subr.mxu0 0.0
      %917 = vmatpush1.msra.mxu0 0.0
      %918 = vmatprep.subr.mxu0 0.0
      %919 = vmatpush1.msra.mxu0 0.0
      %920 = vmatprep.subr.mxu0 0.0
      %921 = vmatpush1.msra.mxu0 0.0
      %922 = vmatprep.subr.mxu0 0.0
      %923 = vmatpush1.msra.mxu0 0.0
      %924 = vmatprep.subr.mxu0 0.0
      %925 = vmatpush1.msra.mxu0 0.0
      %926 = vmatprep.subr.mxu0 0.0
      %927 = vmatpush1.msra.mxu0 0.0
      %928 = vmatprep.subr.mxu0 0.0
      %929 = vmatpush1.msra.mxu0 0.0
      %930 = vmatprep.subr.mxu0 0.0
      %931 = vmatpush1.msra.mxu0 0.0
      %932 = vmatprep.subr.mxu0 0.0
      %933 = vmatpush1.msra.mxu0 0.0
      %934 = vmatprep.subr.mxu0 0.0
      %935 = vmatpush1.msra.mxu0 0.0
      %936 = vmatprep.subr.mxu0 0.0
      %937 = vmatpush1.msra.mxu0 0.0
      %938 = vmatprep.subr.mxu0 0.0
      %939 = vmatpush1.msra.mxu0 0.0
      %940 = vmatprep.subr.mxu0 0.0
      %941 = vmatpush1.msra.mxu0 0.0
      %942 = vmatprep.subr.mxu0 0.0
      %943 = vmatpush1.msra.mxu0 0.0
      %944 = vmatprep.subr.mxu0 0.0
      %945 = vmatpush1.msra.mxu0 0.0
      %946 = vmatprep.subr.mxu0 0.0
      %947 = vmatpush1.msra.mxu0 0.0
      %948 = vmatprep.subr.mxu0 0.0
      %949 = vmatpush1.msra.mxu0 0.0
      %950 = vmatprep.subr.mxu0 0.0
      %951 = vmatpush1.msra.mxu0 0.0
      %952 = vmatprep.subr.mxu0 0.0
      %953 = vmatpush1.msra.mxu0 0.0
      %954 = vmatprep.subr.mxu0 0.0
      %955 = vmatpush1.msra.mxu0 0.0
      %956 = vmatprep.subr.mxu0 0.0
      %957 = vmatpush1.msra.mxu0 0.0
      %958 = vmatprep.subr.mxu0 0.0
      %959 = vmatpush1.msra.mxu0 0.0
      %960 = vmatprep.subr.mxu0 0.0
      %961 = vmatpush1.msra.mxu0 0.0
      %962 = vmatprep.subr.mxu0 0.0
      %963 = vmatpush1.msra.mxu0 0.0
      %964 = vmatprep.subr.mxu0 0.0
      %965 = vmatpush1.msra.mxu0 0.0
      %966 = vmatprep.subr.mxu0 0.0
      %967 = vmatpush1.msra.mxu0 0.0
      %968 = vmatprep.subr.mxu0 0.0
      %969 = vmatpush1.msra.mxu0 0.0
      %970 = vmatprep.subr.mxu0 0.0
      %971 = vmatpush1.msra.mxu0 0.0
      %972 = vmatprep.mubr.f32.mxu0 0.0
      %973 = vmatmul.mubr.f32.gmra.mrb[0].mxu0 %v810
      %v974 = vpop.f32.mrb[0].mxu0
      %v975 = vadd.f32 %v651, %v974
      %v976 = vpop.f32.mrb[0].mxu0
      %977 = vmatprep.mubr.f32.mxu0 0.0
      %978 = vmatmul.mubr.f32.gmra.mrb[0].mxu0 %v813
      %v979 = vpop.f32.mrb[0].mxu0
      %v980 = vadd.f32 %v656, %v979
      %v981 = vpop.f32.mrb[0].mxu0
      %982 = vmatprep.mubr.f32.mxu0 0.0
      %983 = vmatmul.mubr.f32.gmra.mrb[0].mxu0 %v816
      %v984 = vpop.f32.mrb[0].mxu0
      %v985 = vadd.f32 %v661, %v984
      %v986 = vpop.f32.mrb[0].mxu0
      %987 = vmatprep.mubr.f32.mxu0 0.0
      %988 = vmatmul.mubr.f32.gmra.mrb[0].mxu0 %v819
      %v989 = vpop.f32.mrb[0].mxu0
      %v990 = vadd.f32 %v666, %v989
      %v991 = vpop.f32.mrb[0].mxu0
      %992 = vmatprep.mubr.f32.mxu0 0.0
      %993 = vmatmul.mubr.f32.gmra.mrb[0].mxu0 %v822
      %v994 = vpop.f32.mrb[0].mxu0
      %v995 = vadd.f32 %v671, %v994
      %v996 = vpop.f32.mrb[0].mxu0
      %997 = vmatprep.mubr.f32.mxu0 0.0
      %998 = vmatmul.mubr.f32.gmra.mrb[0].mxu0 %v825
      %v999 = vpop.f32.mrb[0].mxu0
      %v1000 = vadd.f32 %v676, %v999
      %v1001 = vpop.f32.mrb[0].mxu0
      %1002 = vmatprep.mubr.f32.mxu0 0.0
      %1003 = vmatmul.mubr.f32.gmra.mrb[0].mxu0 %v828
      %v1004 = vpop.f32.mrb[0].mxu0
      %v1005 = vadd.f32 %v681, %v1004
      %v1006 = vpop.f32.mrb[0].mxu0
      %1007 = vmatprep.mubr.f32.mxu0 0.0
      %1008 = vmatmul.mubr.f32.gmra.mrb[0].mxu0 %v831
      %v1009 = vpop.f32.mrb[0].mxu0
      %v1010 = vadd.f32 %v686, %v1009
      %v1011 = vpop.f32.mrb[0].mxu0
      %1012 = vmatprep.mubr.f32.mxu0 0.0
      %1013 = vmatmul.mubr.f32.gmra.mrb[0].mxu0 %v834
      %v1014 = vpop.f32.mrb[0].mxu0
      %v1015 = vadd.f32 %v691, %v1014
      %v1016 = vpop.f32.mrb[0].mxu0
      %1017 = vmatprep.mubr.f32.mxu0 0.0
      %1018 = vmatmul.mubr.f32.gmra.mrb[0].mxu0 %v837
      %v1019 = vpop.f32.mrb[0].mxu0
      %v1020 = vadd.f32 %v696, %v1019
      %v1021 = vpop.f32.mrb[0].mxu0
      %1022 = vmatprep.mubr.f32.mxu0 0.0
      %1023 = vmatmul.mubr.f32.gmra.mrb[0].mxu0 %v840
      %v1024 = vpop.f32.mrb[0].mxu0
      %v1025 = vadd.f32 %v701, %v1024
      %v1026 = vpop.f32.mrb[0].mxu0
      %1027 = vmatprep.mubr.f32.mxu0 0.0
      %1028 = vmatmul.mubr.f32.gmra.mrb[0].mxu0 %v843
      %v1029 = vpop.f32.mrb[0].mxu0
      %v1030 = vadd.f32 %v706, %v1029
      %v1031 = vpop.f32.mrb[0].mxu0
      %1032 = vmatprep.mubr.f32.mxu0 0.0
      %1033 = vmatmul.mubr.f32.gmra.mrb[0].mxu0 %v846
      %v1034 = vpop.f32.mrb[0].mxu0
      %v1035 = vadd.f32 %v711, %v1034
      %v1036 = vpop.f32.mrb[0].mxu0
      %1037 = vmatprep.mubr.f32.mxu0 0.0
      %1038 = vmatmul.mubr.f32.gmra.mrb[0].mxu0 %v849
      %v1039 = vpop.f32.mrb[0].mxu0
      %v1040 = vadd.f32 %v716, %v1039
      %v1041 = vpop.f32.mrb[0].mxu0
      %1042 = vmatprep.mubr.f32.mxu0 0.0
      %1043 = vmatmul.mubr.f32.gmra.mrb[0].mxu0 %v852
      %v1044 = vpop.f32.mrb[0].mxu0
      %v1045 = vadd.f32 %v721, %v1044
      %v1046 = vpop.f32.mrb[0].mxu0
      %1047 = vmatprep.mubr.f32.mxu0 0.0
      %1048 = vmatmul.mubr.f32.gmra.mrb[0].mxu0 %v855
      %v1049 = vpop.f32.mrb[0].mxu0
      %v1050 = vadd.f32 %v726, %v1049
      %v1051 = vpop.f32.mrb[0].mxu0
      %1052 = vmatprep.mubr.f32.mxu0 0.0
      %1053 = vmatmul.mubr.f32.gmra.mrb[0].mxu0 %v858
      %v1054 = vpop.f32.mrb[0].mxu0
      %v1055 = vadd.f32 %v731, %v1054
      %v1056 = vpop.f32.mrb[0].mxu0
      %1057 = vmatprep.mubr.f32.mxu0 0.0
      %1058 = vmatmul.mubr.f32.gmra.mrb[0].mxu0 %v861
      %v1059 = vpop.f32.mrb[0].mxu0
      %v1060 = vadd.f32 %v736, %v1059
      %v1061 = vpop.f32.mrb[0].mxu0
      %1062 = vmatprep.mubr.f32.mxu0 0.0
      %1063 = vmatmul.mubr.f32.gmra.mrb[0].mxu0 %v864
      %v1064 = vpop.f32.mrb[0].mxu0
      %v1065 = vadd.f32 %v741, %v1064
      %v1066 = vpop.f32.mrb[0].mxu0
      %1067 = vmatprep.mubr.f32.mxu0 0.0
      %1068 = vmatmul.mubr.f32.gmra.mrb[0].mxu0 %v867
      %v1069 = vpop.f32.mrb[0].mxu0
      %v1070 = vadd.f32 %v746, %v1069
      %v1071 = vpop.f32.mrb[0].mxu0
      %1072 = vmatprep.mubr.f32.mxu0 0.0
      %1073 = vmatmul.mubr.f32.gmra.mrb[0].mxu0 %v870
      %v1074 = vpop.f32.mrb[0].mxu0
      %v1075 = vadd.f32 %v751, %v1074
      %v1076 = vpop.f32.mrb[0].mxu0
      %1077 = vmatprep.mubr.f32.mxu0 0.0
      %1078 = vmatmul.mubr.f32.gmra.mrb[0].mxu0 %v873
      %v1079 = vpop.f32.mrb[0].mxu0
      %v1080 = vadd.f32 %v756, %v1079
      %v1081 = vpop.f32.mrb[0].mxu0
      %1082 = vmatprep.mubr.f32.mxu0 0.0
      %1083 = vmatmul.mubr.f32.gmra.mrb[0].mxu0 %v876
      %v1084 = vpop.f32.mrb[0].mxu0
      %v1085 = vadd.f32 %v761, %v1084
      %v1086 = vpop.f32.mrb[0].mxu0
      %1087 = vmatprep.mubr.f32.mxu0 0.0
      %1088 = vmatmul.mubr.f32.gmra.mrb[0].mxu0 %v879
      %v1089 = vpop.f32.mrb[0].mxu0
      %v1090 = vadd.f32 %v766, %v1089
      %v1091 = vpop.f32.mrb[0].mxu0
      %1092 = vmatprep.mubr.f32.mxu0 0.0
      %1093 = vmatmul.mubr.f32.gmra.mrb[0].mxu0 %v882
      %v1094 = vpop.f32.mrb[0].mxu0
      %v1095 = vadd.f32 %v771, %v1094
      %v1096 = vpop.f32.mrb[0].mxu0
      %1097 = vmatprep.mubr.f32.mxu0 0.0
      %1098 = vmatmul.mubr.f32.gmra.mrb[0].mxu0 %v885
      %v1099 = vpop.f32.mrb[0].mxu0
      %v1100 = vadd.f32 %v776, %v1099
      %v1101 = vpop.f32.mrb[0].mxu0
      %1102 = vmatprep.mubr.f32.mxu0 0.0
      %1103 = vmatmul.mubr.f32.gmra.mrb[0].mxu0 %v888
      %v1104 = vpop.f32.mrb[0].mxu0
      %v1105 = vadd.f32 %v781, %v1104
      %v1106 = vpop.f32.mrb[0].mxu0
      %1107 = vmatprep.mubr.f32.mxu0 0.0
      %1108 = vmatmul.mubr.f32.gmra.mrb[0].mxu0 %v891
      %v1109 = vpop.f32.mrb[0].mxu0
      %v1110 = vadd.f32 %v786, %v1109
      %v1111 = vpop.f32.mrb[0].mxu0
      %1112 = vmatprep.mubr.f32.mxu0 0.0
      %1113 = vmatmul.mubr.f32.gmra.mrb[0].mxu0 %v894
      %v1114 = vpop.f32.mrb[0].mxu0
      %v1115 = vadd.f32 %v791, %v1114
      %v1116 = vpop.f32.mrb[0].mxu0
      %1117 = vmatprep.mubr.f32.mxu0 0.0
      %1118 = vmatmul.mubr.f32.gmra.mrb[0].mxu0 %v897
      %v1119 = vpop.f32.mrb[0].mxu0
      %v1120 = vadd.f32 %v796, %v1119
      %v1121 = vpop.f32.mrb[0].mxu0
      %1122 = vmatprep.mubr.f32.mxu0 0.0
      %1123 = vmatmul.mubr.f32.gmra.mrb[0].mxu0 %v900
      %v1124 = vpop.f32.mrb[0].mxu0
      %v1125 = vadd.f32 %v801, %v1124
      %v1126 = vpop.f32.mrb[0].mxu0
      %1127 = vmatprep.mubr.f32.mxu0 0.0
      %1128 = vmatmul.mubr.f32.gmra.mrb[0].mxu0 %v903
      %v1129 = vpop.f32.mrb[0].mxu0
      %v1130 = vadd.f32 %v806, %v1129
      %v1131 = vpop.f32.mrb[0].mxu0
      %1132 = vdwg.mxu0
      %v1133 = vld [vmem:[#allocation2 + $0x2] sm:$0xff]
      %v1134 = vld [vmem:[#allocation2 + $0xa] sm:$0xff]
      %v1135 = vld [vmem:[#allocation2 + $0x1a] sm:$0xff]
      %v1136 = vld [vmem:[#allocation2 + $0x22] sm:$0xff]
      %v1137 = vld [vmem:[#allocation2 + $0x32] sm:$0xff]
      %v1138 = vld [vmem:[#allocation2 + $0x3a] sm:$0xff]
      %v1139 = vld [vmem:[#allocation2 + $0x4a] sm:$0xff]
      %v1140 = vld [vmem:[#allocation2 + $0x52] sm:$0xff]
      %v1141 = vld [vmem:[#allocation2 + $0x62] sm:$0xff]
      %v1142 = vld [vmem:[#allocation2 + $0x6a] sm:$0xff]
      %v1143 = vld [vmem:[#allocation2 + $0x7a] sm:$0xff]
      %v1144 = vld [vmem:[#allocation2 + $0x82] sm:$0xff]
      %v1145 = vld [vmem:[#allocation2 + $0x92] sm:$0xff]
      %v1146 = vld [vmem:[#allocation2 + $0x9a] sm:$0xff]
      %v1147 = vld [vmem:[#allocation2 + $0xaa] sm:$0xff]
      %v1148 = vld [vmem:[#allocation2 + $0xb2] sm:$0xff]
      %v1149 = vld [vmem:[#allocation2 + $0xc2] sm:$0xff]
      %v1150 = vld [vmem:[#allocation2 + $0xca] sm:$0xff]
      %v1151 = vld [vmem:[#allocation2 + $0xda] sm:$0xff]
      %v1152 = vld [vmem:[#allocation2 + $0xe2] sm:$0xff]
      %v1153 = vld [vmem:[#allocation2 + $0xf2] sm:$0xff]
      %v1154 = vld [vmem:[#allocation2 + $0xfa] sm:$0xff]
      %v1155 = vld [vmem:[#allocation2 + $0x10a] sm:$0xff]
      %v1156 = vld [vmem:[#allocation2 + $0x112] sm:$0xff]
      %v1157 = vld [vmem:[#allocation2 + $0x122] sm:$0xff]
      %v1158 = vld [vmem:[#allocation2 + $0x12a] sm:$0xff]
      %v1159 = vld [vmem:[#allocation2 + $0x13a] sm:$0xff]
      %v1160 = vld [vmem:[#allocation2 + $0x142] sm:$0xff]
      %v1161 = vld [vmem:[#allocation2 + $0x152] sm:$0xff]
      %v1162 = vld [vmem:[#allocation2 + $0x15a] sm:$0xff]
      %v1163 = vld [vmem:[#allocation2 + $0x16a] sm:$0xff]
      %v1164 = vld [vmem:[#allocation2 + $0x172] sm:$0xff]
      %s1165 = scalar_lea.vmem %s1, 8
      %v1166 = vld [vmem:[%s1165] sm:$0xf]
      %v1168 = vsel %vm328, %v1133, 0
      %v1171 = vsel %vm328, %v1134, 0
      %v1174 = vsel %vm328, %v1135, 0
      %v1177 = vsel %vm328, %v1136, 0
      %v1180 = vsel %vm328, %v1137, 0
      %v1183 = vsel %vm328, %v1138, 0
      %v1186 = vsel %vm328, %v1139, 0
      %v1189 = vsel %vm328, %v1140, 0
      %v1192 = vsel %vm328, %v1141, 0
      %v1195 = vsel %vm328, %v1142, 0
      %v1198 = vsel %vm328, %v1143, 0
      %v1201 = vsel %vm328, %v1144, 0
      %v1204 = vsel %vm328, %v1145, 0
      %v1207 = vsel %vm328, %v1146, 0
      %v1210 = vsel %vm328, %v1147, 0
      %v1213 = vsel %vm328, %v1148, 0
      %v1216 = vsel %vm328, %v1149, 0
      %v1219 = vsel %vm328, %v1150, 0
      %v1222 = vsel %vm328, %v1151, 0
      %v1225 = vsel %vm328, %v1152, 0
      %v1228 = vsel %vm328, %v1153, 0
      %v1231 = vsel %vm328, %v1154, 0
      %v1234 = vsel %vm328, %v1155, 0
      %v1237 = vsel %vm328, %v1156, 0
      %v1240 = vsel %vm328, %v1157, 0
      %v1243 = vsel %vm328, %v1158, 0
      %v1246 = vsel %vm328, %v1159, 0
      %v1249 = vsel %vm328, %v1160, 0
      %v1252 = vsel %vm328, %v1161, 0
      %v1255 = vsel %vm328, %v1162, 0
      %v1258 = vsel %vm328, %v1163, 0
      %v1261 = vsel %vm328, %v1164, 0
      %v1264 = vsel %vm580, %v1166, 0
      %1266 = vmatprep.subr.mxu0 0.0
      %1267 = vmatpush1.msra.mxu0 %v1264
      %1268 = vmatprep.subr.mxu0 0.0
      %1269 = vmatpush1.msra.mxu0 0.0
      %1270 = vmatprep.subr.mxu0 0.0
      %1271 = vmatpush1.msra.mxu0 0.0
      %1272 = vmatprep.subr.mxu0 0.0
      %1273 = vmatpush1.msra.mxu0 0.0
      %1274 = vmatprep.subr.mxu0 0.0
      %1275 = vmatpush1.msra.mxu0 0.0
      %1276 = vmatprep.subr.mxu0 0.0
      %1277 = vmatpush1.msra.mxu0 0.0
      %1278 = vmatprep.subr.mxu0 0.0
      %1279 = vmatpush1.msra.mxu0 0.0
      %1280 = vmatprep.subr.mxu0 0.0
      %1281 = vmatpush1.msra.mxu0 0.0
      %1282 = vmatprep.subr.mxu0 0.0
      %1283 = vmatpush1.msra.mxu0 0.0
      %1284 = vmatprep.subr.mxu0 0.0
      %1285 = vmatpush1.msra.mxu0 0.0
      %1286 = vmatprep.subr.mxu0 0.0
      %1287 = vmatpush1.msra.mxu0 0.0
      %1288 = vmatprep.subr.mxu0 0.0
      %1289 = vmatpush1.msra.mxu0 0.0
      %1290 = vmatprep.subr.mxu0 0.0
      %1291 = vmatpush1.msra.mxu0 0.0
      %1292 = vmatprep.subr.mxu0 0.0
      %1293 = vmatpush1.msra.mxu0 0.0
      %1294 = vmatprep.subr.mxu0 0.0
      %1295 = vmatpush1.msra.mxu0 0.0
      %1296 = vmatprep.subr.mxu0 0.0
      %1297 = vmatpush1.msra.mxu0 0.0
      %1298 = vmatprep.subr.mxu0 0.0
      %1299 = vmatpush1.msra.mxu0 0.0
      %1300 = vmatprep.subr.mxu0 0.0
      %1301 = vmatpush1.msra.mxu0 0.0
      %1302 = vmatprep.subr.mxu0 0.0
      %1303 = vmatpush1.msra.mxu0 0.0
      %1304 = vmatprep.subr.mxu0 0.0
      %1305 = vmatpush1.msra.mxu0 0.0
      %1306 = vmatprep.subr.mxu0 0.0
      %1307 = vmatpush1.msra.mxu0 0.0
      %1308 = vmatprep.subr.mxu0 0.0
      %1309 = vmatpush1.msra.mxu0 0.0
      %1310 = vmatprep.subr.mxu0 0.0
      %1311 = vmatpush1.msra.mxu0 0.0
      %1312 = vmatprep.subr.mxu0 0.0
      %1313 = vmatpush1.msra.mxu0 0.0
      %1314 = vmatprep.subr.mxu0 0.0
      %1315 = vmatpush1.msra.mxu0 0.0
      %1316 = vmatprep.subr.mxu0 0.0
      %1317 = vmatpush1.msra.mxu0 0.0
      %1318 = vmatprep.subr.mxu0 0.0
      %1319 = vmatpush1.msra.mxu0 0.0
      %1320 = vmatprep.subr.mxu0 0.0
      %1321 = vmatpush1.msra.mxu0 0.0
      %1322 = vmatprep.subr.mxu0 0.0
      %1323 = vmatpush1.msra.mxu0 0.0
      %1324 = vmatprep.subr.mxu0 0.0
      %1325 = vmatpush1.msra.mxu0 0.0
      %1326 = vmatprep.subr.mxu0 0.0
      %1327 = vmatpush1.msra.mxu0 0.0
      %1328 = vmatprep.subr.mxu0 0.0
      %1329 = vmatpush1.msra.mxu0 0.0
      %1330 = vmatprep.mubr.f32.mxu0 0.0
      %1331 = vmatmul.mubr.f32.gmra.mrb[0].mxu0 %v1168
      %v1332 = vpop.f32.mrb[0].mxu0
      %v1333 = vadd.f32 0.0, %v1332
      %v1334 = vpop.f32.mrb[0].mxu0
      %1335 = vmatprep.mubr.f32.mxu0 0.0
      %1336 = vmatmul.mubr.f32.gmra.mrb[0].mxu0 %v1171
      %v1337 = vpop.f32.mrb[0].mxu0
      %v1338 = vadd.f32 0.0, %v1337
      %v1339 = vpop.f32.mrb[0].mxu0
      %1340 = vmatprep.mubr.f32.mxu0 0.0
      %1341 = vmatmul.mubr.f32.gmra.mrb[0].mxu0 %v1174
      %v1342 = vpop.f32.mrb[0].mxu0
      %v1343 = vadd.f32 0.0, %v1342
      %v1344 = vpop.f32.mrb[0].mxu0
      %1345 = vmatprep.mubr.f32.mxu0 0.0
      %1346 = vmatmul.mubr.f32.gmra.mrb[0].mxu0 %v1177
      %v1347 = vpop.f32.mrb[0].mxu0
      %v1348 = vadd.f32 0.0, %v1347
      %v1349 = vpop.f32.mrb[0].mxu0
      %1350 = vmatprep.mubr.f32.mxu0 0.0
      %1351 = vmatmul.mubr.f32.gmra.mrb[0].mxu0 %v1180
      %v1352 = vpop.f32.mrb[0].mxu0
      %v1353 = vadd.f32 0.0, %v1352
      %v1354 = vpop.f32.mrb[0].mxu0
      %1355 = vmatprep.mubr.f32.mxu0 0.0
      %1356 = vmatmul.mubr.f32.gmra.mrb[0].mxu0 %v1183
      %v1357 = vpop.f32.mrb[0].mxu0
      %v1358 = vadd.f32 0.0, %v1357
      %v1359 = vpop.f32.mrb[0].mxu0
      %1360 = vmatprep.mubr.f32.mxu0 0.0
      %1361 = vmatmul.mubr.f32.gmra.mrb[0].mxu0 %v1186
      %v1362 = vpop.f32.mrb[0].mxu0
      %v1363 = vadd.f32 0.0, %v1362
      %v1364 = vpop.f32.mrb[0].mxu0
      %1365 = vmatprep.mubr.f32.mxu0 0.0
      %1366 = vmatmul.mubr.f32.gmra.mrb[0].mxu0 %v1189
      %v1367 = vpop.f32.mrb[0].mxu0
      %v1368 = vadd.f32 0.0, %v1367
      %v1369 = vpop.f32.mrb[0].mxu0
      %1370 = vmatprep.mubr.f32.mxu0 0.0
      %1371 = vmatmul.mubr.f32.gmra.mrb[0].mxu0 %v1192
      %v1372 = vpop.f32.mrb[0].mxu0
      %v1373 = vadd.f32 0.0, %v1372
      %v1374 = vpop.f32.mrb[0].mxu0
      %1375 = vmatprep.mubr.f32.mxu0 0.0
      %1376 = vmatmul.mubr.f32.gmra.mrb[0].mxu0 %v1195
      %v1377 = vpop.f32.mrb[0].mxu0
      %v1378 = vadd.f32 0.0, %v1377
      %v1379 = vpop.f32.mrb[0].mxu0
      %1380 = vmatprep.mubr.f32.mxu0 0.0
      %1381 = vmatmul.mubr.f32.gmra.mrb[0].mxu0 %v1198
      %v1382 = vpop.f32.mrb[0].mxu0
      %v1383 = vadd.f32 0.0, %v1382
      %v1384 = vpop.f32.mrb[0].mxu0
      %1385 = vmatprep.mubr.f32.mxu0 0.0
      %1386 = vmatmul.mubr.f32.gmra.mrb[0].mxu0 %v1201
      %v1387 = vpop.f32.mrb[0].mxu0
      %v1388 = vadd.f32 0.0, %v1387
      %v1389 = vpop.f32.mrb[0].mxu0
      %1390 = vmatprep.mubr.f32.mxu0 0.0
      %1391 = vmatmul.mubr.f32.gmra.mrb[0].mxu0 %v1204
      %v1392 = vpop.f32.mrb[0].mxu0
      %v1393 = vadd.f32 0.0, %v1392
      %v1394 = vpop.f32.mrb[0].mxu0
      %1395 = vmatprep.mubr.f32.mxu0 0.0
      %1396 = vmatmul.mubr.f32.gmra.mrb[0].mxu0 %v1207
      %v1397 = vpop.f32.mrb[0].mxu0
      %v1398 = vadd.f32 0.0, %v1397
      %v1399 = vpop.f32.mrb[0].mxu0
      %1400 = vmatprep.mubr.f32.mxu0 0.0
      %1401 = vmatmul.mubr.f32.gmra.mrb[0].mxu0 %v1210
      %v1402 = vpop.f32.mrb[0].mxu0
      %v1403 = vadd.f32 0.0, %v1402
      %v1404 = vpop.f32.mrb[0].mxu0
      %1405 = vmatprep.mubr.f32.mxu0 0.0
      %1406 = vmatmul.mubr.f32.gmra.mrb[0].mxu0 %v1213
      %v1407 = vpop.f32.mrb[0].mxu0
      %v1408 = vadd.f32 0.0, %v1407
      %v1409 = vpop.f32.mrb[0].mxu0
      %1410 = vmatprep.mubr.f32.mxu0 0.0
      %1411 = vmatmul.mubr.f32.gmra.mrb[0].mxu0 %v1216
      %v1412 = vpop.f32.mrb[0].mxu0
      %v1413 = vadd.f32 0.0, %v1412
      %v1414 = vpop.f32.mrb[0].mxu0
      %1415 = vmatprep.mubr.f32.mxu0 0.0
      %1416 = vmatmul.mubr.f32.gmra.mrb[0].mxu0 %v1219
      %v1417 = vpop.f32.mrb[0].mxu0
      %v1418 = vadd.f32 0.0, %v1417
      %v1419 = vpop.f32.mrb[0].mxu0
      %1420 = vmatprep.mubr.f32.mxu0 0.0
      %1421 = vmatmul.mubr.f32.gmra.mrb[0].mxu0 %v1222
      %v1422 = vpop.f32.mrb[0].mxu0
      %v1423 = vadd.f32 0.0, %v1422
      %v1424 = vpop.f32.mrb[0].mxu0
      %1425 = vmatprep.mubr.f32.mxu0 0.0
      %1426 = vmatmul.mubr.f32.gmra.mrb[0].mxu0 %v1225
      %v1427 = vpop.f32.mrb[0].mxu0
      %v1428 = vadd.f32 0.0, %v1427
      %v1429 = vpop.f32.mrb[0].mxu0
      %1430 = vmatprep.mubr.f32.mxu0 0.0
      %1431 = vmatmul.mubr.f32.gmra.mrb[0].mxu0 %v1228
      %v1432 = vpop.f32.mrb[0].mxu0
      %v1433 = vadd.f32 0.0, %v1432
      %v1434 = vpop.f32.mrb[0].mxu0
      %1435 = vmatprep.mubr.f32.mxu0 0.0
      %1436 = vmatmul.mubr.f32.gmra.mrb[0].mxu0 %v1231
      %v1437 = vpop.f32.mrb[0].mxu0
      %v1438 = vadd.f32 0.0, %v1437
      %v1439 = vpop.f32.mrb[0].mxu0
      %1440 = vmatprep.mubr.f32.mxu0 0.0
      %1441 = vmatmul.mubr.f32.gmra.mrb[0].mxu0 %v1234
      %v1442 = vpop.f32.mrb[0].mxu0
      %v1443 = vadd.f32 0.0, %v1442
      %v1444 = vpop.f32.mrb[0].mxu0
      %1445 = vmatprep.mubr.f32.mxu0 0.0
      %1446 = vmatmul.mubr.f32.gmra.mrb[0].mxu0 %v1237
      %v1447 = vpop.f32.mrb[0].mxu0
      %v1448 = vadd.f32 0.0, %v1447
      %v1449 = vpop.f32.mrb[0].mxu0
      %1450 = vmatprep.mubr.f32.mxu0 0.0
      %1451 = vmatmul.mubr.f32.gmra.mrb[0].mxu0 %v1240
      %v1452 = vpop.f32.mrb[0].mxu0
      %v1453 = vadd.f32 0.0, %v1452
      %v1454 = vpop.f32.mrb[0].mxu0
      %1455 = vmatprep.mubr.f32.mxu0 0.0
      %1456 = vmatmul.mubr.f32.gmra.mrb[0].mxu0 %v1243
      %v1457 = vpop.f32.mrb[0].mxu0
      %v1458 = vadd.f32 0.0, %v1457
      %v1459 = vpop.f32.mrb[0].mxu0
      %1460 = vmatprep.mubr.f32.mxu0 0.0
      %1461 = vmatmul.mubr.f32.gmra.mrb[0].mxu0 %v1246
      %v1462 = vpop.f32.mrb[0].mxu0
      %v1463 = vadd.f32 0.0, %v1462
      %v1464 = vpop.f32.mrb[0].mxu0
      %1465 = vmatprep.mubr.f32.mxu0 0.0
      %1466 = vmatmul.mubr.f32.gmra.mrb[0].mxu0 %v1249
      %v1467 = vpop.f32.mrb[0].mxu0
      %v1468 = vadd.f32 0.0, %v1467
      %v1469 = vpop.f32.mrb[0].mxu0
      %1470 = vmatprep.mubr.f32.mxu0 0.0
      %1471 = vmatmul.mubr.f32.gmra.mrb[0].mxu0 %v1252
      %v1472 = vpop.f32.mrb[0].mxu0
      %v1473 = vadd.f32 0.0, %v1472
      %v1474 = vpop.f32.mrb[0].mxu0
      %1475 = vmatprep.mubr.f32.mxu0 0.0
      %1476 = vmatmul.mubr.f32.gmra.mrb[0].mxu0 %v1255
      %v1477 = vpop.f32.mrb[0].mxu0
      %v1478 = vadd.f32 0.0, %v1477
      %v1479 = vpop.f32.mrb[0].mxu0
      %1480 = vmatprep.mubr.f32.mxu0 0.0
      %1481 = vmatmul.mubr.f32.gmra.mrb[0].mxu0 %v1258
      %v1482 = vpop.f32.mrb[0].mxu0
      %v1483 = vadd.f32 0.0, %v1482
      %v1484 = vpop.f32.mrb[0].mxu0
      %1485 = vmatprep.mubr.f32.mxu0 0.0
      %1486 = vmatmul.mubr.f32.gmra.mrb[0].mxu0 %v1261
      %v1487 = vpop.f32.mrb[0].mxu0
      %v1488 = vadd.f32 0.0, %v1487
      %v1489 = vpop.f32.mrb[0].mxu0
      %1490 = vdwg.mxu0
      %v1491 = vadd.f32 %v975, %v1333
      %v1492 = vadd.f32 %v980, %v1338
      %v1493 = vadd.f32 %v985, %v1343
      %v1494 = vadd.f32 %v990, %v1348
      %v1495 = vadd.f32 %v995, %v1353
      %v1496 = vadd.f32 %v1000, %v1358
      %v1497 = vadd.f32 %v1005, %v1363
      %v1498 = vadd.f32 %v1010, %v1368
      %v1499 = vadd.f32 %v1015, %v1373
      %v1500 = vadd.f32 %v1020, %v1378
      %v1501 = vadd.f32 %v1025, %v1383
      %v1502 = vadd.f32 %v1030, %v1388
      %v1503 = vadd.f32 %v1035, %v1393
      %v1504 = vadd.f32 %v1040, %v1398
      %v1505 = vadd.f32 %v1045, %v1403
      %v1506 = vadd.f32 %v1050, %v1408
      %v1507 = vadd.f32 %v1055, %v1413
      %v1508 = vadd.f32 %v1060, %v1418
      %v1509 = vadd.f32 %v1065, %v1423
      %v1510 = vadd.f32 %v1070, %v1428
      %v1511 = vadd.f32 %v1075, %v1433
      %v1512 = vadd.f32 %v1080, %v1438
      %v1513 = vadd.f32 %v1085, %v1443
      %v1514 = vadd.f32 %v1090, %v1448
      %v1515 = vadd.f32 %v1095, %v1453
      %v1516 = vadd.f32 %v1100, %v1458
      %v1517 = vadd.f32 %v1105, %v1463
      %v1518 = vadd.f32 %v1110, %v1468
      %v1519 = vadd.f32 %v1115, %v1473
      %v1520 = vadd.f32 %v1120, %v1478
      %v1521 = vadd.f32 %v1125, %v1483
      %v1522 = vadd.f32 %v1130, %v1488
      %v1523 = vld [vmem:[%s384] sm:$0xff]
      %v1524 = vld [vmem:[%s384 + $0x8] sm:$0xff]
      %v1525 = vld [vmem:[%s384 + $0x18] sm:$0xff]
      %v1526 = vld [vmem:[%s384 + $0x20] sm:$0xff]
      %v1527 = vld [vmem:[%s384 + $0x30] sm:$0xff]
      %v1528 = vld [vmem:[%s384 + $0x38] sm:$0xff]
      %v1529 = vld [vmem:[%s384 + $0x48] sm:$0xff]
      %v1530 = vld [vmem:[%s384 + $0x50] sm:$0xff]
      %v1531 = vld [vmem:[%s384 + $0x60] sm:$0xff]
      %v1532 = vld [vmem:[%s384 + $0x68] sm:$0xff]
      %v1533 = vld [vmem:[%s384 + $0x78] sm:$0xff]
      %v1534 = vld [vmem:[%s384 + $0x80] sm:$0xff]
      %v1535 = vld [vmem:[%s384 + $0x90] sm:$0xff]
      %v1536 = vld [vmem:[%s384 + $0x98] sm:$0xff]
      %v1537 = vld [vmem:[%s384 + $0xa8] sm:$0xff]
      %v1538 = vld [vmem:[%s384 + $0xb0] sm:$0xff]
      %v1539 = vld [vmem:[%s384 + $0xc0] sm:$0xff]
      %v1540 = vld [vmem:[%s384 + $0xc8] sm:$0xff]
      %v1541 = vld [vmem:[%s384 + $0xd8] sm:$0xff]
      %v1542 = vld [vmem:[%s384 + $0xe0] sm:$0xff]
      %v1543 = vld [vmem:[%s384 + $0xf0] sm:$0xff]
      %v1544 = vld [vmem:[%s384 + $0xf8] sm:$0xff]
      %v1545 = vld [vmem:[%s384 + $0x108] sm:$0xff]
      %v1546 = vld [vmem:[%s384 + $0x110] sm:$0xff]
      %v1547 = vld [vmem:[%s384 + $0x120] sm:$0xff]
      %v1548 = vld [vmem:[%s384 + $0x128] sm:$0xff]
      %v1549 = vld [vmem:[%s384 + $0x138] sm:$0xff]
      %v1550 = vld [vmem:[%s384 + $0x140] sm:$0xff]
      %v1551 = vld [vmem:[%s384 + $0x150] sm:$0xff]
      %v1552 = vld [vmem:[%s384 + $0x158] sm:$0xff]
      %v1553 = vld [vmem:[%s384 + $0x168] sm:$0xff]
      %v1554 = vld [vmem:[%s384 + $0x170] sm:$0xff]
      %s1555 = scalar_lea.vmem %s1, 12
      %v1556 = vld [vmem:[%s1555] sm:$0xf]
      %v1558 = vsel %vm328, %v1523, 0
      %v1561 = vsel %vm328, %v1524, 0
      %v1564 = vsel %vm328, %v1525, 0
      %v1567 = vsel %vm328, %v1526, 0
      %v1570 = vsel %vm328, %v1527, 0
      %v1573 = vsel %vm328, %v1528, 0
      %v1576 = vsel %vm328, %v1529, 0
      %v1579 = vsel %vm328, %v1530, 0
      %v1582 = vsel %vm328, %v1531, 0
      %v1585 = vsel %vm328, %v1532, 0
      %v1588 = vsel %vm328, %v1533, 0
      %v1591 = vsel %vm328, %v1534, 0
      %v1594 = vsel %vm328, %v1535, 0
      %v1597 = vsel %vm328, %v1536, 0
      %v1600 = vsel %vm328, %v1537, 0
      %v1603 = vsel %vm328, %v1538, 0
      %v1606 = vsel %vm328, %v1539, 0
      %v1609 = vsel %vm328, %v1540, 0
      %v1612 = vsel %vm328, %v1541, 0
      %v1615 = vsel %vm328, %v1542, 0
      %v1618 = vsel %vm328, %v1543, 0
      %v1621 = vsel %vm328, %v1544, 0
      %v1624 = vsel %vm328, %v1545, 0
      %v1627 = vsel %vm328, %v1546, 0
      %v1630 = vsel %vm328, %v1547, 0
      %v1633 = vsel %vm328, %v1548, 0
      %v1636 = vsel %vm328, %v1549, 0
      %v1639 = vsel %vm328, %v1550, 0
      %v1642 = vsel %vm328, %v1551, 0
      %v1645 = vsel %vm328, %v1552, 0
      %v1648 = vsel %vm328, %v1553, 0
      %v1651 = vsel %vm328, %v1554, 0
      %v1654 = vsel %vm580, %v1556, 0
      %1656 = vmatprep.subr.mxu0 0.0
      %1657 = vmatpush1.msra.mxu0 %v1654
      %1658 = vmatprep.subr.mxu0 0.0
      %1659 = vmatpush1.msra.mxu0 0.0
      %1660 = vmatprep.subr.mxu0 0.0
      %1661 = vmatpush1.msra.mxu0 0.0
      %1662 = vmatprep.subr.mxu0 0.0
      %1663 = vmatpush1.msra.mxu0 0.0
      %1664 = vmatprep.subr.mxu0 0.0
      %1665 = vmatpush1.msra.mxu0 0.0
      %1666 = vmatprep.subr.mxu0 0.0
      %1667 = vmatpush1.msra.mxu0 0.0
      %1668 = vmatprep.subr.mxu0 0.0
      %1669 = vmatpush1.msra.mxu0 0.0
      %1670 = vmatprep.subr.mxu0 0.0
      %1671 = vmatpush1.msra.mxu0 0.0
      %1672 = vmatprep.subr.mxu0 0.0
      %1673 = vmatpush1.msra.mxu0 0.0
      %1674 = vmatprep.subr.mxu0 0.0
      %1675 = vmatpush1.msra.mxu0 0.0
      %1676 = vmatprep.subr.mxu0 0.0
      %1677 = vmatpush1.msra.mxu0 0.0
      %1678 = vmatprep.subr.mxu0 0.0
      %1679 = vmatpush1.msra.mxu0 0.0
      %1680 = vmatprep.subr.mxu0 0.0
      %1681 = vmatpush1.msra.mxu0 0.0
      %1682 = vmatprep.subr.mxu0 0.0
      %1683 = vmatpush1.msra.mxu0 0.0
      %1684 = vmatprep.subr.mxu0 0.0
      %1685 = vmatpush1.msra.mxu0 0.0
      %1686 = vmatprep.subr.mxu0 0.0
      %1687 = vmatpush1.msra.mxu0 0.0
      %1688 = vmatprep.subr.mxu0 0.0
      %1689 = vmatpush1.msra.mxu0 0.0
      %1690 = vmatprep.subr.mxu0 0.0
      %1691 = vmatpush1.msra.mxu0 0.0
      %1692 = vmatprep.subr.mxu0 0.0
      %1693 = vmatpush1.msra.mxu0 0.0
      %1694 = vmatprep.subr.mxu0 0.0
      %1695 = vmatpush1.msra.mxu0 0.0
      %1696 = vmatprep.subr.mxu0 0.0
      %1697 = vmatpush1.msra.mxu0 0.0
      %1698 = vmatprep.subr.mxu0 0.0
      %1699 = vmatpush1.msra.mxu0 0.0
      %1700 = vmatprep.subr.mxu0 0.0
      %1701 = vmatpush1.msra.mxu0 0.0
      %1702 = vmatprep.subr.mxu0 0.0
      %1703 = vmatpush1.msra.mxu0 0.0
      %1704 = vmatprep.subr.mxu0 0.0
      %1705 = vmatpush1.msra.mxu0 0.0
      %1706 = vmatprep.subr.mxu0 0.0
      %1707 = vmatpush1.msra.mxu0 0.0
      %1708 = vmatprep.subr.mxu0 0.0
      %1709 = vmatpush1.msra.mxu0 0.0
      %1710 = vmatprep.subr.mxu0 0.0
      %1711 = vmatpush1.msra.mxu0 0.0
      %1712 = vmatprep.subr.mxu0 0.0
      %1713 = vmatpush1.msra.mxu0 0.0
      %1714 = vmatprep.subr.mxu0 0.0
      %1715 = vmatpush1.msra.mxu0 0.0
      %1716 = vmatprep.subr.mxu0 0.0
      %1717 = vmatpush1.msra.mxu0 0.0
      %1718 = vmatprep.subr.mxu0 0.0
      %1719 = vmatpush1.msra.mxu0 0.0
      %1720 = vmatprep.mubr.f32.mxu0 0.0
      %1721 = vmatmul.mubr.f32.gmra.mrb[0].mxu0 %v1558
      %v1722 = vpop.f32.mrb[0].mxu0
      %v1723 = vadd.f32 0.0, %v1722
      %v1724 = vpop.f32.mrb[0].mxu0
      %1725 = vmatprep.mubr.f32.mxu0 0.0
      %1726 = vmatmul.mubr.f32.gmra.mrb[0].mxu0 %v1561
      %v1727 = vpop.f32.mrb[0].mxu0
      %v1728 = vadd.f32 0.0, %v1727
      %v1729 = vpop.f32.mrb[0].mxu0
      %1730 = vmatprep.mubr.f32.mxu0 0.0
      %1731 = vmatmul.mubr.f32.gmra.mrb[0].mxu0 %v1564
      %v1732 = vpop.f32.mrb[0].mxu0
      %v1733 = vadd.f32 0.0, %v1732
      %v1734 = vpop.f32.mrb[0].mxu0
      %1735 = vmatprep.mubr.f32.mxu0 0.0
      %1736 = vmatmul.mubr.f32.gmra.mrb[0].mxu0 %v1567
      %v1737 = vpop.f32.mrb[0].mxu0
      %v1738 = vadd.f32 0.0, %v1737
      %v1739 = vpop.f32.mrb[0].mxu0
      %1740 = vmatprep.mubr.f32.mxu0 0.0
      %1741 = vmatmul.mubr.f32.gmra.mrb[0].mxu0 %v1570
      %v1742 = vpop.f32.mrb[0].mxu0
      %v1743 = vadd.f32 0.0, %v1742
      %v1744 = vpop.f32.mrb[0].mxu0
      %1745 = vmatprep.mubr.f32.mxu0 0.0
      %1746 = vmatmul.mubr.f32.gmra.mrb[0].mxu0 %v1573
      %v1747 = vpop.f32.mrb[0].mxu0
      %v1748 = vadd.f32 0.0, %v1747
      %v1749 = vpop.f32.mrb[0].mxu0
      %1750 = vmatprep.mubr.f32.mxu0 0.0
      %1751 = vmatmul.mubr.f32.gmra.mrb[0].mxu0 %v1576
      %v1752 = vpop.f32.mrb[0].mxu0
      %v1753 = vadd.f32 0.0, %v1752
      %v1754 = vpop.f32.mrb[0].mxu0
      %1755 = vmatprep.mubr.f32.mxu0 0.0
      %1756 = vmatmul.mubr.f32.gmra.mrb[0].mxu0 %v1579
      %v1757 = vpop.f32.mrb[0].mxu0
      %v1758 = vadd.f32 0.0, %v1757
      %v1759 = vpop.f32.mrb[0].mxu0
      %1760 = vmatprep.mubr.f32.mxu0 0.0
      %1761 = vmatmul.mubr.f32.gmra.mrb[0].mxu0 %v1582
      %v1762 = vpop.f32.mrb[0].mxu0
      %v1763 = vadd.f32 0.0, %v1762
      %v1764 = vpop.f32.mrb[0].mxu0
      %1765 = vmatprep.mubr.f32.mxu0 0.0
      %1766 = vmatmul.mubr.f32.gmra.mrb[0].mxu0 %v1585
      %v1767 = vpop.f32.mrb[0].mxu0
      %v1768 = vadd.f32 0.0, %v1767
      %v1769 = vpop.f32.mrb[0].mxu0
      %1770 = vmatprep.mubr.f32.mxu0 0.0
      %1771 = vmatmul.mubr.f32.gmra.mrb[0].mxu0 %v1588
      %v1772 = vpop.f32.mrb[0].mxu0
      %v1773 = vadd.f32 0.0, %v1772
      %v1774 = vpop.f32.mrb[0].mxu0
      %1775 = vmatprep.mubr.f32.mxu0 0.0
      %1776 = vmatmul.mubr.f32.gmra.mrb[0].mxu0 %v1591
      %v1777 = vpop.f32.mrb[0].mxu0
      %v1778 = vadd.f32 0.0, %v1777
      %v1779 = vpop.f32.mrb[0].mxu0
      %1780 = vmatprep.mubr.f32.mxu0 0.0
      %1781 = vmatmul.mubr.f32.gmra.mrb[0].mxu0 %v1594
      %v1782 = vpop.f32.mrb[0].mxu0
      %v1783 = vadd.f32 0.0, %v1782
      %v1784 = vpop.f32.mrb[0].mxu0
      %1785 = vmatprep.mubr.f32.mxu0 0.0
      %1786 = vmatmul.mubr.f32.gmra.mrb[0].mxu0 %v1597
      %v1787 = vpop.f32.mrb[0].mxu0
      %v1788 = vadd.f32 0.0, %v1787
      %v1789 = vpop.f32.mrb[0].mxu0
      %1790 = vmatprep.mubr.f32.mxu0 0.0
      %1791 = vmatmul.mubr.f32.gmra.mrb[0].mxu0 %v1600
      %v1792 = vpop.f32.mrb[0].mxu0
      %v1793 = vadd.f32 0.0, %v1792
      %v1794 = vpop.f32.mrb[0].mxu0
      %1795 = vmatprep.mubr.f32.mxu0 0.0
      %1796 = vmatmul.mubr.f32.gmra.mrb[0].mxu0 %v1603
      %v1797 = vpop.f32.mrb[0].mxu0
      %v1798 = vadd.f32 0.0, %v1797
      %v1799 = vpop.f32.mrb[0].mxu0
      %1800 = vmatprep.mubr.f32.mxu0 0.0
      %1801 = vmatmul.mubr.f32.gmra.mrb[0].mxu0 %v1606
      %v1802 = vpop.f32.mrb[0].mxu0
      %v1803 = vadd.f32 0.0, %v1802
      %v1804 = vpop.f32.mrb[0].mxu0
      %1805 = vmatprep.mubr.f32.mxu0 0.0
      %1806 = vmatmul.mubr.f32.gmra.mrb[0].mxu0 %v1609
      %v1807 = vpop.f32.mrb[0].mxu0
      %v1808 = vadd.f32 0.0, %v1807
      %v1809 = vpop.f32.mrb[0].mxu0
      %1810 = vmatprep.mubr.f32.mxu0 0.0
      %1811 = vmatmul.mubr.f32.gmra.mrb[0].mxu0 %v1612
      %v1812 = vpop.f32.mrb[0].mxu0
      %v1813 = vadd.f32 0.0, %v1812
      %v1814 = vpop.f32.mrb[0].mxu0
      %1815 = vmatprep.mubr.f32.mxu0 0.0
      %1816 = vmatmul.mubr.f32.gmra.mrb[0].mxu0 %v1615
      %v1817 = vpop.f32.mrb[0].mxu0
      %v1818 = vadd.f32 0.0, %v1817
      %v1819 = vpop.f32.mrb[0].mxu0
      %1820 = vmatprep.mubr.f32.mxu0 0.0
      %1821 = vmatmul.mubr.f32.gmra.mrb[0].mxu0 %v1618
      %v1822 = vpop.f32.mrb[0].mxu0
      %v1823 = vadd.f32 0.0, %v1822
      %v1824 = vpop.f32.mrb[0].mxu0
      %1825 = vmatprep.mubr.f32.mxu0 0.0
      %1826 = vmatmul.mubr.f32.gmra.mrb[0].mxu0 %v1621
      %v1827 = vpop.f32.mrb[0].mxu0
      %v1828 = vadd.f32 0.0, %v1827
      %v1829 = vpop.f32.mrb[0].mxu0
      %1830 = vmatprep.mubr.f32.mxu0 0.0
      %1831 = vmatmul.mubr.f32.gmra.mrb[0].mxu0 %v1624
      %v1832 = vpop.f32.mrb[0].mxu0
      %v1833 = vadd.f32 0.0, %v1832
      %v1834 = vpop.f32.mrb[0].mxu0
      %1835 = vmatprep.mubr.f32.mxu0 0.0
      %1836 = vmatmul.mubr.f32.gmra.mrb[0].mxu0 %v1627
      %v1837 = vpop.f32.mrb[0].mxu0
      %v1838 = vadd.f32 0.0, %v1837
      %v1839 = vpop.f32.mrb[0].mxu0
      %1840 = vmatprep.mubr.f32.mxu0 0.0
      %1841 = vmatmul.mubr.f32.gmra.mrb[0].mxu0 %v1630
      %v1842 = vpop.f32.mrb[0].mxu0
      %v1843 = vadd.f32 0.0, %v1842
      %v1844 = vpop.f32.mrb[0].mxu0
      %1845 = vmatprep.mubr.f32.mxu0 0.0
      %1846 = vmatmul.mubr.f32.gmra.mrb[0].mxu0 %v1633
      %v1847 = vpop.f32.mrb[0].mxu0
      %v1848 = vadd.f32 0.0, %v1847
      %v1849 = vpop.f32.mrb[0].mxu0
      %1850 = vmatprep.mubr.f32.mxu0 0.0
      %1851 = vmatmul.mubr.f32.gmra.mrb[0].mxu0 %v1636
      %v1852 = vpop.f32.mrb[0].mxu0
      %v1853 = vadd.f32 0.0, %v1852
      %v1854 = vpop.f32.mrb[0].mxu0
      %1855 = vmatprep.mubr.f32.mxu0 0.0
      %1856 = vmatmul.mubr.f32.gmra.mrb[0].mxu0 %v1639
      %v1857 = vpop.f32.mrb[0].mxu0
      %v1858 = vadd.f32 0.0, %v1857
      %v1859 = vpop.f32.mrb[0].mxu0
      %1860 = vmatprep.mubr.f32.mxu0 0.0
      %1861 = vmatmul.mubr.f32.gmra.mrb[0].mxu0 %v1642
      %v1862 = vpop.f32.mrb[0].mxu0
      %v1863 = vadd.f32 0.0, %v1862
      %v1864 = vpop.f32.mrb[0].mxu0
      %1865 = vmatprep.mubr.f32.mxu0 0.0
      %1866 = vmatmul.mubr.f32.gmra.mrb[0].mxu0 %v1645
      %v1867 = vpop.f32.mrb[0].mxu0
      %v1868 = vadd.f32 0.0, %v1867
      %v1869 = vpop.f32.mrb[0].mxu0
      %1870 = vmatprep.mubr.f32.mxu0 0.0
      %1871 = vmatmul.mubr.f32.gmra.mrb[0].mxu0 %v1648
      %v1872 = vpop.f32.mrb[0].mxu0
      %v1873 = vadd.f32 0.0, %v1872
      %v1874 = vpop.f32.mrb[0].mxu0
      %1875 = vmatprep.mubr.f32.mxu0 0.0
      %1876 = vmatmul.mubr.f32.gmra.mrb[0].mxu0 %v1651
      %v1877 = vpop.f32.mrb[0].mxu0
      %v1878 = vadd.f32 0.0, %v1877
      %v1879 = vpop.f32.mrb[0].mxu0
      %1880 = vdwg.mxu0
      %v1881 = vadd.f32 %v1491, %v1723
      %v1882 = vadd.f32 %v1492, %v1728
      %v1883 = vadd.f32 %v1493, %v1733
      %v1884 = vadd.f32 %v1494, %v1738
      %v1885 = vadd.f32 %v1495, %v1743
      %v1886 = vadd.f32 %v1496, %v1748
      %v1887 = vadd.f32 %v1497, %v1753
      %v1888 = vadd.f32 %v1498, %v1758
      %v1889 = vadd.f32 %v1499, %v1763
      %v1890 = vadd.f32 %v1500, %v1768
      %v1891 = vadd.f32 %v1501, %v1773
      %v1892 = vadd.f32 %v1502, %v1778
      %v1893 = vadd.f32 %v1503, %v1783
      %v1894 = vadd.f32 %v1504, %v1788
      %v1895 = vadd.f32 %v1505, %v1793
      %v1896 = vadd.f32 %v1506, %v1798
      %v1897 = vadd.f32 %v1507, %v1803
      %v1898 = vadd.f32 %v1508, %v1808
      %v1899 = vadd.f32 %v1509, %v1813
      %v1900 = vadd.f32 %v1510, %v1818
      %v1901 = vadd.f32 %v1511, %v1823
      %v1902 = vadd.f32 %v1512, %v1828
      %v1903 = vadd.f32 %v1513, %v1833
      %v1904 = vadd.f32 %v1514, %v1838
      %v1905 = vadd.f32 %v1515, %v1843
      %v1906 = vadd.f32 %v1516, %v1848
      %v1907 = vadd.f32 %v1517, %v1853
      %v1908 = vadd.f32 %v1518, %v1858
      %v1909 = vadd.f32 %v1519, %v1863
      %v1910 = vadd.f32 %v1520, %v1868
      %v1911 = vadd.f32 %v1521, %v1873
      %v1912 = vadd.f32 %v1522, %v1878
      %v1913 = vld [vmem:[%s384 + $0x1] sm:$0xff]
      %v1914 = vld [vmem:[%s384 + $0x9] sm:$0xff]
      %v1915 = vld [vmem:[%s384 + $0x19] sm:$0xff]
      %v1916 = vld [vmem:[%s384 + $0x21] sm:$0xff]
      %v1917 = vld [vmem:[%s384 + $0x31] sm:$0xff]
      %v1918 = vld [vmem:[%s384 + $0x39] sm:$0xff]
      %v1919 = vld [vmem:[%s384 + $0x49] sm:$0xff]
      %v1920 = vld [vmem:[%s384 + $0x51] sm:$0xff]
      %v1921 = vld [vmem:[%s384 + $0x61] sm:$0xff]
      %v1922 = vld [vmem:[%s384 + $0x69] sm:$0xff]
      %v1923 = vld [vmem:[%s384 + $0x79] sm:$0xff]
      %v1924 = vld [vmem:[%s384 + $0x81] sm:$0xff]
      %v1925 = vld [vmem:[%s384 + $0x91] sm:$0xff]
      %v1926 = vld [vmem:[%s384 + $0x99] sm:$0xff]
      %v1927 = vld [vmem:[%s384 + $0xa9] sm:$0xff]
      %v1928 = vld [vmem:[%s384 + $0xb1] sm:$0xff]
      %v1929 = vld [vmem:[%s384 + $0xc1] sm:$0xff]
      %v1930 = vld [vmem:[%s384 + $0xc9] sm:$0xff]
      %v1931 = vld [vmem:[%s384 + $0xd9] sm:$0xff]
      %v1932 = vld [vmem:[%s384 + $0xe1] sm:$0xff]
      %v1933 = vld [vmem:[%s384 + $0xf1] sm:$0xff]
      %v1934 = vld [vmem:[%s384 + $0xf9] sm:$0xff]
      %v1935 = vld [vmem:[%s384 + $0x109] sm:$0xff]
      %v1936 = vld [vmem:[%s384 + $0x111] sm:$0xff]
      %v1937 = vld [vmem:[%s384 + $0x121] sm:$0xff]
      %v1938 = vld [vmem:[%s384 + $0x129] sm:$0xff]
      %v1939 = vld [vmem:[%s384 + $0x139] sm:$0xff]
      %v1940 = vld [vmem:[%s384 + $0x141] sm:$0xff]
      %v1941 = vld [vmem:[%s384 + $0x151] sm:$0xff]
      %v1942 = vld [vmem:[%s384 + $0x159] sm:$0xff]
      %v1943 = vld [vmem:[%s384 + $0x169] sm:$0xff]
      %v1944 = vld [vmem:[%s384 + $0x171] sm:$0xff]
      %s1945 = scalar_lea.vmem %s1, 16
      %v1946 = vld [vmem:[%s1945] sm:$0xf]
      %v1948 = vsel %vm328, %v1913, 0
      %v1951 = vsel %vm328, %v1914, 0
      %v1954 = vsel %vm328, %v1915, 0
      %v1957 = vsel %vm328, %v1916, 0
      %v1960 = vsel %vm328, %v1917, 0
      %v1963 = vsel %vm328, %v1918, 0
      %v1966 = vsel %vm328, %v1919, 0
      %v1969 = vsel %vm328, %v1920, 0
      %v1972 = vsel %vm328, %v1921, 0
      %v1975 = vsel %vm328, %v1922, 0
      %v1978 = vsel %vm328, %v1923, 0
      %v1981 = vsel %vm328, %v1924, 0
      %v1984 = vsel %vm328, %v1925, 0
      %v1987 = vsel %vm328, %v1926, 0
      %v1990 = vsel %vm328, %v1927, 0
      %v1993 = vsel %vm328, %v1928, 0
      %v1996 = vsel %vm328, %v1929, 0
      %v1999 = vsel %vm328, %v1930, 0
      %v2002 = vsel %vm328, %v1931, 0
      %v2005 = vsel %vm328, %v1932, 0
      %v2008 = vsel %vm328, %v1933, 0
      %v2011 = vsel %vm328, %v1934, 0
      %v2014 = vsel %vm328, %v1935, 0
      %v2017 = vsel %vm328, %v1936, 0
      %v2020 = vsel %vm328, %v1937, 0
      %v2023 = vsel %vm328, %v1938, 0
      %v2026 = vsel %vm328, %v1939, 0
      %v2029 = vsel %vm328, %v1940, 0
      %v2032 = vsel %vm328, %v1941, 0
      %v2035 = vsel %vm328, %v1942, 0
      %v2038 = vsel %vm328, %v1943, 0
      %v2041 = vsel %vm328, %v1944, 0
      %v2044 = vsel %vm580, %v1946, 0
      %2046 = vmatprep.subr.mxu0 0.0
      %2047 = vmatpush1.msra.mxu0 %v2044
      %2048 = vmatprep.subr.mxu0 0.0
      %2049 = vmatpush1.msra.mxu0 0.0
      %2050 = vmatprep.subr.mxu0 0.0
      %2051 = vmatpush1.msra.mxu0 0.0
      %2052 = vmatprep.subr.mxu0 0.0
      %2053 = vmatpush1.msra.mxu0 0.0
      %2054 = vmatprep.subr.mxu0 0.0
      %2055 = vmatpush1.msra.mxu0 0.0
      %2056 = vmatprep.subr.mxu0 0.0
      %2057 = vmatpush1.msra.mxu0 0.0
      %2058 = vmatprep.subr.mxu0 0.0
      %2059 = vmatpush1.msra.mxu0 0.0
      %2060 = vmatprep.subr.mxu0 0.0
      %2061 = vmatpush1.msra.mxu0 0.0
      %2062 = vmatprep.subr.mxu0 0.0
      %2063 = vmatpush1.msra.mxu0 0.0
      %2064 = vmatprep.subr.mxu0 0.0
      %2065 = vmatpush1.msra.mxu0 0.0
      %2066 = vmatprep.subr.mxu0 0.0
      %2067 = vmatpush1.msra.mxu0 0.0
      %2068 = vmatprep.subr.mxu0 0.0
      %2069 = vmatpush1.msra.mxu0 0.0
      %2070 = vmatprep.subr.mxu0 0.0
      %2071 = vmatpush1.msra.mxu0 0.0
      %2072 = vmatprep.subr.mxu0 0.0
      %2073 = vmatpush1.msra.mxu0 0.0
      %2074 = vmatprep.subr.mxu0 0.0
      %2075 = vmatpush1.msra.mxu0 0.0
      %2076 = vmatprep.subr.mxu0 0.0
      %2077 = vmatpush1.msra.mxu0 0.0
      %2078 = vmatprep.subr.mxu0 0.0
      %2079 = vmatpush1.msra.mxu0 0.0
      %2080 = vmatprep.subr.mxu0 0.0
      %2081 = vmatpush1.msra.mxu0 0.0
      %2082 = vmatprep.subr.mxu0 0.0
      %2083 = vmatpush1.msra.mxu0 0.0
      %2084 = vmatprep.subr.mxu0 0.0
      %2085 = vmatpush1.msra.mxu0 0.0
      %2086 = vmatprep.subr.mxu0 0.0
      %2087 = vmatpush1.msra.mxu0 0.0
      %2088 = vmatprep.subr.mxu0 0.0
      %2089 = vmatpush1.msra.mxu0 0.0
      %2090 = vmatprep.subr.mxu0 0.0
      %2091 = vmatpush1.msra.mxu0 0.0
      %2092 = vmatprep.subr.mxu0 0.0
      %2093 = vmatpush1.msra.mxu0 0.0
      %2094 = vmatprep.subr.mxu0 0.0
      %2095 = vmatpush1.msra.mxu0 0.0
      %2096 = vmatprep.subr.mxu0 0.0
      %2097 = vmatpush1.msra.mxu0 0.0
      %2098 = vmatprep.subr.mxu0 0.0
      %2099 = vmatpush1.msra.mxu0 0.0
      %2100 = vmatprep.subr.mxu0 0.0
      %2101 = vmatpush1.msra.mxu0 0.0
      %2102 = vmatprep.subr.mxu0 0.0
      %2103 = vmatpush1.msra.mxu0 0.0
      %2104 = vmatprep.subr.mxu0 0.0
      %2105 = vmatpush1.msra.mxu0 0.0
      %2106 = vmatprep.subr.mxu0 0.0
      %2107 = vmatpush1.msra.mxu0 0.0
      %2108 = vmatprep.subr.mxu0 0.0
      %2109 = vmatpush1.msra.mxu0 0.0
      %2110 = vmatprep.mubr.f32.mxu0 0.0
      %2111 = vmatmul.mubr.f32.gmra.mrb[0].mxu0 %v1948
      %v2112 = vpop.f32.mrb[0].mxu0
      %v2113 = vadd.f32 0.0, %v2112
      %v2114 = vpop.f32.mrb[0].mxu0
      %2115 = vmatprep.mubr.f32.mxu0 0.0
      %2116 = vmatmul.mubr.f32.gmra.mrb[0].mxu0 %v1951
      %v2117 = vpop.f32.mrb[0].mxu0
      %v2118 = vadd.f32 0.0, %v2117
      %v2119 = vpop.f32.mrb[0].mxu0
      %2120 = vmatprep.mubr.f32.mxu0 0.0
      %2121 = vmatmul.mubr.f32.gmra.mrb[0].mxu0 %v1954
      %v2122 = vpop.f32.mrb[0].mxu0
      %v2123 = vadd.f32 0.0, %v2122
      %v2124 = vpop.f32.mrb[0].mxu0
      %2125 = vmatprep.mubr.f32.mxu0 0.0
      %2126 = vmatmul.mubr.f32.gmra.mrb[0].mxu0 %v1957
      %v2127 = vpop.f32.mrb[0].mxu0
      %v2128 = vadd.f32 0.0, %v2127
      %v2129 = vpop.f32.mrb[0].mxu0
      %2130 = vmatprep.mubr.f32.mxu0 0.0
      %2131 = vmatmul.mubr.f32.gmra.mrb[0].mxu0 %v1960
      %v2132 = vpop.f32.mrb[0].mxu0
      %v2133 = vadd.f32 0.0, %v2132
      %v2134 = vpop.f32.mrb[0].mxu0
      %2135 = vmatprep.mubr.f32.mxu0 0.0
      %2136 = vmatmul.mubr.f32.gmra.mrb[0].mxu0 %v1963
      %v2137 = vpop.f32.mrb[0].mxu0
      %v2138 = vadd.f32 0.0, %v2137
      %v2139 = vpop.f32.mrb[0].mxu0
      %2140 = vmatprep.mubr.f32.mxu0 0.0
      %2141 = vmatmul.mubr.f32.gmra.mrb[0].mxu0 %v1966
      %v2142 = vpop.f32.mrb[0].mxu0
      %v2143 = vadd.f32 0.0, %v2142
      %v2144 = vpop.f32.mrb[0].mxu0
      %2145 = vmatprep.mubr.f32.mxu0 0.0
      %2146 = vmatmul.mubr.f32.gmra.mrb[0].mxu0 %v1969
      %v2147 = vpop.f32.mrb[0].mxu0
      %v2148 = vadd.f32 0.0, %v2147
      %v2149 = vpop.f32.mrb[0].mxu0
      %2150 = vmatprep.mubr.f32.mxu0 0.0
      %2151 = vmatmul.mubr.f32.gmra.mrb[0].mxu0 %v1972
      %v2152 = vpop.f32.mrb[0].mxu0
      %v2153 = vadd.f32 0.0, %v2152
      %v2154 = vpop.f32.mrb[0].mxu0
      %2155 = vmatprep.mubr.f32.mxu0 0.0
      %2156 = vmatmul.mubr.f32.gmra.mrb[0].mxu0 %v1975
      %v2157 = vpop.f32.mrb[0].mxu0
      %v2158 = vadd.f32 0.0, %v2157
      %v2159 = vpop.f32.mrb[0].mxu0
      %2160 = vmatprep.mubr.f32.mxu0 0.0
      %2161 = vmatmul.mubr.f32.gmra.mrb[0].mxu0 %v1978
      %v2162 = vpop.f32.mrb[0].mxu0
      %v2163 = vadd.f32 0.0, %v2162
      %v2164 = vpop.f32.mrb[0].mxu0
      %2165 = vmatprep.mubr.f32.mxu0 0.0
      %2166 = vmatmul.mubr.f32.gmra.mrb[0].mxu0 %v1981
      %v2167 = vpop.f32.mrb[0].mxu0
      %v2168 = vadd.f32 0.0, %v2167
      %v2169 = vpop.f32.mrb[0].mxu0
      %2170 = vmatprep.mubr.f32.mxu0 0.0
      %2171 = vmatmul.mubr.f32.gmra.mrb[0].mxu0 %v1984
      %v2172 = vpop.f32.mrb[0].mxu0
      %v2173 = vadd.f32 0.0, %v2172
      %v2174 = vpop.f32.mrb[0].mxu0
      %2175 = vmatprep.mubr.f32.mxu0 0.0
      %2176 = vmatmul.mubr.f32.gmra.mrb[0].mxu0 %v1987
      %v2177 = vpop.f32.mrb[0].mxu0
      %v2178 = vadd.f32 0.0, %v2177
      %v2179 = vpop.f32.mrb[0].mxu0
      %2180 = vmatprep.mubr.f32.mxu0 0.0
      %2181 = vmatmul.mubr.f32.gmra.mrb[0].mxu0 %v1990
      %v2182 = vpop.f32.mrb[0].mxu0
      %v2183 = vadd.f32 0.0, %v2182
      %v2184 = vpop.f32.mrb[0].mxu0
      %2185 = vmatprep.mubr.f32.mxu0 0.0
      %2186 = vmatmul.mubr.f32.gmra.mrb[0].mxu0 %v1993
      %v2187 = vpop.f32.mrb[0].mxu0
      %v2188 = vadd.f32 0.0, %v2187
      %v2189 = vpop.f32.mrb[0].mxu0
      %2190 = vmatprep.mubr.f32.mxu0 0.0
      %2191 = vmatmul.mubr.f32.gmra.mrb[0].mxu0 %v1996
      %v2192 = vpop.f32.mrb[0].mxu0
      %v2193 = vadd.f32 0.0, %v2192
      %v2194 = vpop.f32.mrb[0].mxu0
      %2195 = vmatprep.mubr.f32.mxu0 0.0
      %2196 = vmatmul.mubr.f32.gmra.mrb[0].mxu0 %v1999
      %v2197 = vpop.f32.mrb[0].mxu0
      %v2198 = vadd.f32 0.0, %v2197
      %v2199 = vpop.f32.mrb[0].mxu0
      %2200 = vmatprep.mubr.f32.mxu0 0.0
      %2201 = vmatmul.mubr.f32.gmra.mrb[0].mxu0 %v2002
      %v2202 = vpop.f32.mrb[0].mxu0
      %v2203 = vadd.f32 0.0, %v2202
      %v2204 = vpop.f32.mrb[0].mxu0
      %2205 = vmatprep.mubr.f32.mxu0 0.0
      %2206 = vmatmul.mubr.f32.gmra.mrb[0].mxu0 %v2005
      %v2207 = vpop.f32.mrb[0].mxu0
      %v2208 = vadd.f32 0.0, %v2207
      %v2209 = vpop.f32.mrb[0].mxu0
      %2210 = vmatprep.mubr.f32.mxu0 0.0
      %2211 = vmatmul.mubr.f32.gmra.mrb[0].mxu0 %v2008
      %v2212 = vpop.f32.mrb[0].mxu0
      %v2213 = vadd.f32 0.0, %v2212
      %v2214 = vpop.f32.mrb[0].mxu0
      %2215 = vmatprep.mubr.f32.mxu0 0.0
      %2216 = vmatmul.mubr.f32.gmra.mrb[0].mxu0 %v2011
      %v2217 = vpop.f32.mrb[0].mxu0
      %v2218 = vadd.f32 0.0, %v2217
      %v2219 = vpop.f32.mrb[0].mxu0
      %2220 = vmatprep.mubr.f32.mxu0 0.0
      %2221 = vmatmul.mubr.f32.gmra.mrb[0].mxu0 %v2014
      %v2222 = vpop.f32.mrb[0].mxu0
      %v2223 = vadd.f32 0.0, %v2222
      %v2224 = vpop.f32.mrb[0].mxu0
      %2225 = vmatprep.mubr.f32.mxu0 0.0
      %2226 = vmatmul.mubr.f32.gmra.mrb[0].mxu0 %v2017
      %v2227 = vpop.f32.mrb[0].mxu0
      %v2228 = vadd.f32 0.0, %v2227
      %v2229 = vpop.f32.mrb[0].mxu0
      %2230 = vmatprep.mubr.f32.mxu0 0.0
      %2231 = vmatmul.mubr.f32.gmra.mrb[0].mxu0 %v2020
      %v2232 = vpop.f32.mrb[0].mxu0
      %v2233 = vadd.f32 0.0, %v2232
      %v2234 = vpop.f32.mrb[0].mxu0
      %2235 = vmatprep.mubr.f32.mxu0 0.0
      %2236 = vmatmul.mubr.f32.gmra.mrb[0].mxu0 %v2023
      %v2237 = vpop.f32.mrb[0].mxu0
      %v2238 = vadd.f32 0.0, %v2237
      %v2239 = vpop.f32.mrb[0].mxu0
      %2240 = vmatprep.mubr.f32.mxu0 0.0
      %2241 = vmatmul.mubr.f32.gmra.mrb[0].mxu0 %v2026
      %v2242 = vpop.f32.mrb[0].mxu0
      %v2243 = vadd.f32 0.0, %v2242
      %v2244 = vpop.f32.mrb[0].mxu0
      %2245 = vmatprep.mubr.f32.mxu0 0.0
      %2246 = vmatmul.mubr.f32.gmra.mrb[0].mxu0 %v2029
      %v2247 = vpop.f32.mrb[0].mxu0
      %v2248 = vadd.f32 0.0, %v2247
      %v2249 = vpop.f32.mrb[0].mxu0
      %2250 = vmatprep.mubr.f32.mxu0 0.0
      %2251 = vmatmul.mubr.f32.gmra.mrb[0].mxu0 %v2032
      %v2252 = vpop.f32.mrb[0].mxu0
      %v2253 = vadd.f32 0.0, %v2252
      %v2254 = vpop.f32.mrb[0].mxu0
      %2255 = vmatprep.mubr.f32.mxu0 0.0
      %2256 = vmatmul.mubr.f32.gmra.mrb[0].mxu0 %v2035
      %v2257 = vpop.f32.mrb[0].mxu0
      %v2258 = vadd.f32 0.0, %v2257
      %v2259 = vpop.f32.mrb[0].mxu0
      %2260 = vmatprep.mubr.f32.mxu0 0.0
      %2261 = vmatmul.mubr.f32.gmra.mrb[0].mxu0 %v2038
      %v2262 = vpop.f32.mrb[0].mxu0
      %v2263 = vadd.f32 0.0, %v2262
      %v2264 = vpop.f32.mrb[0].mxu0
      %2265 = vmatprep.mubr.f32.mxu0 0.0
      %2266 = vmatmul.mubr.f32.gmra.mrb[0].mxu0 %v2041
      %v2267 = vpop.f32.mrb[0].mxu0
      %v2268 = vadd.f32 0.0, %v2267
      %v2269 = vpop.f32.mrb[0].mxu0
      %2270 = vdwg.mxu0
      %v2271 = vadd.f32 %v1881, %v2113
      %v2272 = vadd.f32 %v1882, %v2118
      %v2273 = vadd.f32 %v1883, %v2123
      %v2274 = vadd.f32 %v1884, %v2128
      %v2275 = vadd.f32 %v1885, %v2133
      %v2276 = vadd.f32 %v1886, %v2138
      %v2277 = vadd.f32 %v1887, %v2143
      %v2278 = vadd.f32 %v1888, %v2148
      %v2279 = vadd.f32 %v1889, %v2153
      %v2280 = vadd.f32 %v1890, %v2158
      %v2281 = vadd.f32 %v1891, %v2163
      %v2282 = vadd.f32 %v1892, %v2168
      %v2283 = vadd.f32 %v1893, %v2173
      %v2284 = vadd.f32 %v1894, %v2178
      %v2285 = vadd.f32 %v1895, %v2183
      %v2286 = vadd.f32 %v1896, %v2188
      %v2287 = vadd.f32 %v1897, %v2193
      %v2288 = vadd.f32 %v1898, %v2198
      %v2289 = vadd.f32 %v1899, %v2203
      %v2290 = vadd.f32 %v1900, %v2208
      %v2291 = vadd.f32 %v1901, %v2213
      %v2292 = vadd.f32 %v1902, %v2218
      %v2293 = vadd.f32 %v1903, %v2223
      %v2294 = vadd.f32 %v1904, %v2228
      %v2295 = vadd.f32 %v1905, %v2233
      %v2296 = vadd.f32 %v1906, %v2238
      %v2297 = vadd.f32 %v1907, %v2243
      %v2298 = vadd.f32 %v1908, %v2248
      %v2299 = vadd.f32 %v1909, %v2253
      %v2300 = vadd.f32 %v1910, %v2258
      %v2301 = vadd.f32 %v1911, %v2263
      %v2302 = vadd.f32 %v1912, %v2268
      %v2303 = vld [vmem:[%s384 + $0x2] sm:$0xff]
      %v2304 = vld [vmem:[%s384 + $0xa] sm:$0xff]
      %v2305 = vld [vmem:[%s384 + $0x1a] sm:$0xff]
      %v2306 = vld [vmem:[%s384 + $0x22] sm:$0xff]
      %v2307 = vld [vmem:[%s384 + $0x32] sm:$0xff]
      %v2308 = vld [vmem:[%s384 + $0x3a] sm:$0xff]
      %v2309 = vld [vmem:[%s384 + $0x4a] sm:$0xff]
      %v2310 = vld [vmem:[%s384 + $0x52] sm:$0xff]
      %v2311 = vld [vmem:[%s384 + $0x62] sm:$0xff]
      %v2312 = vld [vmem:[%s384 + $0x6a] sm:$0xff]
      %v2313 = vld [vmem:[%s384 + $0x7a] sm:$0xff]
      %v2314 = vld [vmem:[%s384 + $0x82] sm:$0xff]
      %v2315 = vld [vmem:[%s384 + $0x92] sm:$0xff]
      %v2316 = vld [vmem:[%s384 + $0x9a] sm:$0xff]
      %v2317 = vld [vmem:[%s384 + $0xaa] sm:$0xff]
      %v2318 = vld [vmem:[%s384 + $0xb2] sm:$0xff]
      %v2319 = vld [vmem:[%s384 + $0xc2] sm:$0xff]
      %v2320 = vld [vmem:[%s384 + $0xca] sm:$0xff]
      %v2321 = vld [vmem:[%s384 + $0xda] sm:$0xff]
      %v2322 = vld [vmem:[%s384 + $0xe2] sm:$0xff]
      %v2323 = vld [vmem:[%s384 + $0xf2] sm:$0xff]
      %v2324 = vld [vmem:[%s384 + $0xfa] sm:$0xff]
      %v2325 = vld [vmem:[%s384 + $0x10a] sm:$0xff]
      %v2326 = vld [vmem:[%s384 + $0x112] sm:$0xff]
      %v2327 = vld [vmem:[%s384 + $0x122] sm:$0xff]
      %v2328 = vld [vmem:[%s384 + $0x12a] sm:$0xff]
      %v2329 = vld [vmem:[%s384 + $0x13a] sm:$0xff]
      %v2330 = vld [vmem:[%s384 + $0x142] sm:$0xff]
      %v2331 = vld [vmem:[%s384 + $0x152] sm:$0xff]
      %v2332 = vld [vmem:[%s384 + $0x15a] sm:$0xff]
      %v2333 = vld [vmem:[%s384 + $0x16a] sm:$0xff]
      %v2334 = vld [vmem:[%s384 + $0x172] sm:$0xff]
      %s2335 = scalar_lea.vmem %s1, 20
      %v2336 = vld [vmem:[%s2335] sm:$0xf]
      %v2338 = vsel %vm328, %v2303, 0
      %v2341 = vsel %vm328, %v2304, 0
      %v2344 = vsel %vm328, %v2305, 0
      %v2347 = vsel %vm328, %v2306, 0
      %v2350 = vsel %vm328, %v2307, 0
      %v2353 = vsel %vm328, %v2308, 0
      %v2356 = vsel %vm328, %v2309, 0
      %v2359 = vsel %vm328, %v2310, 0
      %v2362 = vsel %vm328, %v2311, 0
      %v2365 = vsel %vm328, %v2312, 0
      %v2368 = vsel %vm328, %v2313, 0
      %v2371 = vsel %vm328, %v2314, 0
      %v2374 = vsel %vm328, %v2315, 0
      %v2377 = vsel %vm328, %v2316, 0
      %v2380 = vsel %vm328, %v2317, 0
      %v2383 = vsel %vm328, %v2318, 0
      %v2386 = vsel %vm328, %v2319, 0
      %v2389 = vsel %vm328, %v2320, 0
      %v2392 = vsel %vm328, %v2321, 0
      %v2395 = vsel %vm328, %v2322, 0
      %v2398 = vsel %vm328, %v2323, 0
      %v2401 = vsel %vm328, %v2324, 0
      %v2404 = vsel %vm328, %v2325, 0
      %v2407 = vsel %vm328, %v2326, 0
      %v2410 = vsel %vm328, %v2327, 0
      %v2413 = vsel %vm328, %v2328, 0
      %v2416 = vsel %vm328, %v2329, 0
      %v2419 = vsel %vm328, %v2330, 0
      %v2422 = vsel %vm328, %v2331, 0
      %v2425 = vsel %vm328, %v2332, 0
      %v2428 = vsel %vm328, %v2333, 0
      %v2431 = vsel %vm328, %v2334, 0
      %v2434 = vsel %vm580, %v2336, 0
      %2436 = vmatprep.subr.mxu0 0.0
      %2437 = vmatpush1.msra.mxu0 %v2434
      %2438 = vmatprep.subr.mxu0 0.0
      %2439 = vmatpush1.msra.mxu0 0.0
      %2440 = vmatprep.subr.mxu0 0.0
      %2441 = vmatpush1.msra.mxu0 0.0
      %2442 = vmatprep.subr.mxu0 0.0
      %2443 = vmatpush1.msra.mxu0 0.0
      %2444 = vmatprep.subr.mxu0 0.0
      %2445 = vmatpush1.msra.mxu0 0.0
      %2446 = vmatprep.subr.mxu0 0.0
      %2447 = vmatpush1.msra.mxu0 0.0
      %2448 = vmatprep.subr.mxu0 0.0
      %2449 = vmatpush1.msra.mxu0 0.0
      %2450 = vmatprep.subr.mxu0 0.0
      %2451 = vmatpush1.msra.mxu0 0.0
      %2452 = vmatprep.subr.mxu0 0.0
      %2453 = vmatpush1.msra.mxu0 0.0
      %2454 = vmatprep.subr.mxu0 0.0
      %2455 = vmatpush1.msra.mxu0 0.0
      %2456 = vmatprep.subr.mxu0 0.0
      %2457 = vmatpush1.msra.mxu0 0.0
      %2458 = vmatprep.subr.mxu0 0.0
      %2459 = vmatpush1.msra.mxu0 0.0
      %2460 = vmatprep.subr.mxu0 0.0
      %2461 = vmatpush1.msra.mxu0 0.0
      %2462 = vmatprep.subr.mxu0 0.0
      %2463 = vmatpush1.msra.mxu0 0.0
      %2464 = vmatprep.subr.mxu0 0.0
      %2465 = vmatpush1.msra.mxu0 0.0
      %2466 = vmatprep.subr.mxu0 0.0
      %2467 = vmatpush1.msra.mxu0 0.0
      %2468 = vmatprep.subr.mxu0 0.0
      %2469 = vmatpush1.msra.mxu0 0.0
      %2470 = vmatprep.subr.mxu0 0.0
      %2471 = vmatpush1.msra.mxu0 0.0
      %2472 = vmatprep.subr.mxu0 0.0
      %2473 = vmatpush1.msra.mxu0 0.0
      %2474 = vmatprep.subr.mxu0 0.0
      %2475 = vmatpush1.msra.mxu0 0.0
      %2476 = vmatprep.subr.mxu0 0.0
      %2477 = vmatpush1.msra.mxu0 0.0
      %2478 = vmatprep.subr.mxu0 0.0
      %2479 = vmatpush1.msra.mxu0 0.0
      %2480 = vmatprep.subr.mxu0 0.0
      %2481 = vmatpush1.msra.mxu0 0.0
      %2482 = vmatprep.subr.mxu0 0.0
      %2483 = vmatpush1.msra.mxu0 0.0
      %2484 = vmatprep.subr.mxu0 0.0
      %2485 = vmatpush1.msra.mxu0 0.0
      %2486 = vmatprep.subr.mxu0 0.0
      %2487 = vmatpush1.msra.mxu0 0.0
      %2488 = vmatprep.subr.mxu0 0.0
      %2489 = vmatpush1.msra.mxu0 0.0
      %2490 = vmatprep.subr.mxu0 0.0
      %2491 = vmatpush1.msra.mxu0 0.0
      %2492 = vmatprep.subr.mxu0 0.0
      %2493 = vmatpush1.msra.mxu0 0.0
      %2494 = vmatprep.subr.mxu0 0.0
      %2495 = vmatpush1.msra.mxu0 0.0
      %2496 = vmatprep.subr.mxu0 0.0
      %2497 = vmatpush1.msra.mxu0 0.0
      %2498 = vmatprep.subr.mxu0 0.0
      %2499 = vmatpush1.msra.mxu0 0.0
      %2500 = vmatprep.mubr.f32.mxu0 0.0
      %2501 = vmatmul.mubr.f32.gmra.mrb[0].mxu0 %v2338
      %v2502 = vpop.f32.mrb[0].mxu0
      %v2503 = vadd.f32 0.0, %v2502
      %v2504 = vpop.f32.mrb[0].mxu0
      %2505 = vmatprep.mubr.f32.mxu0 0.0
      %2506 = vmatmul.mubr.f32.gmra.mrb[0].mxu0 %v2341
      %v2507 = vpop.f32.mrb[0].mxu0
      %v2508 = vadd.f32 0.0, %v2507
      %v2509 = vpop.f32.mrb[0].mxu0
      %2510 = vmatprep.mubr.f32.mxu0 0.0
      %2511 = vmatmul.mubr.f32.gmra.mrb[0].mxu0 %v2344
      %v2512 = vpop.f32.mrb[0].mxu0
      %v2513 = vadd.f32 0.0, %v2512
      %v2514 = vpop.f32.mrb[0].mxu0
      %2515 = vmatprep.mubr.f32.mxu0 0.0
      %2516 = vmatmul.mubr.f32.gmra.mrb[0].mxu0 %v2347
      %v2517 = vpop.f32.mrb[0].mxu0
      %v2518 = vadd.f32 0.0, %v2517
      %v2519 = vpop.f32.mrb[0].mxu0
      %2520 = vmatprep.mubr.f32.mxu0 0.0
      %2521 = vmatmul.mubr.f32.gmra.mrb[0].mxu0 %v2350
      %v2522 = vpop.f32.mrb[0].mxu0
      %v2523 = vadd.f32 0.0, %v2522
      %v2524 = vpop.f32.mrb[0].mxu0
      %2525 = vmatprep.mubr.f32.mxu0 0.0
      %2526 = vmatmul.mubr.f32.gmra.mrb[0].mxu0 %v2353
      %v2527 = vpop.f32.mrb[0].mxu0
      %v2528 = vadd.f32 0.0, %v2527
      %v2529 = vpop.f32.mrb[0].mxu0
      %2530 = vmatprep.mubr.f32.mxu0 0.0
      %2531 = vmatmul.mubr.f32.gmra.mrb[0].mxu0 %v2356
      %v2532 = vpop.f32.mrb[0].mxu0
      %v2533 = vadd.f32 0.0, %v2532
      %v2534 = vpop.f32.mrb[0].mxu0
      %2535 = vmatprep.mubr.f32.mxu0 0.0
      %2536 = vmatmul.mubr.f32.gmra.mrb[0].mxu0 %v2359
      %v2537 = vpop.f32.mrb[0].mxu0
      %v2538 = vadd.f32 0.0, %v2537
      %v2539 = vpop.f32.mrb[0].mxu0
      %2540 = vmatprep.mubr.f32.mxu0 0.0
      %2541 = vmatmul.mubr.f32.gmra.mrb[0].mxu0 %v2362
      %v2542 = vpop.f32.mrb[0].mxu0
      %v2543 = vadd.f32 0.0, %v2542
      %v2544 = vpop.f32.mrb[0].mxu0
      %2545 = vmatprep.mubr.f32.mxu0 0.0
      %2546 = vmatmul.mubr.f32.gmra.mrb[0].mxu0 %v2365
      %v2547 = vpop.f32.mrb[0].mxu0
      %v2548 = vadd.f32 0.0, %v2547
      %v2549 = vpop.f32.mrb[0].mxu0
      %2550 = vmatprep.mubr.f32.mxu0 0.0
      %2551 = vmatmul.mubr.f32.gmra.mrb[0].mxu0 %v2368
      %v2552 = vpop.f32.mrb[0].mxu0
      %v2553 = vadd.f32 0.0, %v2552
      %v2554 = vpop.f32.mrb[0].mxu0
      %2555 = vmatprep.mubr.f32.mxu0 0.0
      %2556 = vmatmul.mubr.f32.gmra.mrb[0].mxu0 %v2371
      %v2557 = vpop.f32.mrb[0].mxu0
      %v2558 = vadd.f32 0.0, %v2557
      %v2559 = vpop.f32.mrb[0].mxu0
      %2560 = vmatprep.mubr.f32.mxu0 0.0
      %2561 = vmatmul.mubr.f32.gmra.mrb[0].mxu0 %v2374
      %v2562 = vpop.f32.mrb[0].mxu0
      %v2563 = vadd.f32 0.0, %v2562
      %v2564 = vpop.f32.mrb[0].mxu0
      %2565 = vmatprep.mubr.f32.mxu0 0.0
      %2566 = vmatmul.mubr.f32.gmra.mrb[0].mxu0 %v2377
      %v2567 = vpop.f32.mrb[0].mxu0
      %v2568 = vadd.f32 0.0, %v2567
      %v2569 = vpop.f32.mrb[0].mxu0
      %2570 = vmatprep.mubr.f32.mxu0 0.0
      %2571 = vmatmul.mubr.f32.gmra.mrb[0].mxu0 %v2380
      %v2572 = vpop.f32.mrb[0].mxu0
      %v2573 = vadd.f32 0.0, %v2572
      %v2574 = vpop.f32.mrb[0].mxu0
      %2575 = vmatprep.mubr.f32.mxu0 0.0
      %2576 = vmatmul.mubr.f32.gmra.mrb[0].mxu0 %v2383
      %v2577 = vpop.f32.mrb[0].mxu0
      %v2578 = vadd.f32 0.0, %v2577
      %v2579 = vpop.f32.mrb[0].mxu0
      %2580 = vmatprep.mubr.f32.mxu0 0.0
      %2581 = vmatmul.mubr.f32.gmra.mrb[0].mxu0 %v2386
      %v2582 = vpop.f32.mrb[0].mxu0
      %v2583 = vadd.f32 0.0, %v2582
      %v2584 = vpop.f32.mrb[0].mxu0
      %2585 = vmatprep.mubr.f32.mxu0 0.0
      %2586 = vmatmul.mubr.f32.gmra.mrb[0].mxu0 %v2389
      %v2587 = vpop.f32.mrb[0].mxu0
      %v2588 = vadd.f32 0.0, %v2587
      %v2589 = vpop.f32.mrb[0].mxu0
      %2590 = vmatprep.mubr.f32.mxu0 0.0
      %2591 = vmatmul.mubr.f32.gmra.mrb[0].mxu0 %v2392
      %v2592 = vpop.f32.mrb[0].mxu0
      %v2593 = vadd.f32 0.0, %v2592
      %v2594 = vpop.f32.mrb[0].mxu0
      %2595 = vmatprep.mubr.f32.mxu0 0.0
      %2596 = vmatmul.mubr.f32.gmra.mrb[0].mxu0 %v2395
      %v2597 = vpop.f32.mrb[0].mxu0
      %v2598 = vadd.f32 0.0, %v2597
      %v2599 = vpop.f32.mrb[0].mxu0
      %2600 = vmatprep.mubr.f32.mxu0 0.0
      %2601 = vmatmul.mubr.f32.gmra.mrb[0].mxu0 %v2398
      %v2602 = vpop.f32.mrb[0].mxu0
      %v2603 = vadd.f32 0.0, %v2602
      %v2604 = vpop.f32.mrb[0].mxu0
      %2605 = vmatprep.mubr.f32.mxu0 0.0
      %2606 = vmatmul.mubr.f32.gmra.mrb[0].mxu0 %v2401
      %v2607 = vpop.f32.mrb[0].mxu0
      %v2608 = vadd.f32 0.0, %v2607
      %v2609 = vpop.f32.mrb[0].mxu0
      %2610 = vmatprep.mubr.f32.mxu0 0.0
      %2611 = vmatmul.mubr.f32.gmra.mrb[0].mxu0 %v2404
      %v2612 = vpop.f32.mrb[0].mxu0
      %v2613 = vadd.f32 0.0, %v2612
      %v2614 = vpop.f32.mrb[0].mxu0
      %2615 = vmatprep.mubr.f32.mxu0 0.0
      %2616 = vmatmul.mubr.f32.gmra.mrb[0].mxu0 %v2407
      %v2617 = vpop.f32.mrb[0].mxu0
      %v2618 = vadd.f32 0.0, %v2617
      %v2619 = vpop.f32.mrb[0].mxu0
      %2620 = vmatprep.mubr.f32.mxu0 0.0
      %2621 = vmatmul.mubr.f32.gmra.mrb[0].mxu0 %v2410
      %v2622 = vpop.f32.mrb[0].mxu0
      %v2623 = vadd.f32 0.0, %v2622
      %v2624 = vpop.f32.mrb[0].mxu0
      %2625 = vmatprep.mubr.f32.mxu0 0.0
      %2626 = vmatmul.mubr.f32.gmra.mrb[0].mxu0 %v2413
      %v2627 = vpop.f32.mrb[0].mxu0
      %v2628 = vadd.f32 0.0, %v2627
      %v2629 = vpop.f32.mrb[0].mxu0
      %2630 = vmatprep.mubr.f32.mxu0 0.0
      %2631 = vmatmul.mubr.f32.gmra.mrb[0].mxu0 %v2416
      %v2632 = vpop.f32.mrb[0].mxu0
      %v2633 = vadd.f32 0.0, %v2632
      %v2634 = vpop.f32.mrb[0].mxu0
      %2635 = vmatprep.mubr.f32.mxu0 0.0
      %2636 = vmatmul.mubr.f32.gmra.mrb[0].mxu0 %v2419
      %v2637 = vpop.f32.mrb[0].mxu0
      %v2638 = vadd.f32 0.0, %v2637
      %v2639 = vpop.f32.mrb[0].mxu0
      %2640 = vmatprep.mubr.f32.mxu0 0.0
      %2641 = vmatmul.mubr.f32.gmra.mrb[0].mxu0 %v2422
      %v2642 = vpop.f32.mrb[0].mxu0
      %v2643 = vadd.f32 0.0, %v2642
      %v2644 = vpop.f32.mrb[0].mxu0
      %2645 = vmatprep.mubr.f32.mxu0 0.0
      %2646 = vmatmul.mubr.f32.gmra.mrb[0].mxu0 %v2425
      %v2647 = vpop.f32.mrb[0].mxu0
      %v2648 = vadd.f32 0.0, %v2647
      %v2649 = vpop.f32.mrb[0].mxu0
      %2650 = vmatprep.mubr.f32.mxu0 0.0
      %2651 = vmatmul.mubr.f32.gmra.mrb[0].mxu0 %v2428
      %v2652 = vpop.f32.mrb[0].mxu0
      %v2653 = vadd.f32 0.0, %v2652
      %v2654 = vpop.f32.mrb[0].mxu0
      %2655 = vmatprep.mubr.f32.mxu0 0.0
      %2656 = vmatmul.mubr.f32.gmra.mrb[0].mxu0 %v2431
      %v2657 = vpop.f32.mrb[0].mxu0
      %v2658 = vadd.f32 0.0, %v2657
      %v2659 = vpop.f32.mrb[0].mxu0
      %2660 = vdwg.mxu0
      %v2661 = vadd.f32 %v2271, %v2503
      %v2662 = vadd.f32 %v2272, %v2508
      %v2663 = vadd.f32 %v2273, %v2513
      %v2664 = vadd.f32 %v2274, %v2518
      %v2665 = vadd.f32 %v2275, %v2523
      %v2666 = vadd.f32 %v2276, %v2528
      %v2667 = vadd.f32 %v2277, %v2533
      %v2668 = vadd.f32 %v2278, %v2538
      %v2669 = vadd.f32 %v2279, %v2543
      %v2670 = vadd.f32 %v2280, %v2548
      %v2671 = vadd.f32 %v2281, %v2553
      %v2672 = vadd.f32 %v2282, %v2558
      %v2673 = vadd.f32 %v2283, %v2563
      %v2674 = vadd.f32 %v2284, %v2568
      %v2675 = vadd.f32 %v2285, %v2573
      %v2676 = vadd.f32 %v2286, %v2578
      %v2677 = vadd.f32 %v2287, %v2583
      %v2678 = vadd.f32 %v2288, %v2588
      %v2679 = vadd.f32 %v2289, %v2593
      %v2680 = vadd.f32 %v2290, %v2598
      %v2681 = vadd.f32 %v2291, %v2603
      %v2682 = vadd.f32 %v2292, %v2608
      %v2683 = vadd.f32 %v2293, %v2613
      %v2684 = vadd.f32 %v2294, %v2618
      %v2685 = vadd.f32 %v2295, %v2623
      %v2686 = vadd.f32 %v2296, %v2628
      %v2687 = vadd.f32 %v2297, %v2633
      %v2688 = vadd.f32 %v2298, %v2638
      %v2689 = vadd.f32 %v2299, %v2643
      %v2690 = vadd.f32 %v2300, %v2648
      %v2691 = vadd.f32 %v2301, %v2653
      %v2692 = vadd.f32 %v2302, %v2658
      %s2693 = scalar_lea.vmem [#allocation2], 48
      %v2694 = vld [vmem:[%s2693] sm:$0xff]
      %v2695 = vld [vmem:[%s2693 + $0x8] sm:$0xff]
      %v2696 = vld [vmem:[%s2693 + $0x18] sm:$0xff]
      %v2697 = vld [vmem:[%s2693 + $0x20] sm:$0xff]
      %v2698 = vld [vmem:[%s2693 + $0x30] sm:$0xff]
      %v2699 = vld [vmem:[%s2693 + $0x38] sm:$0xff]
      %v2700 = vld [vmem:[%s2693 + $0x48] sm:$0xff]
      %v2701 = vld [vmem:[%s2693 + $0x50] sm:$0xff]
      %v2702 = vld [vmem:[%s2693 + $0x60] sm:$0xff]
      %v2703 = vld [vmem:[%s2693 + $0x68] sm:$0xff]
      %v2704 = vld [vmem:[%s2693 + $0x78] sm:$0xff]
      %v2705 = vld [vmem:[%s2693 + $0x80] sm:$0xff]
      %v2706 = vld [vmem:[%s2693 + $0x90] sm:$0xff]
      %v2707 = vld [vmem:[%s2693 + $0x98] sm:$0xff]
      %v2708 = vld [vmem:[%s2693 + $0xa8] sm:$0xff]
      %v2709 = vld [vmem:[%s2693 + $0xb0] sm:$0xff]
      %v2710 = vld [vmem:[%s2693 + $0xc0] sm:$0xff]
      %v2711 = vld [vmem:[%s2693 + $0xc8] sm:$0xff]
      %v2712 = vld [vmem:[%s2693 + $0xd8] sm:$0xff]
      %v2713 = vld [vmem:[%s2693 + $0xe0] sm:$0xff]
      %v2714 = vld [vmem:[%s2693 + $0xf0] sm:$0xff]
      %v2715 = vld [vmem:[%s2693 + $0xf8] sm:$0xff]
      %v2716 = vld [vmem:[%s2693 + $0x108] sm:$0xff]
      %v2717 = vld [vmem:[%s2693 + $0x110] sm:$0xff]
      %v2718 = vld [vmem:[%s2693 + $0x120] sm:$0xff]
      %v2719 = vld [vmem:[%s2693 + $0x128] sm:$0xff]
      %v2720 = vld [vmem:[%s2693 + $0x138] sm:$0xff]
      %v2721 = vld [vmem:[%s2693 + $0x140] sm:$0xff]
      %v2722 = vld [vmem:[%s2693 + $0x150] sm:$0xff]
      %v2723 = vld [vmem:[%s2693 + $0x158] sm:$0xff]
      %v2724 = vld [vmem:[%s2693 + $0x168] sm:$0xff]
      %v2725 = vld [vmem:[%s2693 + $0x170] sm:$0xff]
      %s2726 = scalar_lea.vmem %s1, 24
      %v2727 = vld [vmem:[%s2726] sm:$0xf]
      %v2729 = vsel %vm328, %v2694, 0
      %v2732 = vsel %vm328, %v2695, 0
      %v2735 = vsel %vm328, %v2696, 0
      %v2738 = vsel %vm328, %v2697, 0
      %v2741 = vsel %vm328, %v2698, 0
      %v2744 = vsel %vm328, %v2699, 0
      %v2747 = vsel %vm328, %v2700, 0
      %v2750 = vsel %vm328, %v2701, 0
      %v2753 = vsel %vm328, %v2702, 0
      %v2756 = vsel %vm328, %v2703, 0
      %v2759 = vsel %vm328, %v2704, 0
      %v2762 = vsel %vm328, %v2705, 0
      %v2765 = vsel %vm328, %v2706, 0
      %v2768 = vsel %vm328, %v2707, 0
      %v2771 = vsel %vm328, %v2708, 0
      %v2774 = vsel %vm328, %v2709, 0
      %v2777 = vsel %vm328, %v2710, 0
      %v2780 = vsel %vm328, %v2711, 0
      %v2783 = vsel %vm328, %v2712, 0
      %v2786 = vsel %vm328, %v2713, 0
      %v2789 = vsel %vm328, %v2714, 0
      %v2792 = vsel %vm328, %v2715, 0
      %v2795 = vsel %vm328, %v2716, 0
      %v2798 = vsel %vm328, %v2717, 0
      %v2801 = vsel %vm328, %v2718, 0
      %v2804 = vsel %vm328, %v2719, 0
      %v2807 = vsel %vm328, %v2720, 0
      %v2810 = vsel %vm328, %v2721, 0
      %v2813 = vsel %vm328, %v2722, 0
      %v2816 = vsel %vm328, %v2723, 0
      %v2819 = vsel %vm328, %v2724, 0
      %v2822 = vsel %vm328, %v2725, 0
      %v2825 = vsel %vm580, %v2727, 0
      %2827 = vmatprep.subr.mxu0 0.0
      %2828 = vmatpush1.msra.mxu0 %v2825
      %2829 = vmatprep.subr.mxu0 0.0
      %2830 = vmatpush1.msra.mxu0 0.0
      %2831 = vmatprep.subr.mxu0 0.0
      %2832 = vmatpush1.msra.mxu0 0.0
      %2833 = vmatprep.subr.mxu0 0.0
      %2834 = vmatpush1.msra.mxu0 0.0
      %2835 = vmatprep.subr.mxu0 0.0
      %2836 = vmatpush1.msra.mxu0 0.0
      %2837 = vmatprep.subr.mxu0 0.0
      %2838 = vmatpush1.msra.mxu0 0.0
      %2839 = vmatprep.subr.mxu0 0.0
      %2840 = vmatpush1.msra.mxu0 0.0
      %2841 = vmatprep.subr.mxu0 0.0
      %2842 = vmatpush1.msra.mxu0 0.0
      %2843 = vmatprep.subr.mxu0 0.0
      %2844 = vmatpush1.msra.mxu0 0.0
      %2845 = vmatprep.subr.mxu0 0.0
      %2846 = vmatpush1.msra.mxu0 0.0
      %2847 = vmatprep.subr.mxu0 0.0
      %2848 = vmatpush1.msra.mxu0 0.0
      %2849 = vmatprep.subr.mxu0 0.0
      %2850 = vmatpush1.msra.mxu0 0.0
      %2851 = vmatprep.subr.mxu0 0.0
      %2852 = vmatpush1.msra.mxu0 0.0
      %2853 = vmatprep.subr.mxu0 0.0
      %2854 = vmatpush1.msra.mxu0 0.0
      %2855 = vmatprep.subr.mxu0 0.0
      %2856 = vmatpush1.msra.mxu0 0.0
      %2857 = vmatprep.subr.mxu0 0.0
      %2858 = vmatpush1.msra.mxu0 0.0
      %2859 = vmatprep.subr.mxu0 0.0
      %2860 = vmatpush1.msra.mxu0 0.0
      %2861 = vmatprep.subr.mxu0 0.0
      %2862 = vmatpush1.msra.mxu0 0.0
      %2863 = vmatprep.subr.mxu0 0.0
      %2864 = vmatpush1.msra.mxu0 0.0
      %2865 = vmatprep.subr.mxu0 0.0
      %2866 = vmatpush1.msra.mxu0 0.0
      %2867 = vmatprep.subr.mxu0 0.0
      %2868 = vmatpush1.msra.mxu0 0.0
      %2869 = vmatprep.subr.mxu0 0.0
      %2870 = vmatpush1.msra.mxu0 0.0
      %2871 = vmatprep.subr.mxu0 0.0
      %2872 = vmatpush1.msra.mxu0 0.0
      %2873 = vmatprep.subr.mxu0 0.0
      %2874 = vmatpush1.msra.mxu0 0.0
      %2875 = vmatprep.subr.mxu0 0.0
      %2876 = vmatpush1.msra.mxu0 0.0
      %2877 = vmatprep.subr.mxu0 0.0
      %2878 = vmatpush1.msra.mxu0 0.0
      %2879 = vmatprep.subr.mxu0 0.0
      %2880 = vmatpush1.msra.mxu0 0.0
      %2881 = vmatprep.subr.mxu0 0.0
      %2882 = vmatpush1.msra.mxu0 0.0
      %2883 = vmatprep.subr.mxu0 0.0
      %2884 = vmatpush1.msra.mxu0 0.0
      %2885 = vmatprep.subr.mxu0 0.0
      %2886 = vmatpush1.msra.mxu0 0.0
      %2887 = vmatprep.subr.mxu0 0.0
      %2888 = vmatpush1.msra.mxu0 0.0
      %2889 = vmatprep.subr.mxu0 0.0
      %2890 = vmatpush1.msra.mxu0 0.0
      %2891 = vmatprep.mubr.f32.mxu0 0.0
      %2892 = vmatmul.mubr.f32.gmra.mrb[0].mxu0 %v2729
      %v2893 = vpop.f32.mrb[0].mxu0
      %v2894 = vadd.f32 0.0, %v2893
      %v2895 = vpop.f32.mrb[0].mxu0
      %2896 = vmatprep.mubr.f32.mxu0 0.0
      %2897 = vmatmul.mubr.f32.gmra.mrb[0].mxu0 %v2732
      %v2898 = vpop.f32.mrb[0].mxu0
      %v2899 = vadd.f32 0.0, %v2898
      %v2900 = vpop.f32.mrb[0].mxu0
      %2901 = vmatprep.mubr.f32.mxu0 0.0
      %2902 = vmatmul.mubr.f32.gmra.mrb[0].mxu0 %v2735
      %v2903 = vpop.f32.mrb[0].mxu0
      %v2904 = vadd.f32 0.0, %v2903
      %v2905 = vpop.f32.mrb[0].mxu0
      %2906 = vmatprep.mubr.f32.mxu0 0.0
      %2907 = vmatmul.mubr.f32.gmra.mrb[0].mxu0 %v2738
      %v2908 = vpop.f32.mrb[0].mxu0
      %v2909 = vadd.f32 0.0, %v2908
      %v2910 = vpop.f32.mrb[0].mxu0
      %2911 = vmatprep.mubr.f32.mxu0 0.0
      %2912 = vmatmul.mubr.f32.gmra.mrb[0].mxu0 %v2741
      %v2913 = vpop.f32.mrb[0].mxu0
      %v2914 = vadd.f32 0.0, %v2913
      %v2915 = vpop.f32.mrb[0].mxu0
      %2916 = vmatprep.mubr.f32.mxu0 0.0
      %2917 = vmatmul.mubr.f32.gmra.mrb[0].mxu0 %v2744
      %v2918 = vpop.f32.mrb[0].mxu0
      %v2919 = vadd.f32 0.0, %v2918
      %v2920 = vpop.f32.mrb[0].mxu0
      %2921 = vmatprep.mubr.f32.mxu0 0.0
      %2922 = vmatmul.mubr.f32.gmra.mrb[0].mxu0 %v2747
      %v2923 = vpop.f32.mrb[0].mxu0
      %v2924 = vadd.f32 0.0, %v2923
      %v2925 = vpop.f32.mrb[0].mxu0
      %2926 = vmatprep.mubr.f32.mxu0 0.0
      %2927 = vmatmul.mubr.f32.gmra.mrb[0].mxu0 %v2750
      %v2928 = vpop.f32.mrb[0].mxu0
      %v2929 = vadd.f32 0.0, %v2928
      %v2930 = vpop.f32.mrb[0].mxu0
      %2931 = vmatprep.mubr.f32.mxu0 0.0
      %2932 = vmatmul.mubr.f32.gmra.mrb[0].mxu0 %v2753
      %v2933 = vpop.f32.mrb[0].mxu0
      %v2934 = vadd.f32 0.0, %v2933
      %v2935 = vpop.f32.mrb[0].mxu0
      %2936 = vmatprep.mubr.f32.mxu0 0.0
      %2937 = vmatmul.mubr.f32.gmra.mrb[0].mxu0 %v2756
      %v2938 = vpop.f32.mrb[0].mxu0
      %v2939 = vadd.f32 0.0, %v2938
      %v2940 = vpop.f32.mrb[0].mxu0
      %2941 = vmatprep.mubr.f32.mxu0 0.0
      %2942 = vmatmul.mubr.f32.gmra.mrb[0].mxu0 %v2759
      %v2943 = vpop.f32.mrb[0].mxu0
      %v2944 = vadd.f32 0.0, %v2943
      %v2945 = vpop.f32.mrb[0].mxu0
      %2946 = vmatprep.mubr.f32.mxu0 0.0
      %2947 = vmatmul.mubr.f32.gmra.mrb[0].mxu0 %v2762
      %v2948 = vpop.f32.mrb[0].mxu0
      %v2949 = vadd.f32 0.0, %v2948
      %v2950 = vpop.f32.mrb[0].mxu0
      %2951 = vmatprep.mubr.f32.mxu0 0.0
      %2952 = vmatmul.mubr.f32.gmra.mrb[0].mxu0 %v2765
      %v2953 = vpop.f32.mrb[0].mxu0
      %v2954 = vadd.f32 0.0, %v2953
      %v2955 = vpop.f32.mrb[0].mxu0
      %2956 = vmatprep.mubr.f32.mxu0 0.0
      %2957 = vmatmul.mubr.f32.gmra.mrb[0].mxu0 %v2768
      %v2958 = vpop.f32.mrb[0].mxu0
      %v2959 = vadd.f32 0.0, %v2958
      %v2960 = vpop.f32.mrb[0].mxu0
      %2961 = vmatprep.mubr.f32.mxu0 0.0
      %2962 = vmatmul.mubr.f32.gmra.mrb[0].mxu0 %v2771
      %v2963 = vpop.f32.mrb[0].mxu0
      %v2964 = vadd.f32 0.0, %v2963
      %v2965 = vpop.f32.mrb[0].mxu0
      %2966 = vmatprep.mubr.f32.mxu0 0.0
      %2967 = vmatmul.mubr.f32.gmra.mrb[0].mxu0 %v2774
      %v2968 = vpop.f32.mrb[0].mxu0
      %v2969 = vadd.f32 0.0, %v2968
      %v2970 = vpop.f32.mrb[0].mxu0
      %2971 = vmatprep.mubr.f32.mxu0 0.0
      %2972 = vmatmul.mubr.f32.gmra.mrb[0].mxu0 %v2777
      %v2973 = vpop.f32.mrb[0].mxu0
      %v2974 = vadd.f32 0.0, %v2973
      %v2975 = vpop.f32.mrb[0].mxu0
      %2976 = vmatprep.mubr.f32.mxu0 0.0
      %2977 = vmatmul.mubr.f32.gmra.mrb[0].mxu0 %v2780
      %v2978 = vpop.f32.mrb[0].mxu0
      %v2979 = vadd.f32 0.0, %v2978
      %v2980 = vpop.f32.mrb[0].mxu0
      %2981 = vmatprep.mubr.f32.mxu0 0.0
      %2982 = vmatmul.mubr.f32.gmra.mrb[0].mxu0 %v2783
      %v2983 = vpop.f32.mrb[0].mxu0
      %v2984 = vadd.f32 0.0, %v2983
      %v2985 = vpop.f32.mrb[0].mxu0
      %2986 = vmatprep.mubr.f32.mxu0 0.0
      %2987 = vmatmul.mubr.f32.gmra.mrb[0].mxu0 %v2786
      %v2988 = vpop.f32.mrb[0].mxu0
      %v2989 = vadd.f32 0.0, %v2988
      %v2990 = vpop.f32.mrb[0].mxu0
      %2991 = vmatprep.mubr.f32.mxu0 0.0
      %2992 = vmatmul.mubr.f32.gmra.mrb[0].mxu0 %v2789
      %v2993 = vpop.f32.mrb[0].mxu0
      %v2994 = vadd.f32 0.0, %v2993
      %v2995 = vpop.f32.mrb[0].mxu0
      %2996 = vmatprep.mubr.f32.mxu0 0.0
      %2997 = vmatmul.mubr.f32.gmra.mrb[0].mxu0 %v2792
      %v2998 = vpop.f32.mrb[0].mxu0
      %v2999 = vadd.f32 0.0, %v2998
      %v3000 = vpop.f32.mrb[0].mxu0
      %3001 = vmatprep.mubr.f32.mxu0 0.0
      %3002 = vmatmul.mubr.f32.gmra.mrb[0].mxu0 %v2795
      %v3003 = vpop.f32.mrb[0].mxu0
      %v3004 = vadd.f32 0.0, %v3003
      %v3005 = vpop.f32.mrb[0].mxu0
      %3006 = vmatprep.mubr.f32.mxu0 0.0
      %3007 = vmatmul.mubr.f32.gmra.mrb[0].mxu0 %v2798
      %v3008 = vpop.f32.mrb[0].mxu0
      %v3009 = vadd.f32 0.0, %v3008
      %v3010 = vpop.f32.mrb[0].mxu0
      %3011 = vmatprep.mubr.f32.mxu0 0.0
      %3012 = vmatmul.mubr.f32.gmra.mrb[0].mxu0 %v2801
      %v3013 = vpop.f32.mrb[0].mxu0
      %v3014 = vadd.f32 0.0, %v3013
      %v3015 = vpop.f32.mrb[0].mxu0
      %3016 = vmatprep.mubr.f32.mxu0 0.0
      %3017 = vmatmul.mubr.f32.gmra.mrb[0].mxu0 %v2804
      %v3018 = vpop.f32.mrb[0].mxu0
      %v3019 = vadd.f32 0.0, %v3018
      %v3020 = vpop.f32.mrb[0].mxu0
      %3021 = vmatprep.mubr.f32.mxu0 0.0
      %3022 = vmatmul.mubr.f32.gmra.mrb[0].mxu0 %v2807
      %v3023 = vpop.f32.mrb[0].mxu0
      %v3024 = vadd.f32 0.0, %v3023
      %v3025 = vpop.f32.mrb[0].mxu0
      %3026 = vmatprep.mubr.f32.mxu0 0.0
      %3027 = vmatmul.mubr.f32.gmra.mrb[0].mxu0 %v2810
      %v3028 = vpop.f32.mrb[0].mxu0
      %v3029 = vadd.f32 0.0, %v3028
      %v3030 = vpop.f32.mrb[0].mxu0
      %3031 = vmatprep.mubr.f32.mxu0 0.0
      %3032 = vmatmul.mubr.f32.gmra.mrb[0].mxu0 %v2813
      %v3033 = vpop.f32.mrb[0].mxu0
      %v3034 = vadd.f32 0.0, %v3033
      %v3035 = vpop.f32.mrb[0].mxu0
      %3036 = vmatprep.mubr.f32.mxu0 0.0
      %3037 = vmatmul.mubr.f32.gmra.mrb[0].mxu0 %v2816
      %v3038 = vpop.f32.mrb[0].mxu0
      %v3039 = vadd.f32 0.0, %v3038
      %v3040 = vpop.f32.mrb[0].mxu0
      %3041 = vmatprep.mubr.f32.mxu0 0.0
      %3042 = vmatmul.mubr.f32.gmra.mrb[0].mxu0 %v2819
      %v3043 = vpop.f32.mrb[0].mxu0
      %v3044 = vadd.f32 0.0, %v3043
      %v3045 = vpop.f32.mrb[0].mxu0
      %3046 = vmatprep.mubr.f32.mxu0 0.0
      %3047 = vmatmul.mubr.f32.gmra.mrb[0].mxu0 %v2822
      %v3048 = vpop.f32.mrb[0].mxu0
      %v3049 = vadd.f32 0.0, %v3048
      %v3050 = vpop.f32.mrb[0].mxu0
      %3051 = vdwg.mxu0
      %v3052 = vadd.f32 %v2661, %v2894
      %v3053 = vadd.f32 %v2662, %v2899
      %v3054 = vadd.f32 %v2663, %v2904
      %v3055 = vadd.f32 %v2664, %v2909
      %v3056 = vadd.f32 %v2665, %v2914
      %v3057 = vadd.f32 %v2666, %v2919
      %v3058 = vadd.f32 %v2667, %v2924
      %v3059 = vadd.f32 %v2668, %v2929
      %v3060 = vadd.f32 %v2669, %v2934
      %v3061 = vadd.f32 %v2670, %v2939
      %v3062 = vadd.f32 %v2671, %v2944
      %v3063 = vadd.f32 %v2672, %v2949
      %v3064 = vadd.f32 %v2673, %v2954
      %v3065 = vadd.f32 %v2674, %v2959
      %v3066 = vadd.f32 %v2675, %v2964
      %v3067 = vadd.f32 %v2676, %v2969
      %v3068 = vadd.f32 %v2677, %v2974
      %v3069 = vadd.f32 %v2678, %v2979
      %v3070 = vadd.f32 %v2679, %v2984
      %v3071 = vadd.f32 %v2680, %v2989
      %v3072 = vadd.f32 %v2681, %v2994
      %v3073 = vadd.f32 %v2682, %v2999
      %v3074 = vadd.f32 %v2683, %v3004
      %v3075 = vadd.f32 %v2684, %v3009
      %v3076 = vadd.f32 %v2685, %v3014
      %v3077 = vadd.f32 %v2686, %v3019
      %v3078 = vadd.f32 %v2687, %v3024
      %v3079 = vadd.f32 %v2688, %v3029
      %v3080 = vadd.f32 %v2689, %v3034
      %v3081 = vadd.f32 %v2690, %v3039
      %v3082 = vadd.f32 %v2691, %v3044
      %v3083 = vadd.f32 %v2692, %v3049
      %v3084 = vld [vmem:[%s2693 + $0x1] sm:$0xff]
      %v3085 = vld [vmem:[%s2693 + $0x9] sm:$0xff]
      %v3086 = vld [vmem:[%s2693 + $0x19] sm:$0xff]
      %v3087 = vld [vmem:[%s2693 + $0x21] sm:$0xff]
      %v3088 = vld [vmem:[%s2693 + $0x31] sm:$0xff]
      %v3089 = vld [vmem:[%s2693 + $0x39] sm:$0xff]
      %v3090 = vld [vmem:[%s2693 + $0x49] sm:$0xff]
      %v3091 = vld [vmem:[%s2693 + $0x51] sm:$0xff]
      %v3092 = vld [vmem:[%s2693 + $0x61] sm:$0xff]
      %v3093 = vld [vmem:[%s2693 + $0x69] sm:$0xff]
      %v3094 = vld [vmem:[%s2693 + $0x79] sm:$0xff]
      %v3095 = vld [vmem:[%s2693 + $0x81] sm:$0xff]
      %v3096 = vld [vmem:[%s2693 + $0x91] sm:$0xff]
      %v3097 = vld [vmem:[%s2693 + $0x99] sm:$0xff]
      %v3098 = vld [vmem:[%s2693 + $0xa9] sm:$0xff]
      %v3099 = vld [vmem:[%s2693 + $0xb1] sm:$0xff]
      %v3100 = vld [vmem:[%s2693 + $0xc1] sm:$0xff]
      %v3101 = vld [vmem:[%s2693 + $0xc9] sm:$0xff]
      %v3102 = vld [vmem:[%s2693 + $0xd9] sm:$0xff]
      %v3103 = vld [vmem:[%s2693 + $0xe1] sm:$0xff]
      %v3104 = vld [vmem:[%s2693 + $0xf1] sm:$0xff]
      %v3105 = vld [vmem:[%s2693 + $0xf9] sm:$0xff]
      %v3106 = vld [vmem:[%s2693 + $0x109] sm:$0xff]
      %v3107 = vld [vmem:[%s2693 + $0x111] sm:$0xff]
      %v3108 = vld [vmem:[%s2693 + $0x121] sm:$0xff]
      %v3109 = vld [vmem:[%s2693 + $0x129] sm:$0xff]
      %v3110 = vld [vmem:[%s2693 + $0x139] sm:$0xff]
      %v3111 = vld [vmem:[%s2693 + $0x141] sm:$0xff]
      %v3112 = vld [vmem:[%s2693 + $0x151] sm:$0xff]
      %v3113 = vld [vmem:[%s2693 + $0x159] sm:$0xff]
      %v3114 = vld [vmem:[%s2693 + $0x169] sm:$0xff]
      %v3115 = vld [vmem:[%s2693 + $0x171] sm:$0xff]
      %s3116 = scalar_lea.vmem %s1, 28
      %v3117 = vld [vmem:[%s3116] sm:$0xf]
      %v3119 = vsel %vm328, %v3084, 0
      %v3122 = vsel %vm328, %v3085, 0
      %v3125 = vsel %vm328, %v3086, 0
      %v3128 = vsel %vm328, %v3087, 0
      %v3131 = vsel %vm328, %v3088, 0
      %v3134 = vsel %vm328, %v3089, 0
      %v3137 = vsel %vm328, %v3090, 0
      %v3140 = vsel %vm328, %v3091, 0
      %v3143 = vsel %vm328, %v3092, 0
      %v3146 = vsel %vm328, %v3093, 0
      %v3149 = vsel %vm328, %v3094, 0
      %v3152 = vsel %vm328, %v3095, 0
      %v3155 = vsel %vm328, %v3096, 0
      %v3158 = vsel %vm328, %v3097, 0
      %v3161 = vsel %vm328, %v3098, 0
      %v3164 = vsel %vm328, %v3099, 0
      %v3167 = vsel %vm328, %v3100, 0
      %v3170 = vsel %vm328, %v3101, 0
      %v3173 = vsel %vm328, %v3102, 0
      %v3176 = vsel %vm328, %v3103, 0
      %v3179 = vsel %vm328, %v3104, 0
      %v3182 = vsel %vm328, %v3105, 0
      %v3185 = vsel %vm328, %v3106, 0
      %v3188 = vsel %vm328, %v3107, 0
      %v3191 = vsel %vm328, %v3108, 0
      %v3194 = vsel %vm328, %v3109, 0
      %v3197 = vsel %vm328, %v3110, 0
      %v3200 = vsel %vm328, %v3111, 0
      %v3203 = vsel %vm328, %v3112, 0
      %v3206 = vsel %vm328, %v3113, 0
      %v3209 = vsel %vm328, %v3114, 0
      %v3212 = vsel %vm328, %v3115, 0
      %v3215 = vsel %vm580, %v3117, 0
      %3217 = vmatprep.subr.mxu0 0.0
      %3218 = vmatpush1.msra.mxu0 %v3215
      %3219 = vmatprep.subr.mxu0 0.0
      %3220 = vmatpush1.msra.mxu0 0.0
      %3221 = vmatprep.subr.mxu0 0.0
      %3222 = vmatpush1.msra.mxu0 0.0
      %3223 = vmatprep.subr.mxu0 0.0
      %3224 = vmatpush1.msra.mxu0 0.0
      %3225 = vmatprep.subr.mxu0 0.0
      %3226 = vmatpush1.msra.mxu0 0.0
      %3227 = vmatprep.subr.mxu0 0.0
      %3228 = vmatpush1.msra.mxu0 0.0
      %3229 = vmatprep.subr.mxu0 0.0
      %3230 = vmatpush1.msra.mxu0 0.0
      %3231 = vmatprep.subr.mxu0 0.0
      %3232 = vmatpush1.msra.mxu0 0.0
      %3233 = vmatprep.subr.mxu0 0.0
      %3234 = vmatpush1.msra.mxu0 0.0
      %3235 = vmatprep.subr.mxu0 0.0
      %3236 = vmatpush1.msra.mxu0 0.0
      %3237 = vmatprep.subr.mxu0 0.0
      %3238 = vmatpush1.msra.mxu0 0.0
      %3239 = vmatprep.subr.mxu0 0.0
      %3240 = vmatpush1.msra.mxu0 0.0
      %3241 = vmatprep.subr.mxu0 0.0
      %3242 = vmatpush1.msra.mxu0 0.0
      %3243 = vmatprep.subr.mxu0 0.0
      %3244 = vmatpush1.msra.mxu0 0.0
      %3245 = vmatprep.subr.mxu0 0.0
      %3246 = vmatpush1.msra.mxu0 0.0
      %3247 = vmatprep.subr.mxu0 0.0
      %3248 = vmatpush1.msra.mxu0 0.0
      %3249 = vmatprep.subr.mxu0 0.0
      %3250 = vmatpush1.msra.mxu0 0.0
      %3251 = vmatprep.subr.mxu0 0.0
      %3252 = vmatpush1.msra.mxu0 0.0
      %3253 = vmatprep.subr.mxu0 0.0
      %3254 = vmatpush1.msra.mxu0 0.0
      %3255 = vmatprep.subr.mxu0 0.0
      %3256 = vmatpush1.msra.mxu0 0.0
      %3257 = vmatprep.subr.mxu0 0.0
      %3258 = vmatpush1.msra.mxu0 0.0
      %3259 = vmatprep.subr.mxu0 0.0
      %3260 = vmatpush1.msra.mxu0 0.0
      %3261 = vmatprep.subr.mxu0 0.0
      %3262 = vmatpush1.msra.mxu0 0.0
      %3263 = vmatprep.subr.mxu0 0.0
      %3264 = vmatpush1.msra.mxu0 0.0
      %3265 = vmatprep.subr.mxu0 0.0
      %3266 = vmatpush1.msra.mxu0 0.0
      %3267 = vmatprep.subr.mxu0 0.0
      %3268 = vmatpush1.msra.mxu0 0.0
      %3269 = vmatprep.subr.mxu0 0.0
      %3270 = vmatpush1.msra.mxu0 0.0
      %3271 = vmatprep.subr.mxu0 0.0
      %3272 = vmatpush1.msra.mxu0 0.0
      %3273 = vmatprep.subr.mxu0 0.0
      %3274 = vmatpush1.msra.mxu0 0.0
      %3275 = vmatprep.subr.mxu0 0.0
      %3276 = vmatpush1.msra.mxu0 0.0
      %3277 = vmatprep.subr.mxu0 0.0
      %3278 = vmatpush1.msra.mxu0 0.0
      %3279 = vmatprep.subr.mxu0 0.0
      %3280 = vmatpush1.msra.mxu0 0.0
      %3281 = vmatprep.mubr.f32.mxu0 0.0
      %3282 = vmatmul.mubr.f32.gmra.mrb[0].mxu0 %v3119
      %v3283 = vpop.f32.mrb[0].mxu0
      %v3284 = vadd.f32 0.0, %v3283
      %v3285 = vpop.f32.mrb[0].mxu0
      %3286 = vmatprep.mubr.f32.mxu0 0.0
      %3287 = vmatmul.mubr.f32.gmra.mrb[0].mxu0 %v3122
      %v3288 = vpop.f32.mrb[0].mxu0
      %v3289 = vadd.f32 0.0, %v3288
      %v3290 = vpop.f32.mrb[0].mxu0
      %3291 = vmatprep.mubr.f32.mxu0 0.0
      %3292 = vmatmul.mubr.f32.gmra.mrb[0].mxu0 %v3125
      %v3293 = vpop.f32.mrb[0].mxu0
      %v3294 = vadd.f32 0.0, %v3293
      %v3295 = vpop.f32.mrb[0].mxu0
      %3296 = vmatprep.mubr.f32.mxu0 0.0
      %3297 = vmatmul.mubr.f32.gmra.mrb[0].mxu0 %v3128
      %v3298 = vpop.f32.mrb[0].mxu0
      %v3299 = vadd.f32 0.0, %v3298
      %v3300 = vpop.f32.mrb[0].mxu0
      %3301 = vmatprep.mubr.f32.mxu0 0.0
      %3302 = vmatmul.mubr.f32.gmra.mrb[0].mxu0 %v3131
      %v3303 = vpop.f32.mrb[0].mxu0
      %v3304 = vadd.f32 0.0, %v3303
      %v3305 = vpop.f32.mrb[0].mxu0
      %3306 = vmatprep.mubr.f32.mxu0 0.0
      %3307 = vmatmul.mubr.f32.gmra.mrb[0].mxu0 %v3134
      %v3308 = vpop.f32.mrb[0].mxu0
      %v3309 = vadd.f32 0.0, %v3308
      %v3310 = vpop.f32.mrb[0].mxu0
      %3311 = vmatprep.mubr.f32.mxu0 0.0
      %3312 = vmatmul.mubr.f32.gmra.mrb[0].mxu0 %v3137
      %v3313 = vpop.f32.mrb[0].mxu0
      %v3314 = vadd.f32 0.0, %v3313
      %v3315 = vpop.f32.mrb[0].mxu0
      %3316 = vmatprep.mubr.f32.mxu0 0.0
      %3317 = vmatmul.mubr.f32.gmra.mrb[0].mxu0 %v3140
      %v3318 = vpop.f32.mrb[0].mxu0
      %v3319 = vadd.f32 0.0, %v3318
      %v3320 = vpop.f32.mrb[0].mxu0
      %3321 = vmatprep.mubr.f32.mxu0 0.0
      %3322 = vmatmul.mubr.f32.gmra.mrb[0].mxu0 %v3143
      %v3323 = vpop.f32.mrb[0].mxu0
      %v3324 = vadd.f32 0.0, %v3323
      %v3325 = vpop.f32.mrb[0].mxu0
      %3326 = vmatprep.mubr.f32.mxu0 0.0
      %3327 = vmatmul.mubr.f32.gmra.mrb[0].mxu0 %v3146
      %v3328 = vpop.f32.mrb[0].mxu0
      %v3329 = vadd.f32 0.0, %v3328
      %v3330 = vpop.f32.mrb[0].mxu0
      %3331 = vmatprep.mubr.f32.mxu0 0.0
      %3332 = vmatmul.mubr.f32.gmra.mrb[0].mxu0 %v3149
      %v3333 = vpop.f32.mrb[0].mxu0
      %v3334 = vadd.f32 0.0, %v3333
      %v3335 = vpop.f32.mrb[0].mxu0
      %3336 = vmatprep.mubr.f32.mxu0 0.0
      %3337 = vmatmul.mubr.f32.gmra.mrb[0].mxu0 %v3152
      %v3338 = vpop.f32.mrb[0].mxu0
      %v3339 = vadd.f32 0.0, %v3338
      %v3340 = vpop.f32.mrb[0].mxu0
      %3341 = vmatprep.mubr.f32.mxu0 0.0
      %3342 = vmatmul.mubr.f32.gmra.mrb[0].mxu0 %v3155
      %v3343 = vpop.f32.mrb[0].mxu0
      %v3344 = vadd.f32 0.0, %v3343
      %v3345 = vpop.f32.mrb[0].mxu0
      %3346 = vmatprep.mubr.f32.mxu0 0.0
      %3347 = vmatmul.mubr.f32.gmra.mrb[0].mxu0 %v3158
      %v3348 = vpop.f32.mrb[0].mxu0
      %v3349 = vadd.f32 0.0, %v3348
      %v3350 = vpop.f32.mrb[0].mxu0
      %3351 = vmatprep.mubr.f32.mxu0 0.0
      %3352 = vmatmul.mubr.f32.gmra.mrb[0].mxu0 %v3161
      %v3353 = vpop.f32.mrb[0].mxu0
      %v3354 = vadd.f32 0.0, %v3353
      %v3355 = vpop.f32.mrb[0].mxu0
      %3356 = vmatprep.mubr.f32.mxu0 0.0
      %3357 = vmatmul.mubr.f32.gmra.mrb[0].mxu0 %v3164
      %v3358 = vpop.f32.mrb[0].mxu0
      %v3359 = vadd.f32 0.0, %v3358
      %v3360 = vpop.f32.mrb[0].mxu0
      %3361 = vmatprep.mubr.f32.mxu0 0.0
      %3362 = vmatmul.mubr.f32.gmra.mrb[0].mxu0 %v3167
      %v3363 = vpop.f32.mrb[0].mxu0
      %v3364 = vadd.f32 0.0, %v3363
      %v3365 = vpop.f32.mrb[0].mxu0
      %3366 = vmatprep.mubr.f32.mxu0 0.0
      %3367 = vmatmul.mubr.f32.gmra.mrb[0].mxu0 %v3170
      %v3368 = vpop.f32.mrb[0].mxu0
      %v3369 = vadd.f32 0.0, %v3368
      %v3370 = vpop.f32.mrb[0].mxu0
      %3371 = vmatprep.mubr.f32.mxu0 0.0
      %3372 = vmatmul.mubr.f32.gmra.mrb[0].mxu0 %v3173
      %v3373 = vpop.f32.mrb[0].mxu0
      %v3374 = vadd.f32 0.0, %v3373
      %v3375 = vpop.f32.mrb[0].mxu0
      %3376 = vmatprep.mubr.f32.mxu0 0.0
      %3377 = vmatmul.mubr.f32.gmra.mrb[0].mxu0 %v3176
      %v3378 = vpop.f32.mrb[0].mxu0
      %v3379 = vadd.f32 0.0, %v3378
      %v3380 = vpop.f32.mrb[0].mxu0
      %3381 = vmatprep.mubr.f32.mxu0 0.0
      %3382 = vmatmul.mubr.f32.gmra.mrb[0].mxu0 %v3179
      %v3383 = vpop.f32.mrb[0].mxu0
      %v3384 = vadd.f32 0.0, %v3383
      %v3385 = vpop.f32.mrb[0].mxu0
      %3386 = vmatprep.mubr.f32.mxu0 0.0
      %3387 = vmatmul.mubr.f32.gmra.mrb[0].mxu0 %v3182
      %v3388 = vpop.f32.mrb[0].mxu0
      %v3389 = vadd.f32 0.0, %v3388
      %v3390 = vpop.f32.mrb[0].mxu0
      %3391 = vmatprep.mubr.f32.mxu0 0.0
      %3392 = vmatmul.mubr.f32.gmra.mrb[0].mxu0 %v3185
      %v3393 = vpop.f32.mrb[0].mxu0
      %v3394 = vadd.f32 0.0, %v3393
      %v3395 = vpop.f32.mrb[0].mxu0
      %3396 = vmatprep.mubr.f32.mxu0 0.0
      %3397 = vmatmul.mubr.f32.gmra.mrb[0].mxu0 %v3188
      %v3398 = vpop.f32.mrb[0].mxu0
      %v3399 = vadd.f32 0.0, %v3398
      %v3400 = vpop.f32.mrb[0].mxu0
      %3401 = vmatprep.mubr.f32.mxu0 0.0
      %3402 = vmatmul.mubr.f32.gmra.mrb[0].mxu0 %v3191
      %v3403 = vpop.f32.mrb[0].mxu0
      %v3404 = vadd.f32 0.0, %v3403
      %v3405 = vpop.f32.mrb[0].mxu0
      %3406 = vmatprep.mubr.f32.mxu0 0.0
      %3407 = vmatmul.mubr.f32.gmra.mrb[0].mxu0 %v3194
      %v3408 = vpop.f32.mrb[0].mxu0
      %v3409 = vadd.f32 0.0, %v3408
      %v3410 = vpop.f32.mrb[0].mxu0
      %3411 = vmatprep.mubr.f32.mxu0 0.0
      %3412 = vmatmul.mubr.f32.gmra.mrb[0].mxu0 %v3197
      %v3413 = vpop.f32.mrb[0].mxu0
      %v3414 = vadd.f32 0.0, %v3413
      %v3415 = vpop.f32.mrb[0].mxu0
      %3416 = vmatprep.mubr.f32.mxu0 0.0
      %3417 = vmatmul.mubr.f32.gmra.mrb[0].mxu0 %v3200
      %v3418 = vpop.f32.mrb[0].mxu0
      %v3419 = vadd.f32 0.0, %v3418
      %v3420 = vpop.f32.mrb[0].mxu0
      %3421 = vmatprep.mubr.f32.mxu0 0.0
      %3422 = vmatmul.mubr.f32.gmra.mrb[0].mxu0 %v3203
      %v3423 = vpop.f32.mrb[0].mxu0
      %v3424 = vadd.f32 0.0, %v3423
      %v3425 = vpop.f32.mrb[0].mxu0
      %3426 = vmatprep.mubr.f32.mxu0 0.0
      %3427 = vmatmul.mubr.f32.gmra.mrb[0].mxu0 %v3206
      %v3428 = vpop.f32.mrb[0].mxu0
      %v3429 = vadd.f32 0.0, %v3428
      %v3430 = vpop.f32.mrb[0].mxu0
      %3431 = vmatprep.mubr.f32.mxu0 0.0
      %3432 = vmatmul.mubr.f32.gmra.mrb[0].mxu0 %v3209
      %v3433 = vpop.f32.mrb[0].mxu0
      %v3434 = vadd.f32 0.0, %v3433
      %v3435 = vpop.f32.mrb[0].mxu0
      %3436 = vmatprep.mubr.f32.mxu0 0.0
      %3437 = vmatmul.mubr.f32.gmra.mrb[0].mxu0 %v3212
      %v3438 = vpop.f32.mrb[0].mxu0
      %v3439 = vadd.f32 0.0, %v3438
      %v3440 = vpop.f32.mrb[0].mxu0
      %3441 = vdwg.mxu0
      %v3442 = vadd.f32 %v3052, %v3284
      %v3443 = vadd.f32 %v3053, %v3289
      %v3444 = vadd.f32 %v3054, %v3294
      %v3445 = vadd.f32 %v3055, %v3299
      %v3446 = vadd.f32 %v3056, %v3304
      %v3447 = vadd.f32 %v3057, %v3309
      %v3448 = vadd.f32 %v3058, %v3314
      %v3449 = vadd.f32 %v3059, %v3319
      %v3450 = vadd.f32 %v3060, %v3324
      %v3451 = vadd.f32 %v3061, %v3329
      %v3452 = vadd.f32 %v3062, %v3334
      %v3453 = vadd.f32 %v3063, %v3339
      %v3454 = vadd.f32 %v3064, %v3344
      %v3455 = vadd.f32 %v3065, %v3349
      %v3456 = vadd.f32 %v3066, %v3354
      %v3457 = vadd.f32 %v3067, %v3359
      %v3458 = vadd.f32 %v3068, %v3364
      %v3459 = vadd.f32 %v3069, %v3369
      %v3460 = vadd.f32 %v3070, %v3374
      %v3461 = vadd.f32 %v3071, %v3379
      %v3462 = vadd.f32 %v3072, %v3384
      %v3463 = vadd.f32 %v3073, %v3389
      %v3464 = vadd.f32 %v3074, %v3394
      %v3465 = vadd.f32 %v3075, %v3399
      %v3466 = vadd.f32 %v3076, %v3404
      %v3467 = vadd.f32 %v3077, %v3409
      %v3468 = vadd.f32 %v3078, %v3414
      %v3469 = vadd.f32 %v3079, %v3419
      %v3470 = vadd.f32 %v3080, %v3424
      %v3471 = vadd.f32 %v3081, %v3429
      %v3472 = vadd.f32 %v3082, %v3434
      %v3473 = vadd.f32 %v3083, %v3439
      %v3474 = vld [vmem:[%s2693 + $0x2] sm:$0xff]
      %v3475 = vld [vmem:[%s2693 + $0xa] sm:$0xff]
      %v3476 = vld [vmem:[%s2693 + $0x1a] sm:$0xff]
      %v3477 = vld [vmem:[%s2693 + $0x22] sm:$0xff]
      %v3478 = vld [vmem:[%s2693 + $0x32] sm:$0xff]
      %v3479 = vld [vmem:[%s2693 + $0x3a] sm:$0xff]
      %v3480 = vld [vmem:[%s2693 + $0x4a] sm:$0xff]
      %v3481 = vld [vmem:[%s2693 + $0x52] sm:$0xff]
      %v3482 = vld [vmem:[%s2693 + $0x62] sm:$0xff]
      %v3483 = vld [vmem:[%s2693 + $0x6a] sm:$0xff]
      %v3484 = vld [vmem:[%s2693 + $0x7a] sm:$0xff]
      %v3485 = vld [vmem:[%s2693 + $0x82] sm:$0xff]
      %v3486 = vld [vmem:[%s2693 + $0x92] sm:$0xff]
      %v3487 = vld [vmem:[%s2693 + $0x9a] sm:$0xff]
      %v3488 = vld [vmem:[%s2693 + $0xaa] sm:$0xff]
      %v3489 = vld [vmem:[%s2693 + $0xb2] sm:$0xff]
      %v3490 = vld [vmem:[%s2693 + $0xc2] sm:$0xff]
      %v3491 = vld [vmem:[%s2693 + $0xca] sm:$0xff]
      %v3492 = vld [vmem:[%s2693 + $0xda] sm:$0xff]
      %v3493 = vld [vmem:[%s2693 + $0xe2] sm:$0xff]
      %v3494 = vld [vmem:[%s2693 + $0xf2] sm:$0xff]
      %v3495 = vld [vmem:[%s2693 + $0xfa] sm:$0xff]
      %v3496 = vld [vmem:[%s2693 + $0x10a] sm:$0xff]
      %v3497 = vld [vmem:[%s2693 + $0x112] sm:$0xff]
      %v3498 = vld [vmem:[%s2693 + $0x122] sm:$0xff]
      %v3499 = vld [vmem:[%s2693 + $0x12a] sm:$0xff]
      %v3500 = vld [vmem:[%s2693 + $0x13a] sm:$0xff]
      %v3501 = vld [vmem:[%s2693 + $0x142] sm:$0xff]
      %v3502 = vld [vmem:[%s2693 + $0x152] sm:$0xff]
      %v3503 = vld [vmem:[%s2693 + $0x15a] sm:$0xff]
      %v3504 = vld [vmem:[%s2693 + $0x16a] sm:$0xff]
      %v3505 = vld [vmem:[%s2693 + $0x172] sm:$0xff]
      %s3506 = scalar_lea.vmem %s1, 32
      %v3507 = vld [vmem:[%s3506] sm:$0xf]
      %v3509 = vsel %vm328, %v3474, 0
      %v3512 = vsel %vm328, %v3475, 0
      %v3515 = vsel %vm328, %v3476, 0
      %v3518 = vsel %vm328, %v3477, 0
      %v3521 = vsel %vm328, %v3478, 0
      %v3524 = vsel %vm328, %v3479, 0
      %v3527 = vsel %vm328, %v3480, 0
      %v3530 = vsel %vm328, %v3481, 0
      %v3533 = vsel %vm328, %v3482, 0
      %v3536 = vsel %vm328, %v3483, 0
      %v3539 = vsel %vm328, %v3484, 0
      %v3542 = vsel %vm328, %v3485, 0
      %v3545 = vsel %vm328, %v3486, 0
      %v3548 = vsel %vm328, %v3487, 0
      %v3551 = vsel %vm328, %v3488, 0
      %v3554 = vsel %vm328, %v3489, 0
      %v3557 = vsel %vm328, %v3490, 0
      %v3560 = vsel %vm328, %v3491, 0
      %v3563 = vsel %vm328, %v3492, 0
      %v3566 = vsel %vm328, %v3493, 0
      %v3569 = vsel %vm328, %v3494, 0
      %v3572 = vsel %vm328, %v3495, 0
      %v3575 = vsel %vm328, %v3496, 0
      %v3578 = vsel %vm328, %v3497, 0
      %v3581 = vsel %vm328, %v3498, 0
      %v3584 = vsel %vm328, %v3499, 0
      %v3587 = vsel %vm328, %v3500, 0
      %v3590 = vsel %vm328, %v3501, 0
      %v3593 = vsel %vm328, %v3502, 0
      %v3596 = vsel %vm328, %v3503, 0
      %v3599 = vsel %vm328, %v3504, 0
      %v3602 = vsel %vm328, %v3505, 0
      %v3605 = vsel %vm580, %v3507, 0
      %3607 = vmatprep.subr.mxu0 0.0
      %3608 = vmatpush1.msra.mxu0 %v3605
      %3609 = vmatprep.subr.mxu0 0.0
      %3610 = vmatpush1.msra.mxu0 0.0
      %3611 = vmatprep.subr.mxu0 0.0
      %3612 = vmatpush1.msra.mxu0 0.0
      %3613 = vmatprep.subr.mxu0 0.0
      %3614 = vmatpush1.msra.mxu0 0.0
      %3615 = vmatprep.subr.mxu0 0.0
      %3616 = vmatpush1.msra.mxu0 0.0
      %3617 = vmatprep.subr.mxu0 0.0
      %3618 = vmatpush1.msra.mxu0 0.0
      %3619 = vmatprep.subr.mxu0 0.0
      %3620 = vmatpush1.msra.mxu0 0.0
      %3621 = vmatprep.subr.mxu0 0.0
      %3622 = vmatpush1.msra.mxu0 0.0
      %3623 = vmatprep.subr.mxu0 0.0
      %3624 = vmatpush1.msra.mxu0 0.0
      %3625 = vmatprep.subr.mxu0 0.0
      %3626 = vmatpush1.msra.mxu0 0.0
      %3627 = vmatprep.subr.mxu0 0.0
      %3628 = vmatpush1.msra.mxu0 0.0
      %3629 = vmatprep.subr.mxu0 0.0
      %3630 = vmatpush1.msra.mxu0 0.0
      %3631 = vmatprep.subr.mxu0 0.0
      %3632 = vmatpush1.msra.mxu0 0.0
      %3633 = vmatprep.subr.mxu0 0.0
      %3634 = vmatpush1.msra.mxu0 0.0
      %3635 = vmatprep.subr.mxu0 0.0
      %3636 = vmatpush1.msra.mxu0 0.0
      %3637 = vmatprep.subr.mxu0 0.0
      %3638 = vmatpush1.msra.mxu0 0.0
      %3639 = vmatprep.subr.mxu0 0.0
      %3640 = vmatpush1.msra.mxu0 0.0
      %3641 = vmatprep.subr.mxu0 0.0
      %3642 = vmatpush1.msra.mxu0 0.0
      %3643 = vmatprep.subr.mxu0 0.0
      %3644 = vmatpush1.msra.mxu0 0.0
      %3645 = vmatprep.subr.mxu0 0.0
      %3646 = vmatpush1.msra.mxu0 0.0
      %3647 = vmatprep.subr.mxu0 0.0
      %3648 = vmatpush1.msra.mxu0 0.0
      %3649 = vmatprep.subr.mxu0 0.0
      %3650 = vmatpush1.msra.mxu0 0.0
      %3651 = vmatprep.subr.mxu0 0.0
      %3652 = vmatpush1.msra.mxu0 0.0
      %3653 = vmatprep.subr.mxu0 0.0
      %3654 = vmatpush1.msra.mxu0 0.0
      %3655 = vmatprep.subr.mxu0 0.0
      %3656 = vmatpush1.msra.mxu0 0.0
      %3657 = vmatprep.subr.mxu0 0.0
      %3658 = vmatpush1.msra.mxu0 0.0
      %3659 = vmatprep.subr.mxu0 0.0
      %3660 = vmatpush1.msra.mxu0 0.0
      %3661 = vmatprep.subr.mxu0 0.0
      %3662 = vmatpush1.msra.mxu0 0.0
      %3663 = vmatprep.subr.mxu0 0.0
      %3664 = vmatpush1.msra.mxu0 0.0
      %3665 = vmatprep.subr.mxu0 0.0
      %3666 = vmatpush1.msra.mxu0 0.0
      %3667 = vmatprep.subr.mxu0 0.0
      %3668 = vmatpush1.msra.mxu0 0.0
      %3669 = vmatprep.subr.mxu0 0.0
      %3670 = vmatpush1.msra.mxu0 0.0
      %3671 = vmatprep.mubr.f32.mxu0 0.0
      %3672 = vmatmul.mubr.f32.gmra.mrb[0].mxu0 %v3509
      %v3673 = vpop.f32.mrb[0].mxu0
      %v3674 = vadd.f32 0.0, %v3673
      %v3675 = vpop.f32.mrb[0].mxu0
      %3676 = vmatprep.mubr.f32.mxu0 0.0
      %3677 = vmatmul.mubr.f32.gmra.mrb[0].mxu0 %v3512
      %v3678 = vpop.f32.mrb[0].mxu0
      %v3679 = vadd.f32 0.0, %v3678
      %v3680 = vpop.f32.mrb[0].mxu0
      %3681 = vmatprep.mubr.f32.mxu0 0.0
      %3682 = vmatmul.mubr.f32.gmra.mrb[0].mxu0 %v3515
      %v3683 = vpop.f32.mrb[0].mxu0
      %v3684 = vadd.f32 0.0, %v3683
      %v3685 = vpop.f32.mrb[0].mxu0
      %3686 = vmatprep.mubr.f32.mxu0 0.0
      %3687 = vmatmul.mubr.f32.gmra.mrb[0].mxu0 %v3518
      %v3688 = vpop.f32.mrb[0].mxu0
      %v3689 = vadd.f32 0.0, %v3688
      %v3690 = vpop.f32.mrb[0].mxu0
      %3691 = vmatprep.mubr.f32.mxu0 0.0
      %3692 = vmatmul.mubr.f32.gmra.mrb[0].mxu0 %v3521
      %v3693 = vpop.f32.mrb[0].mxu0
      %v3694 = vadd.f32 0.0, %v3693
      %v3695 = vpop.f32.mrb[0].mxu0
      %3696 = vmatprep.mubr.f32.mxu0 0.0
      %3697 = vmatmul.mubr.f32.gmra.mrb[0].mxu0 %v3524
      %v3698 = vpop.f32.mrb[0].mxu0
      %v3699 = vadd.f32 0.0, %v3698
      %v3700 = vpop.f32.mrb[0].mxu0
      %3701 = vmatprep.mubr.f32.mxu0 0.0
      %3702 = vmatmul.mubr.f32.gmra.mrb[0].mxu0 %v3527
      %v3703 = vpop.f32.mrb[0].mxu0
      %v3704 = vadd.f32 0.0, %v3703
      %v3705 = vpop.f32.mrb[0].mxu0
      %3706 = vmatprep.mubr.f32.mxu0 0.0
      %3707 = vmatmul.mubr.f32.gmra.mrb[0].mxu0 %v3530
      %v3708 = vpop.f32.mrb[0].mxu0
      %v3709 = vadd.f32 0.0, %v3708
      %v3710 = vpop.f32.mrb[0].mxu0
      %3711 = vmatprep.mubr.f32.mxu0 0.0
      %3712 = vmatmul.mubr.f32.gmra.mrb[0].mxu0 %v3533
      %v3713 = vpop.f32.mrb[0].mxu0
      %v3714 = vadd.f32 0.0, %v3713
      %v3715 = vpop.f32.mrb[0].mxu0
      %3716 = vmatprep.mubr.f32.mxu0 0.0
      %3717 = vmatmul.mubr.f32.gmra.mrb[0].mxu0 %v3536
      %v3718 = vpop.f32.mrb[0].mxu0
      %v3719 = vadd.f32 0.0, %v3718
      %v3720 = vpop.f32.mrb[0].mxu0
      %3721 = vmatprep.mubr.f32.mxu0 0.0
      %3722 = vmatmul.mubr.f32.gmra.mrb[0].mxu0 %v3539
      %v3723 = vpop.f32.mrb[0].mxu0
      %v3724 = vadd.f32 0.0, %v3723
      %v3725 = vpop.f32.mrb[0].mxu0
      %3726 = vmatprep.mubr.f32.mxu0 0.0
      %3727 = vmatmul.mubr.f32.gmra.mrb[0].mxu0 %v3542
      %v3728 = vpop.f32.mrb[0].mxu0
      %v3729 = vadd.f32 0.0, %v3728
      %v3730 = vpop.f32.mrb[0].mxu0
      %3731 = vmatprep.mubr.f32.mxu0 0.0
      %3732 = vmatmul.mubr.f32.gmra.mrb[0].mxu0 %v3545
      %v3733 = vpop.f32.mrb[0].mxu0
      %v3734 = vadd.f32 0.0, %v3733
      %v3735 = vpop.f32.mrb[0].mxu0
      %3736 = vmatprep.mubr.f32.mxu0 0.0
      %3737 = vmatmul.mubr.f32.gmra.mrb[0].mxu0 %v3548
      %v3738 = vpop.f32.mrb[0].mxu0
      %v3739 = vadd.f32 0.0, %v3738
      %v3740 = vpop.f32.mrb[0].mxu0
      %3741 = vmatprep.mubr.f32.mxu0 0.0
      %3742 = vmatmul.mubr.f32.gmra.mrb[0].mxu0 %v3551
      %v3743 = vpop.f32.mrb[0].mxu0
      %v3744 = vadd.f32 0.0, %v3743
      %v3745 = vpop.f32.mrb[0].mxu0
      %3746 = vmatprep.mubr.f32.mxu0 0.0
      %3747 = vmatmul.mubr.f32.gmra.mrb[0].mxu0 %v3554
      %v3748 = vpop.f32.mrb[0].mxu0
      %v3749 = vadd.f32 0.0, %v3748
      %v3750 = vpop.f32.mrb[0].mxu0
      %3751 = vmatprep.mubr.f32.mxu0 0.0
      %3752 = vmatmul.mubr.f32.gmra.mrb[0].mxu0 %v3557
      %v3753 = vpop.f32.mrb[0].mxu0
      %v3754 = vadd.f32 0.0, %v3753
      %v3755 = vpop.f32.mrb[0].mxu0
      %3756 = vmatprep.mubr.f32.mxu0 0.0
      %3757 = vmatmul.mubr.f32.gmra.mrb[0].mxu0 %v3560
      %v3758 = vpop.f32.mrb[0].mxu0
      %v3759 = vadd.f32 0.0, %v3758
      %v3760 = vpop.f32.mrb[0].mxu0
      %3761 = vmatprep.mubr.f32.mxu0 0.0
      %3762 = vmatmul.mubr.f32.gmra.mrb[0].mxu0 %v3563
      %v3763 = vpop.f32.mrb[0].mxu0
      %v3764 = vadd.f32 0.0, %v3763
      %v3765 = vpop.f32.mrb[0].mxu0
      %3766 = vmatprep.mubr.f32.mxu0 0.0
      %3767 = vmatmul.mubr.f32.gmra.mrb[0].mxu0 %v3566
      %v3768 = vpop.f32.mrb[0].mxu0
      %v3769 = vadd.f32 0.0, %v3768
      %v3770 = vpop.f32.mrb[0].mxu0
      %3771 = vmatprep.mubr.f32.mxu0 0.0
      %3772 = vmatmul.mubr.f32.gmra.mrb[0].mxu0 %v3569
      %v3773 = vpop.f32.mrb[0].mxu0
      %v3774 = vadd.f32 0.0, %v3773
      %v3775 = vpop.f32.mrb[0].mxu0
      %3776 = vmatprep.mubr.f32.mxu0 0.0
      %3777 = vmatmul.mubr.f32.gmra.mrb[0].mxu0 %v3572
      %v3778 = vpop.f32.mrb[0].mxu0
      %v3779 = vadd.f32 0.0, %v3778
      %v3780 = vpop.f32.mrb[0].mxu0
      %3781 = vmatprep.mubr.f32.mxu0 0.0
      %3782 = vmatmul.mubr.f32.gmra.mrb[0].mxu0 %v3575
      %v3783 = vpop.f32.mrb[0].mxu0
      %v3784 = vadd.f32 0.0, %v3783
      %v3785 = vpop.f32.mrb[0].mxu0
      %3786 = vmatprep.mubr.f32.mxu0 0.0
      %3787 = vmatmul.mubr.f32.gmra.mrb[0].mxu0 %v3578
      %v3788 = vpop.f32.mrb[0].mxu0
      %v3789 = vadd.f32 0.0, %v3788
      %v3790 = vpop.f32.mrb[0].mxu0
      %3791 = vmatprep.mubr.f32.mxu0 0.0
      %3792 = vmatmul.mubr.f32.gmra.mrb[0].mxu0 %v3581
      %v3793 = vpop.f32.mrb[0].mxu0
      %v3794 = vadd.f32 0.0, %v3793
      %v3795 = vpop.f32.mrb[0].mxu0
      %3796 = vmatprep.mubr.f32.mxu0 0.0
      %3797 = vmatmul.mubr.f32.gmra.mrb[0].mxu0 %v3584
      %v3798 = vpop.f32.mrb[0].mxu0
      %v3799 = vadd.f32 0.0, %v3798
      %v3800 = vpop.f32.mrb[0].mxu0
      %3801 = vmatprep.mubr.f32.mxu0 0.0
      %3802 = vmatmul.mubr.f32.gmra.mrb[0].mxu0 %v3587
      %v3803 = vpop.f32.mrb[0].mxu0
      %v3804 = vadd.f32 0.0, %v3803
      %v3805 = vpop.f32.mrb[0].mxu0
      %3806 = vmatprep.mubr.f32.mxu0 0.0
      %3807 = vmatmul.mubr.f32.gmra.mrb[0].mxu0 %v3590
      %v3808 = vpop.f32.mrb[0].mxu0
      %v3809 = vadd.f32 0.0, %v3808
      %v3810 = vpop.f32.mrb[0].mxu0
      %3811 = vmatprep.mubr.f32.mxu0 0.0
      %3812 = vmatmul.mubr.f32.gmra.mrb[0].mxu0 %v3593
      %v3813 = vpop.f32.mrb[0].mxu0
      %v3814 = vadd.f32 0.0, %v3813
      %v3815 = vpop.f32.mrb[0].mxu0
      %3816 = vmatprep.mubr.f32.mxu0 0.0
      %3817 = vmatmul.mubr.f32.gmra.mrb[0].mxu0 %v3596
      %v3818 = vpop.f32.mrb[0].mxu0
      %v3819 = vadd.f32 0.0, %v3818
      %v3820 = vpop.f32.mrb[0].mxu0
      %3821 = vmatprep.mubr.f32.mxu0 0.0
      %3822 = vmatmul.mubr.f32.gmra.mrb[0].mxu0 %v3599
      %v3823 = vpop.f32.mrb[0].mxu0
      %v3824 = vadd.f32 0.0, %v3823
      %v3825 = vpop.f32.mrb[0].mxu0
      %3826 = vmatprep.mubr.f32.mxu0 0.0
      %3827 = vmatmul.mubr.f32.gmra.mrb[0].mxu0 %v3602
      %v3828 = vpop.f32.mrb[0].mxu0
      %v3829 = vadd.f32 0.0, %v3828
      %v3830 = vpop.f32.mrb[0].mxu0
      %3831 = vdwg.mxu0
      %v3832 = vadd.f32 %v3442, %v3674
      %v3833 = vadd.f32 %v3443, %v3679
      %v3834 = vadd.f32 %v3444, %v3684
      %v3835 = vadd.f32 %v3445, %v3689
      %v3836 = vadd.f32 %v3446, %v3694
      %v3837 = vadd.f32 %v3447, %v3699
      %v3838 = vadd.f32 %v3448, %v3704
      %v3839 = vadd.f32 %v3449, %v3709
      %v3840 = vadd.f32 %v3450, %v3714
      %v3841 = vadd.f32 %v3451, %v3719
      %v3842 = vadd.f32 %v3452, %v3724
      %v3843 = vadd.f32 %v3453, %v3729
      %v3844 = vadd.f32 %v3454, %v3734
      %v3845 = vadd.f32 %v3455, %v3739
      %v3846 = vadd.f32 %v3456, %v3744
      %v3847 = vadd.f32 %v3457, %v3749
      %v3848 = vadd.f32 %v3458, %v3754
      %v3849 = vadd.f32 %v3459, %v3759
      %v3850 = vadd.f32 %v3460, %v3764
      %v3851 = vadd.f32 %v3461, %v3769
      %v3852 = vadd.f32 %v3462, %v3774
      %v3853 = vadd.f32 %v3463, %v3779
      %v3854 = vadd.f32 %v3464, %v3784
      %v3855 = vadd.f32 %v3465, %v3789
      %v3856 = vadd.f32 %v3466, %v3794
      %v3857 = vadd.f32 %v3467, %v3799
      %v3858 = vadd.f32 %v3468, %v3804
      %v3859 = vadd.f32 %v3469, %v3809
      %v3860 = vadd.f32 %v3470, %v3814
      %v3861 = vadd.f32 %v3471, %v3819
      %v3862 = vadd.f32 %v3472, %v3824
      %v3863 = vadd.f32 %v3473, %v3829
      %v3864 = vld [vmem:[%s2] sm:$0x1]
      %v3866 = vlaneseq
      %v3867 = vshrl.u32 %v3866, 7
      %v3868 = vsub.s32 0, %v3867
      %v3869 = vrot.slane %v3864, %v3868
      %v3871 = vadd.f32 %v3832, %v3869
      %v3872 = vadd.f32 %v3833, %v3869
      %v3873 = vadd.f32 %v3834, %v3869
      %v3874 = vadd.f32 %v3835, %v3869
      %v3875 = vadd.f32 %v3836, %v3869
      %v3876 = vadd.f32 %v3837, %v3869
      %v3877 = vadd.f32 %v3838, %v3869
      %v3878 = vadd.f32 %v3839, %v3869
      %v3879 = vadd.f32 %v3840, %v3869
      %v3880 = vadd.f32 %v3841, %v3869
      %v3881 = vadd.f32 %v3842, %v3869
      %v3882 = vadd.f32 %v3843, %v3869
      %v3883 = vadd.f32 %v3844, %v3869
      %v3884 = vadd.f32 %v3845, %v3869
      %v3885 = vadd.f32 %v3846, %v3869
      %v3886 = vadd.f32 %v3847, %v3869
      %v3887 = vadd.f32 %v3848, %v3869
      %v3888 = vadd.f32 %v3849, %v3869
      %v3889 = vadd.f32 %v3850, %v3869
      %v3890 = vadd.f32 %v3851, %v3869
      %v3891 = vadd.f32 %v3852, %v3869
      %v3892 = vadd.f32 %v3853, %v3869
      %v3893 = vadd.f32 %v3854, %v3869
      %v3894 = vadd.f32 %v3855, %v3869
      %v3895 = vadd.f32 %v3856, %v3869
      %v3896 = vadd.f32 %v3857, %v3869
      %v3897 = vadd.f32 %v3858, %v3869
      %v3898 = vadd.f32 %v3859, %v3869
      %v3899 = vadd.f32 %v3860, %v3869
      %v3900 = vadd.f32 %v3861, %v3869
      %v3901 = vadd.f32 %v3862, %v3869
      %v3902 = vadd.f32 %v3863, %v3869
      %vm3903 = vcmask 64512
      %3904 = vst.msk [vmem:[%s289] sm:$0xff] %vm3903, %v3871
      %3905 = vst.msk [vmem:[%s289 + $0x8] sm:$0xff] %vm3903, %v3872
      %3906 = vst.msk [vmem:[%s289 + $0x10] sm:$0xff] %vm3903, %v3873
      %3907 = vst.msk [vmem:[%s289 + $0x18] sm:$0xff] %vm3903, %v3874
      %3908 = vst.msk [vmem:[%s289 + $0x20] sm:$0xff] %vm3903, %v3875
      %3909 = vst.msk [vmem:[%s289 + $0x28] sm:$0xff] %vm3903, %v3876
      %3910 = vst.msk [vmem:[%s289 + $0x30] sm:$0xff] %vm3903, %v3877
      %3911 = vst.msk [vmem:[%s289 + $0x38] sm:$0xff] %vm3903, %v3878
      %3912 = vst.msk [vmem:[%s289 + $0x40] sm:$0xff] %vm3903, %v3879
      %3913 = vst.msk [vmem:[%s289 + $0x48] sm:$0xff] %vm3903, %v3880
      %3914 = vst.msk [vmem:[%s289 + $0x50] sm:$0xff] %vm3903, %v3881
      %3915 = vst.msk [vmem:[%s289 + $0x58] sm:$0xff] %vm3903, %v3882
      %3916 = vst.msk [vmem:[%s289 + $0x60] sm:$0xff] %vm3903, %v3883
      %3917 = vst.msk [vmem:[%s289 + $0x68] sm:$0xff] %vm3903, %v3884
      %3918 = vst.msk [vmem:[%s289 + $0x70] sm:$0xff] %vm3903, %v3885
      %3919 = vst.msk [vmem:[%s289 + $0x78] sm:$0xff] %vm3903, %v3886
      %3920 = vst.msk [vmem:[%s289 + $0x80] sm:$0xff] %vm3903, %v3887
      %3921 = vst.msk [vmem:[%s289 + $0x88] sm:$0xff] %vm3903, %v3888
      %3922 = vst.msk [vmem:[%s289 + $0x90] sm:$0xff] %vm3903, %v3889
      %3923 = vst.msk [vmem:[%s289 + $0x98] sm:$0xff] %vm3903, %v3890
      %3924 = vst.msk [vmem:[%s289 + $0xa0] sm:$0xff] %vm3903, %v3891
      %3925 = vst.msk [vmem:[%s289 + $0xa8] sm:$0xff] %vm3903, %v3892
      %3926 = vst.msk [vmem:[%s289 + $0xb0] sm:$0xff] %vm3903, %v3893
      %3927 = vst.msk [vmem:[%s289 + $0xb8] sm:$0xff] %vm3903, %v3894
      %3928 = vst.msk [vmem:[%s289 + $0xc0] sm:$0xff] %vm3903, %v3895
      %3929 = vst.msk [vmem:[%s289 + $0xc8] sm:$0xff] %vm3903, %v3896
      %3930 = vst.msk [vmem:[%s289 + $0xd0] sm:$0xff] %vm3903, %v3897
      %3931 = vst.msk [vmem:[%s289 + $0xd8] sm:$0xff] %vm3903, %v3898
      %3932 = vst.msk [vmem:[%s289 + $0xe0] sm:$0xff] %vm3903, %v3899
      %3933 = vst.msk [vmem:[%s289 + $0xe8] sm:$0xff] %vm3903, %v3900
      %3934 = vst.msk [vmem:[%s289 + $0xf0] sm:$0xff] %vm3903, %v3901
      %3935 = vst.msk [vmem:[%s289 + $0xf8] sm:$0xff] %vm3903, %v3902
      %v3936 = vsel %vm3903, %v3871, 0.0
      %v3937 = vsel %vm3903, %v3872, 0.0
      %v3938 = vadd.f32 %v3936, %v3937
      %v3939 = vsel %vm3903, %v3873, 0.0
      %v3940 = vadd.f32 %v3938, %v3939
      %v3941 = vsel %vm3903, %v3874, 0.0
      %v3942 = vadd.f32 %v3940, %v3941
      %v3943 = vsel %vm3903, %v3875, 0.0
      %v3944 = vadd.f32 %v3942, %v3943
      %v3945 = vsel %vm3903, %v3876, 0.0
      %v3946 = vadd.f32 %v3944, %v3945
      %v3947 = vsel %vm3903, %v3877, 0.0
      %v3948 = vadd.f32 %v3946, %v3947
      %v3949 = vsel %vm3903, %v3878, 0.0
      %v3950 = vadd.f32 %v3948, %v3949
      %v3951 = vsel %vm3903, %v3879, 0.0
      %v3952 = vadd.f32 %v3950, %v3951
      %v3953 = vsel %vm3903, %v3880, 0.0
      %v3954 = vadd.f32 %v3952, %v3953
      %v3955 = vsel %vm3903, %v3881, 0.0
      %v3956 = vadd.f32 %v3954, %v3955
      %v3957 = vsel %vm3903, %v3882, 0.0
      %v3958 = vadd.f32 %v3956, %v3957
      %v3959 = vsel %vm3903, %v3883, 0.0
      %v3960 = vadd.f32 %v3958, %v3959
      %v3961 = vsel %vm3903, %v3884, 0.0
      %v3962 = vadd.f32 %v3960, %v3961
      %v3963 = vsel %vm3903, %v3885, 0.0
      %v3964 = vadd.f32 %v3962, %v3963
      %v3965 = vsel %vm3903, %v3886, 0.0
      %v3966 = vadd.f32 %v3964, %v3965
      %v3967 = vsel %vm3903, %v3887, 0.0
      %v3968 = vadd.f32 %v3966, %v3967
      %v3969 = vsel %vm3903, %v3888, 0.0
      %v3970 = vadd.f32 %v3968, %v3969
      %v3971 = vsel %vm3903, %v3889, 0.0
      %v3972 = vadd.f32 %v3970, %v3971
      %v3973 = vsel %vm3903, %v3890, 0.0
      %v3974 = vadd.f32 %v3972, %v3973
      %v3975 = vsel %vm3903, %v3891, 0.0
      %v3976 = vadd.f32 %v3974, %v3975
      %v3977 = vsel %vm3903, %v3892, 0.0
      %v3978 = vadd.f32 %v3976, %v3977
      %v3979 = vsel %vm3903, %v3893, 0.0
      %v3980 = vadd.f32 %v3978, %v3979
      %v3981 = vsel %vm3903, %v3894, 0.0
      %v3982 = vadd.f32 %v3980, %v3981
      %v3983 = vsel %vm3903, %v3895, 0.0
      %v3984 = vadd.f32 %v3982, %v3983
      %v3985 = vsel %vm3903, %v3896, 0.0
      %v3986 = vadd.f32 %v3984, %v3985
      %v3987 = vsel %vm3903, %v3897, 0.0
      %v3988 = vadd.f32 %v3986, %v3987
      %v3989 = vsel %vm3903, %v3898, 0.0
      %v3990 = vadd.f32 %v3988, %v3989
      %v3991 = vsel %vm3903, %v3899, 0.0
      %v3992 = vadd.f32 %v3990, %v3991
      %v3993 = vsel %vm3903, %v3900, 0.0
      %v3994 = vadd.f32 %v3992, %v3993
      %v3995 = vsel %vm3903, %v3901, 0.0
      %v3996 = vadd.f32 %v3994, %v3995
      %v3997 = vsel %vm3903, %v3902, 0.0
      %v3998 = vadd.f32 %v3996, %v3997
      %v3999 = vrot.slane %v3998, 4
      %v4000 = vadd.f32 %v3998, %v3999
      %v4001 = vrot.slane %v4000, 2
      %v4002 = vadd.f32 %v4000, %v4001
      %v4003 = vrot.slane %v4002, 1
      %v4004 = vadd.f32 %v4002, %v4003
      %vm4005 = vcmask 57344
      %4006 = vst.msk [vmem:[%s292] sm:$0x1] %vm4005, %v4004
      %v4007 = vmul.f32 %v3871, %v3871
      %v4008 = vmul.f32 %v3872, %v3872
      %v4009 = vmul.f32 %v3873, %v3873
      %v4010 = vmul.f32 %v3874, %v3874
      %v4011 = vmul.f32 %v3875, %v3875
      %v4012 = vmul.f32 %v3876, %v3876
      %v4013 = vmul.f32 %v3877, %v3877
      %v4014 = vmul.f32 %v3878, %v3878
      %v4015 = vmul.f32 %v3879, %v3879
      %v4016 = vmul.f32 %v3880, %v3880
      %v4017 = vmul.f32 %v3881, %v3881
      %v4018 = vmul.f32 %v3882, %v3882
      %v4019 = vmul.f32 %v3883, %v3883
      %v4020 = vmul.f32 %v3884, %v3884
      %v4021 = vmul.f32 %v3885, %v3885
      %v4022 = vmul.f32 %v3886, %v3886
      %v4023 = vmul.f32 %v3887, %v3887
      %v4024 = vmul.f32 %v3888, %v3888
      %v4025 = vmul.f32 %v3889, %v3889
      %v4026 = vmul.f32 %v3890, %v3890
      %v4027 = vmul.f32 %v3891, %v3891
      %v4028 = vmul.f32 %v3892, %v3892
      %v4029 = vmul.f32 %v3893, %v3893
      %v4030 = vmul.f32 %v3894, %v3894
      %v4031 = vmul.f32 %v3895, %v3895
      %v4032 = vmul.f32 %v3896, %v3896
      %v4033 = vmul.f32 %v3897, %v3897
      %v4034 = vmul.f32 %v3898, %v3898
      %v4035 = vmul.f32 %v3899, %v3899
      %v4036 = vmul.f32 %v3900, %v3900
      %v4037 = vmul.f32 %v3901, %v3901
      %v4038 = vmul.f32 %v3902, %v3902
      %v4039 = vsel %vm3903, %v4007, 0.0
      %v4040 = vsel %vm3903, %v4008, 0.0
      %v4041 = vadd.f32 %v4039, %v4040
      %v4042 = vsel %vm3903, %v4009, 0.0
      %v4043 = vadd.f32 %v4041, %v4042
      %v4044 = vsel %vm3903, %v4010, 0.0
      %v4045 = vadd.f32 %v4043, %v4044
      %v4046 = vsel %vm3903, %v4011, 0.0
      %v4047 = vadd.f32 %v4045, %v4046
      %v4048 = vsel %vm3903, %v4012, 0.0
      %v4049 = vadd.f32 %v4047, %v4048
      %v4050 = vsel %vm3903, %v4013, 0.0
      %v4051 = vadd.f32 %v4049, %v4050
      %v4052 = vsel %vm3903, %v4014, 0.0
      %v4053 = vadd.f32 %v4051, %v4052
      %v4054 = vsel %vm3903, %v4015, 0.0
      %v4055 = vadd.f32 %v4053, %v4054
      %v4056 = vsel %vm3903, %v4016, 0.0
      %v4057 = vadd.f32 %v4055, %v4056
      %v4058 = vsel %vm3903, %v4017, 0.0
      %v4059 = vadd.f32 %v4057, %v4058
      %v4060 = vsel %vm3903, %v4018, 0.0
      %v4061 = vadd.f32 %v4059, %v4060
      %v4062 = vsel %vm3903, %v4019, 0.0
      %v4063 = vadd.f32 %v4061, %v4062
      %v4064 = vsel %vm3903, %v4020, 0.0
      %v4065 = vadd.f32 %v4063, %v4064
      %v4066 = vsel %vm3903, %v4021, 0.0
      %v4067 = vadd.f32 %v4065, %v4066
      %v4068 = vsel %vm3903, %v4022, 0.0
      %v4069 = vadd.f32 %v4067, %v4068
      %v4070 = vsel %vm3903, %v4023, 0.0
      %v4071 = vadd.f32 %v4069, %v4070
      %v4072 = vsel %vm3903, %v4024, 0.0
      %v4073 = vadd.f32 %v4071, %v4072
      %v4074 = vsel %vm3903, %v4025, 0.0
      %v4075 = vadd.f32 %v4073, %v4074
      %v4076 = vsel %vm3903, %v4026, 0.0
      %v4077 = vadd.f32 %v4075, %v4076
      %v4078 = vsel %vm3903, %v4027, 0.0
      %v4079 = vadd.f32 %v4077, %v4078
      %v4080 = vsel %vm3903, %v4028, 0.0
      %v4081 = vadd.f32 %v4079, %v4080
      %v4082 = vsel %vm3903, %v4029, 0.0
      %v4083 = vadd.f32 %v4081, %v4082
      %v4084 = vsel %vm3903, %v4030, 0.0
      %v4085 = vadd.f32 %v4083, %v4084
      %v4086 = vsel %vm3903, %v4031, 0.0
      %v4087 = vadd.f32 %v4085, %v4086
      %v4088 = vsel %vm3903, %v4032, 0.0
      %v4089 = vadd.f32 %v4087, %v4088
      %v4090 = vsel %vm3903, %v4033, 0.0
      %v4091 = vadd.f32 %v4089, %v4090
      %v4092 = vsel %vm3903, %v4034, 0.0
      %v4093 = vadd.f32 %v4091, %v4092
      %v4094 = vsel %vm3903, %v4035, 0.0
      %v4095 = vadd.f32 %v4093, %v4094
      %v4096 = vsel %vm3903, %v4036, 0.0
      %v4097 = vadd.f32 %v4095, %v4096
      %v4098 = vsel %vm3903, %v4037, 0.0
      %v4099 = vadd.f32 %v4097, %v4098
      %v4100 = vsel %vm3903, %v4038, 0.0
      %v4101 = vadd.f32 %v4099, %v4100
      %v4102 = vrot.slane %v4101, 4
      %v4103 = vadd.f32 %v4101, %v4102
      %v4104 = vrot.slane %v4103, 2
      %v4105 = vadd.f32 %v4103, %v4104
      %v4106 = vrot.slane %v4105, 1
      %v4107 = vadd.f32 %v4105, %v4106
      %4108 = vst.msk [vmem:[%s295] sm:$0x1] %vm4005, %v4107
      %p4109 = scmp.lt.s32.totalorder %s19, 1
      %s4110 = scalar_select %p4109, %s19, 1
      %s4111 = smul.addr %s4110, 32
      %s4112 = smul.addr %s4111, 8
      %s4113 = scalar_lea.vmem %s5, %s4112
      %p4114 = scmp.lt.s32.totalorder %s19, 1
      %s4115 = scalar_select %p4114, %s19, 1
      %s4116 = scalar_lea.vmem %s6, %s4115
      %p4117 = scmp.lt.s32.totalorder %s19, 1
      %s4118 = scalar_select %p4117, %s19, 1
      %s4119 = scalar_lea.vmem %s7, %s4118
      // Predicated region
      $region41: #{unet_block.3} parent=39 // pred_check
        %p4120 = pneg %p147
      $region42: #{unet_block.3} parent=39 // pred_check_branch
        %4122 = sbr.rel (%p4120) target = $region44
      $region43: #{unet_block.3} parent=39 // pred_region
        _
      $region44: #{unet_block.3} parent=39 // pred_fallthru
        _
      // Predicated region
      $region45: #{unet_block.3} parent=39 // pred_check
        %p4123 = pneg %p173
      $region46: #{unet_block.3} parent=39 // pred_check_branch
        %4125 = sbr.rel (%p4123) target = $region48
      $region47: #{unet_block.3} parent=39 // pred_region
        _
      $region48: #{unet_block.3} parent=39 // pred_fallthru
        _
      // Predicated region
      $region49: #{unet_block.3} parent=39 // pred_check
        %p4126 = pneg %p199
      $region50: #{unet_block.3} parent=39 // pred_check_branch
        %4128 = sbr.rel (%p4126) target = $region52
      $region51: #{unet_block.3} parent=39 // pred_region
        _
      $region52: #{unet_block.3} parent=39 // pred_fallthru
        _
    $region40: #{unet_block.3} parent=5 // pred_fallthru
      _
    %p4129 = scmp.le.s32.totalorder 2, %s14
    // Predicated region
    $region53: #{unet_block.3} parent=5 // pred_check
      %p4130 = pneg %p4129
    $region54: #{unet_block.3} parent=5 // pred_check_branch
      %4132 = sbr.rel (%p4130) target = $region56
    $region55: #{unet_block.3} parent=5 // pred_region
      %s4133 = ssub.s32 %s14, 2
      // Predicated region
      $region57: #{unet_block.3} parent=55 // pred_check
        %p4134 = pneg %p153
      $region58: #{unet_block.3} parent=55 // pred_check_branch
        %4136 = sbr.rel (%p4134) target = $region60
      $region59: #{unet_block.3} parent=55 // pred_region
        %p4137 = scmp.lt.s32.totalorder %s20, 1
        %s4138 = scalar_select %p4137, %s20, 1
        %s4139 = smul.addr %s4138, 32
        %s4140 = smul.addr %s4139, 8
        %s4141 = scalar_lea.vmem %s5, %s4140
      $region60: #{unet_block.3} parent=55 // pred_fallthru
        _
      // Predicated region
      $region61: #{unet_block.3} parent=55 // pred_check
        %p4142 = pneg %p179
      $region62: #{unet_block.3} parent=55 // pred_check_branch
        %4144 = sbr.rel (%p4142) target = $region64
      $region63: #{unet_block.3} parent=55 // pred_region
        %p4145 = scmp.lt.s32.totalorder %s20, 1
        %s4146 = scalar_select %p4145, %s20, 1
        %s4147 = scalar_lea.vmem %s6, %s4146
      $region64: #{unet_block.3} parent=55 // pred_fallthru
        _
      // Predicated region
      $region65: #{unet_block.3} parent=55 // pred_check
        %p4148 = pneg %p205
      $region66: #{unet_block.3} parent=55 // pred_check_branch
        %4150 = sbr.rel (%p4148) target = $region68
      $region67: #{unet_block.3} parent=55 // pred_region
        %p4151 = scmp.lt.s32.totalorder %s20, 1
        %s4152 = scalar_select %p4151, %s20, 1
        %s4153 = scalar_lea.vmem %s7, %s4152
      $region68: #{unet_block.3} parent=55 // pred_fallthru
        _
    $region56: #{unet_block.3} parent=5 // pred_fallthru
      _
  $region6: #{unet_block.3} parent=0 // loop_footer
    %s18 = sadd.s32 1, %s14
  $region7: #{unet_block.3} parent=0 // loop_footer_branch
    %13 = sbr.rel target = $region3
  $region8: #{unet_block.3} parent=0 // loop_exit
    _

// kernel: unet_block.4
$region0: #{unet_block.4}
  #allocation0 [shape = 'u32[]', space=smem, size = 0x4, offset = 0x4, fixed_abs, tag = 'smem constant byte address 0x4 - core index']
  #allocation1 [shape = 'u32[144,128]{1,0:T(1,128)}', space=vmem, size = 0x12000, scoped, tag = 'internal scratch']
  #allocation2 [shape = 'f32[18,18,8]{2,1,0:T(8,128)}', space=vmem, size = 0x36000, scoped, tag = 'scratch operand']
  %s0 = inlined_call_operand.vmem [shape: f32[2,16,16,8], index: 0, kind: input, shape index: {}]
  %s1 = inlined_call_operand.vmem [shape: f32[9,8,8], index: 1, kind: input, shape index: {}]
  %s2 = inlined_call_operand.vmem [shape: f32[1,8], index: 2, kind: input, shape index: {}]
  %s3 = inlined_call_operand.vmem [shape: f32[1,1,8], index: 3, kind: input, shape index: {}]
  %s4 = inlined_call_operand.vmem [shape: f32[1,1,8], index: 4, kind: input, shape index: {}]
  %s5 = inlined_call_operand.vmem [shape: f32[2,16,16,8], index: 5, kind: output, shape index: {0}]
  %s6 = inlined_call_operand.vmem [shape: f32[2,1,8], index: 6, kind: output, shape index: {1}]
  %s7 = inlined_call_operand.vmem [shape: f32[2,1,8], index: 7, kind: output, shape index: {2}]
  %8 = xla_tuple %s5, %s6, %s7
  %s9 = sld [smem:[#allocation0]]
  $region69: #{unet_block.4} parent=0
    _
  %s11 = ssub.s32 1, %s9
  %s12 = scalar_select 0, %s11, %s9
  loop: start=0, step=1, limit=4
  $region2: #{unet_block.4} parent=0 // loop_pre_header
    _
  $region3: #{unet_block.4} parent=0 // loop_header
    %s14 = sphi 0, %s18
    %p15 = scmp.ge.s32.totalorder %s14, 4
    %s24 = sphi 0, %s26
    %s27 = sphi 0, %s24
    %s28 = sphi 0, %s27
    %s44 = sphi 0, %s28
    %s48 = sphi 0, %s48
    %s50 = sphi 0, %s48
    %s51 = sphi 0, %s50
    %s65 = sphi 0, %s51
    %s69 = sphi 0, %s69
    %s71 = sphi 0, %s69
    %s72 = sphi 0, %s71
    %s86 = sphi 0, %s72
    %s90 = sphi 0, %s90
    %s92 = sphi 0, %s90
    %s93 = sphi 0, %s92
    %s107 = sphi 0, %s93
    %s111 = sphi 0, %s111
    %s113 = sphi 0, %s111
    %s114 = sphi 0, %s113
    %s128 = sphi 0, %s114
    %s134 = sphi 0, %s136
    %s137 = sphi 0, %s134
    %s138 = sphi 0, %s137
    %s154 = sphi 0, %s138
    %s160 = sphi 0, %s162
    %s163 = sphi 0, %s160
    %s164 = sphi 0, %s163
    %s180 = sphi 0, %s164
    %s186 = sphi 0, %s188
    %s189 = sphi 0, %s186
    %s190 = sphi 0, %s189
    %s206 = sphi 0, %s190
  $region4: #{unet_block.4} parent=0 // loop_header_branch
    %17 = sbr.rel (%p15) target = $region8
  $region5: #{unet_block.4} parent=0 // loop_body
    %s19 = ssub.s32 %s14, 1
    %s20 = ssub.s32 %s14, 2
    %s21 = sadd.s32 %s14, 1
    %s22 = ssub.s32 %s14, %s21
    %p23 = scmp.eq.s32.totalorder %s22, 0
    %s25 = sadd.s32 %s24, 1
    %s26 = scalar_select %p23, %s24, %s25
    %p29 = pneg %p23
    %p30 = scmp.eq.s32.totalorder %s14, 1
    %p31 = por %p29, %p30
    %p32 = scmp.ne.s32.totalorder %s24, %s27
    %p33 = scmp.eq.s32.totalorder %s14, 0
    %p34 = por %p32, %p33
    %p35 = scmp.ne.s32.totalorder %s24, %s27
    %p36 = scmp.eq.s32.totalorder %s19, 1
    %p37 = por %p35, %p36
    %p38 = scmp.ne.s32.totalorder %s27, %s28
    %p39 = scmp.eq.s32.totalorder %s19, 0
    %p40 = por %p38, %p39
    %p41 = scmp.ne.s32.totalorder %s27, %s28
    %p42 = scmp.eq.s32.totalorder %s20, 1
    %p43 = por %p41, %p42
    %p45 = scmp.ne.s32.totalorder %s28, %s44
    %p46 = scmp.eq.s32.totalorder %s20, 0
    %p47 = por %p45, %p46
    %s49 = sadd.s32 %s48, 1
    %p52 = scmp.eq.s32.totalorder %s14, 1
    %p53 = scmp.ne.s32.totalorder %s48, %s50
    %p54 = scmp.eq.s32.totalorder %s14, 0
    %p55 = por %p53, %p54
    %p56 = scmp.ne.s32.totalorder %s48, %s50
    %p57 = scmp.eq.s32.totalorder %s19, 1
    %p58 = por %p56, %p57
    %p59 = scmp.ne.s32.totalorder %s50, %s51
    %p60 = scmp.eq.s32.totalorder %s19, 0
    %p61 = por %p59, %p60
    %p62 = scmp.ne.s32.totalorder %s50, %s51
    %p63 = scmp.eq.s32.totalorder %s20, 1
    %p64 = por %p62, %p63
    %p66 = scmp.ne.s32.totalorder %s51, %s65
    %p67 = scmp.eq.s32.totalorder %s20, 0
    %p68 = por %p66, %p67
    %s70 = sadd.s32 %s69, 1
    %p73 = scmp.eq.s32.totalorder %s14, 1
    %p74 = scmp.ne.s32.totalorder %s69, %s71
    %p75 = scmp.eq.s32.totalorder %s14, 0
    %p76 = por %p74, %p75
    %p77 = scmp.ne.s32.totalorder %s69, %s71
    %p78 = scmp.eq.s32.totalorder %s19, 1
    %p79 = por %p77, %p78
    %p80 = scmp.ne.s32.totalorder %s71, %s72
    %p81 = scmp.eq.s32.totalorder %s19, 0
    %p82 = por %p80, %p81
    %p83 = scmp.ne.s32.totalorder %s71, %s72
    %p84 = scmp.eq.s32.totalorder %s20, 1
    %p85 = por %p83, %p84
    %p87 = scmp.ne.s32.totalorder %s72, %s86
    %p88 = scmp.eq.s32.totalorder %s20, 0
    %p89 = por %p87, %p88
    %s91 = sadd.s32 %s90, 1
    %p94 = scmp.eq.s32.totalorder %s14, 1
    %p95 = scmp.ne.s32.totalorder %s90, %s92
    %p96 = scmp.eq.s32.totalorder %s14, 0
    %p97 = por %p95, %p96
    %p98 = scmp.ne.s32.totalorder %s90, %s92
    %p99 = scmp.eq.s32.totalorder %s19, 1
    %p100 = por %p98, %p99
    %p101 = scmp.ne.s32.totalorder %s92, %s93
    %p102 = scmp.eq.s32.totalorder %s19, 0
    %p103 = por %p101, %p102
    %p104 = scmp.ne.s32.totalorder %s92, %s93
    %p105 = scmp.eq.s32.totalorder %s20, 1
    %p106 = por %p104, %p105
    %p108 = scmp.ne.s32.totalorder %s93, %s107
    %p109 = scmp.eq.s32.totalorder %s20, 0
    %p110 = por %p108, %p109
    %s112 = sadd.s32 %s111, 1
    %p115 = scmp.eq.s32.totalorder %s14, 1
    %p116 = scmp.ne.s32.totalorder %s111, %s113
    %p117 = scmp.eq.s32.totalorder %s14, 0
    %p118 = por %p116, %p117
    %p119 = scmp.ne.s32.totalorder %s111, %s113
    %p120 = scmp.eq.s32.totalorder %s19, 1
    %p121 = por %p119, %p120
    %p122 = scmp.ne.s32.totalorder %s113, %s114
    %p123 = scmp.eq.s32.totalorder %s19, 0
    %p124 = por %p122, %p123
    %p125 = scmp.ne.s32.totalorder %s113, %s114
    %p126 = scmp.eq.s32.totalorder %s20, 1
    %p127 = por %p125, %p126
    %p129 = scmp.ne.s32.totalorder %s114, %s128
    %p130 = scmp.eq.s32.totalorder %s20, 0
    %p131 = por %p129, %p130
    %s132 = ssub.s32 %s14, %s21
    %p133 = scmp.eq.s32.totalorder %s132, 0
    %s135 = sadd.s32 %s134, 1
    %s136 = scalar_select %p133, %s134, %s135
    %p139 = pneg %p133
    %p140 = scmp.eq.s32.totalorder %s14, 1
    %p141 = por %p139, %p140
    %p142 = scmp.ne.s32.totalorder %s134, %s137
    %p143 = scmp.eq.s32.totalorder %s14, 0
    %p144 = por %p142, %p143
    %p145 = scmp.ne.s32.totalorder %s134, %s137
    %p146 = scmp.eq.s32.totalorder %s19, 1
    %p147 = por %p145, %p146
    %p148 = scmp.ne.s32.totalorder %s137, %s138
    %p149 = scmp.eq.s32.totalorder %s19, 0
    %p150 = por %p148, %p149
    %p151 = scmp.ne.s32.totalorder %s137, %s138
    %p152 = scmp.eq.s32.totalorder %s20, 1
    %p153 = por %p151, %p152
    %p155 = scmp.ne.s32.totalorder %s138, %s154
    %p156 = scmp.eq.s32.totalorder %s20, 0
    %p157 = por %p155, %p156
    %s158 = ssub.s32 %s14, %s21
    %p159 = scmp.eq.s32.totalorder %s158, 0
    %s161 = sadd.s32 %s160, 1
    %s162 = scalar_select %p159, %s160, %s161
    %p165 = pneg %p159
    %p166 = scmp.eq.s32.totalorder %s14, 1
    %p167 = por %p165, %p166
    %p168 = scmp.ne.s32.totalorder %s160, %s163
    %p169 = scmp.eq.s32.totalorder %s14, 0
    %p170 = por %p168, %p169
    %p171 = scmp.ne.s32.totalorder %s160, %s163
    %p172 = scmp.eq.s32.totalorder %s19, 1
    %p173 = por %p171, %p172
    %p174 = scmp.ne.s32.totalorder %s163, %s164
    %p175 = scmp.eq.s32.totalorder %s19, 0
    %p176 = por %p174, %p175
    %p177 = scmp.ne.s32.totalorder %s163, %s164
    %p178 = scmp.eq.s32.totalorder %s20, 1
    %p179 = por %p177, %p178
    %p181 = scmp.ne.s32.totalorder %s164, %s180
    %p182 = scmp.eq.s32.totalorder %s20, 0
    %p183 = por %p181, %p182
    %s184 = ssub.s32 %s14, %s21
    %p185 = scmp.eq.s32.totalorder %s184, 0
    %s187 = sadd.s32 %s186, 1
    %s188 = scalar_select %p185, %s186, %s187
    %p191 = pneg %p185
    %p192 = scmp.eq.s32.totalorder %s14, 1
    %p193 = por %p191, %p192
    %p194 = scmp.ne.s32.totalorder %s186, %s189
    %p195 = scmp.eq.s32.totalorder %s14, 0
    %p196 = por %p194, %p195
    %p197 = scmp.ne.s32.totalorder %s186, %s189
    %p198 = scmp.eq.s32.totalorder %s19, 1
    %p199 = por %p197, %p198
    %p200 = scmp.ne.s32.totalorder %s189, %s190
    %p201 = scmp.eq.s32.totalorder %s19, 0
    %p202 = por %p200, %p201
    %p203 = scmp.ne.s32.totalorder %s189, %s190
    %p204 = scmp.eq.s32.totalorder %s20, 1
    %p205 = por %p203, %p204
    %p207 = scmp.ne.s32.totalorder %s190, %s206
    %p208 = scmp.eq.s32.totalorder %s20, 0
    %p209 = por %p207, %p208
    %p210 = scmp.le.s32.totalorder 1, %s14
    %p211 = scmp.lt.s32.totalorder %s14, 3
    %p212 = pnand %p210, %p211
    %p213 = pneg %p212
    // Predicated region
    $region9: #{unet_block.4} parent=5 // pred_check
      _
    $region10: #{unet_block.4} parent=5 // pred_check_branch
      %215 = sbr.rel (%p212) target = $region12
    $region11: #{unet_block.4} parent=5 // pred_region
      %s216 = ssub.s32 %s14, 1
      // Predicated region
      $region13: #{unet_block.4} parent=11 // pred_check
        %p217 = pneg %p61
      $region14: #{unet_block.4} parent=11 // pred_check_branch
        %219 = sbr.rel (%p217) target = $region16
      $region15: #{unet_block.4} parent=11 // pred_region
        _
      $region16: #{unet_block.4} parent=11 // pred_fallthru
        _
      // Predicated region
      $region17: #{unet_block.4} parent=11 // pred_check
        %p220 = pneg %p82
      $region18: #{unet_block.4} parent=11 // pred_check_branch
        %222 = sbr.rel (%p220) target = $region20
      $region19: #{unet_block.4} parent=11 // pred_region
        _
      $region20: #{unet_block.4} parent=11 // pred_fallthru
        _
      // Predicated region
      $region21: #{unet_block.4} parent=11 // pred_check
        %p223 = pneg %p103
      $region22: #{unet_block.4} parent=11 // pred_check_branch
        %225 = sbr.rel (%p223) target = $region24
      $region23: #{unet_block.4} parent=11 // pred_region
        _
      $region24: #{unet_block.4} parent=11 // pred_fallthru
        _
      // Predicated region
      $region25: #{unet_block.4} parent=11 // pred_check
        %p226 = pneg %p124
      $region26: #{unet_block.4} parent=11 // pred_check_branch
        %228 = sbr.rel (%p226) target = $region28
      $region27: #{unet_block.4} parent=11 // pred_region
        _
      $region28: #{unet_block.4} parent=11 // pred_fallthru
        _
    $region12: #{unet_block.4} parent=5 // pred_fallthru
      _
    %p229 = scmp.lt.s32.totalorder %s14, 2
    // Predicated region
    $region29: #{unet_block.4} parent=5 // pred_check
      %p230 = pneg %p229
    $region30: #{unet_block.4} parent=5 // pred_check_branch
      %232 = sbr.rel (%p230) target = $region32
    $region31: #{unet_block.4} parent=5 // pred_region
      // Predicated region
      $region33: #{unet_block.4} parent=31 // pred_check
        %p233 = pneg %p34
      $region34: #{unet_block.4} parent=31 // pred_check_branch
        %235 = sbr.rel (%p233) target = $region36
      $region35: #{unet_block.4} parent=31 // pred_region
        %p236 = scmp.lt.s32.totalorder %s14, 1
        %s237 = scalar_select %p236, %s14, 1
        %s238 = smul.addr %s237, 32
        %s239 = smul.addr %s238, 8
        %s240 = scalar_lea.vmem %s0, %s239
      $region36: #{unet_block.4} parent=31 // pred_fallthru
        _
    $region32: #{unet_block.4} parent=5 // pred_fallthru
      _
    %p241 = scmp.le.s32.totalorder 1, %s14
    %p242 = scmp.lt.s32.totalorder %s14, 3
    %p243 = pnand %p241, %p242
    %p244 = pneg %p243
    // Predicated region
    $region37: #{unet_block.4} parent=5 // pred_check
      _
    $region38: #{unet_block.4} parent=5 // pred_check_branch
      %246 = sbr.rel (%p243) target = $region40
    $region39: #{unet_block.4} parent=5 // pred_region
      %s247 = ssub.s32 %s14, 1
      %p248 = scmp.lt.s32.totalorder %s19, 1
      %s249 = scalar_select %p248, %s19, 1
      %s250 = smul.addr %s249, 32
      %s251 = smul.addr %s250, 8
      %s252 = scalar_lea.vmem %s0, %s251
      %p253 = pneg %p40
      %p254 = pneg %p37
      %p255 = pneg %p61
      %p256 = pneg %p58
      %p257 = pneg %p82
      %p258 = pneg %p79
      %p259 = pneg %p103
      %p260 = pneg %p100
      %p261 = pneg %p124
      %p262 = pneg %p121
      %p263 = pneg %p150
      %p264 = pneg %p147
      %p265 = scmp.lt.s32.totalorder %s19, 1
      %s266 = scalar_select %p265, %s19, 1
      %s267 = smul.addr %s266, 32
      %s268 = smul.addr %s267, 8
      %s269 = scalar_lea.vmem %s5, %s268
      %p270 = pneg %p176
      %p271 = pneg %p173
      %p272 = scmp.lt.s32.totalorder %s19, 1
      %s273 = scalar_select %p272, %s19, 1
      %s274 = scalar_lea.vmem %s6, %s273
      %p275 = pneg %p202
      %p276 = pneg %p199
      %p277 = scmp.lt.s32.totalorder %s19, 1
      %s278 = scalar_select %p277, %s19, 1
      %s279 = scalar_lea.vmem %s7, %s278
      %p280 = scmp.lt.s32.totalorder %s19, 1
      %s281 = scalar_select %p280, %s19, 1
      %s282 = smul.addr %s281, 32
      %s283 = smul.addr %s282, 8
      %s284 = scalar_lea.vmem %s0, %s283
      %p285 = scmp.lt.s32.totalorder %s19, 1
      %s286 = scalar_select %p285, %s19, 1
      %s287 = smul.addr %s286, 32
      %s288 = smul.addr %s287, 8
      %s289 = scalar_lea.vmem %s5, %s288
      %p290 = scmp.lt.s32.totalorder %s19, 1
      %s291 = scalar_select %p290, %s19, 1
      %s292 = scalar_lea.vmem %s6, %s291
      %p293 = scmp.lt.s32.totalorder %s19, 1
      %s294 = scalar_select %p293, %s19, 1
      %s295 = scalar_lea.vmem %s7, %s294
      %v296 = vld [vmem:[%s284] sm:$0xff]
      %v297 = vld [vmem:[%s284 + $0x8] sm:$0xff]
      %v298 = vld [vmem:[%s284 + $0x10] sm:$0xff]
      %v299 = vld [vmem:[%s284 + $0x18] sm:$0xff]
      %v300 = vld [vmem:[%s284 + $0x20] sm:$0xff]
      %v301 = vld [vmem:[%s284 + $0x28] sm:$0xff]
      %v302 = vld [vmem:[%s284 + $0x30] sm:$0xff]
      %v303 = vld [vmem:[%s284 + $0x38] sm:$0xff]
      %v304 = vld [vmem:[%s284 + $0x40] sm:$0xff]
      %v305 = vld [vmem:[%s284 + $0x48] sm:$0xff]
      %v306 = vld [vmem:[%s284 + $0x50] sm:$0xff]
      %v307 = vld [vmem:[%s284 + $0x58] sm:$0xff]
      %v308 = vld [vmem:[%s284 + $0x60] sm:$0xff]
      %v309 = vld [vmem:[%s284 + $0x68] sm:$0xff]
      %v310 = vld [vmem:[%s284 + $0x70] sm:$0xff]
      %v311 = vld [vmem:[%s284 + $0x78] sm:$0xff]
      %v312 = vld [vmem:[%s284 + $0x80] sm:$0xff]
      %v313 = vld [vmem:[%s284 + $0x88] sm:$0xff]
      %v314 = vld [vmem:[%s284 + $0x90] sm:$0xff]
      %v315 = vld [vmem:[%s284 + $0x98] sm:$0xff]
      %v316 = vld [vmem:[%s284 + $0xa0] sm:$0xff]
      %v317 = vld [vmem:[%s284 + $0xa8] sm:$0xff]
      %v318 = vld [vmem:[%s284 + $0xb0] sm:$0xff]
      %v319 = vld [vmem:[%s284 + $0xb8] sm:$0xff]
      %v320 = vld [vmem:[%s284 + $0xc0] sm:$0xff]
      %v321 = vld [vmem:[%s284 + $0xc8] sm:$0xff]
      %v322 = vld [vmem:[%s284 + $0xd0] sm:$0xff]
      %v323 = vld [vmem:[%s284 + $0xd8] sm:$0xff]
      %v324 = vld [vmem:[%s284 + $0xe0] sm:$0xff]
      %v325 = vld [vmem:[%s284 + $0xe8] sm:$0xff]
      %v326 = vld [vmem:[%s284 + $0xf0] sm:$0xff]
      %v327 = vld [vmem:[%s284 + $0xf8] sm:$0xff]
      %v328 = vld [vmem:[%s3] sm:$0x1]
      %v330 = vlaneseq
      %v331 = vshrl.u32 %v330, 7
      %v332 = vsub.s32 0, %v331
      %v333 = vrot.slane %v328, %v332
      %v335 = vmul.f32 %v296, %v333
      %v336 = vmul.f32 %v297, %v333
      %v337 = vmul.f32 %v298, %v333
      %v338 = vmul.f32 %v299, %v333
      %v339 = vmul.f32 %v300, %v333
      %v340 = vmul.f32 %v301, %v333
      %v341 = vmul.f32 %v302, %v333
      %v342 = vmul.f32 %v303, %v333
      %v343 = vmul.f32 %v304, %v333
      %v344 = vmul.f32 %v305, %v333
      %v345 = vmul.f32 %v306, %v333
      %v346 = vmul.f32 %v307, %v333
      %v347 = vmul.f32 %v308, %v333
      %v348 = vmul.f32 %v309, %v333
      %v349 = vmul.f32 %v310, %v333
      %v350 = vmul.f32 %v311, %v333
      %v351 = vmul.f32 %v312, %v333
      %v352 = vmul.f32 %v313, %v333
      %v353 = vmul.f32 %v314, %v333
      %v354 = vmul.f32 %v315, %v333
      %v355 = vmul.f32 %v316, %v333
      %v356 = vmul.f32 %v317, %v333
      %v357 = vmul.f32 %v318, %v333
      %v358 = vmul.f32 %v319, %v333
      %v359 = vmul.f32 %v320, %v333
      %v360 = vmul.f32 %v321, %v333
      %v361 = vmul.f32 %v322, %v333
      %v362 = vmul.f32 %v323, %v333
      %v363 = vmul.f32 %v324, %v333
      %v364 = vmul.f32 %v325, %v333
      %v365 = vmul.f32 %v326, %v333
      %v366 = vmul.f32 %v327, %v333
      %v367 = vld [vmem:[%s4] sm:$0x1]
      %v369 = vlaneseq
      %v370 = vshrl.u32 %v369, 7
      %v371 = vsub.s32 0, %v370
      %v372 = vrot.slane %v367, %v371
      %v374 = vadd.f32 %v335, %v372
      %v375 = vadd.f32 %v336, %v372
      %v376 = vadd.f32 %v337, %v372
      %v377 = vadd.f32 %v338, %v372
      %v378 = vadd.f32 %v339, %v372
      %v379 = vadd.f32 %v340, %v372
      %v380 = vadd.f32 %v341, %v372
      %v381 = vadd.f32 %v342, %v372
      %v382 = vadd.f32 %v343, %v372
      %v383 = vadd.f32 %v344, %v372
      %v384 = vadd.f32 %v345, %v372
      %v385 = vadd.f32 %v346, %v372
      %v386 = vadd.f32 %v347, %v372
      %v387 = vadd.f32 %v348, %v372
      %v388 = vadd.f32 %v349, %v372
      %v389 = vadd.f32 %v350, %v372
      %v390 = vadd.f32 %v351, %v372
      %v391 = vadd.f32 %v352, %v372
      %v392 = vadd.f32 %v353, %v372
      %v393 = vadd.f32 %v354, %v372
      %v394 = vadd.f32 %v355, %v372
      %v395 = vadd.f32 %v356, %v372
      %v396 = vadd.f32 %v357, %v372
      %v397 = vadd.f32 %v358, %v372
      %v398 = vadd.f32 %v359, %v372
      %v399 = vadd.f32 %v360, %v372
      %v400 = vadd.f32 %v361, %v372
      %v401 = vadd.f32 %v362, %v372
      %v402 = vadd.f32 %v363, %v372
      %v403 = vadd.f32 %v364, %v372
      %v404 = vadd.f32 %v365, %v372
      %v405 = vadd.f32 %v366, %v372
      %v406 = vmax.f32 %v374, 0.0
      %v407 = vmax.f32 %v375, 0.0
      %v408 = vmax.f32 %v376, 0.0
      %v409 = vmax.f32 %v377, 0.0
      %v410 = vmax.f32 %v378, 0.0
      %v411 = vmax.f32 %v379, 0.0
      %v412 = vmax.f32 %v380, 0.0
      %v413 = vmax.f32 %v381, 0.0
      %v414 = vmax.f32 %v382, 0.0
      %v415 = vmax.f32 %v383, 0.0
      %v416 = vmax.f32 %v384, 0.0
      %v417 = vmax.f32 %v385, 0.0
      %v418 = vmax.f32 %v386, 0.0
      %v419 = vmax.f32 %v387, 0.0
      %v420 = vmax.f32 %v388, 0.0
      %v421 = vmax.f32 %v389, 0.0
      %v422 = vmax.f32 %v390, 0.0
      %v423 = vmax.f32 %v391, 0.0
      %v424 = vmax.f32 %v392, 0.0
      %v425 = vmax.f32 %v393, 0.0
      %v426 = vmax.f32 %v394, 0.0
      %v427 = vmax.f32 %v395, 0.0
      %v428 = vmax.f32 %v396, 0.0
      %v429 = vmax.f32 %v397, 0.0
      %v430 = vmax.f32 %v398, 0.0
      %v431 = vmax.f32 %v399, 0.0
      %v432 = vmax.f32 %v400, 0.0
      %v433 = vmax.f32 %v401, 0.0
      %v434 = vmax.f32 %v402, 0.0
      %v435 = vmax.f32 %v403, 0.0
      %v436 = vmax.f32 %v404, 0.0
      %v437 = vmax.f32 %v405, 0.0
      %vm438 = vcmask 64512
      %439 = vst.msk [vmem:[#allocation2] sm:$0xff] %vm438, 0.0
      %440 = vst.msk [vmem:[#allocation2 + $0x8] sm:$0xff] %vm438, 0.0
      %vm441 = vcmask 58368
      %442 = vst.msk [vmem:[#allocation2 + $0x10] sm:$0x3] %vm441, 0.0
      %443 = vst.msk [vmem:[#allocation2 + $0x18] sm:$0xff] %vm438, 0.0
      %444 = vst.msk [vmem:[#allocation2 + $0x20] sm:$0xff] %vm438, 0.0
      %445 = vst.msk [vmem:[#allocation2 + $0x28] sm:$0x3] %vm441, 0.0
      %446 = vst.msk [vmem:[#allocation2 + $0x30] sm:$0xff] %vm438, 0.0
      %447 = vst.msk [vmem:[#allocation2 + $0x38] sm:$0xff] %vm438, 0.0
      %448 = vst.msk [vmem:[#allocation2 + $0x40] sm:$0x3] %vm441, 0.0
      %449 = vst.msk [vmem:[#allocation2 + $0x48] sm:$0xff] %vm438, 0.0
      %450 = vst.msk [vmem:[#allocation2 + $0x50] sm:$0xff] %vm438, 0.0
      %451 = vst.msk [vmem:[#allocation2 + $0x58] sm:$0x3] %vm441, 0.0
      %452 = vst.msk [vmem:[#allocation2 + $0x60] sm:$0xff] %vm438, 0.0
      %453 = vst.msk [vmem:[#allocation2 + $0x68] sm:$0xff] %vm438, 0.0
      %454 = vst.msk [vmem:[#allocation2 + $0x70] sm:$0x3] %vm441, 0.0
      %455 = vst.msk [vmem:[#allocation2 + $0x78] sm:$0xff] %vm438, 0.0
      %456 = vst.msk [vmem:[#allocation2 + $0x80] sm:$0xff] %vm438, 0.0
      %457 = vst.msk [vmem:[#allocation2 + $0x88] sm:$0x3] %vm441, 0.0
      %458 = vst.msk [vmem:[#allocation2 + $0x90] sm:$0xff] %vm438, 0.0
      %459 = vst.msk [vmem:[#allocation2 + $0x98] sm:$0xff] %vm438, 0.0
      %460 = vst.msk [vmem:[#allocation2 + $0xa0] sm:$0x3] %vm441, 0.0
      %461 = vst.msk [vmem:[#allocation2 + $0xa8] sm:$0xff] %vm438, 0.0
      %462 = vst.msk [vmem:[#allocation2 + $0xb0] sm:$0xff] %vm438, 0.0
      %463 = vst.msk [vmem:[#allocation2 + $0xb8] sm:$0x3] %vm441, 0.0
      %464 = vst.msk [vmem:[#allocation2 + $0xc0] sm:$0xff] %vm438, 0.0
      %465 = vst.msk [vmem:[#allocation2 + $0xc8] sm:$0xff] %vm438, 0.0
      %466 = vst.msk [vmem:[#allocation2 + $0xd0] sm:$0x3] %vm441, 0.0
      %467 = vst.msk [vmem:[#allocation2 + $0xd8] sm:$0xff] %vm438, 0.0
      %468 = vst.msk [vmem:[#allocation2 + $0xe0] sm:$0xff] %vm438, 0.0
      %469 = vst.msk [vmem:[#allocation2 + $0xe8] sm:$0x3] %vm441, 0.0
      %470 = vst.msk [vmem:[#allocation2 + $0xf0] sm:$0xff] %vm438, 0.0
      %471 = vst.msk [vmem:[#allocation2 + $0xf8] sm:$0xff] %vm438, 0.0
      %472 = vst.msk [vmem:[#allocation2 + $0x100] sm:$0x3] %vm441, 0.0
      %473 = vst.msk [vmem:[#allocation2 + $0x108] sm:$0xff] %vm438, 0.0
      %474 = vst.msk [vmem:[#allocation2 + $0x110] sm:$0xff] %vm438, 0.0
      %475 = vst.msk [vmem:[#allocation2 + $0x118] sm:$0x3] %vm441, 0.0
      %476 = vst.msk [vmem:[#allocation2 + $0x120] sm:$0xff] %vm438, 0.0
      %477 = vst.msk [vmem:[#allocation2 + $0x128] sm:$0xff] %vm438, 0.0
      %478 = vst.msk [vmem:[#allocation2 + $0x130] sm:$0x3] %vm441, 0.0
      %479 = vst.msk [vmem:[#allocation2 + $0x138] sm:$0xff] %vm438, 0.0
      %480 = vst.msk [vmem:[#allocation2 + $0x140] sm:$0xff] %vm438, 0.0
      %481 = vst.msk [vmem:[#allocation2 + $0x148] sm:$0x3] %vm441, 0.0
      %482 = vst.msk [vmem:[#allocation2 + $0x150] sm:$0xff] %vm438, 0.0
      %483 = vst.msk [vmem:[#allocation2 + $0x158] sm:$0xff] %vm438, 0.0
      %484 = vst.msk [vmem:[#allocation2 + $0x160] sm:$0x3] %vm441, 0.0
      %485 = vst.msk [vmem:[#allocation2 + $0x168] sm:$0xff] %vm438, 0.0
      %486 = vst.msk [vmem:[#allocation2 + $0x170] sm:$0xff] %vm438, 0.0
      %487 = vst.msk [vmem:[#allocation2 + $0x178] sm:$0x3] %vm441, 0.0
      %488 = vst.msk [vmem:[#allocation2 + $0x180] sm:$0xff] %vm438, 0.0
      %489 = vst.msk [vmem:[#allocation2 + $0x188] sm:$0xff] %vm438, 0.0
      %490 = vst.msk [vmem:[#allocation2 + $0x190] sm:$0x3] %vm441, 0.0
      %491 = vst.msk [vmem:[#allocation2 + $0x198] sm:$0xff] %vm438, 0.0
      %492 = vst.msk [vmem:[#allocation2 + $0x1a0] sm:$0xff] %vm438, 0.0
      %493 = vst.msk [vmem:[#allocation2 + $0x1a8] sm:$0x3] %vm441, 0.0
      %s494 = scalar_lea.vmem [#allocation2], 24
      %495 = vst.msk [vmem:[%s494 + $0x1] sm:$0xff] %vm438, %v406
      %496 = vst.msk [vmem:[%s494 + $0x9] sm:$0xff] %vm438, %v407
      %497 = vst.msk [vmem:[%s494 + $0x19] sm:$0xff] %vm438, %v408
      %498 = vst.msk [vmem:[%s494 + $0x21] sm:$0xff] %vm438, %v409
      %499 = vst.msk [vmem:[%s494 + $0x31] sm:$0xff] %vm438, %v410
      %500 = vst.msk [vmem:[%s494 + $0x39] sm:$0xff] %vm438, %v411
      %501 = vst.msk [vmem:[%s494 + $0x49] sm:$0xff] %vm438, %v412
      %502 = vst.msk [vmem:[%s494 + $0x51] sm:$0xff] %vm438, %v413
      %503 = vst.msk [vmem:[%s494 + $0x61] sm:$0xff] %vm438, %v414
      %504 = vst.msk [vmem:[%s494 + $0x69] sm:$0xff] %vm438, %v415
      %505 = vst.msk [vmem:[%s494 + $0x79] sm:$0xff] %vm438, %v416
      %506 = vst.msk [vmem:[%s494 + $0x81] sm:$0xff] %vm438, %v417
      %507 = vst.msk [vmem:[%s494 + $0x91] sm:$0xff] %vm438, %v418
      %508 = vst.msk [vmem:[%s494 + $0x99] sm:$0xff] %vm438, %v419
      %509 = vst.msk [vmem:[%s494 + $0xa9] sm:$0xff] %vm438, %v420
      %510 = vst.msk [vmem:[%s494 + $0xb1] sm:$0xff] %vm438, %v421
      %511 = vst.msk [vmem:[%s494 + $0xc1] sm:$0xff] %vm438, %v422
      %512 = vst.msk [vmem:[%s494 + $0xc9] sm:$0xff] %vm438, %v423
      %513 = vst.msk [vmem:[%s494 + $0xd9] sm:$0xff] %vm438, %v424
      %514 = vst.msk [vmem:[%s494 + $0xe1] sm:$0xff] %vm438, %v425
      %515 = vst.msk [vmem:[%s494 + $0xf1] sm:$0xff] %vm438, %v426
      %516 = vst.msk [vmem:[%s494 + $0xf9] sm:$0xff] %vm438, %v427
      %517 = vst.msk [vmem:[%s494 + $0x109] sm:$0xff] %vm438, %v428
      %518 = vst.msk [vmem:[%s494 + $0x111] sm:$0xff] %vm438, %v429
      %519 = vst.msk [vmem:[%s494 + $0x121] sm:$0xff] %vm438, %v430
      %520 = vst.msk [vmem:[%s494 + $0x129] sm:$0xff] %vm438, %v431
      %521 = vst.msk [vmem:[%s494 + $0x139] sm:$0xff] %vm438, %v432
      %522 = vst.msk [vmem:[%s494 + $0x141] sm:$0xff] %vm438, %v433
      %523 = vst.msk [vmem:[%s494 + $0x151] sm:$0xff] %vm438, %v434
      %524 = vst.msk [vmem:[%s494 + $0x159] sm:$0xff] %vm438, %v435
      %525 = vst.msk [vmem:[%s494 + $0x169] sm:$0xff] %vm438, %v436
      %526 = vst.msk [vmem:[%s494 + $0x171] sm:$0xff] %vm438, %v437
      %v527 = vld [vmem:[#allocation2] sm:$0xff]
      %v528 = vld [vmem:[#allocation2 + $0x8] sm:$0xff]
      %v529 = vld [vmem:[#allocation2 + $0x18] sm:$0xff]
      %v530 = vld [vmem:[#allocation2 + $0x20] sm:$0xff]
      %v531 = vld [vmem:[#allocation2 + $0x30] sm:$0xff]
      %v532 = vld [vmem:[#allocation2 + $0x38] sm:$0xff]
      %v533 = vld [vmem:[#allocation2 + $0x48] sm:$0xff]
      %v534 = vld [vmem:[#allocation2 + $0x50] sm:$0xff]
      %v535 = vld [vmem:[#allocation2 + $0x60] sm:$0xff]
      %v536 = vld [vmem:[#allocation2 + $0x68] sm:$0xff]
      %v537 = vld [vmem:[#allocation2 + $0x78] sm:$0xff]
      %v538 = vld [vmem:[#allocation2 + $0x80] sm:$0xff]
      %v539 = vld [vmem:[#allocation2 + $0x90] sm:$0xff]
      %v540 = vld [vmem:[#allocation2 + $0x98] sm:$0xff]
      %v541 = vld [vmem:[#allocation2 + $0xa8] sm:$0xff]
      %v542 = vld [vmem:[#allocation2 + $0xb0] sm:$0xff]
      %v543 = vld [vmem:[#allocation2 + $0xc0] sm:$0xff]
      %v544 = vld [vmem:[#allocation2 + $0xc8] sm:$0xff]
      %v545 = vld [vmem:[#allocation2 + $0xd8] sm:$0xff]
      %v546 = vld [vmem:[#allocation2 + $0xe0] sm:$0xff]
      %v547 = vld [vmem:[#allocation2 + $0xf0] sm:$0xff]
      %v548 = vld [vmem:[#allocation2 + $0xf8] sm:$0xff]
      %v549 = vld [vmem:[#allocation2 + $0x108] sm:$0xff]
      %v550 = vld [vmem:[#allocation2 + $0x110] sm:$0xff]
      %v551 = vld [vmem:[#allocation2 + $0x120] sm:$0xff]
      %v552 = vld [vmem:[#allocation2 + $0x128] sm:$0xff]
      %v553 = vld [vmem:[#allocation2 + $0x138] sm:$0xff]
      %v554 = vld [vmem:[#allocation2 + $0x140] sm:$0xff]
      %v555 = vld [vmem:[#allocation2 + $0x150] sm:$0xff]
      %v556 = vld [vmem:[#allocation2 + $0x158] sm:$0xff]
      %v557 = vld [vmem:[#allocation2 + $0x168] sm:$0xff]
      %v558 = vld [vmem:[#allocation2 + $0x170] sm:$0xff]
      %v559 = vld [vmem:[%s1] sm:$0xff]
      %v560 = vld [vmem:[#allocation2 + $0x1] sm:$0xff]
      %v561 = vld [vmem:[#allocation2 + $0x9] sm:$0xff]
      %v562 = vld [vmem:[#allocation2 + $0x19] sm:$0xff]
      %v563 = vld [vmem:[#allocation2 + $0x21] sm:$0xff]
      %v564 = vld [vmem:[#allocation2 + $0x31] sm:$0xff]
      %v565 = vld [vmem:[#allocation2 + $0x39] sm:$0xff]
      %v566 = vld [vmem:[#allocation2 + $0x49] sm:$0xff]
      %v567 = vld [vmem:[#allocation2 + $0x51] sm:$0xff]
      %v568 = vld [vmem:[#allocation2 + $0x61] sm:$0xff]
      %v569 = vld [vmem:[#allocation2 + $0x69] sm:$0xff]
      %v570 = vld [vmem:[#allocation2 + $0x79] sm:$0xff]
      %v571 = vld [vmem:[#allocation2 + $0x81] sm:$0xff]
      %v572 = vld [vmem:[#allocation2 + $0x91] sm:$0xff]
      %v573 = vld [vmem:[#allocation2 + $0x99] sm:$0xff]
      %v574 = vld [vmem:[#allocation2 + $0xa9] sm:$0xff]
      %v575 = vld [vmem:[#allocation2 + $0xb1] sm:$0xff]
      %v576 = vld [vmem:[#allocation2 + $0xc1] sm:$0xff]
      %v577 = vld [vmem:[#allocation2 + $0xc9] sm:$0xff]
      %v578 = vld [vmem:[#allocation2 + $0xd9] sm:$0xff]
      %v579 = vld [vmem:[#allocation2 + $0xe1] sm:$0xff]
      %v580 = vld [vmem:[#allocation2 + $0xf1] sm:$0xff]
      %v581 = vld [vmem:[#allocation2 + $0xf9] sm:$0xff]
      %v582 = vld [vmem:[#allocation2 + $0x109] sm:$0xff]
      %v583 = vld [vmem:[#allocation2 + $0x111] sm:$0xff]
      %v584 = vld [vmem:[#allocation2 + $0x121] sm:$0xff]
      %v585 = vld [vmem:[#allocation2 + $0x129] sm:$0xff]
      %v586 = vld [vmem:[#allocation2 + $0x139] sm:$0xff]
      %v587 = vld [vmem:[#allocation2 + $0x141] sm:$0xff]
      %v588 = vld [vmem:[#allocation2 + $0x151] sm:$0xff]
      %v589 = vld [vmem:[#allocation2 + $0x159] sm:$0xff]
      %v590 = vld [vmem:[#allocation2 + $0x169] sm:$0xff]
      %v591 = vld [vmem:[#allocation2 + $0x171] sm:$0xff]
      %s592 = scalar_lea.vmem %s1, 8
      %v593 = vld [vmem:[%s592] sm:$0xff]
      %v595 = vsel %vm438, %v560, 0
      %v598 = vsel %vm438, %v561, 0
      %v601 = vsel %vm438, %v562, 0
      %v604 = vsel %vm438, %v563, 0
      %v607 = vsel %vm438, %v564, 0
      %v610 = vsel %vm438, %v565, 0
      %v613 = vsel %vm438, %v566, 0
      %v616 = vsel %vm438, %v567, 0
      %v619 = vsel %vm438, %v568, 0
      %v622 = vsel %vm438, %v569, 0
      %v625 = vsel %vm438, %v570, 0
      %v628 = vsel %vm438, %v571, 0
      %v631 = vsel %vm438, %v572, 0
      %v634 = vsel %vm438, %v573, 0
      %v637 = vsel %vm438, %v574, 0
      %v640 = vsel %vm438, %v575, 0
      %v643 = vsel %vm438, %v576, 0
      %v646 = vsel %vm438, %v577, 0
      %v649 = vsel %vm438, %v578, 0
      %v652 = vsel %vm438, %v579, 0
      %v655 = vsel %vm438, %v580, 0
      %v658 = vsel %vm438, %v581, 0
      %v661 = vsel %vm438, %v582, 0
      %v664 = vsel %vm438, %v583, 0
      %v667 = vsel %vm438, %v584, 0
      %v670 = vsel %vm438, %v585, 0
      %v673 = vsel %vm438, %v586, 0
      %v676 = vsel %vm438, %v587, 0
      %v679 = vsel %vm438, %v588, 0
      %v682 = vsel %vm438, %v589, 0
      %v685 = vsel %vm438, %v590, 0
      %v688 = vsel %vm438, %v591, 0
      %690 = vmatprep.subr.mxu0 0.0
      %691 = vmatpush1.msra.mxu0 %v593
      %692 = vmatprep.subr.mxu0 0.0
      %693 = vmatpush1.msra.mxu0 0.0
      %694 = vmatprep.subr.mxu0 0.0
      %695 = vmatpush1.msra.mxu0 0.0
      %696 = vmatprep.subr.mxu0 0.0
      %697 = vmatpush1.msra.mxu0 0.0
      %698 = vmatprep.subr.mxu0 0.0
      %699 = vmatpush1.msra.mxu0 0.0
      %700 = vmatprep.subr.mxu0 0.0
      %701 = vmatpush1.msra.mxu0 0.0
      %702 = vmatprep.subr.mxu0 0.0
      %703 = vmatpush1.msra.mxu0 0.0
      %704 = vmatprep.subr.mxu0 0.0
      %705 = vmatpush1.msra.mxu0 0.0
      %706 = vmatprep.subr.mxu0 0.0
      %707 = vmatpush1.msra.mxu0 0.0
      %708 = vmatprep.subr.mxu0 0.0
      %709 = vmatpush1.msra.mxu0 0.0
      %710 = vmatprep.subr.mxu0 0.0
      %711 = vmatpush1.msra.mxu0 0.0
      %712 = vmatprep.subr.mxu0 0.0
      %713 = vmatpush1.msra.mxu0 0.0
      %714 = vmatprep.subr.mxu0 0.0
      %715 = vmatpush1.msra.mxu0 0.0
      %716 = vmatprep.subr.mxu0 0.0
      %717 = vmatpush1.msra.mxu0 0.0
      %718 = vmatprep.subr.mxu0 0.0
      %719 = vmatpush1.msra.mxu0 0.0
      %720 = vmatprep.subr.mxu0 0.0
      %721 = vmatpush1.msra.mxu0 0.0
      %722 = vmatprep.subr.mxu0 0.0
      %723 = vmatpush1.msra.mxu0 0.0
      %724 = vmatprep.subr.mxu0 0.0
      %725 = vmatpush1.msra.mxu0 0.0
      %726 = vmatprep.subr.mxu0 0.0
      %727 = vmatpush1.msra.mxu0 0.0
      %728 = vmatprep.subr.mxu0 0.0
      %729 = vmatpush1.msra.mxu0 0.0
      %730 = vmatprep.subr.mxu0 0.0
      %731 = vmatpush1.msra.mxu0 0.0
      %732 = vmatprep.subr.mxu0 0.0
      %733 = vmatpush1.msra.mxu0 0.0
      %734 = vmatprep.subr.mxu0 0.0
      %735 = vmatpush1.msra.mxu0 0.0
      %736 = vmatprep.subr.mxu0 0.0
      %737 = vmatpush1.msra.mxu0 0.0
      %738 = vmatprep.subr.mxu0 0.0
      %739 = vmatpush1.msra.mxu0 0.0
      %740 = vmatprep.subr.mxu0 0.0
      %741 = vmatpush1.msra.mxu0 0.0
      %742 = vmatprep.subr.mxu0 0.0
      %743 = vmatpush1.msra.mxu0 0.0
      %744 = vmatprep.subr.mxu0 0.0
      %745 = vmatpush1.msra.mxu0 0.0
      %746 = vmatprep.subr.mxu0 0.0
      %747 = vmatpush1.msra.mxu0 0.0
      %748 = vmatprep.subr.mxu0 0.0
      %749 = vmatpush1.msra.mxu0 0.0
      %750 = vmatprep.subr.mxu0 0.0
      %751 = vmatpush1.msra.mxu0 0.0
      %752 = vmatprep.subr.mxu0 0.0
      %753 = vmatpush1.msra.mxu0 0.0
      %754 = vmatprep.mubr.f32.mxu0 0.0
      %755 = vmatmul.mubr.f32.gmra.mrb[0].mxu0 %v595
      %v756 = vpop.f32.mrb[0].mxu0
      %v757 = vadd.f32 0.0, %v756
      %v758 = vpop.f32.mrb[0].mxu0
      %759 = vmatprep.mubr.f32.mxu0 0.0
      %760 = vmatmul.mubr.f32.gmra.mrb[0].mxu0 %v598
      %v761 = vpop.f32.mrb[0].mxu0
      %v762 = vadd.f32 0.0, %v761
      %v763 = vpop.f32.mrb[0].mxu0
      %764 = vmatprep.mubr.f32.mxu0 0.0
      %765 = vmatmul.mubr.f32.gmra.mrb[0].mxu0 %v601
      %v766 = vpop.f32.mrb[0].mxu0
      %v767 = vadd.f32 0.0, %v766
      %v768 = vpop.f32.mrb[0].mxu0
      %769 = vmatprep.mubr.f32.mxu0 0.0
      %770 = vmatmul.mubr.f32.gmra.mrb[0].mxu0 %v604
      %v771 = vpop.f32.mrb[0].mxu0
      %v772 = vadd.f32 0.0, %v771
      %v773 = vpop.f32.mrb[0].mxu0
      %774 = vmatprep.mubr.f32.mxu0 0.0
      %775 = vmatmul.mubr.f32.gmra.mrb[0].mxu0 %v607
      %v776 = vpop.f32.mrb[0].mxu0
      %v777 = vadd.f32 0.0, %v776
      %v778 = vpop.f32.mrb[0].mxu0
      %779 = vmatprep.mubr.f32.mxu0 0.0
      %780 = vmatmul.mubr.f32.gmra.mrb[0].mxu0 %v610
      %v781 = vpop.f32.mrb[0].mxu0
      %v782 = vadd.f32 0.0, %v781
      %v783 = vpop.f32.mrb[0].mxu0
      %784 = vmatprep.mubr.f32.mxu0 0.0
      %785 = vmatmul.mubr.f32.gmra.mrb[0].mxu0 %v613
      %v786 = vpop.f32.mrb[0].mxu0
      %v787 = vadd.f32 0.0, %v786
      %v788 = vpop.f32.mrb[0].mxu0
      %789 = vmatprep.mubr.f32.mxu0 0.0
      %790 = vmatmul.mubr.f32.gmra.mrb[0].mxu0 %v616
      %v791 = vpop.f32.mrb[0].mxu0
      %v792 = vadd.f32 0.0, %v791
      %v793 = vpop.f32.mrb[0].mxu0
      %794 = vmatprep.mubr.f32.mxu0 0.0
      %795 = vmatmul.mubr.f32.gmra.mrb[0].mxu0 %v619
      %v796 = vpop.f32.mrb[0].mxu0
      %v797 = vadd.f32 0.0, %v796
      %v798 = vpop.f32.mrb[0].mxu0
      %799 = vmatprep.mubr.f32.mxu0 0.0
      %800 = vmatmul.mubr.f32.gmra.mrb[0].mxu0 %v622
      %v801 = vpop.f32.mrb[0].mxu0
      %v802 = vadd.f32 0.0, %v801
      %v803 = vpop.f32.mrb[0].mxu0
      %804 = vmatprep.mubr.f32.mxu0 0.0
      %805 = vmatmul.mubr.f32.gmra.mrb[0].mxu0 %v625
      %v806 = vpop.f32.mrb[0].mxu0
      %v807 = vadd.f32 0.0, %v806
      %v808 = vpop.f32.mrb[0].mxu0
      %809 = vmatprep.mubr.f32.mxu0 0.0
      %810 = vmatmul.mubr.f32.gmra.mrb[0].mxu0 %v628
      %v811 = vpop.f32.mrb[0].mxu0
      %v812 = vadd.f32 0.0, %v811
      %v813 = vpop.f32.mrb[0].mxu0
      %814 = vmatprep.mubr.f32.mxu0 0.0
      %815 = vmatmul.mubr.f32.gmra.mrb[0].mxu0 %v631
      %v816 = vpop.f32.mrb[0].mxu0
      %v817 = vadd.f32 0.0, %v816
      %v818 = vpop.f32.mrb[0].mxu0
      %819 = vmatprep.mubr.f32.mxu0 0.0
      %820 = vmatmul.mubr.f32.gmra.mrb[0].mxu0 %v634
      %v821 = vpop.f32.mrb[0].mxu0
      %v822 = vadd.f32 0.0, %v821
      %v823 = vpop.f32.mrb[0].mxu0
      %824 = vmatprep.mubr.f32.mxu0 0.0
      %825 = vmatmul.mubr.f32.gmra.mrb[0].mxu0 %v637
      %v826 = vpop.f32.mrb[0].mxu0
      %v827 = vadd.f32 0.0, %v826
      %v828 = vpop.f32.mrb[0].mxu0
      %829 = vmatprep.mubr.f32.mxu0 0.0
      %830 = vmatmul.mubr.f32.gmra.mrb[0].mxu0 %v640
      %v831 = vpop.f32.mrb[0].mxu0
      %v832 = vadd.f32 0.0, %v831
      %v833 = vpop.f32.mrb[0].mxu0
      %834 = vmatprep.mubr.f32.mxu0 0.0
      %835 = vmatmul.mubr.f32.gmra.mrb[0].mxu0 %v643
      %v836 = vpop.f32.mrb[0].mxu0
      %v837 = vadd.f32 0.0, %v836
      %v838 = vpop.f32.mrb[0].mxu0
      %839 = vmatprep.mubr.f32.mxu0 0.0
      %840 = vmatmul.mubr.f32.gmra.mrb[0].mxu0 %v646
      %v841 = vpop.f32.mrb[0].mxu0
      %v842 = vadd.f32 0.0, %v841
      %v843 = vpop.f32.mrb[0].mxu0
      %844 = vmatprep.mubr.f32.mxu0 0.0
      %845 = vmatmul.mubr.f32.gmra.mrb[0].mxu0 %v649
      %v846 = vpop.f32.mrb[0].mxu0
      %v847 = vadd.f32 0.0, %v846
      %v848 = vpop.f32.mrb[0].mxu0
      %849 = vmatprep.mubr.f32.mxu0 0.0
      %850 = vmatmul.mubr.f32.gmra.mrb[0].mxu0 %v652
      %v851 = vpop.f32.mrb[0].mxu0
      %v852 = vadd.f32 0.0, %v851
      %v853 = vpop.f32.mrb[0].mxu0
      %854 = vmatprep.mubr.f32.mxu0 0.0
      %855 = vmatmul.mubr.f32.gmra.mrb[0].mxu0 %v655
      %v856 = vpop.f32.mrb[0].mxu0
      %v857 = vadd.f32 0.0, %v856
      %v858 = vpop.f32.mrb[0].mxu0
      %859 = vmatprep.mubr.f32.mxu0 0.0
      %860 = vmatmul.mubr.f32.gmra.mrb[0].mxu0 %v658
      %v861 = vpop.f32.mrb[0].mxu0
      %v862 = vadd.f32 0.0, %v861
      %v863 = vpop.f32.mrb[0].mxu0
      %864 = vmatprep.mubr.f32.mxu0 0.0
      %865 = vmatmul.mubr.f32.gmra.mrb[0].mxu0 %v661
      %v866 = vpop.f32.mrb[0].mxu0
      %v867 = vadd.f32 0.0, %v866
      %v868 = vpop.f32.mrb[0].mxu0
      %869 = vmatprep.mubr.f32.mxu0 0.0
      %870 = vmatmul.mubr.f32.gmra.mrb[0].mxu0 %v664
      %v871 = vpop.f32.mrb[0].mxu0
      %v872 = vadd.f32 0.0, %v871
      %v873 = vpop.f32.mrb[0].mxu0
      %874 = vmatprep.mubr.f32.mxu0 0.0
      %875 = vmatmul.mubr.f32.gmra.mrb[0].mxu0 %v667
      %v876 = vpop.f32.mrb[0].mxu0
      %v877 = vadd.f32 0.0, %v876
      %v878 = vpop.f32.mrb[0].mxu0
      %879 = vmatprep.mubr.f32.mxu0 0.0
      %880 = vmatmul.mubr.f32.gmra.mrb[0].mxu0 %v670
      %v881 = vpop.f32.mrb[0].mxu0
      %v882 = vadd.f32 0.0, %v881
      %v883 = vpop.f32.mrb[0].mxu0
      %884 = vmatprep.mubr.f32.mxu0 0.0
      %885 = vmatmul.mubr.f32.gmra.mrb[0].mxu0 %v673
      %v886 = vpop.f32.mrb[0].mxu0
      %v887 = vadd.f32 0.0, %v886
      %v888 = vpop.f32.mrb[0].mxu0
      %889 = vmatprep.mubr.f32.mxu0 0.0
      %890 = vmatmul.mubr.f32.gmra.mrb[0].mxu0 %v676
      %v891 = vpop.f32.mrb[0].mxu0
      %v892 = vadd.f32 0.0, %v891
      %v893 = vpop.f32.mrb[0].mxu0
      %894 = vmatprep.mubr.f32.mxu0 0.0
      %895 = vmatmul.mubr.f32.gmra.mrb[0].mxu0 %v679
      %v896 = vpop.f32.mrb[0].mxu0
      %v897 = vadd.f32 0.0, %v896
      %v898 = vpop.f32.mrb[0].mxu0
      %899 = vmatprep.mubr.f32.mxu0 0.0
      %900 = vmatmul.mubr.f32.gmra.mrb[0].mxu0 %v682
      %v901 = vpop.f32.mrb[0].mxu0
      %v902 = vadd.f32 0.0, %v901
      %v903 = vpop.f32.mrb[0].mxu0
      %904 = vmatprep.mubr.f32.mxu0 0.0
      %905 = vmatmul.mubr.f32.gmra.mrb[0].mxu0 %v685
      %v906 = vpop.f32.mrb[0].mxu0
      %v907 = vadd.f32 0.0, %v906
      %v908 = vpop.f32.mrb[0].mxu0
      %909 = vmatprep.mubr.f32.mxu0 0.0
      %910 = vmatmul.mubr.f32.gmra.mrb[0].mxu0 %v688
      %v911 = vpop.f32.mrb[0].mxu0
      %v912 = vadd.f32 0.0, %v911
      %v913 = vpop.f32.mrb[0].mxu0
      %914 = vdwg.mxu0
      %v916 = vsel %vm438, %v527, 0
      %v919 = vsel %vm438, %v528, 0
      %v922 = vsel %vm438, %v529, 0
      %v925 = vsel %vm438, %v530, 0
      %v928 = vsel %vm438, %v531, 0
      %v931 = vsel %vm438, %v532, 0
      %v934 = vsel %vm438, %v533, 0
      %v937 = vsel %vm438, %v534, 0
      %v940 = vsel %vm438, %v535, 0
      %v943 = vsel %vm438, %v536, 0
      %v946 = vsel %vm438, %v537, 0
      %v949 = vsel %vm438, %v538, 0
      %v952 = vsel %vm438, %v539, 0
      %v955 = vsel %vm438, %v540, 0
      %v958 = vsel %vm438, %v541, 0
      %v961 = vsel %vm438, %v542, 0
      %v964 = vsel %vm438, %v543, 0
      %v967 = vsel %vm438, %v544, 0
      %v970 = vsel %vm438, %v545, 0
      %v973 = vsel %vm438, %v546, 0
      %v976 = vsel %vm438, %v547, 0
      %v979 = vsel %vm438, %v548, 0
      %v982 = vsel %vm438, %v549, 0
      %v985 = vsel %vm438, %v550, 0
      %v988 = vsel %vm438, %v551, 0
      %v991 = vsel %vm438, %v552, 0
      %v994 = vsel %vm438, %v553, 0
      %v997 = vsel %vm438, %v554, 0
      %v1000 = vsel %vm438, %v555, 0
      %v1003 = vsel %vm438, %v556, 0
      %v1006 = vsel %vm438, %v557, 0
      %v1009 = vsel %vm438, %v558, 0
      %1011 = vmatprep.subr.mxu0 0.0
      %1012 = vmatpush1.msra.mxu0 %v559
      %1013 = vmatprep.subr.mxu0 0.0
      %1014 = vmatpush1.msra.mxu0 0.0
      %1015 = vmatprep.subr.mxu0 0.0
      %1016 = vmatpush1.msra.mxu0 0.0
      %1017 = vmatprep.subr.mxu0 0.0
      %1018 = vmatpush1.msra.mxu0 0.0
      %1019 = vmatprep.subr.mxu0 0.0
      %1020 = vmatpush1.msra.mxu0 0.0
      %1021 = vmatprep.subr.mxu0 0.0
      %1022 = vmatpush1.msra.mxu0 0.0
      %1023 = vmatprep.subr.mxu0 0.0
      %1024 = vmatpush1.msra.mxu0 0.0
      %1025 = vmatprep.subr.mxu0 0.0
      %1026 = vmatpush1.msra.mxu0 0.0
      %1027 = vmatprep.subr.mxu0 0.0
      %1028 = vmatpush1.msra.mxu0 0.0
      %1029 = vmatprep.subr.mxu0 0.0
      %1030 = vmatpush1.msra.mxu0 0.0
      %1031 = vmatprep.subr.mxu0 0.0
      %1032 = vmatpush1.msra.mxu0 0.0
      %1033 = vmatprep.subr.mxu0 0.0
      %1034 = vmatpush1.msra.mxu0 0.0
      %1035 = vmatprep.subr.mxu0 0.0
      %1036 = vmatpush1.msra.mxu0 0.0
      %1037 = vmatprep.subr.mxu0 0.0
      %1038 = vmatpush1.msra.mxu0 0.0
      %1039 = vmatprep.subr.mxu0 0.0
      %1040 = vmatpush1.msra.mxu0 0.0
      %1041 = vmatprep.subr.mxu0 0.0
      %1042 = vmatpush1.msra.mxu0 0.0
      %1043 = vmatprep.subr.mxu0 0.0
      %1044 = vmatpush1.msra.mxu0 0.0
      %1045 = vmatprep.subr.mxu0 0.0
      %1046 = vmatpush1.msra.mxu0 0.0
      %1047 = vmatprep.subr.mxu0 0.0
      %1048 = vmatpush1.msra.mxu0 0.0
      %1049 = vmatprep.subr.mxu0 0.0
      %1050 = vmatpush1.msra.mxu0 0.0
      %1051 = vmatprep.subr.mxu0 0.0
      %1052 = vmatpush1.msra.mxu0 0.0
      %1053 = vmatprep.subr.mxu0 0.0
      %1054 = vmatpush1.msra.mxu0 0.0
      %1055 = vmatprep.subr.mxu0 0.0
      %1056 = vmatpush1.msra.mxu0 0.0
      %1057 = vmatprep.subr.mxu0 0.0
      %1058 = vmatpush1.msra.mxu0 0.0
      %1059 = vmatprep.subr.mxu0 0.0
      %1060 = vmatpush1.msra.mxu0 0.0
      %1061 = vmatprep.subr.mxu0 0.0
      %1062 = vmatpush1.msra.mxu0 0.0
      %1063 = vmatprep.subr.mxu0 0.0
      %1064 = vmatpush1.msra.mxu0 0.0
      %1065 = vmatprep.subr.mxu0 0.0
      %1066 = vmatpush1.msra.mxu0 0.0
      %1067 = vmatprep.subr.mxu0 0.0
      %1068 = vmatpush1.msra.mxu0 0.0
      %1069 = vmatprep.subr.mxu0 0.0
      %1070 = vmatpush1.msra.mxu0 0.0
      %1071 = vmatprep.subr.mxu0 0.0
      %1072 = vmatpush1.msra.mxu0 0.0
      %1073 = vmatprep.subr.mxu0 0.0
      %1074 = vmatpush1.msra.mxu0 0.0
      %1075 = vmatprep.mubr.f32.mxu0 0.0
      %1076 = vmatmul.mubr.f32.gmra.mrb[0].mxu0 %v916
      %v1077 = vpop.f32.mrb[0].mxu0
      %v1078 = vadd.f32 %v757, %v1077
      %v1079 = vpop.f32.mrb[0].mxu0
      %1080 = vmatprep.mubr.f32.mxu0 0.0
      %1081 = vmatmul.mubr.f32.gmra.mrb[0].mxu0 %v919
      %v1082 = vpop.f32.mrb[0].mxu0
      %v1083 = vadd.f32 %v762, %v1082
      %v1084 = vpop.f32.mrb[0].mxu0
      %1085 = vmatprep.mubr.f32.mxu0 0.0
      %1086 = vmatmul.mubr.f32.gmra.mrb[0].mxu0 %v922
      %v1087 = vpop.f32.mrb[0].mxu0
      %v1088 = vadd.f32 %v767, %v1087
      %v1089 = vpop.f32.mrb[0].mxu0
      %1090 = vmatprep.mubr.f32.mxu0 0.0
      %1091 = vmatmul.mubr.f32.gmra.mrb[0].mxu0 %v925
      %v1092 = vpop.f32.mrb[0].mxu0
      %v1093 = vadd.f32 %v772, %v1092
      %v1094 = vpop.f32.mrb[0].mxu0
      %1095 = vmatprep.mubr.f32.mxu0 0.0
      %1096 = vmatmul.mubr.f32.gmra.mrb[0].mxu0 %v928
      %v1097 = vpop.f32.mrb[0].mxu0
      %v1098 = vadd.f32 %v777, %v1097
      %v1099 = vpop.f32.mrb[0].mxu0
      %1100 = vmatprep.mubr.f32.mxu0 0.0
      %1101 = vmatmul.mubr.f32.gmra.mrb[0].mxu0 %v931
      %v1102 = vpop.f32.mrb[0].mxu0
      %v1103 = vadd.f32 %v782, %v1102
      %v1104 = vpop.f32.mrb[0].mxu0
      %1105 = vmatprep.mubr.f32.mxu0 0.0
      %1106 = vmatmul.mubr.f32.gmra.mrb[0].mxu0 %v934
      %v1107 = vpop.f32.mrb[0].mxu0
      %v1108 = vadd.f32 %v787, %v1107
      %v1109 = vpop.f32.mrb[0].mxu0
      %1110 = vmatprep.mubr.f32.mxu0 0.0
      %1111 = vmatmul.mubr.f32.gmra.mrb[0].mxu0 %v937
      %v1112 = vpop.f32.mrb[0].mxu0
      %v1113 = vadd.f32 %v792, %v1112
      %v1114 = vpop.f32.mrb[0].mxu0
      %1115 = vmatprep.mubr.f32.mxu0 0.0
      %1116 = vmatmul.mubr.f32.gmra.mrb[0].mxu0 %v940
      %v1117 = vpop.f32.mrb[0].mxu0
      %v1118 = vadd.f32 %v797, %v1117
      %v1119 = vpop.f32.mrb[0].mxu0
      %1120 = vmatprep.mubr.f32.mxu0 0.0
      %1121 = vmatmul.mubr.f32.gmra.mrb[0].mxu0 %v943
      %v1122 = vpop.f32.mrb[0].mxu0
      %v1123 = vadd.f32 %v802, %v1122
      %v1124 = vpop.f32.mrb[0].mxu0
      %1125 = vmatprep.mubr.f32.mxu0 0.0
      %1126 = vmatmul.mubr.f32.gmra.mrb[0].mxu0 %v946
      %v1127 = vpop.f32.mrb[0].mxu0
      %v1128 = vadd.f32 %v807, %v1127
      %v1129 = vpop.f32.mrb[0].mxu0
      %1130 = vmatprep.mubr.f32.mxu0 0.0
      %1131 = vmatmul.mubr.f32.gmra.mrb[0].mxu0 %v949
      %v1132 = vpop.f32.mrb[0].mxu0
      %v1133 = vadd.f32 %v812, %v1132
      %v1134 = vpop.f32.mrb[0].mxu0
      %1135 = vmatprep.mubr.f32.mxu0 0.0
      %1136 = vmatmul.mubr.f32.gmra.mrb[0].mxu0 %v952
      %v1137 = vpop.f32.mrb[0].mxu0
      %v1138 = vadd.f32 %v817, %v1137
      %v1139 = vpop.f32.mrb[0].mxu0
      %1140 = vmatprep.mubr.f32.mxu0 0.0
      %1141 = vmatmul.mubr.f32.gmra.mrb[0].mxu0 %v955
      %v1142 = vpop.f32.mrb[0].mxu0
      %v1143 = vadd.f32 %v822, %v1142
      %v1144 = vpop.f32.mrb[0].mxu0
      %1145 = vmatprep.mubr.f32.mxu0 0.0
      %1146 = vmatmul.mubr.f32.gmra.mrb[0].mxu0 %v958
      %v1147 = vpop.f32.mrb[0].mxu0
      %v1148 = vadd.f32 %v827, %v1147
      %v1149 = vpop.f32.mrb[0].mxu0
      %1150 = vmatprep.mubr.f32.mxu0 0.0
      %1151 = vmatmul.mubr.f32.gmra.mrb[0].mxu0 %v961
      %v1152 = vpop.f32.mrb[0].mxu0
      %v1153 = vadd.f32 %v832, %v1152
      %v1154 = vpop.f32.mrb[0].mxu0
      %1155 = vmatprep.mubr.f32.mxu0 0.0
      %1156 = vmatmul.mubr.f32.gmra.mrb[0].mxu0 %v964
      %v1157 = vpop.f32.mrb[0].mxu0
      %v1158 = vadd.f32 %v837, %v1157
      %v1159 = vpop.f32.mrb[0].mxu0
      %1160 = vmatprep.mubr.f32.mxu0 0.0
      %1161 = vmatmul.mubr.f32.gmra.mrb[0].mxu0 %v967
      %v1162 = vpop.f32.mrb[0].mxu0
      %v1163 = vadd.f32 %v842, %v1162
      %v1164 = vpop.f32.mrb[0].mxu0
      %1165 = vmatprep.mubr.f32.mxu0 0.0
      %1166 = vmatmul.mubr.f32.gmra.mrb[0].mxu0 %v970
      %v1167 = vpop.f32.mrb[0].mxu0
      %v1168 = vadd.f32 %v847, %v1167
      %v1169 = vpop.f32.mrb[0].mxu0
      %1170 = vmatprep.mubr.f32.mxu0 0.0
      %1171 = vmatmul.mubr.f32.gmra.mrb[0].mxu0 %v973
      %v1172 = vpop.f32.mrb[0].mxu0
      %v1173 = vadd.f32 %v852, %v1172
      %v1174 = vpop.f32.mrb[0].mxu0
      %1175 = vmatprep.mubr.f32.mxu0 0.0
      %1176 = vmatmul.mubr.f32.gmra.mrb[0].mxu0 %v976
      %v1177 = vpop.f32.mrb[0].mxu0
      %v1178 = vadd.f32 %v857, %v1177
      %v1179 = vpop.f32.mrb[0].mxu0
      %1180 = vmatprep.mubr.f32.mxu0 0.0
      %1181 = vmatmul.mubr.f32.gmra.mrb[0].mxu0 %v979
      %v1182 = vpop.f32.mrb[0].mxu0
      %v1183 = vadd.f32 %v862, %v1182
      %v1184 = vpop.f32.mrb[0].mxu0
      %1185 = vmatprep.mubr.f32.mxu0 0.0
      %1186 = vmatmul.mubr.f32.gmra.mrb[0].mxu0 %v982
      %v1187 = vpop.f32.mrb[0].mxu0
      %v1188 = vadd.f32 %v867, %v1187
      %v1189 = vpop.f32.mrb[0].mxu0
      %1190 = vmatprep.mubr.f32.mxu0 0.0
      %1191 = vmatmul.mubr.f32.gmra.mrb[0].mxu0 %v985
      %v1192 = vpop.f32.mrb[0].mxu0
      %v1193 = vadd.f32 %v872, %v1192
      %v1194 = vpop.f32.mrb[0].mxu0
      %1195 = vmatprep.mubr.f32.mxu0 0.0
      %1196 = vmatmul.mubr.f32.gmra.mrb[0].mxu0 %v988
      %v1197 = vpop.f32.mrb[0].mxu0
      %v1198 = vadd.f32 %v877, %v1197
      %v1199 = vpop.f32.mrb[0].mxu0
      %1200 = vmatprep.mubr.f32.mxu0 0.0
      %1201 = vmatmul.mubr.f32.gmra.mrb[0].mxu0 %v991
      %v1202 = vpop.f32.mrb[0].mxu0
      %v1203 = vadd.f32 %v882, %v1202
      %v1204 = vpop.f32.mrb[0].mxu0
      %1205 = vmatprep.mubr.f32.mxu0 0.0
      %1206 = vmatmul.mubr.f32.gmra.mrb[0].mxu0 %v994
      %v1207 = vpop.f32.mrb[0].mxu0
      %v1208 = vadd.f32 %v887, %v1207
      %v1209 = vpop.f32.mrb[0].mxu0
      %1210 = vmatprep.mubr.f32.mxu0 0.0
      %1211 = vmatmul.mubr.f32.gmra.mrb[0].mxu0 %v997
      %v1212 = vpop.f32.mrb[0].mxu0
      %v1213 = vadd.f32 %v892, %v1212
      %v1214 = vpop.f32.mrb[0].mxu0
      %1215 = vmatprep.mubr.f32.mxu0 0.0
      %1216 = vmatmul.mubr.f32.gmra.mrb[0].mxu0 %v1000
      %v1217 = vpop.f32.mrb[0].mxu0
      %v1218 = vadd.f32 %v897, %v1217
      %v1219 = vpop.f32.mrb[0].mxu0
      %1220 = vmatprep.mubr.f32.mxu0 0.0
      %1221 = vmatmul.mubr.f32.gmra.mrb[0].mxu0 %v1003
      %v1222 = vpop.f32.mrb[0].mxu0
      %v1223 = vadd.f32 %v902, %v1222
      %v1224 = vpop.f32.mrb[0].mxu0
      %1225 = vmatprep.mubr.f32.mxu0 0.0
      %1226 = vmatmul.mubr.f32.gmra.mrb[0].mxu0 %v1006
      %v1227 = vpop.f32.mrb[0].mxu0
      %v1228 = vadd.f32 %v907, %v1227
      %v1229 = vpop.f32.mrb[0].mxu0
      %1230 = vmatprep.mubr.f32.mxu0 0.0
      %1231 = vmatmul.mubr.f32.gmra.mrb[0].mxu0 %v1009
      %v1232 = vpop.f32.mrb[0].mxu0
      %v1233 = vadd.f32 %v912, %v1232
      %v1234 = vpop.f32.mrb[0].mxu0
      %1235 = vdwg.mxu0
      %v1236 = vld [vmem:[#allocation2 + $0x2] sm:$0xff]
      %v1237 = vld [vmem:[#allocation2 + $0xa] sm:$0xff]
      %v1238 = vld [vmem:[#allocation2 + $0x1a] sm:$0xff]
      %v1239 = vld [vmem:[#allocation2 + $0x22] sm:$0xff]
      %v1240 = vld [vmem:[#allocation2 + $0x32] sm:$0xff]
      %v1241 = vld [vmem:[#allocation2 + $0x3a] sm:$0xff]
      %v1242 = vld [vmem:[#allocation2 + $0x4a] sm:$0xff]
      %v1243 = vld [vmem:[#allocation2 + $0x52] sm:$0xff]
      %v1244 = vld [vmem:[#allocation2 + $0x62] sm:$0xff]
      %v1245 = vld [vmem:[#allocation2 + $0x6a] sm:$0xff]
      %v1246 = vld [vmem:[#allocation2 + $0x7a] sm:$0xff]
      %v1247 = vld [vmem:[#allocation2 + $0x82] sm:$0xff]
      %v1248 = vld [vmem:[#allocation2 + $0x92] sm:$0xff]
      %v1249 = vld [vmem:[#allocation2 + $0x9a] sm:$0xff]
      %v1250 = vld [vmem:[#allocation2 + $0xaa] sm:$0xff]
      %v1251 = vld [vmem:[#allocation2 + $0xb2] sm:$0xff]
      %v1252 = vld [vmem:[#allocation2 + $0xc2] sm:$0xff]
      %v1253 = vld [vmem:[#allocation2 + $0xca] sm:$0xff]
      %v1254 = vld [vmem:[#allocation2 + $0xda] sm:$0xff]
      %v1255 = vld [vmem:[#allocation2 + $0xe2] sm:$0xff]
      %v1256 = vld [vmem:[#allocation2 + $0xf2] sm:$0xff]
      %v1257 = vld [vmem:[#allocation2 + $0xfa] sm:$0xff]
      %v1258 = vld [vmem:[#allocation2 + $0x10a] sm:$0xff]
      %v1259 = vld [vmem:[#allocation2 + $0x112] sm:$0xff]
      %v1260 = vld [vmem:[#allocation2 + $0x122] sm:$0xff]
      %v1261 = vld [vmem:[#allocation2 + $0x12a] sm:$0xff]
      %v1262 = vld [vmem:[#allocation2 + $0x13a] sm:$0xff]
      %v1263 = vld [vmem:[#allocation2 + $0x142] sm:$0xff]
      %v1264 = vld [vmem:[#allocation2 + $0x152] sm:$0xff]
      %v1265 = vld [vmem:[#allocation2 + $0x15a] sm:$0xff]
      %v1266 = vld [vmem:[#allocation2 + $0x16a] sm:$0xff]
      %v1267 = vld [vmem:[#allocation2 + $0x172] sm:$0xff]
      %s1268 = scalar_lea.vmem %s1, 16
      %v1269 = vld [vmem:[%s1268] sm:$0xff]
      %v1271 = vsel %vm438, %v1236, 0
      %v1274 = vsel %vm438, %v1237, 0
      %v1277 = vsel %vm438, %v1238, 0
      %v1280 = vsel %vm438, %v1239, 0
      %v1283 = vsel %vm438, %v1240, 0
      %v1286 = vsel %vm438, %v1241, 0
      %v1289 = vsel %vm438, %v1242, 0
      %v1292 = vsel %vm438, %v1243, 0
      %v1295 = vsel %vm438, %v1244, 0
      %v1298 = vsel %vm438, %v1245, 0
      %v1301 = vsel %vm438, %v1246, 0
      %v1304 = vsel %vm438, %v1247, 0
      %v1307 = vsel %vm438, %v1248, 0
      %v1310 = vsel %vm438, %v1249, 0
      %v1313 = vsel %vm438, %v1250, 0
      %v1316 = vsel %vm438, %v1251, 0
      %v1319 = vsel %vm438, %v1252, 0
      %v1322 = vsel %vm438, %v1253, 0
      %v1325 = vsel %vm438, %v1254, 0
      %v1328 = vsel %vm438, %v1255, 0
      %v1331 = vsel %vm438, %v1256, 0
      %v1334 = vsel %vm438, %v1257, 0
      %v1337 = vsel %vm438, %v1258, 0
      %v1340 = vsel %vm438, %v1259, 0
      %v1343 = vsel %vm438, %v1260, 0
      %v1346 = vsel %vm438, %v1261, 0
      %v1349 = vsel %vm438, %v1262, 0
      %v1352 = vsel %vm438, %v1263, 0
      %v1355 = vsel %vm438, %v1264, 0
      %v1358 = vsel %vm438, %v1265, 0
      %v1361 = vsel %vm438, %v1266, 0
      %v1364 = vsel %vm438, %v1267, 0
      %1366 = vmatprep.subr.mxu0 0.0
      %1367 = vmatpush1.msra.mxu0 %v1269
      %1368 = vmatprep.subr.mxu0 0.0
      %1369 = vmatpush1.msra.mxu0 0.0
      %1370 = vmatprep.subr.mxu0 0.0
      %1371 = vmatpush1.msra.mxu0 0.0
      %1372 = vmatprep.subr.mxu0 0.0
      %1373 = vmatpush1.msra.mxu0 0.0
      %1374 = vmatprep.subr.mxu0 0.0
      %1375 = vmatpush1.msra.mxu0 0.0
      %1376 = vmatprep.subr.mxu0 0.0
      %1377 = vmatpush1.msra.mxu0 0.0
      %1378 = vmatprep.subr.mxu0 0.0
      %1379 = vmatpush1.msra.mxu0 0.0
      %1380 = vmatprep.subr.mxu0 0.0
      %1381 = vmatpush1.msra.mxu0 0.0
      %1382 = vmatprep.subr.mxu0 0.0
      %1383 = vmatpush1.msra.mxu0 0.0
      %1384 = vmatprep.subr.mxu0 0.0
      %1385 = vmatpush1.msra.mxu0 0.0
      %1386 = vmatprep.subr.mxu0 0.0
      %1387 = vmatpush1.msra.mxu0 0.0
      %1388 = vmatprep.subr.mxu0 0.0
      %1389 = vmatpush1.msra.mxu0 0.0
      %1390 = vmatprep.subr.mxu0 0.0
      %1391 = vmatpush1.msra.mxu0 0.0
      %1392 = vmatprep.subr.mxu0 0.0
      %1393 = vmatpush1.msra.mxu0 0.0
      %1394 = vmatprep.subr.mxu0 0.0
      %1395 = vmatpush1.msra.mxu0 0.0
      %1396 = vmatprep.subr.mxu0 0.0
      %1397 = vmatpush1.msra.mxu0 0.0
      %1398 = vmatprep.subr.mxu0 0.0
      %1399 = vmatpush1.msra.mxu0 0.0
      %1400 = vmatprep.subr.mxu0 0.0
      %1401 = vmatpush1.msra.mxu0 0.0
      %1402 = vmatprep.subr.mxu0 0.0
      %1403 = vmatpush1.msra.mxu0 0.0
      %1404 = vmatprep.subr.mxu0 0.0
      %1405 = vmatpush1.msra.mxu0 0.0
      %1406 = vmatprep.subr.mxu0 0.0
      %1407 = vmatpush1.msra.mxu0 0.0
      %1408 = vmatprep.subr.mxu0 0.0
      %1409 = vmatpush1.msra.mxu0 0.0
      %1410 = vmatprep.subr.mxu0 0.0
      %1411 = vmatpush1.msra.mxu0 0.0
      %1412 = vmatprep.subr.mxu0 0.0
      %1413 = vmatpush1.msra.mxu0 0.0
      %1414 = vmatprep.subr.mxu0 0.0
      %1415 = vmatpush1.msra.mxu0 0.0
      %1416 = vmatprep.subr.mxu0 0.0
      %1417 = vmatpush1.msra.mxu0 0.0
      %1418 = vmatprep.subr.mxu0 0.0
      %1419 = vmatpush1.msra.mxu0 0.0
      %1420 = vmatprep.subr.mxu0 0.0
      %1421 = vmatpush1.msra.mxu0 0.0
      %1422 = vmatprep.subr.mxu0 0.0
      %1423 = vmatpush1.msra.mxu0 0.0
      %1424 = vmatprep.subr.mxu0 0.0
      %1425 = vmatpush1.msra.mxu0 0.0
      %1426 = vmatprep.subr.mxu0 0.0
      %1427 = vmatpush1.msra.mxu0 0.0
      %1428 = vmatprep.subr.mxu0 0.0
      %1429 = vmatpush1.msra.mxu0 0.0
      %1430 = vmatprep.mubr.f32.mxu0 0.0
      %1431 = vmatmul.mubr.f32.gmra.mrb[0].mxu0 %v1271
      %v1432 = vpop.f32.mrb[0].mxu0
      %v1433 = vadd.f32 0.0, %v1432
      %v1434 = vpop.f32.mrb[0].mxu0
      %1435 = vmatprep.mubr.f32.mxu0 0.0
      %1436 = vmatmul.mubr.f32.gmra.mrb[0].mxu0 %v1274
      %v1437 = vpop.f32.mrb[0].mxu0
      %v1438 = vadd.f32 0.0, %v1437
      %v1439 = vpop.f32.mrb[0].mxu0
      %1440 = vmatprep.mubr.f32.mxu0 0.0
      %1441 = vmatmul.mubr.f32.gmra.mrb[0].mxu0 %v1277
      %v1442 = vpop.f32.mrb[0].mxu0
      %v1443 = vadd.f32 0.0, %v1442
      %v1444 = vpop.f32.mrb[0].mxu0
      %1445 = vmatprep.mubr.f32.mxu0 0.0
      %1446 = vmatmul.mubr.f32.gmra.mrb[0].mxu0 %v1280
      %v1447 = vpop.f32.mrb[0].mxu0
      %v1448 = vadd.f32 0.0, %v1447
      %v1449 = vpop.f32.mrb[0].mxu0
      %1450 = vmatprep.mubr.f32.mxu0 0.0
      %1451 = vmatmul.mubr.f32.gmra.mrb[0].mxu0 %v1283
      %v1452 = vpop.f32.mrb[0].mxu0
      %v1453 = vadd.f32 0.0, %v1452
      %v1454 = vpop.f32.mrb[0].mxu0
      %1455 = vmatprep.mubr.f32.mxu0 0.0
      %1456 = vmatmul.mubr.f32.gmra.mrb[0].mxu0 %v1286
      %v1457 = vpop.f32.mrb[0].mxu0
      %v1458 = vadd.f32 0.0, %v1457
      %v1459 = vpop.f32.mrb[0].mxu0
      %1460 = vmatprep.mubr.f32.mxu0 0.0
      %1461 = vmatmul.mubr.f32.gmra.mrb[0].mxu0 %v1289
      %v1462 = vpop.f32.mrb[0].mxu0
      %v1463 = vadd.f32 0.0, %v1462
      %v1464 = vpop.f32.mrb[0].mxu0
      %1465 = vmatprep.mubr.f32.mxu0 0.0
      %1466 = vmatmul.mubr.f32.gmra.mrb[0].mxu0 %v1292
      %v1467 = vpop.f32.mrb[0].mxu0
      %v1468 = vadd.f32 0.0, %v1467
      %v1469 = vpop.f32.mrb[0].mxu0
      %1470 = vmatprep.mubr.f32.mxu0 0.0
      %1471 = vmatmul.mubr.f32.gmra.mrb[0].mxu0 %v1295
      %v1472 = vpop.f32.mrb[0].mxu0
      %v1473 = vadd.f32 0.0, %v1472
      %v1474 = vpop.f32.mrb[0].mxu0
      %1475 = vmatprep.mubr.f32.mxu0 0.0
      %1476 = vmatmul.mubr.f32.gmra.mrb[0].mxu0 %v1298
      %v1477 = vpop.f32.mrb[0].mxu0
      %v1478 = vadd.f32 0.0, %v1477
      %v1479 = vpop.f32.mrb[0].mxu0
      %1480 = vmatprep.mubr.f32.mxu0 0.0
      %1481 = vmatmul.mubr.f32.gmra.mrb[0].mxu0 %v1301
      %v1482 = vpop.f32.mrb[0].mxu0
      %v1483 = vadd.f32 0.0, %v1482
      %v1484 = vpop.f32.mrb[0].mxu0
      %1485 = vmatprep.mubr.f32.mxu0 0.0
      %1486 = vmatmul.mubr.f32.gmra.mrb[0].mxu0 %v1304
      %v1487 = vpop.f32.mrb[0].mxu0
      %v1488 = vadd.f32 0.0, %v1487
      %v1489 = vpop.f32.mrb[0].mxu0
      %1490 = vmatprep.mubr.f32.mxu0 0.0
      %1491 = vmatmul.mubr.f32.gmra.mrb[0].mxu0 %v1307
      %v1492 = vpop.f32.mrb[0].mxu0
      %v1493 = vadd.f32 0.0, %v1492
      %v1494 = vpop.f32.mrb[0].mxu0
      %1495 = vmatprep.mubr.f32.mxu0 0.0
      %1496 = vmatmul.mubr.f32.gmra.mrb[0].mxu0 %v1310
      %v1497 = vpop.f32.mrb[0].mxu0
      %v1498 = vadd.f32 0.0, %v1497
      %v1499 = vpop.f32.mrb[0].mxu0
      %1500 = vmatprep.mubr.f32.mxu0 0.0
      %1501 = vmatmul.mubr.f32.gmra.mrb[0].mxu0 %v1313
      %v1502 = vpop.f32.mrb[0].mxu0
      %v1503 = vadd.f32 0.0, %v1502
      %v1504 = vpop.f32.mrb[0].mxu0
      %1505 = vmatprep.mubr.f32.mxu0 0.0
      %1506 = vmatmul.mubr.f32.gmra.mrb[0].mxu0 %v1316
      %v1507 = vpop.f32.mrb[0].mxu0
      %v1508 = vadd.f32 0.0, %v1507
      %v1509 = vpop.f32.mrb[0].mxu0
      %1510 = vmatprep.mubr.f32.mxu0 0.0
      %1511 = vmatmul.mubr.f32.gmra.mrb[0].mxu0 %v1319
      %v1512 = vpop.f32.mrb[0].mxu0
      %v1513 = vadd.f32 0.0, %v1512
      %v1514 = vpop.f32.mrb[0].mxu0
      %1515 = vmatprep.mubr.f32.mxu0 0.0
      %1516 = vmatmul.mubr.f32.gmra.mrb[0].mxu0 %v1322
      %v1517 = vpop.f32.mrb[0].mxu0
      %v1518 = vadd.f32 0.0, %v1517
      %v1519 = vpop.f32.mrb[0].mxu0
      %1520 = vmatprep.mubr.f32.mxu0 0.0
      %1521 = vmatmul.mubr.f32.gmra.mrb[0].mxu0 %v1325
      %v1522 = vpop.f32.mrb[0].mxu0
      %v1523 = vadd.f32 0.0, %v1522
      %v1524 = vpop.f32.mrb[0].mxu0
      %1525 = vmatprep.mubr.f32.mxu0 0.0
      %1526 = vmatmul.mubr.f32.gmra.mrb[0].mxu0 %v1328
      %v1527 = vpop.f32.mrb[0].mxu0
      %v1528 = vadd.f32 0.0, %v1527
      %v1529 = vpop.f32.mrb[0].mxu0
      %1530 = vmatprep.mubr.f32.mxu0 0.0
      %1531 = vmatmul.mubr.f32.gmra.mrb[0].mxu0 %v1331
      %v1532 = vpop.f32.mrb[0].mxu0
      %v1533 = vadd.f32 0.0, %v1532
      %v1534 = vpop.f32.mrb[0].mxu0
      %1535 = vmatprep.mubr.f32.mxu0 0.0
      %1536 = vmatmul.mubr.f32.gmra.mrb[0].mxu0 %v1334
      %v1537 = vpop.f32.mrb[0].mxu0
      %v1538 = vadd.f32 0.0, %v1537
      %v1539 = vpop.f32.mrb[0].mxu0
      %1540 = vmatprep.mubr.f32.mxu0 0.0
      %1541 = vmatmul.mubr.f32.gmra.mrb[0].mxu0 %v1337
      %v1542 = vpop.f32.mrb[0].mxu0
      %v1543 = vadd.f32 0.0, %v1542
      %v1544 = vpop.f32.mrb[0].mxu0
      %1545 = vmatprep.mubr.f32.mxu0 0.0
      %1546 = vmatmul.mubr.f32.gmra.mrb[0].mxu0 %v1340
      %v1547 = vpop.f32.mrb[0].mxu0
      %v1548 = vadd.f32 0.0, %v1547
      %v1549 = vpop.f32.mrb[0].mxu0
      %1550 = vmatprep.mubr.f32.mxu0 0.0
      %1551 = vmatmul.mubr.f32.gmra.mrb[0].mxu0 %v1343
      %v1552 = vpop.f32.mrb[0].mxu0
      %v1553 = vadd.f32 0.0, %v1552
      %v1554 = vpop.f32.mrb[0].mxu0
      %1555 = vmatprep.mubr.f32.mxu0 0.0
      %1556 = vmatmul.mubr.f32.gmra.mrb[0].mxu0 %v1346
      %v1557 = vpop.f32.mrb[0].mxu0
      %v1558 = vadd.f32 0.0, %v1557
      %v1559 = vpop.f32.mrb[0].mxu0
      %1560 = vmatprep.mubr.f32.mxu0 0.0
      %1561 = vmatmul.mubr.f32.gmra.mrb[0].mxu0 %v1349
      %v1562 = vpop.f32.mrb[0].mxu0
      %v1563 = vadd.f32 0.0, %v1562
      %v1564 = vpop.f32.mrb[0].mxu0
      %1565 = vmatprep.mubr.f32.mxu0 0.0
      %1566 = vmatmul.mubr.f32.gmra.mrb[0].mxu0 %v1352
      %v1567 = vpop.f32.mrb[0].mxu0
      %v1568 = vadd.f32 0.0, %v1567
      %v1569 = vpop.f32.mrb[0].mxu0
      %1570 = vmatprep.mubr.f32.mxu0 0.0
      %1571 = vmatmul.mubr.f32.gmra.mrb[0].mxu0 %v1355
      %v1572 = vpop.f32.mrb[0].mxu0
      %v1573 = vadd.f32 0.0, %v1572
      %v1574 = vpop.f32.mrb[0].mxu0
      %1575 = vmatprep.mubr.f32.mxu0 0.0
      %1576 = vmatmul.mubr.f32.gmra.mrb[0].mxu0 %v1358
      %v1577 = vpop.f32.mrb[0].mxu0
      %v1578 = vadd.f32 0.0, %v1577
      %v1579 = vpop.f32.mrb[0].mxu0
      %1580 = vmatprep.mubr.f32.mxu0 0.0
      %1581 = vmatmul.mubr.f32.gmra.mrb[0].mxu0 %v1361
      %v1582 = vpop.f32.mrb[0].mxu0
      %v1583 = vadd.f32 0.0, %v1582
      %v1584 = vpop.f32.mrb[0].mxu0
      %1585 = vmatprep.mubr.f32.mxu0 0.0
      %1586 = vmatmul.mubr.f32.gmra.mrb[0].mxu0 %v1364
      %v1587 = vpop.f32.mrb[0].mxu0
      %v1588 = vadd.f32 0.0, %v1587
      %v1589 = vpop.f32.mrb[0].mxu0
      %1590 = vdwg.mxu0
      %v1591 = vadd.f32 %v1078, %v1433
      %v1592 = vadd.f32 %v1083, %v1438
      %v1593 = vadd.f32 %v1088, %v1443
      %v1594 = vadd.f32 %v1093, %v1448
      %v1595 = vadd.f32 %v1098, %v1453
      %v1596 = vadd.f32 %v1103, %v1458
      %v1597 = vadd.f32 %v1108, %v1463
      %v1598 = vadd.f32 %v1113, %v1468
      %v1599 = vadd.f32 %v1118, %v1473
      %v1600 = vadd.f32 %v1123, %v1478
      %v1601 = vadd.f32 %v1128, %v1483
      %v1602 = vadd.f32 %v1133, %v1488
      %v1603 = vadd.f32 %v1138, %v1493
      %v1604 = vadd.f32 %v1143, %v1498
      %v1605 = vadd.f32 %v1148, %v1503
      %v1606 = vadd.f32 %v1153, %v1508
      %v1607 = vadd.f32 %v1158, %v1513
      %v1608 = vadd.f32 %v1163, %v1518
      %v1609 = vadd.f32 %v1168, %v1523
      %v1610 = vadd.f32 %v1173, %v1528
      %v1611 = vadd.f32 %v1178, %v1533
      %v1612 = vadd.f32 %v1183, %v1538
      %v1613 = vadd.f32 %v1188, %v1543
      %v1614 = vadd.f32 %v1193, %v1548
      %v1615 = vadd.f32 %v1198, %v1553
      %v1616 = vadd.f32 %v1203, %v1558
      %v1617 = vadd.f32 %v1208, %v1563
      %v1618 = vadd.f32 %v1213, %v1568
      %v1619 = vadd.f32 %v1218, %v1573
      %v1620 = vadd.f32 %v1223, %v1578
      %v1621 = vadd.f32 %v1228, %v1583
      %v1622 = vadd.f32 %v1233, %v1588
      %v1623 = vld [vmem:[%s494] sm:$0xff]
      %v1624 = vld [vmem:[%s494 + $0x8] sm:$0xff]
      %v1625 = vld [vmem:[%s494 + $0x18] sm:$0xff]
      %v1626 = vld [vmem:[%s494 + $0x20] sm:$0xff]
      %v1627 = vld [vmem:[%s494 + $0x30] sm:$0xff]
      %v1628 = vld [vmem:[%s494 + $0x38] sm:$0xff]
      %v1629 = vld [vmem:[%s494 + $0x48] sm:$0xff]
      %v1630 = vld [vmem:[%s494 + $0x50] sm:$0xff]
      %v1631 = vld [vmem:[%s494 + $0x60] sm:$0xff]
      %v1632 = vld [vmem:[%s494 + $0x68] sm:$0xff]
      %v1633 = vld [vmem:[%s494 + $0x78] sm:$0xff]
      %v1634 = vld [vmem:[%s494 + $0x80] sm:$0xff]
      %v1635 = vld [vmem:[%s494 + $0x90] sm:$0xff]
      %v1636 = vld [vmem:[%s494 + $0x98] sm:$0xff]
      %v1637 = vld [vmem:[%s494 + $0xa8] sm:$0xff]
      %v1638 = vld [vmem:[%s494 + $0xb0] sm:$0xff]
      %v1639 = vld [vmem:[%s494 + $0xc0] sm:$0xff]
      %v1640 = vld [vmem:[%s494 + $0xc8] sm:$0xff]
      %v1641 = vld [vmem:[%s494 + $0xd8] sm:$0xff]
      %v1642 = vld [vmem:[%s494 + $0xe0] sm:$0xff]
      %v1643 = vld [vmem:[%s494 + $0xf0] sm:$0xff]
      %v1644 = vld [vmem:[%s494 + $0xf8] sm:$0xff]
      %v1645 = vld [vmem:[%s494 + $0x108] sm:$0xff]
      %v1646 = vld [vmem:[%s494 + $0x110] sm:$0xff]
      %v1647 = vld [vmem:[%s494 + $0x120] sm:$0xff]
      %v1648 = vld [vmem:[%s494 + $0x128] sm:$0xff]
      %v1649 = vld [vmem:[%s494 + $0x138] sm:$0xff]
      %v1650 = vld [vmem:[%s494 + $0x140] sm:$0xff]
      %v1651 = vld [vmem:[%s494 + $0x150] sm:$0xff]
      %v1652 = vld [vmem:[%s494 + $0x158] sm:$0xff]
      %v1653 = vld [vmem:[%s494 + $0x168] sm:$0xff]
      %v1654 = vld [vmem:[%s494 + $0x170] sm:$0xff]
      %s1655 = scalar_lea.vmem %s1, 24
      %v1656 = vld [vmem:[%s1655] sm:$0xff]
      %v1658 = vsel %vm438, %v1623, 0
      %v1661 = vsel %vm438, %v1624, 0
      %v1664 = vsel %vm438, %v1625, 0
      %v1667 = vsel %vm438, %v1626, 0
      %v1670 = vsel %vm438, %v1627, 0
      %v1673 = vsel %vm438, %v1628, 0
      %v1676 = vsel %vm438, %v1629, 0
      %v1679 = vsel %vm438, %v1630, 0
      %v1682 = vsel %vm438, %v1631, 0
      %v1685 = vsel %vm438, %v1632, 0
      %v1688 = vsel %vm438, %v1633, 0
      %v1691 = vsel %vm438, %v1634, 0
      %v1694 = vsel %vm438, %v1635, 0
      %v1697 = vsel %vm438, %v1636, 0
      %v1700 = vsel %vm438, %v1637, 0
      %v1703 = vsel %vm438, %v1638, 0
      %v1706 = vsel %vm438, %v1639, 0
      %v1709 = vsel %vm438, %v1640, 0
      %v1712 = vsel %vm438, %v1641, 0
      %v1715 = vsel %vm438, %v1642, 0
      %v1718 = vsel %vm438, %v1643, 0
      %v1721 = vsel %vm438, %v1644, 0
      %v1724 = vsel %vm438, %v1645, 0
      %v1727 = vsel %vm438, %v1646, 0
      %v1730 = vsel %vm438, %v1647, 0
      %v1733 = vsel %vm438, %v1648, 0
      %v1736 = vsel %vm438, %v1649, 0
      %v1739 = vsel %vm438, %v1650, 0
      %v1742 = vsel %vm438, %v1651, 0
      %v1745 = vsel %vm438, %v1652, 0
      %v1748 = vsel %vm438, %v1653, 0
      %v1751 = vsel %vm438, %v1654, 0
      %1753 = vmatprep.subr.mxu0 0.0
      %1754 = vmatpush1.msra.mxu0 %v1656
      %1755 = vmatprep.subr.mxu0 0.0
      %1756 = vmatpush1.msra.mxu0 0.0
      %1757 = vmatprep.subr.mxu0 0.0
      %1758 = vmatpush1.msra.mxu0 0.0
      %1759 = vmatprep.subr.mxu0 0.0
      %1760 = vmatpush1.msra.mxu0 0.0
      %1761 = vmatprep.subr.mxu0 0.0
      %1762 = vmatpush1.msra.mxu0 0.0
      %1763 = vmatprep.subr.mxu0 0.0
      %1764 = vmatpush1.msra.mxu0 0.0
      %1765 = vmatprep.subr.mxu0 0.0
      %1766 = vmatpush1.msra.mxu0 0.0
      %1767 = vmatprep.subr.mxu0 0.0
      %1768 = vmatpush1.msra.mxu0 0.0
      %1769 = vmatprep.subr.mxu0 0.0
      %1770 = vmatpush1.msra.mxu0 0.0
      %1771 = vmatprep.subr.mxu0 0.0
      %1772 = vmatpush1.msra.mxu0 0.0
      %1773 = vmatprep.subr.mxu0 0.0
      %1774 = vmatpush1.msra.mxu0 0.0
      %1775 = vmatprep.subr.mxu0 0.0
      %1776 = vmatpush1.msra.mxu0 0.0
      %1777 = vmatprep.subr.mxu0 0.0
      %1778 = vmatpush1.msra.mxu0 0.0
      %1779 = vmatprep.subr.mxu0 0.0
      %1780 = vmatpush1.msra.mxu0 0.0
      %1781 = vmatprep.subr.mxu0 0.0
      %1782 = vmatpush1.msra.mxu0 0.0
      %1783 = vmatprep.subr.mxu0 0.0
      %1784 = vmatpush1.msra.mxu0 0.0
      %1785 = vmatprep.subr.mxu0 0.0
      %1786 = vmatpush1.msra.mxu0 0.0
      %1787 = vmatprep.subr.mxu0 0.0
      %1788 = vmatpush1.msra.mxu0 0.0
      %1789 = vmatprep.subr.mxu0 0.0
      %1790 = vmatpush1.msra.mxu0 0.0
      %1791 = vmatprep.subr.mxu0 0.0
      %1792 = vmatpush1.msra.mxu0 0.0
      %1793 = vmatprep.subr.mxu0 0.0
      %1794 = vmatpush1.msra.mxu0 0.0
      %1795 = vmatprep.subr.mxu0 0.0
      %1796 = vmatpush1.msra.mxu0 0.0
      %1797 = vmatprep.subr.mxu0 0.0
      %1798 = vmatpush1.msra.mxu0 0.0
      %1799 = vmatprep.subr.mxu0 0.0
      %1800 = vmatpush1.msra.mxu0 0.0
      %1801 = vmatprep.subr.mxu0 0.0
      %1802 = vmatpush1.msra.mxu0 0.0
      %1803 = vmatprep.subr.mxu0 0.0
      %1804 = vmatpush1.msra.mxu0 0.0
      %1805 = vmatprep.subr.mxu0 0.0
      %1806 = vmatpush1.msra.mxu0 0.0
      %1807 = vmatprep.subr.mxu0 0.0
      %1808 = vmatpush1.msra.mxu0 0.0
      %1809 = vmatprep.subr.mxu0 0.0
      %1810 = vmatpush1.msra.mxu0 0.0
      %1811 = vmatprep.subr.mxu0 0.0
      %1812 = vmatpush1.msra.mxu0 0.0
      %1813 = vmatprep.subr.mxu0 0.0
      %1814 = vmatpush1.msra.mxu0 0.0
      %1815 = vmatprep.subr.mxu0 0.0
      %1816 = vmatpush1.msra.mxu0 0.0
      %1817 = vmatprep.mubr.f32.mxu0 0.0
      %1818 = vmatmul.mubr.f32.gmra.mrb[0].mxu0 %v1658
      %v1819 = vpop.f32.mrb[0].mxu0
      %v1820 = vadd.f32 0.0, %v1819
      %v1821 = vpop.f32.mrb[0].mxu0
      %1822 = vmatprep.mubr.f32.mxu0 0.0
      %1823 = vmatmul.mubr.f32.gmra.mrb[0].mxu0 %v1661
      %v1824 = vpop.f32.mrb[0].mxu0
      %v1825 = vadd.f32 0.0, %v1824
      %v1826 = vpop.f32.mrb[0].mxu0
      %1827 = vmatprep.mubr.f32.mxu0 0.0
      %1828 = vmatmul.mubr.f32.gmra.mrb[0].mxu0 %v1664
      %v1829 = vpop.f32.mrb[0].mxu0
      %v1830 = vadd.f32 0.0, %v1829
      %v1831 = vpop.f32.mrb[0].mxu0
      %1832 = vmatprep.mubr.f32.mxu0 0.0
      %1833 = vmatmul.mubr.f32.gmra.mrb[0].mxu0 %v1667
      %v1834 = vpop.f32.mrb[0].mxu0
      %v1835 = vadd.f32 0.0, %v1834
      %v1836 = vpop.f32.mrb[0].mxu0
      %1837 = vmatprep.mubr.f32.mxu0 0.0
      %1838 = vmatmul.mubr.f32.gmra.mrb[0].mxu0 %v1670
      %v1839 = vpop.f32.mrb[0].mxu0
      %v1840 = vadd.f32 0.0, %v1839
      %v1841 = vpop.f32.mrb[0].mxu0
      %1842 = vmatprep.mubr.f32.mxu0 0.0
      %1843 = vmatmul.mubr.f32.gmra.mrb[0].mxu0 %v1673
      %v1844 = vpop.f32.mrb[0].mxu0
      %v1845 = vadd.f32 0.0, %v1844
      %v1846 = vpop.f32.mrb[0].mxu0
      %1847 = vmatprep.mubr.f32.mxu0 0.0
      %1848 = vmatmul.mubr.f32.gmra.mrb[0].mxu0 %v1676
      %v1849 = vpop.f32.mrb[0].mxu0
      %v1850 = vadd.f32 0.0, %v1849
      %v1851 = vpop.f32.mrb[0].mxu0
      %1852 = vmatprep.mubr.f32.mxu0 0.0
      %1853 = vmatmul.mubr.f32.gmra.mrb[0].mxu0 %v1679
      %v1854 = vpop.f32.mrb[0].mxu0
      %v1855 = vadd.f32 0.0, %v1854
      %v1856 = vpop.f32.mrb[0].mxu0
      %1857 = vmatprep.mubr.f32.mxu0 0.0
      %1858 = vmatmul.mubr.f32.gmra.mrb[0].mxu0 %v1682
      %v1859 = vpop.f32.mrb[0].mxu0
      %v1860 = vadd.f32 0.0, %v1859
      %v1861 = vpop.f32.mrb[0].mxu0
      %1862 = vmatprep.mubr.f32.mxu0 0.0
      %1863 = vmatmul.mubr.f32.gmra.mrb[0].mxu0 %v1685
      %v1864 = vpop.f32.mrb[0].mxu0
      %v1865 = vadd.f32 0.0, %v1864
      %v1866 = vpop.f32.mrb[0].mxu0
      %1867 = vmatprep.mubr.f32.mxu0 0.0
      %1868 = vmatmul.mubr.f32.gmra.mrb[0].mxu0 %v1688
      %v1869 = vpop.f32.mrb[0].mxu0
      %v1870 = vadd.f32 0.0, %v1869
      %v1871 = vpop.f32.mrb[0].mxu0
      %1872 = vmatprep.mubr.f32.mxu0 0.0
      %1873 = vmatmul.mubr.f32.gmra.mrb[0].mxu0 %v1691
      %v1874 = vpop.f32.mrb[0].mxu0
      %v1875 = vadd.f32 0.0, %v1874
      %v1876 = vpop.f32.mrb[0].mxu0
      %1877 = vmatprep.mubr.f32.mxu0 0.0
      %1878 = vmatmul.mubr.f32.gmra.mrb[0].mxu0 %v1694
      %v1879 = vpop.f32.mrb[0].mxu0
      %v1880 = vadd.f32 0.0, %v1879
      %v1881 = vpop.f32.mrb[0].mxu0
      %1882 = vmatprep.mubr.f32.mxu0 0.0
      %1883 = vmatmul.mubr.f32.gmra.mrb[0].mxu0 %v1697
      %v1884 = vpop.f32.mrb[0].mxu0
      %v1885 = vadd.f32 0.0, %v1884
      %v1886 = vpop.f32.mrb[0].mxu0
      %1887 = vmatprep.mubr.f32.mxu0 0.0
      %1888 = vmatmul.mubr.f32.gmra.mrb[0].mxu0 %v1700
      %v1889 = vpop.f32.mrb[0].mxu0
      %v1890 = vadd.f32 0.0, %v1889
      %v1891 = vpop.f32.mrb[0].mxu0
      %1892 = vmatprep.mubr.f32.mxu0 0.0
      %1893 = vmatmul.mubr.f32.gmra.mrb[0].mxu0 %v1703
      %v1894 = vpop.f32.mrb[0].mxu0
      %v1895 = vadd.f32 0.0, %v1894
      %v1896 = vpop.f32.mrb[0].mxu0
      %1897 = vmatprep.mubr.f32.mxu0 0.0
      %1898 = vmatmul.mubr.f32.gmra.mrb[0].mxu0 %v1706
      %v1899 = vpop.f32.mrb[0].mxu0
      %v1900 = vadd.f32 0.0, %v1899
      %v1901 = vpop.f32.mrb[0].mxu0
      %1902 = vmatprep.mubr.f32.mxu0 0.0
      %1903 = vmatmul.mubr.f32.gmra.mrb[0].mxu0 %v1709
      %v1904 = vpop.f32.mrb[0].mxu0
      %v1905 = vadd.f32 0.0, %v1904
      %v1906 = vpop.f32.mrb[0].mxu0
      %1907 = vmatprep.mubr.f32.mxu0 0.0
      %1908 = vmatmul.mubr.f32.gmra.mrb[0].mxu0 %v1712
      %v1909 = vpop.f32.mrb[0].mxu0
      %v1910 = vadd.f32 0.0, %v1909
      %v1911 = vpop.f32.mrb[0].mxu0
      %1912 = vmatprep.mubr.f32.mxu0 0.0
      %1913 = vmatmul.mubr.f32.gmra.mrb[0].mxu0 %v1715
      %v1914 = vpop.f32.mrb[0].mxu0
      %v1915 = vadd.f32 0.0, %v1914
      %v1916 = vpop.f32.mrb[0].mxu0
      %1917 = vmatprep.mubr.f32.mxu0 0.0
      %1918 = vmatmul.mubr.f32.gmra.mrb[0].mxu0 %v1718
      %v1919 = vpop.f32.mrb[0].mxu0
      %v1920 = vadd.f32 0.0, %v1919
      %v1921 = vpop.f32.mrb[0].mxu0
      %1922 = vmatprep.mubr.f32.mxu0 0.0
      %1923 = vmatmul.mubr.f32.gmra.mrb[0].mxu0 %v1721
      %v1924 = vpop.f32.mrb[0].mxu0
      %v1925 = vadd.f32 0.0, %v1924
      %v1926 = vpop.f32.mrb[0].mxu0
      %1927 = vmatprep.mubr.f32.mxu0 0.0
      %1928 = vmatmul.mubr.f32.gmra.mrb[0].mxu0 %v1724
      %v1929 = vpop.f32.mrb[0].mxu0
      %v1930 = vadd.f32 0.0, %v1929
      %v1931 = vpop.f32.mrb[0].mxu0
      %1932 = vmatprep.mubr.f32.mxu0 0.0
      %1933 = vmatmul.mubr.f32.gmra.mrb[0].mxu0 %v1727
      %v1934 = vpop.f32.mrb[0].mxu0
      %v1935 = vadd.f32 0.0, %v1934
      %v1936 = vpop.f32.mrb[0].mxu0
      %1937 = vmatprep.mubr.f32.mxu0 0.0
      %1938 = vmatmul.mubr.f32.gmra.mrb[0].mxu0 %v1730
      %v1939 = vpop.f32.mrb[0].mxu0
      %v1940 = vadd.f32 0.0, %v1939
      %v1941 = vpop.f32.mrb[0].mxu0
      %1942 = vmatprep.mubr.f32.mxu0 0.0
      %1943 = vmatmul.mubr.f32.gmra.mrb[0].mxu0 %v1733
      %v1944 = vpop.f32.mrb[0].mxu0
      %v1945 = vadd.f32 0.0, %v1944
      %v1946 = vpop.f32.mrb[0].mxu0
      %1947 = vmatprep.mubr.f32.mxu0 0.0
      %1948 = vmatmul.mubr.f32.gmra.mrb[0].mxu0 %v1736
      %v1949 = vpop.f32.mrb[0].mxu0
      %v1950 = vadd.f32 0.0, %v1949
      %v1951 = vpop.f32.mrb[0].mxu0
      %1952 = vmatprep.mubr.f32.mxu0 0.0
      %1953 = vmatmul.mubr.f32.gmra.mrb[0].mxu0 %v1739
      %v1954 = vpop.f32.mrb[0].mxu0
      %v1955 = vadd.f32 0.0, %v1954
      %v1956 = vpop.f32.mrb[0].mxu0
      %1957 = vmatprep.mubr.f32.mxu0 0.0
      %1958 = vmatmul.mubr.f32.gmra.mrb[0].mxu0 %v1742
      %v1959 = vpop.f32.mrb[0].mxu0
      %v1960 = vadd.f32 0.0, %v1959
      %v1961 = vpop.f32.mrb[0].mxu0
      %1962 = vmatprep.mubr.f32.mxu0 0.0
      %1963 = vmatmul.mubr.f32.gmra.mrb[0].mxu0 %v1745
      %v1964 = vpop.f32.mrb[0].mxu0
      %v1965 = vadd.f32 0.0, %v1964
      %v1966 = vpop.f32.mrb[0].mxu0
      %1967 = vmatprep.mubr.f32.mxu0 0.0
      %1968 = vmatmul.mubr.f32.gmra.mrb[0].mxu0 %v1748
      %v1969 = vpop.f32.mrb[0].mxu0
      %v1970 = vadd.f32 0.0, %v1969
      %v1971 = vpop.f32.mrb[0].mxu0
      %1972 = vmatprep.mubr.f32.mxu0 0.0
      %1973 = vmatmul.mubr.f32.gmra.mrb[0].mxu0 %v1751
      %v1974 = vpop.f32.mrb[0].mxu0
      %v1975 = vadd.f32 0.0, %v1974
      %v1976 = vpop.f32.mrb[0].mxu0
      %1977 = vdwg.mxu0
      %v1978 = vadd.f32 %v1591, %v1820
      %v1979 = vadd.f32 %v1592, %v1825
      %v1980 = vadd.f32 %v1593, %v1830
      %v1981 = vadd.f32 %v1594, %v1835
      %v1982 = vadd.f32 %v1595, %v1840
      %v1983 = vadd.f32 %v1596, %v1845
      %v1984 = vadd.f32 %v1597, %v1850
      %v1985 = vadd.f32 %v1598, %v1855
      %v1986 = vadd.f32 %v1599, %v1860
      %v1987 = vadd.f32 %v1600, %v1865
      %v1988 = vadd.f32 %v1601, %v1870
      %v1989 = vadd.f32 %v1602, %v1875
      %v1990 = vadd.f32 %v1603, %v1880
      %v1991 = vadd.f32 %v1604, %v1885
      %v1992 = vadd.f32 %v1605, %v1890
      %v1993 = vadd.f32 %v1606, %v1895
      %v1994 = vadd.f32 %v1607, %v1900
      %v1995 = vadd.f32 %v1608, %v1905
      %v1996 = vadd.f32 %v1609, %v1910
      %v1997 = vadd.f32 %v1610, %v1915
      %v1998 = vadd.f32 %v1611, %v1920
      %v1999 = vadd.f32 %v1612, %v1925
      %v2000 = vadd.f32 %v1613, %v1930
      %v2001 = vadd.f32 %v1614, %v1935
      %v2002 = vadd.f32 %v1615, %v1940
      %v2003 = vadd.f32 %v1616, %v1945
      %v2004 = vadd.f32 %v1617, %v1950
      %v2005 = vadd.f32 %v1618, %v1955
      %v2006 = vadd.f32 %v1619, %v1960
      %v2007 = vadd.f32 %v1620, %v1965
      %v2008 = vadd.f32 %v1621, %v1970
      %v2009 = vadd.f32 %v1622, %v1975
      %v2010 = vld [vmem:[%s494 + $0x1] sm:$0xff]
      %v2011 = vld [vmem:[%s494 + $0x9] sm:$0xff]
      %v2012 = vld [vmem:[%s494 + $0x19] sm:$0xff]
      %v2013 = vld [vmem:[%s494 + $0x21] sm:$0xff]
      %v2014 = vld [vmem:[%s494 + $0x31] sm:$0xff]
      %v2015 = vld [vmem:[%s494 + $0x39] sm:$0xff]
      %v2016 = vld [vmem:[%s494 + $0x49] sm:$0xff]
      %v2017 = vld [vmem:[%s494 + $0x51] sm:$0xff]
      %v2018 = vld [vmem:[%s494 + $0x61] sm:$0xff]
      %v2019 = vld [vmem:[%s494 + $0x69] sm:$0xff]
      %v2020 = vld [vmem:[%s494 + $0x79] sm:$0xff]
      %v2021 = vld [vmem:[%s494 + $0x81] sm:$0xff]
      %v2022 = vld [vmem:[%s494 + $0x91] sm:$0xff]
      %v2023 = vld [vmem:[%s494 + $0x99] sm:$0xff]
      %v2024 = vld [vmem:[%s494 + $0xa9] sm:$0xff]
      %v2025 = vld [vmem:[%s494 + $0xb1] sm:$0xff]
      %v2026 = vld [vmem:[%s494 + $0xc1] sm:$0xff]
      %v2027 = vld [vmem:[%s494 + $0xc9] sm:$0xff]
      %v2028 = vld [vmem:[%s494 + $0xd9] sm:$0xff]
      %v2029 = vld [vmem:[%s494 + $0xe1] sm:$0xff]
      %v2030 = vld [vmem:[%s494 + $0xf1] sm:$0xff]
      %v2031 = vld [vmem:[%s494 + $0xf9] sm:$0xff]
      %v2032 = vld [vmem:[%s494 + $0x109] sm:$0xff]
      %v2033 = vld [vmem:[%s494 + $0x111] sm:$0xff]
      %v2034 = vld [vmem:[%s494 + $0x121] sm:$0xff]
      %v2035 = vld [vmem:[%s494 + $0x129] sm:$0xff]
      %v2036 = vld [vmem:[%s494 + $0x139] sm:$0xff]
      %v2037 = vld [vmem:[%s494 + $0x141] sm:$0xff]
      %v2038 = vld [vmem:[%s494 + $0x151] sm:$0xff]
      %v2039 = vld [vmem:[%s494 + $0x159] sm:$0xff]
      %v2040 = vld [vmem:[%s494 + $0x169] sm:$0xff]
      %v2041 = vld [vmem:[%s494 + $0x171] sm:$0xff]
      %s2042 = scalar_lea.vmem %s1, 32
      %v2043 = vld [vmem:[%s2042] sm:$0xff]
      %v2045 = vsel %vm438, %v2010, 0
      %v2048 = vsel %vm438, %v2011, 0
      %v2051 = vsel %vm438, %v2012, 0
      %v2054 = vsel %vm438, %v2013, 0
      %v2057 = vsel %vm438, %v2014, 0
      %v2060 = vsel %vm438, %v2015, 0
      %v2063 = vsel %vm438, %v2016, 0
      %v2066 = vsel %vm438, %v2017, 0
      %v2069 = vsel %vm438, %v2018, 0
      %v2072 = vsel %vm438, %v2019, 0
      %v2075 = vsel %vm438, %v2020, 0
      %v2078 = vsel %vm438, %v2021, 0
      %v2081 = vsel %vm438, %v2022, 0
      %v2084 = vsel %vm438, %v2023, 0
      %v2087 = vsel %vm438, %v2024, 0
      %v2090 = vsel %vm438, %v2025, 0
      %v2093 = vsel %vm438, %v2026, 0
      %v2096 = vsel %vm438, %v2027, 0
      %v2099 = vsel %vm438, %v2028, 0
      %v2102 = vsel %vm438, %v2029, 0
      %v2105 = vsel %vm438, %v2030, 0
      %v2108 = vsel %vm438, %v2031, 0
      %v2111 = vsel %vm438, %v2032, 0
      %v2114 = vsel %vm438, %v2033, 0
      %v2117 = vsel %vm438, %v2034, 0
      %v2120 = vsel %vm438, %v2035, 0
      %v2123 = vsel %vm438, %v2036, 0
      %v2126 = vsel %vm438, %v2037, 0
      %v2129 = vsel %vm438, %v2038, 0
      %v2132 = vsel %vm438, %v2039, 0
      %v2135 = vsel %vm438, %v2040, 0
      %v2138 = vsel %vm438, %v2041, 0
      %2140 = vmatprep.subr.mxu0 0.0
      %2141 = vmatpush1.msra.mxu0 %v2043
      %2142 = vmatprep.subr.mxu0 0.0
      %2143 = vmatpush1.msra.mxu0 0.0
      %2144 = vmatprep.subr.mxu0 0.0
      %2145 = vmatpush1.msra.mxu0 0.0
      %2146 = vmatprep.subr.mxu0 0.0
      %2147 = vmatpush1.msra.mxu0 0.0
      %2148 = vmatprep.subr.mxu0 0.0
      %2149 = vmatpush1.msra.mxu0 0.0
      %2150 = vmatprep.subr.mxu0 0.0
      %2151 = vmatpush1.msra.mxu0 0.0
      %2152 = vmatprep.subr.mxu0 0.0
      %2153 = vmatpush1.msra.mxu0 0.0
      %2154 = vmatprep.subr.mxu0 0.0
      %2155 = vmatpush1.msra.mxu0 0.0
      %2156 = vmatprep.subr.mxu0 0.0
      %2157 = vmatpush1.msra.mxu0 0.0
      %2158 = vmatprep.subr.mxu0 0.0
      %2159 = vmatpush1.msra.mxu0 0.0
      %2160 = vmatprep.subr.mxu0 0.0
      %2161 = vmatpush1.msra.mxu0 0.0
      %2162 = vmatprep.subr.mxu0 0.0
      %2163 = vmatpush1.msra.mxu0 0.0
      %2164 = vmatprep.subr.mxu0 0.0
      %2165 = vmatpush1.msra.mxu0 0.0
      %2166 = vmatprep.subr.mxu0 0.0
      %2167 = vmatpush1.msra.mxu0 0.0
      %2168 = vmatprep.subr.mxu0 0.0
      %2169 = vmatpush1.msra.mxu0 0.0
      %2170 = vmatprep.subr.mxu0 0.0
      %2171 = vmatpush1.msra.mxu0 0.0
      %2172 = vmatprep.subr.mxu0 0.0
      %2173 = vmatpush1.msra.mxu0 0.0
      %2174 = vmatprep.subr.mxu0 0.0
      %2175 = vmatpush1.msra.mxu0 0.0
      %2176 = vmatprep.subr.mxu0 0.0
      %2177 = vmatpush1.msra.mxu0 0.0
      %2178 = vmatprep.subr.mxu0 0.0
      %2179 = vmatpush1.msra.mxu0 0.0
      %2180 = vmatprep.subr.mxu0 0.0
      %2181 = vmatpush1.msra.mxu0 0.0
      %2182 = vmatprep.subr.mxu0 0.0
      %2183 = vmatpush1.msra.mxu0 0.0
      %2184 = vmatprep.subr.mxu0 0.0
      %2185 = vmatpush1.msra.mxu0 0.0
      %2186 = vmatprep.subr.mxu0 0.0
      %2187 = vmatpush1.msra.mxu0 0.0
      %2188 = vmatprep.subr.mxu0 0.0
      %2189 = vmatpush1.msra.mxu0 0.0
      %2190 = vmatprep.subr.mxu0 0.0
      %2191 = vmatpush1.msra.mxu0 0.0
      %2192 = vmatprep.subr.mxu0 0.0
      %2193 = vmatpush1.msra.mxu0 0.0
      %2194 = vmatprep.subr.mxu0 0.0
      %2195 = vmatpush1.msra.mxu0 0.0
      %2196 = vmatprep.subr.mxu0 0.0
      %2197 = vmatpush1.msra.mxu0 0.0
      %2198 = vmatprep.subr.mxu0 0.0
      %2199 = vmatpush1.msra.mxu0 0.0
      %2200 = vmatprep.subr.mxu0 0.0
      %2201 = vmatpush1.msra.mxu0 0.0
      %2202 = vmatprep.subr.mxu0 0.0
      %2203 = vmatpush1.msra.mxu0 0.0
      %2204 = vmatprep.mubr.f32.mxu0 0.0
      %2205 = vmatmul.mubr.f32.gmra.mrb[0].mxu0 %v2045
      %v2206 = vpop.f32.mrb[0].mxu0
      %v2207 = vadd.f32 0.0, %v2206
      %v2208 = vpop.f32.mrb[0].mxu0
      %2209 = vmatprep.mubr.f32.mxu0 0.0
      %2210 = vmatmul.mubr.f32.gmra.mrb[0].mxu0 %v2048
      %v2211 = vpop.f32.mrb[0].mxu0
      %v2212 = vadd.f32 0.0, %v2211
      %v2213 = vpop.f32.mrb[0].mxu0
      %2214 = vmatprep.mubr.f32.mxu0 0.0
      %2215 = vmatmul.mubr.f32.gmra.mrb[0].mxu0 %v2051
      %v2216 = vpop.f32.mrb[0].mxu0
      %v2217 = vadd.f32 0.0, %v2216
      %v2218 = vpop.f32.mrb[0].mxu0
      %2219 = vmatprep.mubr.f32.mxu0 0.0
      %2220 = vmatmul.mubr.f32.gmra.mrb[0].mxu0 %v2054
      %v2221 = vpop.f32.mrb[0].mxu0
      %v2222 = vadd.f32 0.0, %v2221
      %v2223 = vpop.f32.mrb[0].mxu0
      %2224 = vmatprep.mubr.f32.mxu0 0.0
      %2225 = vmatmul.mubr.f32.gmra.mrb[0].mxu0 %v2057
      %v2226 = vpop.f32.mrb[0].mxu0
      %v2227 = vadd.f32 0.0, %v2226
      %v2228 = vpop.f32.mrb[0].mxu0
      %2229 = vmatprep.mubr.f32.mxu0 0.0
      %2230 = vmatmul.mubr.f32.gmra.mrb[0].mxu0 %v2060
      %v2231 = vpop.f32.mrb[0].mxu0
      %v2232 = vadd.f32 0.0, %v2231
      %v2233 = vpop.f32.mrb[0].mxu0
      %2234 = vmatprep.mubr.f32.mxu0 0.0
      %2235 = vmatmul.mubr.f32.gmra.mrb[0].mxu0 %v2063
      %v2236 = vpop.f32.mrb[0].mxu0
      %v2237 = vadd.f32 0.0, %v2236
      %v2238 = vpop.f32.mrb[0].mxu0
      %2239 = vmatprep.mubr.f32.mxu0 0.0
      %2240 = vmatmul.mubr.f32.gmra.mrb[0].mxu0 %v2066
      %v2241 = vpop.f32.mrb[0].mxu0
      %v2242 = vadd.f32 0.0, %v2241
      %v2243 = vpop.f32.mrb[0].mxu0
      %2244 = vmatprep.mubr.f32.mxu0 0.0
      %2245 = vmatmul.mubr.f32.gmra.mrb[0].mxu0 %v2069
      %v2246 = vpop.f32.mrb[0].mxu0
      %v2247 = vadd.f32 0.0, %v2246
      %v2248 = vpop.f32.mrb[0].mxu0
      %2249 = vmatprep.mubr.f32.mxu0 0.0
      %2250 = vmatmul.mubr.f32.gmra.mrb[0].mxu0 %v2072
      %v2251 = vpop.f32.mrb[0].mxu0
      %v2252 = vadd.f32 0.0, %v2251
      %v2253 = vpop.f32.mrb[0].mxu0
      %2254 = vmatprep.mubr.f32.mxu0 0.0
      %2255 = vmatmul.mubr.f32.gmra.mrb[0].mxu0 %v2075
      %v2256 = vpop.f32.mrb[0].mxu0
      %v2257 = vadd.f32 0.0, %v2256
      %v2258 = vpop.f32.mrb[0].mxu0
      %2259 = vmatprep.mubr.f32.mxu0 0.0
      %2260 = vmatmul.mubr.f32.gmra.mrb[0].mxu0 %v2078
      %v2261 = vpop.f32.mrb[0].mxu0
      %v2262 = vadd.f32 0.0, %v2261
      %v2263 = vpop.f32.mrb[0].mxu0
      %2264 = vmatprep.mubr.f32.mxu0 0.0
      %2265 = vmatmul.mubr.f32.gmra.mrb[0].mxu0 %v2081
      %v2266 = vpop.f32.mrb[0].mxu0
      %v2267 = vadd.f32 0.0, %v2266
      %v2268 = vpop.f32.mrb[0].mxu0
      %2269 = vmatprep.mubr.f32.mxu0 0.0
      %2270 = vmatmul.mubr.f32.gmra.mrb[0].mxu0 %v2084
      %v2271 = vpop.f32.mrb[0].mxu0
      %v2272 = vadd.f32 0.0, %v2271
      %v2273 = vpop.f32.mrb[0].mxu0
      %2274 = vmatprep.mubr.f32.mxu0 0.0
      %2275 = vmatmul.mubr.f32.gmra.mrb[0].mxu0 %v2087
      %v2276 = vpop.f32.mrb[0].mxu0
      %v2277 = vadd.f32 0.0, %v2276
      %v2278 = vpop.f32.mrb[0].mxu0
      %2279 = vmatprep.mubr.f32.mxu0 0.0
      %2280 = vmatmul.mubr.f32.gmra.mrb[0].mxu0 %v2090
      %v2281 = vpop.f32.mrb[0].mxu0
      %v2282 = vadd.f32 0.0, %v2281
      %v2283 = vpop.f32.mrb[0].mxu0
      %2284 = vmatprep.mubr.f32.mxu0 0.0
      %2285 = vmatmul.mubr.f32.gmra.mrb[0].mxu0 %v2093
      %v2286 = vpop.f32.mrb[0].mxu0
      %v2287 = vadd.f32 0.0, %v2286
      %v2288 = vpop.f32.mrb[0].mxu0
      %2289 = vmatprep.mubr.f32.mxu0 0.0
      %2290 = vmatmul.mubr.f32.gmra.mrb[0].mxu0 %v2096
      %v2291 = vpop.f32.mrb[0].mxu0
      %v2292 = vadd.f32 0.0, %v2291
      %v2293 = vpop.f32.mrb[0].mxu0
      %2294 = vmatprep.mubr.f32.mxu0 0.0
      %2295 = vmatmul.mubr.f32.gmra.mrb[0].mxu0 %v2099
      %v2296 = vpop.f32.mrb[0].mxu0
      %v2297 = vadd.f32 0.0, %v2296
      %v2298 = vpop.f32.mrb[0].mxu0
      %2299 = vmatprep.mubr.f32.mxu0 0.0
      %2300 = vmatmul.mubr.f32.gmra.mrb[0].mxu0 %v2102
      %v2301 = vpop.f32.mrb[0].mxu0
      %v2302 = vadd.f32 0.0, %v2301
      %v2303 = vpop.f32.mrb[0].mxu0
      %2304 = vmatprep.mubr.f32.mxu0 0.0
      %2305 = vmatmul.mubr.f32.gmra.mrb[0].mxu0 %v2105
      %v2306 = vpop.f32.mrb[0].mxu0
      %v2307 = vadd.f32 0.0, %v2306
      %v2308 = vpop.f32.mrb[0].mxu0
      %2309 = vmatprep.mubr.f32.mxu0 0.0
      %2310 = vmatmul.mubr.f32.gmra.mrb[0].mxu0 %v2108
      %v2311 = vpop.f32.mrb[0].mxu0
      %v2312 = vadd.f32 0.0, %v2311
      %v2313 = vpop.f32.mrb[0].mxu0
      %2314 = vmatprep.mubr.f32.mxu0 0.0
      %2315 = vmatmul.mubr.f32.gmra.mrb[0].mxu0 %v2111
      %v2316 = vpop.f32.mrb[0].mxu0
      %v2317 = vadd.f32 0.0, %v2316
      %v2318 = vpop.f32.mrb[0].mxu0
      %2319 = vmatprep.mubr.f32.mxu0 0.0
      %2320 = vmatmul.mubr.f32.gmra.mrb[0].mxu0 %v2114
      %v2321 = vpop.f32.mrb[0].mxu0
      %v2322 = vadd.f32 0.0, %v2321
      %v2323 = vpop.f32.mrb[0].mxu0
      %2324 = vmatprep.mubr.f32.mxu0 0.0
      %2325 = vmatmul.mubr.f32.gmra.mrb[0].mxu0 %v2117
      %v2326 = vpop.f32.mrb[0].mxu0
      %v2327 = vadd.f32 0.0, %v2326
      %v2328 = vpop.f32.mrb[0].mxu0
      %2329 = vmatprep.mubr.f32.mxu0 0.0
      %2330 = vmatmul.mubr.f32.gmra.mrb[0].mxu0 %v2120
      %v2331 = vpop.f32.mrb[0].mxu0
      %v2332 = vadd.f32 0.0, %v2331
      %v2333 = vpop.f32.mrb[0].mxu0
      %2334 = vmatprep.mubr.f32.mxu0 0.0
      %2335 = vmatmul.mubr.f32.gmra.mrb[0].mxu0 %v2123
      %v2336 = vpop.f32.mrb[0].mxu0
      %v2337 = vadd.f32 0.0, %v2336
      %v2338 = vpop.f32.mrb[0].mxu0
      %2339 = vmatprep.mubr.f32.mxu0 0.0
      %2340 = vmatmul.mubr.f32.gmra.mrb[0].mxu0 %v2126
      %v2341 = vpop.f32.mrb[0].mxu0
      %v2342 = vadd.f32 0.0, %v2341
      %v2343 = vpop.f32.mrb[0].mxu0
      %2344 = vmatprep.mubr.f32.mxu0 0.0
      %2345 = vmatmul.mubr.f32.gmra.mrb[0].mxu0 %v2129
      %v2346 = vpop.f32.mrb[0].mxu0
      %v2347 = vadd.f32 0.0, %v2346
      %v2348 = vpop.f32.mrb[0].mxu0
      %2349 = vmatprep.mubr.f32.mxu0 0.0
      %2350 = vmatmul.mubr.f32.gmra.mrb[0].mxu0 %v2132
      %v2351 = vpop.f32.mrb[0].mxu0
      %v2352 = vadd.f32 0.0, %v2351
      %v2353 = vpop.f32.mrb[0].mxu0
      %2354 = vmatprep.mubr.f32.mxu0 0.0
      %2355 = vmatmul.mubr.f32.gmra.mrb[0].mxu0 %v2135
      %v2356 = vpop.f32.mrb[0].mxu0
      %v2357 = vadd.f32 0.0, %v2356
      %v2358 = vpop.f32.mrb[0].mxu0
      %2359 = vmatprep.mubr.f32.mxu0 0.0
      %2360 = vmatmul.mubr.f32.gmra.mrb[0].mxu0 %v2138
      %v2361 = vpop.f32.mrb[0].mxu0
      %v2362 = vadd.f32 0.0, %v2361
      %v2363 = vpop.f32.mrb[0].mxu0
      %2364 = vdwg.mxu0
      %v2365 = vadd.f32 %v1978, %v2207
      %v2366 = vadd.f32 %v1979, %v2212
      %v2367 = vadd.f32 %v1980, %v2217
      %v2368 = vadd.f32 %v1981, %v2222
      %v2369 = vadd.f32 %v1982, %v2227
      %v2370 = vadd.f32 %v1983, %v2232
      %v2371 = vadd.f32 %v1984, %v2237
      %v2372 = vadd.f32 %v1985, %v2242
      %v2373 = vadd.f32 %v1986, %v2247
      %v2374 = vadd.f32 %v1987, %v2252
      %v2375 = vadd.f32 %v1988, %v2257
      %v2376 = vadd.f32 %v1989, %v2262
      %v2377 = vadd.f32 %v1990, %v2267
      %v2378 = vadd.f32 %v1991, %v2272
      %v2379 = vadd.f32 %v1992, %v2277
      %v2380 = vadd.f32 %v1993, %v2282
      %v2381 = vadd.f32 %v1994, %v2287
      %v2382 = vadd.f32 %v1995, %v2292
      %v2383 = vadd.f32 %v1996, %v2297
      %v2384 = vadd.f32 %v1997, %v2302
      %v2385 = vadd.f32 %v1998, %v2307
      %v2386 = vadd.f32 %v1999, %v2312
      %v2387 = vadd.f32 %v2000, %v2317
      %v2388 = vadd.f32 %v2001, %v2322
      %v2389 = vadd.f32 %v2002, %v2327
      %v2390 = vadd.f32 %v2003, %v2332
      %v2391 = vadd.f32 %v2004, %v2337
      %v2392 = vadd.f32 %v2005, %v2342
      %v2393 = vadd.f32 %v2006, %v2347
      %v2394 = vadd.f32 %v2007, %v2352
      %v2395 = vadd.f32 %v2008, %v2357
      %v2396 = vadd.f32 %v2009, %v2362
      %v2397 = vld [vmem:[%s494 + $0x2] sm:$0xff]
      %v2398 = vld [vmem:[%s494 + $0xa] sm:$0xff]
      %v2399 = vld [vmem:[%s494 + $0x1a] sm:$0xff]
      %v2400 = vld [vmem:[%s494 + $0x22] sm:$0xff]
      %v2401 = vld [vmem:[%s494 + $0x32] sm:$0xff]
      %v2402 = vld [vmem:[%s494 + $0x3a] sm:$0xff]
      %v2403 = vld [vmem:[%s494 + $0x4a] sm:$0xff]
      %v2404 = vld [vmem:[%s494 + $0x52] sm:$0xff]
      %v2405 = vld [vmem:[%s494 + $0x62] sm:$0xff]
      %v2406 = vld [vmem:[%s494 + $0x6a] sm:$0xff]
      %v2407 = vld [vmem:[%s494 + $0x7a] sm:$0xff]
      %v2408 = vld [vmem:[%s494 + $0x82] sm:$0xff]
      %v2409 = vld [vmem:[%s494 + $0x92] sm:$0xff]
      %v2410 = vld [vmem:[%s494 + $0x9a] sm:$0xff]
      %v2411 = vld [vmem:[%s494 + $0xaa] sm:$0xff]
      %v2412 = vld [vmem:[%s494 + $0xb2] sm:$0xff]
      %v2413 = vld [vmem:[%s494 + $0xc2] sm:$0xff]
      %v2414 = vld [vmem:[%s494 + $0xca] sm:$0xff]
      %v2415 = vld [vmem:[%s494 + $0xda] sm:$0xff]
      %v2416 = vld [vmem:[%s494 + $0xe2] sm:$0xff]
      %v2417 = vld [vmem:[%s494 + $0xf2] sm:$0xff]
      %v2418 = vld [vmem:[%s494 + $0xfa] sm:$0xff]
      %v2419 = vld [vmem:[%s494 + $0x10a] sm:$0xff]
      %v2420 = vld [vmem:[%s494 + $0x112] sm:$0xff]
      %v2421 = vld [vmem:[%s494 + $0x122] sm:$0xff]
      %v2422 = vld [vmem:[%s494 + $0x12a] sm:$0xff]
      %v2423 = vld [vmem:[%s494 + $0x13a] sm:$0xff]
      %v2424 = vld [vmem:[%s494 + $0x142] sm:$0xff]
      %v2425 = vld [vmem:[%s494 + $0x152] sm:$0xff]
      %v2426 = vld [vmem:[%s494 + $0x15a] sm:$0xff]
      %v2427 = vld [vmem:[%s494 + $0x16a] sm:$0xff]
      %v2428 = vld [vmem:[%s494 + $0x172] sm:$0xff]
      %s2429 = scalar_lea.vmem %s1, 40
      %v2430 = vld [vmem:[%s2429] sm:$0xff]
      %v2432 = vsel %vm438, %v2397, 0
      %v2435 = vsel %vm438, %v2398, 0
      %v2438 = vsel %vm438, %v2399, 0
      %v2441 = vsel %vm438, %v2400, 0
      %v2444 = vsel %vm438, %v2401, 0
      %v2447 = vsel %vm438, %v2402, 0
      %v2450 = vsel %vm438, %v2403, 0
      %v2453 = vsel %vm438, %v2404, 0
      %v2456 = vsel %vm438, %v2405, 0
      %v2459 = vsel %vm438, %v2406, 0
      %v2462 = vsel %vm438, %v2407, 0
      %v2465 = vsel %vm438, %v2408, 0
      %v2468 = vsel %vm438, %v2409, 0
      %v2471 = vsel %vm438, %v2410, 0
      %v2474 = vsel %vm438, %v2411, 0
      %v2477 = vsel %vm438, %v2412, 0
      %v2480 = vsel %vm438, %v2413, 0
      %v2483 = vsel %vm438, %v2414, 0
      %v2486 = vsel %vm438, %v2415, 0
      %v2489 = vsel %vm438, %v2416, 0
      %v2492 = vsel %vm438, %v2417, 0
      %v2495 = vsel %vm438, %v2418, 0
      %v2498 = vsel %vm438, %v2419, 0
      %v2501 = vsel %vm438, %v2420, 0
      %v2504 = vsel %vm438, %v2421, 0
      %v2507 = vsel %vm438, %v2422, 0
      %v2510 = vsel %vm438, %v2423, 0
      %v2513 = vsel %vm438, %v2424, 0
      %v2516 = vsel %vm438, %v2425, 0
      %v2519 = vsel %vm438, %v2426, 0
      %v2522 = vsel %vm438, %v2427, 0
      %v2525 = vsel %vm438, %v2428, 0
      %2527 = vmatprep.subr.mxu0 0.0
      %2528 = vmatpush1.msra.mxu0 %v2430
      %2529 = vmatprep.subr.mxu0 0.0
      %2530 = vmatpush1.msra.mxu0 0.0
      %2531 = vmatprep.subr.mxu0 0.0
      %2532 = vmatpush1.msra.mxu0 0.0
      %2533 = vmatprep.subr.mxu0 0.0
      %2534 = vmatpush1.msra.mxu0 0.0
      %2535 = vmatprep.subr.mxu0 0.0
      %2536 = vmatpush1.msra.mxu0 0.0
      %2537 = vmatprep.subr.mxu0 0.0
      %2538 = vmatpush1.msra.mxu0 0.0
      %2539 = vmatprep.subr.mxu0 0.0
      %2540 = vmatpush1.msra.mxu0 0.0
      %2541 = vmatprep.subr.mxu0 0.0
      %2542 = vmatpush1.msra.mxu0 0.0
      %2543 = vmatprep.subr.mxu0 0.0
      %2544 = vmatpush1.msra.mxu0 0.0
      %2545 = vmatprep.subr.mxu0 0.0
      %2546 = vmatpush1.msra.mxu0 0.0
      %2547 = vmatprep.subr.mxu0 0.0
      %2548 = vmatpush1.msra.mxu0 0.0
      %2549 = vmatprep.subr.mxu0 0.0
      %2550 = vmatpush1.msra.mxu0 0.0
      %2551 = vmatprep.subr.mxu0 0.0
      %2552 = vmatpush1.msra.mxu0 0.0
      %2553 = vmatprep.subr.mxu0 0.0
      %2554 = vmatpush1.msra.mxu0 0.0
      %2555 = vmatprep.subr.mxu0 0.0
      %2556 = vmatpush1.msra.mxu0 0.0
      %2557 = vmatprep.subr.mxu0 0.0
      %2558 = vmatpush1.msra.mxu0 0.0
      %2559 = vmatprep.subr.mxu0 0.0
      %2560 = vmatpush1.msra.mxu0 0.0
      %2561 = vmatprep.subr.mxu0 0.0
      %2562 = vmatpush1.msra.mxu0 0.0
      %2563 = vmatprep.subr.mxu0 0.0
      %2564 = vmatpush1.msra.mxu0 0.0
      %2565 = vmatprep.subr.mxu0 0.0
      %2566 = vmatpush1.msra.mxu0 0.0
      %2567 = vmatprep.subr.mxu0 0.0
      %2568 = vmatpush1.msra.mxu0 0.0
      %2569 = vmatprep.subr.mxu0 0.0
      %2570 = vmatpush1.msra.mxu0 0.0
      %2571 = vmatprep.subr.mxu0 0.0
      %2572 = vmatpush1.msra.mxu0 0.0
      %2573 = vmatprep.subr.mxu0 0.0
      %2574 = vmatpush1.msra.mxu0 0.0
      %2575 = vmatprep.subr.mxu0 0.0
      %2576 = vmatpush1.msra.mxu0 0.0
      %2577 = vmatprep.subr.mxu0 0.0
      %2578 = vmatpush1.msra.mxu0 0.0
      %2579 = vmatprep.subr.mxu0 0.0
      %2580 = vmatpush1.msra.mxu0 0.0
      %2581 = vmatprep.subr.mxu0 0.0
      %2582 = vmatpush1.msra.mxu0 0.0
      %2583 = vmatprep.subr.mxu0 0.0
      %2584 = vmatpush1.msra.mxu0 0.0
      %2585 = vmatprep.subr.mxu0 0.0
      %2586 = vmatpush1.msra.mxu0 0.0
      %2587 = vmatprep.subr.mxu0 0.0
      %2588 = vmatpush1.msra.mxu0 0.0
      %2589 = vmatprep.subr.mxu0 0.0
      %2590 = vmatpush1.msra.mxu0 0.0
      %2591 = vmatprep.mubr.f32.mxu0 0.0
      %2592 = vmatmul.mubr.f32.gmra.mrb[0].mxu0 %v2432
      %v2593 = vpop.f32.mrb[0].mxu0
      %v2594 = vadd.f32 0.0, %v2593
      %v2595 = vpop.f32.mrb[0].mxu0
      %2596 = vmatprep.mubr.f32.mxu0 0.0
      %2597 = vmatmul.mubr.f32.gmra.mrb[0].mxu0 %v2435
      %v2598 = vpop.f32.mrb[0].mxu0
      %v2599 = vadd.f32 0.0, %v2598
      %v2600 = vpop.f32.mrb[0].mxu0
      %2601 = vmatprep.mubr.f32.mxu0 0.0
      %2602 = vmatmul.mubr.f32.gmra.mrb[0].mxu0 %v2438
      %v2603 = vpop.f32.mrb[0].mxu0
      %v2604 = vadd.f32 0.0, %v2603
      %v2605 = vpop.f32.mrb[0].mxu0
      %2606 = vmatprep.mubr.f32.mxu0 0.0
      %2607 = vmatmul.mubr.f32.gmra.mrb[0].mxu0 %v2441
      %v2608 = vpop.f32.mrb[0].mxu0
      %v2609 = vadd.f32 0.0, %v2608
      %v2610 = vpop.f32.mrb[0].mxu0
      %2611 = vmatprep.mubr.f32.mxu0 0.0
      %2612 = vmatmul.mubr.f32.gmra.mrb[0].mxu0 %v2444
      %v2613 = vpop.f32.mrb[0].mxu0
      %v2614 = vadd.f32 0.0, %v2613
      %v2615 = vpop.f32.mrb[0].mxu0
      %2616 = vmatprep.mubr.f32.mxu0 0.0
      %2617 = vmatmul.mubr.f32.gmra.mrb[0].mxu0 %v2447
      %v2618 = vpop.f32.mrb[0].mxu0
      %v2619 = vadd.f32 0.0, %v2618
      %v2620 = vpop.f32.mrb[0].mxu0
      %2621 = vmatprep.mubr.f32.mxu0 0.0
      %2622 = vmatmul.mubr.f32.gmra.mrb[0].mxu0 %v2450
      %v2623 = vpop.f32.mrb[0].mxu0
      %v2624 = vadd.f32 0.0, %v2623
      %v2625 = vpop.f32.mrb[0].mxu0
      %2626 = vmatprep.mubr.f32.mxu0 0.0
      %2627 = vmatmul.mubr.f32.gmra.mrb[0].mxu0 %v2453
      %v2628 = vpop.f32.mrb[0].mxu0
      %v2629 = vadd.f32 0.0, %v2628
      %v2630 = vpop.f32.mrb[0].mxu0
      %2631 = vmatprep.mubr.f32.mxu0 0.0
      %2632 = vmatmul.mubr.f32.gmra.mrb[0].mxu0 %v2456
      %v2633 = vpop.f32.mrb[0].mxu0
      %v2634 = vadd.f32 0.0, %v2633
      %v2635 = vpop.f32.mrb[0].mxu0
      %2636 = vmatprep.mubr.f32.mxu0 0.0
      %2637 = vmatmul.mubr.f32.gmra.mrb[0].mxu0 %v2459
      %v2638 = vpop.f32.mrb[0].mxu0
      %v2639 = vadd.f32 0.0, %v2638
      %v2640 = vpop.f32.mrb[0].mxu0
      %2641 = vmatprep.mubr.f32.mxu0 0.0
      %2642 = vmatmul.mubr.f32.gmra.mrb[0].mxu0 %v2462
      %v2643 = vpop.f32.mrb[0].mxu0
      %v2644 = vadd.f32 0.0, %v2643
      %v2645 = vpop.f32.mrb[0].mxu0
      %2646 = vmatprep.mubr.f32.mxu0 0.0
      %2647 = vmatmul.mubr.f32.gmra.mrb[0].mxu0 %v2465
      %v2648 = vpop.f32.mrb[0].mxu0
      %v2649 = vadd.f32 0.0, %v2648
      %v2650 = vpop.f32.mrb[0].mxu0
      %2651 = vmatprep.mubr.f32.mxu0 0.0
      %2652 = vmatmul.mubr.f32.gmra.mrb[0].mxu0 %v2468
      %v2653 = vpop.f32.mrb[0].mxu0
      %v2654 = vadd.f32 0.0, %v2653
      %v2655 = vpop.f32.mrb[0].mxu0
      %2656 = vmatprep.mubr.f32.mxu0 0.0
      %2657 = vmatmul.mubr.f32.gmra.mrb[0].mxu0 %v2471
      %v2658 = vpop.f32.mrb[0].mxu0
      %v2659 = vadd.f32 0.0, %v2658
      %v2660 = vpop.f32.mrb[0].mxu0
      %2661 = vmatprep.mubr.f32.mxu0 0.0
      %2662 = vmatmul.mubr.f32.gmra.mrb[0].mxu0 %v2474
      %v2663 = vpop.f32.mrb[0].mxu0
      %v2664 = vadd.f32 0.0, %v2663
      %v2665 = vpop.f32.mrb[0].mxu0
      %2666 = vmatprep.mubr.f32.mxu0 0.0
      %2667 = vmatmul.mubr.f32.gmra.mrb[0].mxu0 %v2477
      %v2668 = vpop.f32.mrb[0].mxu0
      %v2669 = vadd.f32 0.0, %v2668
      %v2670 = vpop.f32.mrb[0].mxu0
      %2671 = vmatprep.mubr.f32.mxu0 0.0
      %2672 = vmatmul.mubr.f32.gmra.mrb[0].mxu0 %v2480
      %v2673 = vpop.f32.mrb[0].mxu0
      %v2674 = vadd.f32 0.0, %v2673
      %v2675 = vpop.f32.mrb[0].mxu0
      %2676 = vmatprep.mubr.f32.mxu0 0.0
      %2677 = vmatmul.mubr.f32.gmra.mrb[0].mxu0 %v2483
      %v2678 = vpop.f32.mrb[0].mxu0
      %v2679 = vadd.f32 0.0, %v2678
      %v2680 = vpop.f32.mrb[0].mxu0
      %2681 = vmatprep.mubr.f32.mxu0 0.0
      %2682 = vmatmul.mubr.f32.gmra.mrb[0].mxu0 %v2486
      %v2683 = vpop.f32.mrb[0].mxu0
      %v2684 = vadd.f32 0.0, %v2683
      %v2685 = vpop.f32.mrb[0].mxu0
      %2686 = vmatprep.mubr.f32.mxu0 0.0
      %2687 = vmatmul.mubr.f32.gmra.mrb[0].mxu0 %v2489
      %v2688 = vpop.f32.mrb[0].mxu0
      %v2689 = vadd.f32 0.0, %v2688
      %v2690 = vpop.f32.mrb[0].mxu0
      %2691 = vmatprep.mubr.f32.mxu0 0.0
      %2692 = vmatmul.mubr.f32.gmra.mrb[0].mxu0 %v2492
      %v2693 = vpop.f32.mrb[0].mxu0
      %v2694 = vadd.f32 0.0, %v2693
      %v2695 = vpop.f32.mrb[0].mxu0
      %2696 = vmatprep.mubr.f32.mxu0 0.0
      %2697 = vmatmul.mubr.f32.gmra.mrb[0].mxu0 %v2495
      %v2698 = vpop.f32.mrb[0].mxu0
      %v2699 = vadd.f32 0.0, %v2698
      %v2700 = vpop.f32.mrb[0].mxu0
      %2701 = vmatprep.mubr.f32.mxu0 0.0
      %2702 = vmatmul.mubr.f32.gmra.mrb[0].mxu0 %v2498
      %v2703 = vpop.f32.mrb[0].mxu0
      %v2704 = vadd.f32 0.0, %v2703
      %v2705 = vpop.f32.mrb[0].mxu0
      %2706 = vmatprep.mubr.f32.mxu0 0.0
      %2707 = vmatmul.mubr.f32.gmra.mrb[0].mxu0 %v2501
      %v2708 = vpop.f32.mrb[0].mxu0
      %v2709 = vadd.f32 0.0, %v2708
      %v2710 = vpop.f32.mrb[0].mxu0
      %2711 = vmatprep.mubr.f32.mxu0 0.0
      %2712 = vmatmul.mubr.f32.gmra.mrb[0].mxu0 %v2504
      %v2713 = vpop.f32.mrb[0].mxu0
      %v2714 = vadd.f32 0.0, %v2713
      %v2715 = vpop.f32.mrb[0].mxu0
      %2716 = vmatprep.mubr.f32.mxu0 0.0
      %2717 = vmatmul.mubr.f32.gmra.mrb[0].mxu0 %v2507
      %v2718 = vpop.f32.mrb[0].mxu0
      %v2719 = vadd.f32 0.0, %v2718
      %v2720 = vpop.f32.mrb[0].mxu0
      %2721 = vmatprep.mubr.f32.mxu0 0.0
      %2722 = vmatmul.mubr.f32.gmra.mrb[0].mxu0 %v2510
      %v2723 = vpop.f32.mrb[0].mxu0
      %v2724 = vadd.f32 0.0, %v2723
      %v2725 = vpop.f32.mrb[0].mxu0
      %2726 = vmatprep.mubr.f32.mxu0 0.0
      %2727 = vmatmul.mubr.f32.gmra.mrb[0].mxu0 %v2513
      %v2728 = vpop.f32.mrb[0].mxu0
      %v2729 = vadd.f32 0.0, %v2728
      %v2730 = vpop.f32.mrb[0].mxu0
      %2731 = vmatprep.mubr.f32.mxu0 0.0
      %2732 = vmatmul.mubr.f32.gmra.mrb[0].mxu0 %v2516
      %v2733 = vpop.f32.mrb[0].mxu0
      %v2734 = vadd.f32 0.0, %v2733
      %v2735 = vpop.f32.mrb[0].mxu0
      %2736 = vmatprep.mubr.f32.mxu0 0.0
      %2737 = vmatmul.mubr.f32.gmra.mrb[0].mxu0 %v2519
      %v2738 = vpop.f32.mrb[0].mxu0
      %v2739 = vadd.f32 0.0, %v2738
      %v2740 = vpop.f32.mrb[0].mxu0
      %2741 = vmatprep.mubr.f32.mxu0 0.0
      %2742 = vmatmul.mubr.f32.gmra.mrb[0].mxu0 %v2522
      %v2743 = vpop.f32.mrb[0].mxu0
      %v2744 = vadd.f32 0.0, %v2743
      %v2745 = vpop.f32.mrb[0].mxu0
      %2746 = vmatprep.mubr.f32.mxu0 0.0
      %2747 = vmatmul.mubr.f32.gmra.mrb[0].mxu0 %v2525
      %v2748 = vpop.f32.mrb[0].mxu0
      %v2749 = vadd.f32 0.0, %v2748
      %v2750 = vpop.f32.mrb[0].mxu0
      %2751 = vdwg.mxu0
      %v2752 = vadd.f32 %v2365, %v2594
      %v2753 = vadd.f32 %v2366, %v2599
      %v2754 = vadd.f32 %v2367, %v2604
      %v2755 = vadd.f32 %v2368, %v2609
      %v2756 = vadd.f32 %v2369, %v2614
      %v2757 = vadd.f32 %v2370, %v2619
      %v2758 = vadd.f32 %v2371, %v2624
      %v2759 = vadd.f32 %v2372, %v2629
      %v2760 = vadd.f32 %v2373, %v2634
      %v2761 = vadd.f32 %v2374, %v2639
      %v2762 = vadd.f32 %v2375, %v2644
      %v2763 = vadd.f32 %v2376, %v2649
      %v2764 = vadd.f32 %v2377, %v2654
      %v2765 = vadd.f32 %v2378, %v2659
      %v2766 = vadd.f32 %v2379, %v2664
      %v2767 = vadd.f32 %v2380, %v2669
      %v2768 = vadd.f32 %v2381, %v2674
      %v2769 = vadd.f32 %v2382, %v2679
      %v2770 = vadd.f32 %v2383, %v2684
      %v2771 = vadd.f32 %v2384, %v2689
      %v2772 = vadd.f32 %v2385, %v2694
      %v2773 = vadd.f32 %v2386, %v2699
      %v2774 = vadd.f32 %v2387, %v2704
      %v2775 = vadd.f32 %v2388, %v2709
      %v2776 = vadd.f32 %v2389, %v2714
      %v2777 = vadd.f32 %v2390, %v2719
      %v2778 = vadd.f32 %v2391, %v2724
      %v2779 = vadd.f32 %v2392, %v2729
      %v2780 = vadd.f32 %v2393, %v2734
      %v2781 = vadd.f32 %v2394, %v2739
      %v2782 = vadd.f32 %v2395, %v2744
      %v2783 = vadd.f32 %v2396, %v2749
      %s2784 = scalar_lea.vmem [#allocation2], 48
      %v2785 = vld [vmem:[%s2784] sm:$0xff]
      %v2786 = vld [vmem:[%s2784 + $0x8] sm:$0xff]
      %v2787 = vld [vmem:[%s2784 + $0x18] sm:$0xff]
      %v2788 = vld [vmem:[%s2784 + $0x20] sm:$0xff]
      %v2789 = vld [vmem:[%s2784 + $0x30] sm:$0xff]
      %v2790 = vld [vmem:[%s2784 + $0x38] sm:$0xff]
      %v2791 = vld [vmem:[%s2784 + $0x48] sm:$0xff]
      %v2792 = vld [vmem:[%s2784 + $0x50] sm:$0xff]
      %v2793 = vld [vmem:[%s2784 + $0x60] sm:$0xff]
      %v2794 = vld [vmem:[%s2784 + $0x68] sm:$0xff]
      %v2795 = vld [vmem:[%s2784 + $0x78] sm:$0xff]
      %v2796 = vld [vmem:[%s2784 + $0x80] sm:$0xff]
      %v2797 = vld [vmem:[%s2784 + $0x90] sm:$0xff]
      %v2798 = vld [vmem:[%s2784 + $0x98] sm:$0xff]
      %v2799 = vld [vmem:[%s2784 + $0xa8] sm:$0xff]
      %v2800 = vld [vmem:[%s2784 + $0xb0] sm:$0xff]
      %v2801 = vld [vmem:[%s2784 + $0xc0] sm:$0xff]
      %v2802 = vld [vmem:[%s2784 + $0xc8] sm:$0xff]
      %v2803 = vld [vmem:[%s2784 + $0xd8] sm:$0xff]
      %v2804 = vld [vmem:[%s2784 + $0xe0] sm:$0xff]
      %v2805 = vld [vmem:[%s2784 + $0xf0] sm:$0xff]
      %v2806 = vld [vmem:[%s2784 + $0xf8] sm:$0xff]
      %v2807 = vld [vmem:[%s2784 + $0x108] sm:$0xff]
      %v2808 = vld [vmem:[%s2784 + $0x110] sm:$0xff]
      %v2809 = vld [vmem:[%s2784 + $0x120] sm:$0xff]
      %v2810 = vld [vmem:[%s2784 + $0x128] sm:$0xff]
      %v2811 = vld [vmem:[%s2784 + $0x138] sm:$0xff]
      %v2812 = vld [vmem:[%s2784 + $0x140] sm:$0xff]
      %v2813 = vld [vmem:[%s2784 + $0x150] sm:$0xff]
      %v2814 = vld [vmem:[%s2784 + $0x158] sm:$0xff]
      %v2815 = vld [vmem:[%s2784 + $0x168] sm:$0xff]
      %v2816 = vld [vmem:[%s2784 + $0x170] sm:$0xff]
      %s2817 = scalar_lea.vmem %s1, 48
      %v2818 = vld [vmem:[%s2817] sm:$0xff]
      %v2820 = vsel %vm438, %v2785, 0
      %v2823 = vsel %vm438, %v2786, 0
      %v2826 = vsel %vm438, %v2787, 0
      %v2829 = vsel %vm438, %v2788, 0
      %v2832 = vsel %vm438, %v2789, 0
      %v2835 = vsel %vm438, %v2790, 0
      %v2838 = vsel %vm438, %v2791, 0
      %v2841 = vsel %vm438, %v2792, 0
      %v2844 = vsel %vm438, %v2793, 0
      %v2847 = vsel %vm438, %v2794, 0
      %v2850 = vsel %vm438, %v2795, 0
      %v2853 = vsel %vm438, %v2796, 0
      %v2856 = vsel %vm438, %v2797, 0
      %v2859 = vsel %vm438, %v2798, 0
      %v2862 = vsel %vm438, %v2799, 0
      %v2865 = vsel %vm438, %v2800, 0
      %v2868 = vsel %vm438, %v2801, 0
      %v2871 = vsel %vm438, %v2802, 0
      %v2874 = vsel %vm438, %v2803, 0
      %v2877 = vsel %vm438, %v2804, 0
      %v2880 = vsel %vm438, %v2805, 0
      %v2883 = vsel %vm438, %v2806, 0
      %v2886 = vsel %vm438, %v2807, 0
      %v2889 = vsel %vm438, %v2808, 0
      %v2892 = vsel %vm438, %v2809, 0
      %v2895 = vsel %vm438, %v2810, 0
      %v2898 = vsel %vm438, %v2811, 0
      %v2901 = vsel %vm438, %v2812, 0
      %v2904 = vsel %vm438, %v2813, 0
      %v2907 = vsel %vm438, %v2814, 0
      %v2910 = vsel %vm438, %v2815, 0
      %v2913 = vsel %vm438, %v2816, 0
      %2915 = vmatprep.subr.mxu0 0.0
      %2916 = vmatpush1.msra.mxu0 %v2818
      %2917 = vmatprep.subr.mxu0 0.0
      %2918 = vmatpush1.msra.mxu0 0.0
      %2919 = vmatprep.subr.mxu0 0.0
      %2920 = vmatpush1.msra.mxu0 0.0
      %2921 = vmatprep.subr.mxu0 0.0
      %2922 = vmatpush1.msra.mxu0 0.0
      %2923 = vmatprep.subr.mxu0 0.0
      %2924 = vmatpush1.msra.mxu0 0.0
      %2925 = vmatprep.subr.mxu0 0.0
      %2926 = vmatpush1.msra.mxu0 0.0
      %2927 = vmatprep.subr.mxu0 0.0
      %2928 = vmatpush1.msra.mxu0 0.0
      %2929 = vmatprep.subr.mxu0 0.0
      %2930 = vmatpush1.msra.mxu0 0.0
      %2931 = vmatprep.subr.mxu0 0.0
      %2932 = vmatpush1.msra.mxu0 0.0
      %2933 = vmatprep.subr.mxu0 0.0
      %2934 = vmatpush1.msra.mxu0 0.0
      %2935 = vmatprep.subr.mxu0 0.0
      %2936 = vmatpush1.msra.mxu0 0.0
      %2937 = vmatprep.subr.mxu0 0.0
      %2938 = vmatpush1.msra.mxu0 0.0
      %2939 = vmatprep.subr.mxu0 0.0
      %2940 = vmatpush1.msra.mxu0 0.0
      %2941 = vmatprep.subr.mxu0 0.0
      %2942 = vmatpush1.msra.mxu0 0.0
      %2943 = vmatprep.subr.mxu0 0.0
      %2944 = vmatpush1.msra.mxu0 0.0
      %2945 = vmatprep.subr.mxu0 0.0
      %2946 = vmatpush1.msra.mxu0 0.0
      %2947 = vmatprep.subr.mxu0 0.0
      %2948 = vmatpush1.msra.mxu0 0.0
      %2949 = vmatprep.subr.mxu0 0.0
      %2950 = vmatpush1.msra.mxu0 0.0
      %2951 = vmatprep.subr.mxu0 0.0
      %2952 = vmatpush1.msra.mxu0 0.0
      %2953 = vmatprep.subr.mxu0 0.0
      %2954 = vmatpush1.msra.mxu0 0.0
      %2955 = vmatprep.subr.mxu0 0.0
      %2956 = vmatpush1.msra.mxu0 0.0
      %2957 = vmatprep.subr.mxu0 0.0
      %2958 = vmatpush1.msra.mxu0 0.0
      %2959 = vmatprep.subr.mxu0 0.0
      %2960 = vmatpush1.msra.mxu0 0.0
      %2961 = vmatprep.subr.mxu0 0.0
      %2962 = vmatpush1.msra.mxu0 0.0
      %2963 = vmatprep.subr.mxu0 0.0
      %2964 = vmatpush1.msra.mxu0 0.0
      %2965 = vmatprep.subr.mxu0 0.0
      %2966 = vmatpush1.msra.mxu0 0.0
      %2967 = vmatprep.subr.mxu0 0.0
      %2968 = vmatpush1.msra.mxu0 0.0
      %2969 = vmatprep.subr.mxu0 0.0
      %2970 = vmatpush1.msra.mxu0 0.0
      %2971 = vmatprep.subr.mxu0 0.0
      %2972 = vmatpush1.msra.mxu0 0.0
      %2973 = vmatprep.subr.mxu0 0.0
      %2974 = vmatpush1.msra.mxu0 0.0
      %2975 = vmatprep.subr.mxu0 0.0
      %2976 = vmatpush1.msra.mxu0 0.0
      %2977 = vmatprep.subr.mxu0 0.0
      %2978 = vmatpush1.msra.mxu0 0.0
      %2979 = vmatprep.mubr.f32.mxu0 0.0
      %2980 = vmatmul.mubr.f32.gmra.mrb[0].mxu0 %v2820
      %v2981 = vpop.f32.mrb[0].mxu0
      %v2982 = vadd.f32 0.0, %v2981
      %v2983 = vpop.f32.mrb[0].mxu0
      %2984 = vmatprep.mubr.f32.mxu0 0.0
      %2985 = vmatmul.mubr.f32.gmra.mrb[0].mxu0 %v2823
      %v2986 = vpop.f32.mrb[0].mxu0
      %v2987 = vadd.f32 0.0, %v2986
      %v2988 = vpop.f32.mrb[0].mxu0
      %2989 = vmatprep.mubr.f32.mxu0 0.0
      %2990 = vmatmul.mubr.f32.gmra.mrb[0].mxu0 %v2826
      %v2991 = vpop.f32.mrb[0].mxu0
      %v2992 = vadd.f32 0.0, %v2991
      %v2993 = vpop.f32.mrb[0].mxu0
      %2994 = vmatprep.mubr.f32.mxu0 0.0
      %2995 = vmatmul.mubr.f32.gmra.mrb[0].mxu0 %v2829
      %v2996 = vpop.f32.mrb[0].mxu0
      %v2997 = vadd.f32 0.0, %v2996
      %v2998 = vpop.f32.mrb[0].mxu0
      %2999 = vmatprep.mubr.f32.mxu0 0.0
      %3000 = vmatmul.mubr.f32.gmra.mrb[0].mxu0 %v2832
      %v3001 = vpop.f32.mrb[0].mxu0
      %v3002 = vadd.f32 0.0, %v3001
      %v3003 = vpop.f32.mrb[0].mxu0
      %3004 = vmatprep.mubr.f32.mxu0 0.0
      %3005 = vmatmul.mubr.f32.gmra.mrb[0].mxu0 %v2835
      %v3006 = vpop.f32.mrb[0].mxu0
      %v3007 = vadd.f32 0.0, %v3006
      %v3008 = vpop.f32.mrb[0].mxu0
      %3009 = vmatprep.mubr.f32.mxu0 0.0
      %3010 = vmatmul.mubr.f32.gmra.mrb[0].mxu0 %v2838
      %v3011 = vpop.f32.mrb[0].mxu0
      %v3012 = vadd.f32 0.0, %v3011
      %v3013 = vpop.f32.mrb[0].mxu0
      %3014 = vmatprep.mubr.f32.mxu0 0.0
      %3015 = vmatmul.mubr.f32.gmra.mrb[0].mxu0 %v2841
      %v3016 = vpop.f32.mrb[0].mxu0
      %v3017 = vadd.f32 0.0, %v3016
      %v3018 = vpop.f32.mrb[0].mxu0
      %3019 = vmatprep.mubr.f32.mxu0 0.0
      %3020 = vmatmul.mubr.f32.gmra.mrb[0].mxu0 %v2844
      %v3021 = vpop.f32.mrb[0].mxu0
      %v3022 = vadd.f32 0.0, %v3021
      %v3023 = vpop.f32.mrb[0].mxu0
      %3024 = vmatprep.mubr.f32.mxu0 0.0
      %3025 = vmatmul.mubr.f32.gmra.mrb[0].mxu0 %v2847
      %v3026 = vpop.f32.mrb[0].mxu0
      %v3027 = vadd.f32 0.0, %v3026
      %v3028 = vpop.f32.mrb[0].mxu0
      %3029 = vmatprep.mubr.f32.mxu0 0.0
      %3030 = vmatmul.mubr.f32.gmra.mrb[0].mxu0 %v2850
      %v3031 = vpop.f32.mrb[0].mxu0
      %v3032 = vadd.f32 0.0, %v3031
      %v3033 = vpop.f32.mrb[0].mxu0
      %3034 = vmatprep.mubr.f32.mxu0 0.0
      %3035 = vmatmul.mubr.f32.gmra.mrb[0].mxu0 %v2853
      %v3036 = vpop.f32.mrb[0].mxu0
      %v3037 = vadd.f32 0.0, %v3036
      %v3038 = vpop.f32.mrb[0].mxu0
      %3039 = vmatprep.mubr.f32.mxu0 0.0
      %3040 = vmatmul.mubr.f32.gmra.mrb[0].mxu0 %v2856
      %v3041 = vpop.f32.mrb[0].mxu0
      %v3042 = vadd.f32 0.0, %v3041
      %v3043 = vpop.f32.mrb[0].mxu0
      %3044 = vmatprep.mubr.f32.mxu0 0.0
      %3045 = vmatmul.mubr.f32.gmra.mrb[0].mxu0 %v2859
      %v3046 = vpop.f32.mrb[0].mxu0
      %v3047 = vadd.f32 0.0, %v3046
      %v3048 = vpop.f32.mrb[0].mxu0
      %3049 = vmatprep.mubr.f32.mxu0 0.0
      %3050 = vmatmul.mubr.f32.gmra.mrb[0].mxu0 %v2862
      %v3051 = vpop.f32.mrb[0].mxu0
      %v3052 = vadd.f32 0.0, %v3051
      %v3053 = vpop.f32.mrb[0].mxu0
      %3054 = vmatprep.mubr.f32.mxu0 0.0
      %3055 = vmatmul.mubr.f32.gmra.mrb[0].mxu0 %v2865
      %v3056 = vpop.f32.mrb[0].mxu0
      %v3057 = vadd.f32 0.0, %v3056
      %v3058 = vpop.f32.mrb[0].mxu0
      %3059 = vmatprep.mubr.f32.mxu0 0.0
      %3060 = vmatmul.mubr.f32.gmra.mrb[0].mxu0 %v2868
      %v3061 = vpop.f32.mrb[0].mxu0
      %v3062 = vadd.f32 0.0, %v3061
      %v3063 = vpop.f32.mrb[0].mxu0
      %3064 = vmatprep.mubr.f32.mxu0 0.0
      %3065 = vmatmul.mubr.f32.gmra.mrb[0].mxu0 %v2871
      %v3066 = vpop.f32.mrb[0].mxu0
      %v3067 = vadd.f32 0.0, %v3066
      %v3068 = vpop.f32.mrb[0].mxu0
      %3069 = vmatprep.mubr.f32.mxu0 0.0
      %3070 = vmatmul.mubr.f32.gmra.mrb[0].mxu0 %v2874
      %v3071 = vpop.f32.mrb[0].mxu0
      %v3072 = vadd.f32 0.0, %v3071
      %v3073 = vpop.f32.mrb[0].mxu0
      %3074 = vmatprep.mubr.f32.mxu0 0.0
      %3075 = vmatmul.mubr.f32.gmra.mrb[0].mxu0 %v2877
      %v3076 = vpop.f32.mrb[0].mxu0
      %v3077 = vadd.f32 0.0, %v3076
      %v3078 = vpop.f32.mrb[0].mxu0
      %3079 = vmatprep.mubr.f32.mxu0 0.0
      %3080 = vmatmul.mubr.f32.gmra.mrb[0].mxu0 %v2880
      %v3081 = vpop.f32.mrb[0].mxu0
      %v3082 = vadd.f32 0.0, %v3081
      %v3083 = vpop.f32.mrb[0].mxu0
      %3084 = vmatprep.mubr.f32.mxu0 0.0
      %3085 = vmatmul.mubr.f32.gmra.mrb[0].mxu0 %v2883
      %v3086 = vpop.f32.mrb[0].mxu0
      %v3087 = vadd.f32 0.0, %v3086
      %v3088 = vpop.f32.mrb[0].mxu0
      %3089 = vmatprep.mubr.f32.mxu0 0.0
      %3090 = vmatmul.mubr.f32.gmra.mrb[0].mxu0 %v2886
      %v3091 = vpop.f32.mrb[0].mxu0
      %v3092 = vadd.f32 0.0, %v3091
      %v3093 = vpop.f32.mrb[0].mxu0
      %3094 = vmatprep.mubr.f32.mxu0 0.0
      %3095 = vmatmul.mubr.f32.gmra.mrb[0].mxu0 %v2889
      %v3096 = vpop.f32.mrb[0].mxu0
      %v3097 = vadd.f32 0.0, %v3096
      %v3098 = vpop.f32.mrb[0].mxu0
      %3099 = vmatprep.mubr.f32.mxu0 0.0
      %3100 = vmatmul.mubr.f32.gmra.mrb[0].mxu0 %v2892
      %v3101 = vpop.f32.mrb[0].mxu0
      %v3102 = vadd.f32 0.0, %v3101
      %v3103 = vpop.f32.mrb[0].mxu0
      %3104 = vmatprep.mubr.f32.mxu0 0.0
      %3105 = vmatmul.mubr.f32.gmra.mrb[0].mxu0 %v2895
      %v3106 = vpop.f32.mrb[0].mxu0
      %v3107 = vadd.f32 0.0, %v3106
      %v3108 = vpop.f32.mrb[0].mxu0
      %3109 = vmatprep.mubr.f32.mxu0 0.0
      %3110 = vmatmul.mubr.f32.gmra.mrb[0].mxu0 %v2898
      %v3111 = vpop.f32.mrb[0].mxu0
      %v3112 = vadd.f32 0.0, %v3111
      %v3113 = vpop.f32.mrb[0].mxu0
      %3114 = vmatprep.mubr.f32.mxu0 0.0
      %3115 = vmatmul.mubr.f32.gmra.mrb[0].mxu0 %v2901
      %v3116 = vpop.f32.mrb[0].mxu0
      %v3117 = vadd.f32 0.0, %v3116
      %v3118 = vpop.f32.mrb[0].mxu0
      %3119 = vmatprep.mubr.f32.mxu0 0.0
      %3120 = vmatmul.mubr.f32.gmra.mrb[0].mxu0 %v2904
      %v3121 = vpop.f32.mrb[0].mxu0
      %v3122 = vadd.f32 0.0, %v3121
      %v3123 = vpop.f32.mrb[0].mxu0
      %3124 = vmatprep.mubr.f32.mxu0 0.0
      %3125 = vmatmul.mubr.f32.gmra.mrb[0].mxu0 %v2907
      %v3126 = vpop.f32.mrb[0].mxu0
      %v3127 = vadd.f32 0.0, %v3126
      %v3128 = vpop.f32.mrb[0].mxu0
      %3129 = vmatprep.mubr.f32.mxu0 0.0
      %3130 = vmatmul.mubr.f32.gmra.mrb[0].mxu0 %v2910
      %v3131 = vpop.f32.mrb[0].mxu0
      %v3132 = vadd.f32 0.0, %v3131
      %v3133 = vpop.f32.mrb[0].mxu0
      %3134 = vmatprep.mubr.f32.mxu0 0.0
      %3135 = vmatmul.mubr.f32.gmra.mrb[0].mxu0 %v2913
      %v3136 = vpop.f32.mrb[0].mxu0
      %v3137 = vadd.f32 0.0, %v3136
      %v3138 = vpop.f32.mrb[0].mxu0
      %3139 = vdwg.mxu0
      %v3140 = vadd.f32 %v2752, %v2982
      %v3141 = vadd.f32 %v2753, %v2987
      %v3142 = vadd.f32 %v2754, %v2992
      %v3143 = vadd.f32 %v2755, %v2997
      %v3144 = vadd.f32 %v2756, %v3002
      %v3145 = vadd.f32 %v2757, %v3007
      %v3146 = vadd.f32 %v2758, %v3012
      %v3147 = vadd.f32 %v2759, %v3017
      %v3148 = vadd.f32 %v2760, %v3022
      %v3149 = vadd.f32 %v2761, %v3027
      %v3150 = vadd.f32 %v2762, %v3032
      %v3151 = vadd.f32 %v2763, %v3037
      %v3152 = vadd.f32 %v2764, %v3042
      %v3153 = vadd.f32 %v2765, %v3047
      %v3154 = vadd.f32 %v2766, %v3052
      %v3155 = vadd.f32 %v2767, %v3057
      %v3156 = vadd.f32 %v2768, %v3062
      %v3157 = vadd.f32 %v2769, %v3067
      %v3158 = vadd.f32 %v2770, %v3072
      %v3159 = vadd.f32 %v2771, %v3077
      %v3160 = vadd.f32 %v2772, %v3082
      %v3161 = vadd.f32 %v2773, %v3087
      %v3162 = vadd.f32 %v2774, %v3092
      %v3163 = vadd.f32 %v2775, %v3097
      %v3164 = vadd.f32 %v2776, %v3102
      %v3165 = vadd.f32 %v2777, %v3107
      %v3166 = vadd.f32 %v2778, %v3112
      %v3167 = vadd.f32 %v2779, %v3117
      %v3168 = vadd.f32 %v2780, %v3122
      %v3169 = vadd.f32 %v2781, %v3127
      %v3170 = vadd.f32 %v2782, %v3132
      %v3171 = vadd.f32 %v2783, %v3137
      %v3172 = vld [vmem:[%s2784 + $0x1] sm:$0xff]
      %v3173 = vld [vmem:[%s2784 + $0x9] sm:$0xff]
      %v3174 = vld [vmem:[%s2784 + $0x19] sm:$0xff]
      %v3175 = vld [vmem:[%s2784 + $0x21] sm:$0xff]
      %v3176 = vld [vmem:[%s2784 + $0x31] sm:$0xff]
      %v3177 = vld [vmem:[%s2784 + $0x39] sm:$0xff]
      %v3178 = vld [vmem:[%s2784 + $0x49] sm:$0xff]
      %v3179 = vld [vmem:[%s2784 + $0x51] sm:$0xff]
      %v3180 = vld [vmem:[%s2784 + $0x61] sm:$0xff]
      %v3181 = vld [vmem:[%s2784 + $0x69] sm:$0xff]
      %v3182 = vld [vmem:[%s2784 + $0x79] sm:$0xff]
      %v3183 = vld [vmem:[%s2784 + $0x81] sm:$0xff]
      %v3184 = vld [vmem:[%s2784 + $0x91] sm:$0xff]
      %v3185 = vld [vmem:[%s2784 + $0x99] sm:$0xff]
      %v3186 = vld [vmem:[%s2784 + $0xa9] sm:$0xff]
      %v3187 = vld [vmem:[%s2784 + $0xb1] sm:$0xff]
      %v3188 = vld [vmem:[%s2784 + $0xc1] sm:$0xff]
      %v3189 = vld [vmem:[%s2784 + $0xc9] sm:$0xff]
      %v3190 = vld [vmem:[%s2784 + $0xd9] sm:$0xff]
      %v3191 = vld [vmem:[%s2784 + $0xe1] sm:$0xff]
      %v3192 = vld [vmem:[%s2784 + $0xf1] sm:$0xff]
      %v3193 = vld [vmem:[%s2784 + $0xf9] sm:$0xff]
      %v3194 = vld [vmem:[%s2784 + $0x109] sm:$0xff]
      %v3195 = vld [vmem:[%s2784 + $0x111] sm:$0xff]
      %v3196 = vld [vmem:[%s2784 + $0x121] sm:$0xff]
      %v3197 = vld [vmem:[%s2784 + $0x129] sm:$0xff]
      %v3198 = vld [vmem:[%s2784 + $0x139] sm:$0xff]
      %v3199 = vld [vmem:[%s2784 + $0x141] sm:$0xff]
      %v3200 = vld [vmem:[%s2784 + $0x151] sm:$0xff]
      %v3201 = vld [vmem:[%s2784 + $0x159] sm:$0xff]
      %v3202 = vld [vmem:[%s2784 + $0x169] sm:$0xff]
      %v3203 = vld [vmem:[%s2784 + $0x171] sm:$0xff]
      %s3204 = scalar_lea.vmem %s1, 56
      %v3205 = vld [vmem:[%s3204] sm:$0xff]
      %v3207 = vsel %vm438, %v3172, 0
      %v3210 = vsel %vm438, %v3173, 0
      %v3213 = vsel %vm438, %v3174, 0
      %v3216 = vsel %vm438, %v3175, 0
      %v3219 = vsel %vm438, %v3176, 0
      %v3222 = vsel %vm438, %v3177, 0
      %v3225 = vsel %vm438, %v3178, 0
      %v3228 = vsel %vm438, %v3179, 0
      %v3231 = vsel %vm438, %v3180, 0
      %v3234 = vsel %vm438, %v3181, 0
      %v3237 = vsel %vm438, %v3182, 0
      %v3240 = vsel %vm438, %v3183, 0
      %v3243 = vsel %vm438, %v3184, 0
      %v3246 = vsel %vm438, %v3185, 0
      %v3249 = vsel %vm438, %v3186, 0
      %v3252 = vsel %vm438, %v3187, 0
      %v3255 = vsel %vm438, %v3188, 0
      %v3258 = vsel %vm438, %v3189, 0
      %v3261 = vsel %vm438, %v3190, 0
      %v3264 = vsel %vm438, %v3191, 0
      %v3267 = vsel %vm438, %v3192, 0
      %v3270 = vsel %vm438, %v3193, 0
      %v3273 = vsel %vm438, %v3194, 0
      %v3276 = vsel %vm438, %v3195, 0
      %v3279 = vsel %vm438, %v3196, 0
      %v3282 = vsel %vm438, %v3197, 0
      %v3285 = vsel %vm438, %v3198, 0
      %v3288 = vsel %vm438, %v3199, 0
      %v3291 = vsel %vm438, %v3200, 0
      %v3294 = vsel %vm438, %v3201, 0
      %v3297 = vsel %vm438, %v3202, 0
      %v3300 = vsel %vm438, %v3203, 0
      %3302 = vmatprep.subr.mxu0 0.0
      %3303 = vmatpush1.msra.mxu0 %v3205
      %3304 = vmatprep.subr.mxu0 0.0
      %3305 = vmatpush1.msra.mxu0 0.0
      %3306 = vmatprep.subr.mxu0 0.0
      %3307 = vmatpush1.msra.mxu0 0.0
      %3308 = vmatprep.subr.mxu0 0.0
      %3309 = vmatpush1.msra.mxu0 0.0
      %3310 = vmatprep.subr.mxu0 0.0
      %3311 = vmatpush1.msra.mxu0 0.0
      %3312 = vmatprep.subr.mxu0 0.0
      %3313 = vmatpush1.msra.mxu0 0.0
      %3314 = vmatprep.subr.mxu0 0.0
      %3315 = vmatpush1.msra.mxu0 0.0
      %3316 = vmatprep.subr.mxu0 0.0
      %3317 = vmatpush1.msra.mxu0 0.0
      %3318 = vmatprep.subr.mxu0 0.0
      %3319 = vmatpush1.msra.mxu0 0.0
      %3320 = vmatprep.subr.mxu0 0.0
      %3321 = vmatpush1.msra.mxu0 0.0
      %3322 = vmatprep.subr.mxu0 0.0
      %3323 = vmatpush1.msra.mxu0 0.0
      %3324 = vmatprep.subr.mxu0 0.0
      %3325 = vmatpush1.msra.mxu0 0.0
      %3326 = vmatprep.subr.mxu0 0.0
      %3327 = vmatpush1.msra.mxu0 0.0
      %3328 = vmatprep.subr.mxu0 0.0
      %3329 = vmatpush1.msra.mxu0 0.0
      %3330 = vmatprep.subr.mxu0 0.0
      %3331 = vmatpush1.msra.mxu0 0.0
      %3332 = vmatprep.subr.mxu0 0.0
      %3333 = vmatpush1.msra.mxu0 0.0
      %3334 = vmatprep.subr.mxu0 0.0
      %3335 = vmatpush1.msra.mxu0 0.0
      %3336 = vmatprep.subr.mxu0 0.0
      %3337 = vmatpush1.msra.mxu0 0.0
      %3338 = vmatprep.subr.mxu0 0.0
      %3339 = vmatpush1.msra.mxu0 0.0
      %3340 = vmatprep.subr.mxu0 0.0
      %3341 = vmatpush1.msra.mxu0 0.0
      %3342 = vmatprep.subr.mxu0 0.0
      %3343 = vmatpush1.msra.mxu0 0.0
      %3344 = vmatprep.subr.mxu0 0.0
      %3345 = vmatpush1.msra.mxu0 0.0
      %3346 = vmatprep.subr.mxu0 0.0
      %3347 = vmatpush1.msra.mxu0 0.0
      %3348 = vmatprep.subr.mxu0 0.0
      %3349 = vmatpush1.msra.mxu0 0.0
      %3350 = vmatprep.subr.mxu0 0.0
      %3351 = vmatpush1.msra.mxu0 0.0
      %3352 = vmatprep.subr.mxu0 0.0
      %3353 = vmatpush1.msra.mxu0 0.0
      %3354 = vmatprep.subr.mxu0 0.0
      %3355 = vmatpush1.msra.mxu0 0.0
      %3356 = vmatprep.subr.mxu0 0.0
      %3357 = vmatpush1.msra.mxu0 0.0
      %3358 = vmatprep.subr.mxu0 0.0
      %3359 = vmatpush1.msra.mxu0 0.0
      %3360 = vmatprep.subr.mxu0 0.0
      %3361 = vmatpush1.msra.mxu0 0.0
      %3362 = vmatprep.subr.mxu0 0.0
      %3363 = vmatpush1.msra.mxu0 0.0
      %3364 = vmatprep.subr.mxu0 0.0
      %3365 = vmatpush1.msra.mxu0 0.0
      %3366 = vmatprep.mubr.f32.mxu0 0.0
      %3367 = vmatmul.mubr.f32.gmra.mrb[0].mxu0 %v3207
      %v3368 = vpop.f32.mrb[0].mxu0
      %v3369 = vadd.f32 0.0, %v3368
      %v3370 = vpop.f32.mrb[0].mxu0
      %3371 = vmatprep.mubr.f32.mxu0 0.0
      %3372 = vmatmul.mubr.f32.gmra.mrb[0].mxu0 %v3210
      %v3373 = vpop.f32.mrb[0].mxu0
      %v3374 = vadd.f32 0.0, %v3373
      %v3375 = vpop.f32.mrb[0].mxu0
      %3376 = vmatprep.mubr.f32.mxu0 0.0
      %3377 = vmatmul.mubr.f32.gmra.mrb[0].mxu0 %v3213
      %v3378 = vpop.f32.mrb[0].mxu0
      %v3379 = vadd.f32 0.0, %v3378
      %v3380 = vpop.f32.mrb[0].mxu0
      %3381 = vmatprep.mubr.f32.mxu0 0.0
      %3382 = vmatmul.mubr.f32.gmra.mrb[0].mxu0 %v3216
      %v3383 = vpop.f32.mrb[0].mxu0
      %v3384 = vadd.f32 0.0, %v3383
      %v3385 = vpop.f32.mrb[0].mxu0
      %3386 = vmatprep.mubr.f32.mxu0 0.0
      %3387 = vmatmul.mubr.f32.gmra.mrb[0].mxu0 %v3219
      %v3388 = vpop.f32.mrb[0].mxu0
      %v3389 = vadd.f32 0.0, %v3388
      %v3390 = vpop.f32.mrb[0].mxu0
      %3391 = vmatprep.mubr.f32.mxu0 0.0
      %3392 = vmatmul.mubr.f32.gmra.mrb[0].mxu0 %v3222
      %v3393 = vpop.f32.mrb[0].mxu0
      %v3394 = vadd.f32 0.0, %v3393
      %v3395 = vpop.f32.mrb[0].mxu0
      %3396 = vmatprep.mubr.f32.mxu0 0.0
      %3397 = vmatmul.mubr.f32.gmra.mrb[0].mxu0 %v3225
      %v3398 = vpop.f32.mrb[0].mxu0
      %v3399 = vadd.f32 0.0, %v3398
      %v3400 = vpop.f32.mrb[0].mxu0
      %3401 = vmatprep.mubr.f32.mxu0 0.0
      %3402 = vmatmul.mubr.f32.gmra.mrb[0].mxu0 %v3228
      %v3403 = vpop.f32.mrb[0].mxu0
      %v3404 = vadd.f32 0.0, %v3403
      %v3405 = vpop.f32.mrb[0].mxu0
      %3406 = vmatprep.mubr.f32.mxu0 0.0
      %3407 = vmatmul.mubr.f32.gmra.mrb[0].mxu0 %v3231
      %v3408 = vpop.f32.mrb[0].mxu0
      %v3409 = vadd.f32 0.0, %v3408
      %v3410 = vpop.f32.mrb[0].mxu0
      %3411 = vmatprep.mubr.f32.mxu0 0.0
      %3412 = vmatmul.mubr.f32.gmra.mrb[0].mxu0 %v3234
      %v3413 = vpop.f32.mrb[0].mxu0
      %v3414 = vadd.f32 0.0, %v3413
      %v3415 = vpop.f32.mrb[0].mxu0
      %3416 = vmatprep.mubr.f32.mxu0 0.0
      %3417 = vmatmul.mubr.f32.gmra.mrb[0].mxu0 %v3237
      %v3418 = vpop.f32.mrb[0].mxu0
      %v3419 = vadd.f32 0.0, %v3418
      %v3420 = vpop.f32.mrb[0].mxu0
      %3421 = vmatprep.mubr.f32.mxu0 0.0
      %3422 = vmatmul.mubr.f32.gmra.mrb[0].mxu0 %v3240
      %v3423 = vpop.f32.mrb[0].mxu0
      %v3424 = vadd.f32 0.0, %v3423
      %v3425 = vpop.f32.mrb[0].mxu0
      %3426 = vmatprep.mubr.f32.mxu0 0.0
      %3427 = vmatmul.mubr.f32.gmra.mrb[0].mxu0 %v3243
      %v3428 = vpop.f32.mrb[0].mxu0
      %v3429 = vadd.f32 0.0, %v3428
      %v3430 = vpop.f32.mrb[0].mxu0
      %3431 = vmatprep.mubr.f32.mxu0 0.0
      %3432 = vmatmul.mubr.f32.gmra.mrb[0].mxu0 %v3246
      %v3433 = vpop.f32.mrb[0].mxu0
      %v3434 = vadd.f32 0.0, %v3433
      %v3435 = vpop.f32.mrb[0].mxu0
      %3436 = vmatprep.mubr.f32.mxu0 0.0
      %3437 = vmatmul.mubr.f32.gmra.mrb[0].mxu0 %v3249
      %v3438 = vpop.f32.mrb[0].mxu0
      %v3439 = vadd.f32 0.0, %v3438
      %v3440 = vpop.f32.mrb[0].mxu0
      %3441 = vmatprep.mubr.f32.mxu0 0.0
      %3442 = vmatmul.mubr.f32.gmra.mrb[0].mxu0 %v3252
      %v3443 = vpop.f32.mrb[0].mxu0
      %v3444 = vadd.f32 0.0, %v3443
      %v3445 = vpop.f32.mrb[0].mxu0
      %3446 = vmatprep.mubr.f32.mxu0 0.0
      %3447 = vmatmul.mubr.f32.gmra.mrb[0].mxu0 %v3255
      %v3448 = vpop.f32.mrb[0].mxu0
      %v3449 = vadd.f32 0.0, %v3448
      %v3450 = vpop.f32.mrb[0].mxu0
      %3451 = vmatprep.mubr.f32.mxu0 0.0
      %3452 = vmatmul.mubr.f32.gmra.mrb[0].mxu0 %v3258
      %v3453 = vpop.f32.mrb[0].mxu0
      %v3454 = vadd.f32 0.0, %v3453
      %v3455 = vpop.f32.mrb[0].mxu0
      %3456 = vmatprep.mubr.f32.mxu0 0.0
      %3457 = vmatmul.mubr.f32.gmra.mrb[0].mxu0 %v3261
      %v3458 = vpop.f32.mrb[0].mxu0
      %v3459 = vadd.f32 0.0, %v3458
      %v3460 = vpop.f32.mrb[0].mxu0
      %3461 = vmatprep.mubr.f32.mxu0 0.0
      %3462 = vmatmul.mubr.f32.gmra.mrb[0].mxu0 %v3264
      %v3463 = vpop.f32.mrb[0].mxu0
      %v3464 = vadd.f32 0.0, %v3463
      %v3465 = vpop.f32.mrb[0].mxu0
      %3466 = vmatprep.mubr.f32.mxu0 0.0
      %3467 = vmatmul.mubr.f32.gmra.mrb[0].mxu0 %v3267
      %v3468 = vpop.f32.mrb[0].mxu0
      %v3469 = vadd.f32 0.0, %v3468
      %v3470 = vpop.f32.mrb[0].mxu0
      %3471 = vmatprep.mubr.f32.mxu0 0.0
      %3472 = vmatmul.mubr.f32.gmra.mrb[0].mxu0 %v3270
      %v3473 = vpop.f32.mrb[0].mxu0
      %v3474 = vadd.f32 0.0, %v3473
      %v3475 = vpop.f32.mrb[0].mxu0
      %3476 = vmatprep.mubr.f32.mxu0 0.0
      %3477 = vmatmul.mubr.f32.gmra.mrb[0].mxu0 %v3273
      %v3478 = vpop.f32.mrb[0].mxu0
      %v3479 = vadd.f32 0.0, %v3478
      %v3480 = vpop.f32.mrb[0].mxu0
      %3481 = vmatprep.mubr.f32.mxu0 0.0
      %3482 = vmatmul.mubr.f32.gmra.mrb[0].mxu0 %v3276
      %v3483 = vpop.f32.mrb[0].mxu0
      %v3484 = vadd.f32 0.0, %v3483
      %v3485 = vpop.f32.mrb[0].mxu0
      %3486 = vmatprep.mubr.f32.mxu0 0.0
      %3487 = vmatmul.mubr.f32.gmra.mrb[0].mxu0 %v3279
      %v3488 = vpop.f32.mrb[0].mxu0
      %v3489 = vadd.f32 0.0, %v3488
      %v3490 = vpop.f32.mrb[0].mxu0
      %3491 = vmatprep.mubr.f32.mxu0 0.0
      %3492 = vmatmul.mubr.f32.gmra.mrb[0].mxu0 %v3282
      %v3493 = vpop.f32.mrb[0].mxu0
      %v3494 = vadd.f32 0.0, %v3493
      %v3495 = vpop.f32.mrb[0].mxu0
      %3496 = vmatprep.mubr.f32.mxu0 0.0
      %3497 = vmatmul.mubr.f32.gmra.mrb[0].mxu0 %v3285
      %v3498 = vpop.f32.mrb[0].mxu0
      %v3499 = vadd.f32 0.0, %v3498
      %v3500 = vpop.f32.mrb[0].mxu0
      %3501 = vmatprep.mubr.f32.mxu0 0.0
      %3502 = vmatmul.mubr.f32.gmra.mrb[0].mxu0 %v3288
      %v3503 = vpop.f32.mrb[0].mxu0
      %v3504 = vadd.f32 0.0, %v3503
      %v3505 = vpop.f32.mrb[0].mxu0
      %3506 = vmatprep.mubr.f32.mxu0 0.0
      %3507 = vmatmul.mubr.f32.gmra.mrb[0].mxu0 %v3291
      %v3508 = vpop.f32.mrb[0].mxu0
      %v3509 = vadd.f32 0.0, %v3508
      %v3510 = vpop.f32.mrb[0].mxu0
      %3511 = vmatprep.mubr.f32.mxu0 0.0
      %3512 = vmatmul.mubr.f32.gmra.mrb[0].mxu0 %v3294
      %v3513 = vpop.f32.mrb[0].mxu0
      %v3514 = vadd.f32 0.0, %v3513
      %v3515 = vpop.f32.mrb[0].mxu0
      %3516 = vmatprep.mubr.f32.mxu0 0.0
      %3517 = vmatmul.mubr.f32.gmra.mrb[0].mxu0 %v3297
      %v3518 = vpop.f32.mrb[0].mxu0
      %v3519 = vadd.f32 0.0, %v3518
      %v3520 = vpop.f32.mrb[0].mxu0
      %3521 = vmatprep.mubr.f32.mxu0 0.0
      %3522 = vmatmul.mubr.f32.gmra.mrb[0].mxu0 %v3300
      %v3523 = vpop.f32.mrb[0].mxu0
      %v3524 = vadd.f32 0.0, %v3523
      %v3525 = vpop.f32.mrb[0].mxu0
      %3526 = vdwg.mxu0
      %v3527 = vadd.f32 %v3140, %v3369
      %v3528 = vadd.f32 %v3141, %v3374
      %v3529 = vadd.f32 %v3142, %v3379
      %v3530 = vadd.f32 %v3143, %v3384
      %v3531 = vadd.f32 %v3144, %v3389
      %v3532 = vadd.f32 %v3145, %v3394
      %v3533 = vadd.f32 %v3146, %v3399
      %v3534 = vadd.f32 %v3147, %v3404
      %v3535 = vadd.f32 %v3148, %v3409
      %v3536 = vadd.f32 %v3149, %v3414
      %v3537 = vadd.f32 %v3150, %v3419
      %v3538 = vadd.f32 %v3151, %v3424
      %v3539 = vadd.f32 %v3152, %v3429
      %v3540 = vadd.f32 %v3153, %v3434
      %v3541 = vadd.f32 %v3154, %v3439
      %v3542 = vadd.f32 %v3155, %v3444
      %v3543 = vadd.f32 %v3156, %v3449
      %v3544 = vadd.f32 %v3157, %v3454
      %v3545 = vadd.f32 %v3158, %v3459
      %v3546 = vadd.f32 %v3159, %v3464
      %v3547 = vadd.f32 %v3160, %v3469
      %v3548 = vadd.f32 %v3161, %v3474
      %v3549 = vadd.f32 %v3162, %v3479
      %v3550 = vadd.f32 %v3163, %v3484
      %v3551 = vadd.f32 %v3164, %v3489
      %v3552 = vadd.f32 %v3165, %v3494
      %v3553 = vadd.f32 %v3166, %v3499
      %v3554 = vadd.f32 %v3167, %v3504
      %v3555 = vadd.f32 %v3168, %v3509
      %v3556 = vadd.f32 %v3169, %v3514
      %v3557 = vadd.f32 %v3170, %v3519
      %v3558 = vadd.f32 %v3171, %v3524
      %v3559 = vld [vmem:[%s2784 + $0x2] sm:$0xff]
      %v3560 = vld [vmem:[%s2784 + $0xa] sm:$0xff]
      %v3561 = vld [vmem:[%s2784 + $0x1a] sm:$0xff]
      %v3562 = vld [vmem:[%s2784 + $0x22] sm:$0xff]
      %v3563 = vld [vmem:[%s2784 + $0x32] sm:$0xff]
      %v3564 = vld [vmem:[%s2784 + $0x3a] sm:$0xff]
      %v3565 = vld [vmem:[%s2784 + $0x4a] sm:$0xff]
      %v3566 = vld [vmem:[%s2784 + $0x52] sm:$0xff]
      %v3567 = vld [vmem:[%s2784 + $0x62] sm:$0xff]
      %v3568 = vld [vmem:[%s2784 + $0x6a] sm:$0xff]
      %v3569 = vld [vmem:[%s2784 + $0x7a] sm:$0xff]
      %v3570 = vld [vmem:[%s2784 + $0x82] sm:$0xff]
      %v3571 = vld [vmem:[%s2784 + $0x92] sm:$0xff]
      %v3572 = vld [vmem:[%s2784 + $0x9a] sm:$0xff]
      %v3573 = vld [vmem:[%s2784 + $0xaa] sm:$0xff]
      %v3574 = vld [vmem:[%s2784 + $0xb2] sm:$0xff]
      %v3575 = vld [vmem:[%s2784 + $0xc2] sm:$0xff]
      %v3576 = vld [vmem:[%s2784 + $0xca] sm:$0xff]
      %v3577 = vld [vmem:[%s2784 + $0xda] sm:$0xff]
      %v3578 = vld [vmem:[%s2784 + $0xe2] sm:$0xff]
      %v3579 = vld [vmem:[%s2784 + $0xf2] sm:$0xff]
      %v3580 = vld [vmem:[%s2784 + $0xfa] sm:$0xff]
      %v3581 = vld [vmem:[%s2784 + $0x10a] sm:$0xff]
      %v3582 = vld [vmem:[%s2784 + $0x112] sm:$0xff]
      %v3583 = vld [vmem:[%s2784 + $0x122] sm:$0xff]
      %v3584 = vld [vmem:[%s2784 + $0x12a] sm:$0xff]
      %v3585 = vld [vmem:[%s2784 + $0x13a] sm:$0xff]
      %v3586 = vld [vmem:[%s2784 + $0x142] sm:$0xff]
      %v3587 = vld [vmem:[%s2784 + $0x152] sm:$0xff]
      %v3588 = vld [vmem:[%s2784 + $0x15a] sm:$0xff]
      %v3589 = vld [vmem:[%s2784 + $0x16a] sm:$0xff]
      %v3590 = vld [vmem:[%s2784 + $0x172] sm:$0xff]
      %s3591 = scalar_lea.vmem %s1, 64
      %v3592 = vld [vmem:[%s3591] sm:$0xff]
      %v3594 = vsel %vm438, %v3559, 0
      %v3597 = vsel %vm438, %v3560, 0
      %v3600 = vsel %vm438, %v3561, 0
      %v3603 = vsel %vm438, %v3562, 0
      %v3606 = vsel %vm438, %v3563, 0
      %v3609 = vsel %vm438, %v3564, 0
      %v3612 = vsel %vm438, %v3565, 0
      %v3615 = vsel %vm438, %v3566, 0
      %v3618 = vsel %vm438, %v3567, 0
      %v3621 = vsel %vm438, %v3568, 0
      %v3624 = vsel %vm438, %v3569, 0
      %v3627 = vsel %vm438, %v3570, 0
      %v3630 = vsel %vm438, %v3571, 0
      %v3633 = vsel %vm438, %v3572, 0
      %v3636 = vsel %vm438, %v3573, 0
      %v3639 = vsel %vm438, %v3574, 0
      %v3642 = vsel %vm438, %v3575, 0
      %v3645 = vsel %vm438, %v3576, 0
      %v3648 = vsel %vm438, %v3577, 0
      %v3651 = vsel %vm438, %v3578, 0
      %v3654 = vsel %vm438, %v3579, 0
      %v3657 = vsel %vm438, %v3580, 0
      %v3660 = vsel %vm438, %v3581, 0
      %v3663 = vsel %vm438, %v3582, 0
      %v3666 = vsel %vm438, %v3583, 0
      %v3669 = vsel %vm438, %v3584, 0
      %v3672 = vsel %vm438, %v3585, 0
      %v3675 = vsel %vm438, %v3586, 0
      %v3678 = vsel %vm438, %v3587, 0
      %v3681 = vsel %vm438, %v3588, 0
      %v3684 = vsel %vm438, %v3589, 0
      %v3687 = vsel %vm438, %v3590, 0
      %3689 = vmatprep.subr.mxu0 0.0
      %3690 = vmatpush1.msra.mxu0 %v3592
      %3691 = vmatprep.subr.mxu0 0.0
      %3692 = vmatpush1.msra.mxu0 0.0
      %3693 = vmatprep.subr.mxu0 0.0
      %3694 = vmatpush1.msra.mxu0 0.0
      %3695 = vmatprep.subr.mxu0 0.0
      %3696 = vmatpush1.msra.mxu0 0.0
      %3697 = vmatprep.subr.mxu0 0.0
      %3698 = vmatpush1.msra.mxu0 0.0
      %3699 = vmatprep.subr.mxu0 0.0
      %3700 = vmatpush1.msra.mxu0 0.0
      %3701 = vmatprep.subr.mxu0 0.0
      %3702 = vmatpush1.msra.mxu0 0.0
      %3703 = vmatprep.subr.mxu0 0.0
      %3704 = vmatpush1.msra.mxu0 0.0
      %3705 = vmatprep.subr.mxu0 0.0
      %3706 = vmatpush1.msra.mxu0 0.0
      %3707 = vmatprep.subr.mxu0 0.0
      %3708 = vmatpush1.msra.mxu0 0.0
      %3709 = vmatprep.subr.mxu0 0.0
      %3710 = vmatpush1.msra.mxu0 0.0
      %3711 = vmatprep.subr.mxu0 0.0
      %3712 = vmatpush1.msra.mxu0 0.0
      %3713 = vmatprep.subr.mxu0 0.0
      %3714 = vmatpush1.msra.mxu0 0.0
      %3715 = vmatprep.subr.mxu0 0.0
      %3716 = vmatpush1.msra.mxu0 0.0
      %3717 = vmatprep.subr.mxu0 0.0
      %3718 = vmatpush1.msra.mxu0 0.0
      %3719 = vmatprep.subr.mxu0 0.0
      %3720 = vmatpush1.msra.mxu0 0.0
      %3721 = vmatprep.subr.mxu0 0.0
      %3722 = vmatpush1.msra.mxu0 0.0
      %3723 = vmatprep.subr.mxu0 0.0
      %3724 = vmatpush1.msra.mxu0 0.0
      %3725 = vmatprep.subr.mxu0 0.0
      %3726 = vmatpush1.msra.mxu0 0.0
      %3727 = vmatprep.subr.mxu0 0.0
      %3728 = vmatpush1.msra.mxu0 0.0
      %3729 = vmatprep.subr.mxu0 0.0
      %3730 = vmatpush1.msra.mxu0 0.0
      %3731 = vmatprep.subr.mxu0 0.0
      %3732 = vmatpush1.msra.mxu0 0.0
      %3733 = vmatprep.subr.mxu0 0.0
      %3734 = vmatpush1.msra.mxu0 0.0
      %3735 = vmatprep.subr.mxu0 0.0
      %3736 = vmatpush1.msra.mxu0 0.0
      %3737 = vmatprep.subr.mxu0 0.0
      %3738 = vmatpush1.msra.mxu0 0.0
      %3739 = vmatprep.subr.mxu0 0.0
      %3740 = vmatpush1.msra.mxu0 0.0
      %3741 = vmatprep.subr.mxu0 0.0
      %3742 = vmatpush1.msra.mxu0 0.0
      %3743 = vmatprep.subr.mxu0 0.0
      %3744 = vmatpush1.msra.mxu0 0.0
      %3745 = vmatprep.subr.mxu0 0.0
      %3746 = vmatpush1.msra.mxu0 0.0
      %3747 = vmatprep.subr.mxu0 0.0
      %3748 = vmatpush1.msra.mxu0 0.0
      %3749 = vmatprep.subr.mxu0 0.0
      %3750 = vmatpush1.msra.mxu0 0.0
      %3751 = vmatprep.subr.mxu0 0.0
      %3752 = vmatpush1.msra.mxu0 0.0
      %3753 = vmatprep.mubr.f32.mxu0 0.0
      %3754 = vmatmul.mubr.f32.gmra.mrb[0].mxu0 %v3594
      %v3755 = vpop.f32.mrb[0].mxu0
      %v3756 = vadd.f32 0.0, %v3755
      %v3757 = vpop.f32.mrb[0].mxu0
      %3758 = vmatprep.mubr.f32.mxu0 0.0
      %3759 = vmatmul.mubr.f32.gmra.mrb[0].mxu0 %v3597
      %v3760 = vpop.f32.mrb[0].mxu0
      %v3761 = vadd.f32 0.0, %v3760
      %v3762 = vpop.f32.mrb[0].mxu0
      %3763 = vmatprep.mubr.f32.mxu0 0.0
      %3764 = vmatmul.mubr.f32.gmra.mrb[0].mxu0 %v3600
      %v3765 = vpop.f32.mrb[0].mxu0
      %v3766 = vadd.f32 0.0, %v3765
      %v3767 = vpop.f32.mrb[0].mxu0
      %3768 = vmatprep.mubr.f32.mxu0 0.0
      %3769 = vmatmul.mubr.f32.gmra.mrb[0].mxu0 %v3603
      %v3770 = vpop.f32.mrb[0].mxu0
      %v3771 = vadd.f32 0.0, %v3770
      %v3772 = vpop.f32.mrb[0].mxu0
      %3773 = vmatprep.mubr.f32.mxu0 0.0
      %3774 = vmatmul.mubr.f32.gmra.mrb[0].mxu0 %v3606
      %v3775 = vpop.f32.mrb[0].mxu0
      %v3776 = vadd.f32 0.0, %v3775
      %v3777 = vpop.f32.mrb[0].mxu0
      %3778 = vmatprep.mubr.f32.mxu0 0.0
      %3779 = vmatmul.mubr.f32.gmra.mrb[0].mxu0 %v3609
      %v3780 = vpop.f32.mrb[0].mxu0
      %v3781 = vadd.f32 0.0, %v3780
      %v3782 = vpop.f32.mrb[0].mxu0
      %3783 = vmatprep.mubr.f32.mxu0 0.0
      %3784 = vmatmul.mubr.f32.gmra.mrb[0].mxu0 %v3612
      %v3785 = vpop.f32.mrb[0].mxu0
      %v3786 = vadd.f32 0.0, %v3785
      %v3787 = vpop.f32.mrb[0].mxu0
      %3788 = vmatprep.mubr.f32.mxu0 0.0
      %3789 = vmatmul.mubr.f32.gmra.mrb[0].mxu0 %v3615
      %v3790 = vpop.f32.mrb[0].mxu0
      %v3791 = vadd.f32 0.0, %v3790
      %v3792 = vpop.f32.mrb[0].mxu0
      %3793 = vmatprep.mubr.f32.mxu0 0.0
      %3794 = vmatmul.mubr.f32.gmra.mrb[0].mxu0 %v3618
      %v3795 = vpop.f32.mrb[0].mxu0
      %v3796 = vadd.f32 0.0, %v3795
      %v3797 = vpop.f32.mrb[0].mxu0
      %3798 = vmatprep.mubr.f32.mxu0 0.0
      %3799 = vmatmul.mubr.f32.gmra.mrb[0].mxu0 %v3621
      %v3800 = vpop.f32.mrb[0].mxu0
      %v3801 = vadd.f32 0.0, %v3800
      %v3802 = vpop.f32.mrb[0].mxu0
      %3803 = vmatprep.mubr.f32.mxu0 0.0
      %3804 = vmatmul.mubr.f32.gmra.mrb[0].mxu0 %v3624
      %v3805 = vpop.f32.mrb[0].mxu0
      %v3806 = vadd.f32 0.0, %v3805
      %v3807 = vpop.f32.mrb[0].mxu0
      %3808 = vmatprep.mubr.f32.mxu0 0.0
      %3809 = vmatmul.mubr.f32.gmra.mrb[0].mxu0 %v3627
      %v3810 = vpop.f32.mrb[0].mxu0
      %v3811 = vadd.f32 0.0, %v3810
      %v3812 = vpop.f32.mrb[0].mxu0
      %3813 = vmatprep.mubr.f32.mxu0 0.0
      %3814 = vmatmul.mubr.f32.gmra.mrb[0].mxu0 %v3630
      %v3815 = vpop.f32.mrb[0].mxu0
      %v3816 = vadd.f32 0.0, %v3815
      %v3817 = vpop.f32.mrb[0].mxu0
      %3818 = vmatprep.mubr.f32.mxu0 0.0
      %3819 = vmatmul.mubr.f32.gmra.mrb[0].mxu0 %v3633
      %v3820 = vpop.f32.mrb[0].mxu0
      %v3821 = vadd.f32 0.0, %v3820
      %v3822 = vpop.f32.mrb[0].mxu0
      %3823 = vmatprep.mubr.f32.mxu0 0.0
      %3824 = vmatmul.mubr.f32.gmra.mrb[0].mxu0 %v3636
      %v3825 = vpop.f32.mrb[0].mxu0
      %v3826 = vadd.f32 0.0, %v3825
      %v3827 = vpop.f32.mrb[0].mxu0
      %3828 = vmatprep.mubr.f32.mxu0 0.0
      %3829 = vmatmul.mubr.f32.gmra.mrb[0].mxu0 %v3639
      %v3830 = vpop.f32.mrb[0].mxu0
      %v3831 = vadd.f32 0.0, %v3830
      %v3832 = vpop.f32.mrb[0].mxu0
      %3833 = vmatprep.mubr.f32.mxu0 0.0
      %3834 = vmatmul.mubr.f32.gmra.mrb[0].mxu0 %v3642
      %v3835 = vpop.f32.mrb[0].mxu0
      %v3836 = vadd.f32 0.0, %v3835
      %v3837 = vpop.f32.mrb[0].mxu0
      %3838 = vmatprep.mubr.f32.mxu0 0.0
      %3839 = vmatmul.mubr.f32.gmra.mrb[0].mxu0 %v3645
      %v3840 = vpop.f32.mrb[0].mxu0
      %v3841 = vadd.f32 0.0, %v3840
      %v3842 = vpop.f32.mrb[0].mxu0
      %3843 = vmatprep.mubr.f32.mxu0 0.0
      %3844 = vmatmul.mubr.f32.gmra.mrb[0].mxu0 %v3648
      %v3845 = vpop.f32.mrb[0].mxu0
      %v3846 = vadd.f32 0.0, %v3845
      %v3847 = vpop.f32.mrb[0].mxu0
      %3848 = vmatprep.mubr.f32.mxu0 0.0
      %3849 = vmatmul.mubr.f32.gmra.mrb[0].mxu0 %v3651
      %v3850 = vpop.f32.mrb[0].mxu0
      %v3851 = vadd.f32 0.0, %v3850
      %v3852 = vpop.f32.mrb[0].mxu0
      %3853 = vmatprep.mubr.f32.mxu0 0.0
      %3854 = vmatmul.mubr.f32.gmra.mrb[0].mxu0 %v3654
      %v3855 = vpop.f32.mrb[0].mxu0
      %v3856 = vadd.f32 0.0, %v3855
      %v3857 = vpop.f32.mrb[0].mxu0
      %3858 = vmatprep.mubr.f32.mxu0 0.0
      %3859 = vmatmul.mubr.f32.gmra.mrb[0].mxu0 %v3657
      %v3860 = vpop.f32.mrb[0].mxu0
      %v3861 = vadd.f32 0.0, %v3860
      %v3862 = vpop.f32.mrb[0].mxu0
      %3863 = vmatprep.mubr.f32.mxu0 0.0
      %3864 = vmatmul.mubr.f32.gmra.mrb[0].mxu0 %v3660
      %v3865 = vpop.f32.mrb[0].mxu0
      %v3866 = vadd.f32 0.0, %v3865
      %v3867 = vpop.f32.mrb[0].mxu0
      %3868 = vmatprep.mubr.f32.mxu0 0.0
      %3869 = vmatmul.mubr.f32.gmra.mrb[0].mxu0 %v3663
      %v3870 = vpop.f32.mrb[0].mxu0
      %v3871 = vadd.f32 0.0, %v3870
      %v3872 = vpop.f32.mrb[0].mxu0
      %3873 = vmatprep.mubr.f32.mxu0 0.0
      %3874 = vmatmul.mubr.f32.gmra.mrb[0].mxu0 %v3666
      %v3875 = vpop.f32.mrb[0].mxu0
      %v3876 = vadd.f32 0.0, %v3875
      %v3877 = vpop.f32.mrb[0].mxu0
      %3878 = vmatprep.mubr.f32.mxu0 0.0
      %3879 = vmatmul.mubr.f32.gmra.mrb[0].mxu0 %v3669
      %v3880 = vpop.f32.mrb[0].mxu0
      %v3881 = vadd.f32 0.0, %v3880
      %v3882 = vpop.f32.mrb[0].mxu0
      %3883 = vmatprep.mubr.f32.mxu0 0.0
      %3884 = vmatmul.mubr.f32.gmra.mrb[0].mxu0 %v3672
      %v3885 = vpop.f32.mrb[0].mxu0
      %v3886 = vadd.f32 0.0, %v3885
      %v3887 = vpop.f32.mrb[0].mxu0
      %3888 = vmatprep.mubr.f32.mxu0 0.0
      %3889 = vmatmul.mubr.f32.gmra.mrb[0].mxu0 %v3675
      %v3890 = vpop.f32.mrb[0].mxu0
      %v3891 = vadd.f32 0.0, %v3890
      %v3892 = vpop.f32.mrb[0].mxu0
      %3893 = vmatprep.mubr.f32.mxu0 0.0
      %3894 = vmatmul.mubr.f32.gmra.mrb[0].mxu0 %v3678
      %v3895 = vpop.f32.mrb[0].mxu0
      %v3896 = vadd.f32 0.0, %v3895
      %v3897 = vpop.f32.mrb[0].mxu0
      %3898 = vmatprep.mubr.f32.mxu0 0.0
      %3899 = vmatmul.mubr.f32.gmra.mrb[0].mxu0 %v3681
      %v3900 = vpop.f32.mrb[0].mxu0
      %v3901 = vadd.f32 0.0, %v3900
      %v3902 = vpop.f32.mrb[0].mxu0
      %3903 = vmatprep.mubr.f32.mxu0 0.0
      %3904 = vmatmul.mubr.f32.gmra.mrb[0].mxu0 %v3684
      %v3905 = vpop.f32.mrb[0].mxu0
      %v3906 = vadd.f32 0.0, %v3905
      %v3907 = vpop.f32.mrb[0].mxu0
      %3908 = vmatprep.mubr.f32.mxu0 0.0
      %3909 = vmatmul.mubr.f32.gmra.mrb[0].mxu0 %v3687
      %v3910 = vpop.f32.mrb[0].mxu0
      %v3911 = vadd.f32 0.0, %v3910
      %v3912 = vpop.f32.mrb[0].mxu0
      %3913 = vdwg.mxu0
      %v3914 = vadd.f32 %v3527, %v3756
      %v3915 = vadd.f32 %v3528, %v3761
      %v3916 = vadd.f32 %v3529, %v3766
      %v3917 = vadd.f32 %v3530, %v3771
      %v3918 = vadd.f32 %v3531, %v3776
      %v3919 = vadd.f32 %v3532, %v3781
      %v3920 = vadd.f32 %v3533, %v3786
      %v3921 = vadd.f32 %v3534, %v3791
      %v3922 = vadd.f32 %v3535, %v3796
      %v3923 = vadd.f32 %v3536, %v3801
      %v3924 = vadd.f32 %v3537, %v3806
      %v3925 = vadd.f32 %v3538, %v3811
      %v3926 = vadd.f32 %v3539, %v3816
      %v3927 = vadd.f32 %v3540, %v3821
      %v3928 = vadd.f32 %v3541, %v3826
      %v3929 = vadd.f32 %v3542, %v3831
      %v3930 = vadd.f32 %v3543, %v3836
      %v3931 = vadd.f32 %v3544, %v3841
      %v3932 = vadd.f32 %v3545, %v3846
      %v3933 = vadd.f32 %v3546, %v3851
      %v3934 = vadd.f32 %v3547, %v3856
      %v3935 = vadd.f32 %v3548, %v3861
      %v3936 = vadd.f32 %v3549, %v3866
      %v3937 = vadd.f32 %v3550, %v3871
      %v3938 = vadd.f32 %v3551, %v3876
      %v3939 = vadd.f32 %v3552, %v3881
      %v3940 = vadd.f32 %v3553, %v3886
      %v3941 = vadd.f32 %v3554, %v3891
      %v3942 = vadd.f32 %v3555, %v3896
      %v3943 = vadd.f32 %v3556, %v3901
      %v3944 = vadd.f32 %v3557, %v3906
      %v3945 = vadd.f32 %v3558, %v3911
      %v3946 = vld [vmem:[%s2] sm:$0x1]
      %v3948 = vlaneseq
      %v3949 = vshrl.u32 %v3948, 7
      %v3950 = vsub.s32 0, %v3949
      %v3951 = vrot.slane %v3946, %v3950
      %v3953 = vadd.f32 %v3914, %v3951
      %v3954 = vadd.f32 %v3915, %v3951
      %v3955 = vadd.f32 %v3916, %v3951
      %v3956 = vadd.f32 %v3917, %v3951
      %v3957 = vadd.f32 %v3918, %v3951
      %v3958 = vadd.f32 %v3919, %v3951
      %v3959 = vadd.f32 %v3920, %v3951
      %v3960 = vadd.f32 %v3921, %v3951
      %v3961 = vadd.f32 %v3922, %v3951
      %v3962 = vadd.f32 %v3923, %v3951
      %v3963 = vadd.f32 %v3924, %v3951
      %v3964 = vadd.f32 %v3925, %v3951
      %v3965 = vadd.f32 %v3926, %v3951
      %v3966 = vadd.f32 %v3927, %v3951
      %v3967 = vadd.f32 %v3928, %v3951
      %v3968 = vadd.f32 %v3929, %v3951
      %v3969 = vadd.f32 %v3930, %v3951
      %v3970 = vadd.f32 %v3931, %v3951
      %v3971 = vadd.f32 %v3932, %v3951
      %v3972 = vadd.f32 %v3933, %v3951
      %v3973 = vadd.f32 %v3934, %v3951
      %v3974 = vadd.f32 %v3935, %v3951
      %v3975 = vadd.f32 %v3936, %v3951
      %v3976 = vadd.f32 %v3937, %v3951
      %v3977 = vadd.f32 %v3938, %v3951
      %v3978 = vadd.f32 %v3939, %v3951
      %v3979 = vadd.f32 %v3940, %v3951
      %v3980 = vadd.f32 %v3941, %v3951
      %v3981 = vadd.f32 %v3942, %v3951
      %v3982 = vadd.f32 %v3943, %v3951
      %v3983 = vadd.f32 %v3944, %v3951
      %v3984 = vadd.f32 %v3945, %v3951
      %3985 = vst.msk [vmem:[%s289] sm:$0xff] %vm438, %v3953
      %3986 = vst.msk [vmem:[%s289 + $0x8] sm:$0xff] %vm438, %v3954
      %3987 = vst.msk [vmem:[%s289 + $0x10] sm:$0xff] %vm438, %v3955
      %3988 = vst.msk [vmem:[%s289 + $0x18] sm:$0xff] %vm438, %v3956
      %3989 = vst.msk [vmem:[%s289 + $0x20] sm:$0xff] %vm438, %v3957
      %3990 = vst.msk [vmem:[%s289 + $0x28] sm:$0xff] %vm438, %v3958
      %3991 = vst.msk [vmem:[%s289 + $0x30] sm:$0xff] %vm438, %v3959
      %3992 = vst.msk [vmem:[%s289 + $0x38] sm:$0xff] %vm438, %v3960
      %3993 = vst.msk [vmem:[%s289 + $0x40] sm:$0xff] %vm438, %v3961
      %3994 = vst.msk [vmem:[%s289 + $0x48] sm:$0xff] %vm438, %v3962
      %3995 = vst.msk [vmem:[%s289 + $0x50] sm:$0xff] %vm438, %v3963
      %3996 = vst.msk [vmem:[%s289 + $0x58] sm:$0xff] %vm438, %v3964
      %3997 = vst.msk [vmem:[%s289 + $0x60] sm:$0xff] %vm438, %v3965
      %3998 = vst.msk [vmem:[%s289 + $0x68] sm:$0xff] %vm438, %v3966
      %3999 = vst.msk [vmem:[%s289 + $0x70] sm:$0xff] %vm438, %v3967
      %4000 = vst.msk [vmem:[%s289 + $0x78] sm:$0xff] %vm438, %v3968
      %4001 = vst.msk [vmem:[%s289 + $0x80] sm:$0xff] %vm438, %v3969
      %4002 = vst.msk [vmem:[%s289 + $0x88] sm:$0xff] %vm438, %v3970
      %4003 = vst.msk [vmem:[%s289 + $0x90] sm:$0xff] %vm438, %v3971
      %4004 = vst.msk [vmem:[%s289 + $0x98] sm:$0xff] %vm438, %v3972
      %4005 = vst.msk [vmem:[%s289 + $0xa0] sm:$0xff] %vm438, %v3973
      %4006 = vst.msk [vmem:[%s289 + $0xa8] sm:$0xff] %vm438, %v3974
      %4007 = vst.msk [vmem:[%s289 + $0xb0] sm:$0xff] %vm438, %v3975
      %4008 = vst.msk [vmem:[%s289 + $0xb8] sm:$0xff] %vm438, %v3976
      %4009 = vst.msk [vmem:[%s289 + $0xc0] sm:$0xff] %vm438, %v3977
      %4010 = vst.msk [vmem:[%s289 + $0xc8] sm:$0xff] %vm438, %v3978
      %4011 = vst.msk [vmem:[%s289 + $0xd0] sm:$0xff] %vm438, %v3979
      %4012 = vst.msk [vmem:[%s289 + $0xd8] sm:$0xff] %vm438, %v3980
      %4013 = vst.msk [vmem:[%s289 + $0xe0] sm:$0xff] %vm438, %v3981
      %4014 = vst.msk [vmem:[%s289 + $0xe8] sm:$0xff] %vm438, %v3982
      %4015 = vst.msk [vmem:[%s289 + $0xf0] sm:$0xff] %vm438, %v3983
      %4016 = vst.msk [vmem:[%s289 + $0xf8] sm:$0xff] %vm438, %v3984
      %v4017 = vsel %vm438, %v3953, 0.0
      %v4018 = vsel %vm438, %v3954, 0.0
      %v4019 = vadd.f32 %v4017, %v4018
      %v4020 = vsel %vm438, %v3955, 0.0
      %v4021 = vadd.f32 %v4019, %v4020
      %v4022 = vsel %vm438, %v3956, 0.0
      %v4023 = vadd.f32 %v4021, %v4022
      %v4024 = vsel %vm438, %v3957, 0.0
      %v4025 = vadd.f32 %v4023, %v4024
      %v4026 = vsel %vm438, %v3958, 0.0
      %v4027 = vadd.f32 %v4025, %v4026
      %v4028 = vsel %vm438, %v3959, 0.0
      %v4029 = vadd.f32 %v4027, %v4028
      %v4030 = vsel %vm438, %v3960, 0.0
      %v4031 = vadd.f32 %v4029, %v4030
      %v4032 = vsel %vm438, %v3961, 0.0
      %v4033 = vadd.f32 %v4031, %v4032
      %v4034 = vsel %vm438, %v3962, 0.0
      %v4035 = vadd.f32 %v4033, %v4034
      %v4036 = vsel %vm438, %v3963, 0.0
      %v4037 = vadd.f32 %v4035, %v4036
      %v4038 = vsel %vm438, %v3964, 0.0
      %v4039 = vadd.f32 %v4037, %v4038
      %v4040 = vsel %vm438, %v3965, 0.0
      %v4041 = vadd.f32 %v4039, %v4040
      %v4042 = vsel %vm438, %v3966, 0.0
      %v4043 = vadd.f32 %v4041, %v4042
      %v4044 = vsel %vm438, %v3967, 0.0
      %v4045 = vadd.f32 %v4043, %v4044
      %v4046 = vsel %vm438, %v3968, 0.0
      %v4047 = vadd.f32 %v4045, %v4046
      %v4048 = vsel %vm438, %v3969, 0.0
      %v4049 = vadd.f32 %v4047, %v4048
      %v4050 = vsel %vm438, %v3970, 0.0
      %v4051 = vadd.f32 %v4049, %v4050
      %v4052 = vsel %vm438, %v3971, 0.0
      %v4053 = vadd.f32 %v4051, %v4052
      %v4054 = vsel %vm438, %v3972, 0.0
      %v4055 = vadd.f32 %v4053, %v4054
      %v4056 = vsel %vm438, %v3973, 0.0
      %v4057 = vadd.f32 %v4055, %v4056
      %v4058 = vsel %vm438, %v3974, 0.0
      %v4059 = vadd.f32 %v4057, %v4058
      %v4060 = vsel %vm438, %v3975, 0.0
      %v4061 = vadd.f32 %v4059, %v4060
      %v4062 = vsel %vm438, %v3976, 0.0
      %v4063 = vadd.f32 %v4061, %v4062
      %v4064 = vsel %vm438, %v3977, 0.0
      %v4065 = vadd.f32 %v4063, %v4064
      %v4066 = vsel %vm438, %v3978, 0.0
      %v4067 = vadd.f32 %v4065, %v4066
      %v4068 = vsel %vm438, %v3979, 0.0
      %v4069 = vadd.f32 %v4067, %v4068
      %v4070 = vsel %vm438, %v3980, 0.0
      %v4071 = vadd.f32 %v4069, %v4070
      %v4072 = vsel %vm438, %v3981, 0.0
      %v4073 = vadd.f32 %v4071, %v4072
      %v4074 = vsel %vm438, %v3982, 0.0
      %v4075 = vadd.f32 %v4073, %v4074
      %v4076 = vsel %vm438, %v3983, 0.0
      %v4077 = vadd.f32 %v4075, %v4076
      %v4078 = vsel %vm438, %v3984, 0.0
      %v4079 = vadd.f32 %v4077, %v4078
      %v4080 = vrot.slane %v4079, 4
      %v4081 = vadd.f32 %v4079, %v4080
      %v4082 = vrot.slane %v4081, 2
      %v4083 = vadd.f32 %v4081, %v4082
      %v4084 = vrot.slane %v4083, 1
      %v4085 = vadd.f32 %v4083, %v4084
      %vm4086 = vcmask 57344
      %4087 = vst.msk [vmem:[%s292] sm:$0x1] %vm4086, %v4085
      %v4088 = vmul.f32 %v3953, %v3953
      %v4089 = vmul.f32 %v3954, %v3954
      %v4090 = vmul.f32 %v3955, %v3955
      %v4091 = vmul.f32 %v3956, %v3956
      %v4092 = vmul.f32 %v3957, %v3957
      %v4093 = vmul.f32 %v3958, %v3958
      %v4094 = vmul.f32 %v3959, %v3959
      %v4095 = vmul.f32 %v3960, %v3960
      %v4096 = vmul.f32 %v3961, %v3961
      %v4097 = vmul.f32 %v3962, %v3962
      %v4098 = vmul.f32 %v3963, %v3963
      %v4099 = vmul.f32 %v3964, %v3964
      %v4100 = vmul.f32 %v3965, %v3965
      %v4101 = vmul.f32 %v3966, %v3966
      %v4102 = vmul.f32 %v3967, %v3967
      %v4103 = vmul.f32 %v3968, %v3968
      %v4104 = vmul.f32 %v3969, %v3969
      %v4105 = vmul.f32 %v3970, %v3970
      %v4106 = vmul.f32 %v3971, %v3971
      %v4107 = vmul.f32 %v3972, %v3972
      %v4108 = vmul.f32 %v3973, %v3973
      %v4109 = vmul.f32 %v3974, %v3974
      %v4110 = vmul.f32 %v3975, %v3975
      %v4111 = vmul.f32 %v3976, %v3976
      %v4112 = vmul.f32 %v3977, %v3977
      %v4113 = vmul.f32 %v3978, %v3978
      %v4114 = vmul.f32 %v3979, %v3979
      %v4115 = vmul.f32 %v3980, %v3980
      %v4116 = vmul.f32 %v3981, %v3981
      %v4117 = vmul.f32 %v3982, %v3982
      %v4118 = vmul.f32 %v3983, %v3983
      %v4119 = vmul.f32 %v3984, %v3984
      %v4120 = vsel %vm438, %v4088, 0.0
      %v4121 = vsel %vm438, %v4089, 0.0
      %v4122 = vadd.f32 %v4120, %v4121
      %v4123 = vsel %vm438, %v4090, 0.0
      %v4124 = vadd.f32 %v4122, %v4123
      %v4125 = vsel %vm438, %v4091, 0.0
      %v4126 = vadd.f32 %v4124, %v4125
      %v4127 = vsel %vm438, %v4092, 0.0
      %v4128 = vadd.f32 %v4126, %v4127
      %v4129 = vsel %vm438, %v4093, 0.0
      %v4130 = vadd.f32 %v4128, %v4129
      %v4131 = vsel %vm438, %v4094, 0.0
      %v4132 = vadd.f32 %v4130, %v4131
      %v4133 = vsel %vm438, %v4095, 0.0
      %v4134 = vadd.f32 %v4132, %v4133
      %v4135 = vsel %vm438, %v4096, 0.0
      %v4136 = vadd.f32 %v4134, %v4135
      %v4137 = vsel %vm438, %v4097, 0.0
      %v4138 = vadd.f32 %v4136, %v4137
      %v4139 = vsel %vm438, %v4098, 0.0
      %v4140 = vadd.f32 %v4138, %v4139
      %v4141 = vsel %vm438, %v4099, 0.0
      %v4142 = vadd.f32 %v4140, %v4141
      %v4143 = vsel %vm438, %v4100, 0.0
      %v4144 = vadd.f32 %v4142, %v4143
      %v4145 = vsel %vm438, %v4101, 0.0
      %v4146 = vadd.f32 %v4144, %v4145
      %v4147 = vsel %vm438, %v4102, 0.0
      %v4148 = vadd.f32 %v4146, %v4147
      %v4149 = vsel %vm438, %v4103, 0.0
      %v4150 = vadd.f32 %v4148, %v4149
      %v4151 = vsel %vm438, %v4104, 0.0
      %v4152 = vadd.f32 %v4150, %v4151
      %v4153 = vsel %vm438, %v4105, 0.0
      %v4154 = vadd.f32 %v4152, %v4153
      %v4155 = vsel %vm438, %v4106, 0.0
      %v4156 = vadd.f32 %v4154, %v4155
      %v4157 = vsel %vm438, %v4107, 0.0
      %v4158 = vadd.f32 %v4156, %v4157
      %v4159 = vsel %vm438, %v4108, 0.0
      %v4160 = vadd.f32 %v4158, %v4159
      %v4161 = vsel %vm438, %v4109, 0.0
      %v4162 = vadd.f32 %v4160, %v4161
      %v4163 = vsel %vm438, %v4110, 0.0
      %v4164 = vadd.f32 %v4162, %v4163
      %v4165 = vsel %vm438, %v4111, 0.0
      %v4166 = vadd.f32 %v4164, %v4165
      %v4167 = vsel %vm438, %v4112, 0.0
      %v4168 = vadd.f32 %v4166, %v4167
      %v4169 = vsel %vm438, %v4113, 0.0
      %v4170 = vadd.f32 %v4168, %v4169
      %v4171 = vsel %vm438, %v4114, 0.0
      %v4172 = vadd.f32 %v4170, %v4171
      %v4173 = vsel %vm438, %v4115, 0.0
      %v4174 = vadd.f32 %v4172, %v4173
      %v4175 = vsel %vm438, %v4116, 0.0
      %v4176 = vadd.f32 %v4174, %v4175
      %v4177 = vsel %vm438, %v4117, 0.0
      %v4178 = vadd.f32 %v4176, %v4177
      %v4179 = vsel %vm438, %v4118, 0.0
      %v4180 = vadd.f32 %v4178, %v4179
      %v4181 = vsel %vm438, %v4119, 0.0
      %v4182 = vadd.f32 %v4180, %v4181
      %v4183 = vrot.slane %v4182, 4
      %v4184 = vadd.f32 %v4182, %v4183
      %v4185 = vrot.slane %v4184, 2
      %v4186 = vadd.f32 %v4184, %v4185
      %v4187 = vrot.slane %v4186, 1
      %v4188 = vadd.f32 %v4186, %v4187
      %4189 = vst.msk [vmem:[%s295] sm:$0x1] %vm4086, %v4188
      %p4190 = scmp.lt.s32.totalorder %s19, 1
      %s4191 = scalar_select %p4190, %s19, 1
      %s4192 = smul.addr %s4191, 32
      %s4193 = smul.addr %s4192, 8
      %s4194 = scalar_lea.vmem %s5, %s4193
      %p4195 = scmp.lt.s32.totalorder %s19, 1
      %s4196 = scalar_select %p4195, %s19, 1
      %s4197 = scalar_lea.vmem %s6, %s4196
      %p4198 = scmp.lt.s32.totalorder %s19, 1
      %s4199 = scalar_select %p4198, %s19, 1
      %s4200 = scalar_lea.vmem %s7, %s4199
      // Predicated region
      $region41: #{unet_block.4} parent=39 // pred_check
        %p4201 = pneg %p147
      $region42: #{unet_block.4} parent=39 // pred_check_branch
        %4203 = sbr.rel (%p4201) target = $region44
      $region43: #{unet_block.4} parent=39 // pred_region
        _
      $region44: #{unet_block.4} parent=39 // pred_fallthru
        _
      // Predicated region
      $region45: #{unet_block.4} parent=39 // pred_check
        %p4204 = pneg %p173
      $region46: #{unet_block.4} parent=39 // pred_check_branch
        %4206 = sbr.rel (%p4204) target = $region48
      $region47: #{unet_block.4} parent=39 // pred_region
        _
      $region48: #{unet_block.4} parent=39 // pred_fallthru
        _
      // Predicated region
      $region49: #{unet_block.4} parent=39 // pred_check
        %p4207 = pneg %p199
      $region50: #{unet_block.4} parent=39 // pred_check_branch
        %4209 = sbr.rel (%p4207) target = $region52
      $region51: #{unet_block.4} parent=39 // pred_region
        _
      $region52: #{unet_block.4} parent=39 // pred_fallthru
        _
    $region40: #{unet_block.4} parent=5 // pred_fallthru
      _
    %p4210 = scmp.le.s32.totalorder 2, %s14
    // Predicated region
    $region53: #{unet_block.4} parent=5 // pred_check
      %p4211 = pneg %p4210
    $region54: #{unet_block.4} parent=5 // pred_check_branch
      %4213 = sbr.rel (%p4211) target = $region56
    $region55: #{unet_block.4} parent=5 // pred_region
      %s4214 = ssub.s32 %s14, 2
      // Predicated region
      $region57: #{unet_block.4} parent=55 // pred_check
        %p4215 = pneg %p153
      $region58: #{unet_block.4} parent=55 // pred_check_branch
        %4217 = sbr.rel (%p4215) target = $region60
      $region59: #{unet_block.4} parent=55 // pred_region
        %p4218 = scmp.lt.s32.totalorder %s20, 1
        %s4219 = scalar_select %p4218, %s20, 1
        %s4220 = smul.addr %s4219, 32
        %s4221 = smul.addr %s4220, 8
        %s4222 = scalar_lea.vmem %s5, %s4221
      $region60: #{unet_block.4} parent=55 // pred_fallthru
        _
      // Predicated region
      $region61: #{unet_block.4} parent=55 // pred_check
        %p4223 = pneg %p179
      $region62: #{unet_block.4} parent=55 // pred_check_branch
        %4225 = sbr.rel (%p4223) target = $region64
      $region63: #{unet_block.4} parent=55 // pred_region
        %p4226 = scmp.lt.s32.totalorder %s20, 1
        %s4227 = scalar_select %p4226, %s20, 1
        %s4228 = scalar_lea.vmem %s6, %s4227
      $region64: #{unet_block.4} parent=55 // pred_fallthru
        _
      // Predicated region
      $region65: #{unet_block.4} parent=55 // pred_check
        %p4229 = pneg %p205
      $region66: #{unet_block.4} parent=55 // pred_check_branch
        %4231 = sbr.rel (%p4229) target = $region68
      $region67: #{unet_block.4} parent=55 // pred_region
        %p4232 = scmp.lt.s32.totalorder %s20, 1
        %s4233 = scalar_select %p4232, %s20, 1
        %s4234 = scalar_lea.vmem %s7, %s4233
      $region68: #{unet_block.4} parent=55 // pred_fallthru
        _
    $region56: #{unet_block.4} parent=5 // pred_fallthru
      _
  $region6: #{unet_block.4} parent=0 // loop_footer
    %s18 = sadd.s32 1, %s14
  $region7: #{unet_block.4} parent=0 // loop_footer_branch
    %13 = sbr.rel target = $region3
  $region8: #{unet_block.4} parent=0 // loop_exit
    _

</llo_original>
